<compile_context>
chip_gen: v7x
topology: tpu7x:2x2x1
jax: 0.10.0
libtpu: 0.0.40
codegen_flags: <defaults>
</compile_context>

<pallas_src>
import functools

import jax
import jax.numpy as jnp
import numpy as np
from jax import lax
from jax.experimental import pallas as pl
from jax.experimental.pallas import tpu as pltpu

EPS = 1e-5
# Scoped-VMEM cap for every pallas_call.  v5e/v6e have 128 MiB physical VMEM,
# v7x only 64 MiB -- re-derive tile sizes / this cap when H-band tiling lands.
VMEM_LIMIT_BYTES = 64 * 1024 * 1024


# --------------------------- small helpers ----------------------------------

def _round_up(x, m):
    return ((x + m - 1) // m) * m


def _cpad(c):
    return max(128, _round_up(c, 128))


def _pick_tile(m, cap):
    # Largest divisor of m that is <= cap, preferring sublane-aligned (x8)
    # tiles.  Never falls back to m itself when m > cap (VMEM footgun).
    divs = [t for t in range(1, min(m, cap) + 1) if m % t == 0]
    aligned = [t for t in divs if t % 8 == 0]
    return (aligned or divs)[-1]


def _cparams(sem):
    return pltpu.CompilerParams(dimension_semantics=sem,
                                vmem_limit_bytes=VMEM_LIMIT_BYTES)


def _fold_bn(p):
    # Fold BN into conv weight / bias. Returns HWIO weight (kh,kw,cin,cout) f32.
    scale = p["gamma"] / jnp.sqrt(p["rvar"] + EPS)
    w = jnp.transpose(p["w"], (2, 3, 1, 0)) * scale
    b = p["beta"] - p["rmean"] * scale
    return w, b


def _pack_conv(p, cin_p, cout_p, dtype=jnp.bfloat16):
    # -> ((kh*kw*cin_p, cout_p) bf16 weight slab, (1, cout_p) f32 bias), zero padded.
    w, b = _fold_bn(p)
    kh, kw, cin, cout = w.shape
    wp = jnp.zeros((kh, kw, cin_p, cout_p), jnp.float32).at[:, :, :cin, :cout].set(w)
    bp = jnp.zeros((1, cout_p), jnp.float32).at[0, :cout].set(b)
    return wp.reshape(kh * kw * cin_p, cout_p).astype(dtype), bp


def _pack_attn(pa, cmid2, c2p):
    # ESE fc weight remapped to the padded [y1_pad || y2_pad] channel layout.
    C = 2 * cmid2
    wm = pa["w"].reshape(C, C).T          # (Cin, Cout)
    b = pa["b"]
    Wg = jnp.zeros((2 * c2p, 2 * c2p), jnp.float32)
    Wg = Wg.at[:cmid2, :cmid2].set(wm[:cmid2, :cmid2])
    Wg = Wg.at[:cmid2, c2p:c2p + cmid2].set(wm[:cmid2, cmid2:])
    Wg = Wg.at[c2p:c2p + cmid2, :cmid2].set(wm[cmid2:, :cmid2])
    Wg = Wg.at[c2p:c2p + cmid2, c2p:c2p + cmid2].set(wm[cmid2:, cmid2:])
    bg = jnp.zeros((1, 2 * c2p), jnp.float32)
    bg = bg.at[0, :cmid2].set(b[:cmid2]).at[0, c2p:c2p + cmid2].set(b[cmid2:])
    return Wg, bg


def _pack_conv3(p, cmid2, c2p, cout, cout_p):
    # conv3 weight remapped to the padded [y1_pad || y2_pad] input-channel layout.
    w, b = _fold_bn(p)                    # (1, 1, 2*cmid2, cout)
    w = w.reshape(2 * cmid2, cout)
    W3 = jnp.zeros((2 * c2p, cout_p), jnp.float32)
    W3 = W3.at[:cmid2, :cout].set(w[:cmid2])
    W3 = W3.at[c2p:c2p + cmid2, :cout].set(w[cmid2:])
    b3 = jnp.zeros((1, cout_p), jnp.float32).at[0, :cout].set(b)
    return W3.astype(jnp.bfloat16), b3


# --------------------------- in-kernel im2col --------------------------------

def _im2col_3x3_s1(x, col_ref):
    """im2col of a 3x3 / stride-1 / pad-1 conv from an in-register (H, W, C)
    value into a (H, W, 9*C) VMEM scratch.  Only the 1-pixel boundary strips
    are zeroed (no full-buffer zero, no padded-halo copy); every element of
    col_ref is (re)written before it is read."""
    H, W, C = x.shape
    for di in range(3):
        for dj in range(3):
            oi, oj = di - 1, dj - 1
            ks = (di * 3 + dj) * C
            r0, r1 = max(0, -oi), min(H, H - oi)
            c0, c1 = max(0, -oj), min(W, W - oj)
            if r0 > 0:
                col_ref[0:r0, :, ks:ks + C] = jnp.zeros((r0, W, C), x.dtype)
            if r1 < H:
                col_ref[r1:H, :, ks:ks + C] = jnp.zeros((H - r1, W, C), x.dtype)
            if c0 > 0:
                col_ref[:, 0:c0, ks:ks + C] = jnp.zeros((H, c0, C), x.dtype)
            if c1 < W:
                col_ref[:, c1:W, ks:ks + C] = jnp.zeros((H, W - c1, C), x.dtype)
            col_ref[r0:r1, c0:c1, ks:ks + C] = x[r0 + oi:r1 + oi, c0 + oj:c1 + oj, :]


# --------------------------- Pallas kernels ---------------------------------

def _conv_down_kernel(p00_ref, p01_ref, p10_ref, p11_ref, w_ref, b_ref, o_ref,
                      col_ref):
    # 3x3 stride-2 conv (pad=1): the input arrives pre-split into its 4 stride
    # phases so every tap is a contiguous window of one phase (no in-kernel
    # strided slicing).  im2col -> one K=9*C MXU matmul; BN(+bias)+ReLU fused.
    phases = (p00_ref[0], p01_ref[0], p10_ref[0], p11_ref[0])
    Ho, Wo, C = phases[0].shape
    for di in range(3):
        for dj in range(3):
            a, b = (di + 1) % 2, (dj + 1) % 2       # phase parity of this tap
            si = -1 if di == 0 else 0               # phase-row / col shift
            sj = -1 if dj == 0 else 0
            ks = (di * 3 + dj) * C
            ph = phases[a * 2 + b]
            r0 = 1 if di == 0 else 0
            c0 = 1 if dj == 0 else 0
            if r0:
                col_ref[0:1, :, ks:ks + C] = jnp.zeros((1, Wo, C), ph.dtype)
            if c0:
                col_ref[:, 0:1, ks:ks + C] = jnp.zeros((Ho, 1, C), ph.dtype)
            col_ref[r0:Ho, c0:Wo, ks:ks + C] = ph[r0 + si:Ho + si, c0 + sj:Wo + sj, :]
    acc = jnp.dot(col_ref[...].reshape(Ho * Wo, 9 * C), w_ref[...],
                  preferred_element_type=jnp.float32)
    acc = jnp.maximum(acc + b_ref[...], 0.0)
    o_ref[0] = acc.reshape(Ho, Wo, -1).astype(o_ref.dtype)


def _res_block_body(x_ref, w1_ref, b1_ref, w2_ref, b2_ref, col_ref):
    # Two fused ConvBN(3x3, s1, p1)+ReLU layers + shortcut add; the intermediate
    # activation `h` never leaves VMEM (removes one full HBM round trip/block).
    x = x_ref[0]                                           # (H, W, C) bf16
    H, W, C = x.shape
    _im2col_3x3_s1(x, col_ref)
    h = jnp.dot(col_ref[...].reshape(H * W, 9 * C), w1_ref[...],
                preferred_element_type=jnp.float32)
    h = jnp.maximum(h + b1_ref[...], 0.0)
    _im2col_3x3_s1(h.reshape(H, W, C).astype(x.dtype), col_ref)
    y = jnp.dot(col_ref[...].reshape(H * W, 9 * C), w2_ref[...],
                preferred_element_type=jnp.float32)
    y = jnp.maximum(y + b2_ref[...], 0.0)
    return y + x.reshape(H * W, C).astype(jnp.float32)     # shortcut add


def _res_block_kernel(x_ref, w1_ref, b1_ref, w2_ref, b2_ref, o_ref, col_ref):
    y = _res_block_body(x_ref, w1_ref, b1_ref, w2_ref, b2_ref, col_ref)
    _, H, W, C = o_ref.shape
    o_ref[0] = y.reshape(H, W, C).astype(o_ref.dtype)


def _res_block_sum_kernel(x_ref, w1_ref, b1_ref, w2_ref, b2_ref, o_ref, sum_ref,
                          col_ref):
    y = _res_block_body(x_ref, w1_ref, b1_ref, w2_ref, b2_ref, col_ref)
    _, H, W, C = o_ref.shape
    o_ref[0] = y.reshape(H, W, C).astype(o_ref.dtype)
    # Per-image channel sums for the Effective-SE mean, fused here so the SE
    # gate never re-reads y2 from HBM.
    sum_ref[0] = jnp.sum(y, axis=0, keepdims=True)


def _conv12_kernel(x_ref, w_ref, b_ref, o_ref, sum_ref):
    # conv1 || conv2 (both 1x1 ConvBN+ReLU on the same x) as one row-tiled
    # matmul with concatenated weights; also emits per-image channel sums for
    # the Effective-SE mean, accumulated over the sequential HW-tile axis.
    acc = jnp.dot(x_ref[0], w_ref[...], preferred_element_type=jnp.float32)
    acc = jnp.maximum(acc + b_ref[...], 0.0)
    o_ref[0] = acc.astype(o_ref.dtype)

    @pl.when(pl.program_id(1) == 0)
    def _():
        sum_ref[...] = jnp.zeros_like(sum_ref)

    # NOTE: relies on the HW-tile axis being the innermost, sequentially
    # iterated ("arbitrary") grid axis -- do not mark it "parallel".
    sum_ref[0] = sum_ref[0] + jnp.sum(acc, axis=0, keepdims=True)


def _conv3_kernel(x1_ref, x2_ref, g_ref, w_ref, b_ref, o_ref):
    # conv3 (1x1 ConvBN+ReLU) on [y1 || y2] with the per-image SE gate folded
    # into the weights (diag(g) @ W), so no per-row activation gating/casts.
    # Padded channels have gate = hardsigmoid(0) = 0.5 but their weight rows
    # are exactly zero, so they contribute nothing.
    c2p = x1_ref.shape[-1]
    wz = (w_ref[...] * g_ref[0]).astype(jnp.bfloat16)      # (2*c2p, cout_p)
    acc = jnp.dot(x1_ref[0], wz[:c2p, :], preferred_element_type=jnp.float32)
    acc = acc + jnp.dot(x2_ref[0], wz[c2p:, :], preferred_element_type=jnp.float32)
    acc = jnp.maximum(acc + b_ref[...], 0.0)
    o_ref[0] = acc.astype(o_ref.dtype)


# --------------------------- Pallas wrappers ---------------------------------

def conv_down(x, w_slab, b_row, *, out_dtype=jnp.bfloat16):
    N, H, W, cin_p = x.shape
    assert H % 2 == 0 and W % 2 == 0, "stride-2 conv_down expects even H, W"
    Ho, Wo = H // 2, W // 2
    cout_p = w_slab.shape[1]
    # 4 stride phases via plain XLA slices (no pad; one copy of x instead of ~2).
    phases = [x[:, a::2, b::2, :] for a in range(2) for b in range(2)]
    phase_spec = pl.BlockSpec((1, Ho, Wo, cin_p), lambda n: (n, 0, 0, 0))
    return pl.pallas_call(
        _conv_down_kernel,
        out_shape=jax.ShapeDtypeStruct((N, Ho, Wo, cout_p), out_dtype),
        grid=(N,),
        in_specs=[phase_spec] * 4 + [
            pl.BlockSpec(w_slab.shape, lambda n: (0, 0)),
            pl.BlockSpec((1, cout_p), lambda n: (0, 0)),
        ],
        out_specs=pl.BlockSpec((1, Ho, Wo, cout_p), lambda n: (n, 0, 0, 0)),
        scratch_shapes=[pltpu.VMEM((Ho, Wo, 9 * cin_p), x.dtype)],
        compiler_params=_cparams(("parallel",)),
    )(*phases, w_slab, b_row)


def res_block(x_src, ch_block, w1, b1, w2, b2, *, c2p, emit_sums, alias_input,
              out_dtype=jnp.bfloat16):
    N, H, W, _ = x_src.shape
    in_specs = [
        pl.BlockSpec((1, H, W, c2p), lambda n: (n, 0, 0, ch_block)),
        pl.BlockSpec(w1.shape, lambda n: (0, 0)),
        pl.BlockSpec((1, c2p), lambda n: (0, 0)),
        pl.BlockSpec(w2.shape, lambda n: (0, 0)),
        pl.BlockSpec((1, c2p), lambda n: (0, 0)),
    ]
    scratch = [pltpu.VMEM((H, W, 9 * c2p), jnp.bfloat16)]
    if emit_sums:
        kernel = _res_block_sum_kernel
        out_shape = (jax.ShapeDtypeStruct((N, H, W, c2p), out_dtype),
                     jax.ShapeDtypeStruct((N, 1, c2p), jnp.float32))
        out_specs = (pl.BlockSpec((1, H, W, c2p), lambda n: (n, 0, 0, 0)),
                     pl.BlockSpec((1, 1, c2p), lambda n: (n, 0, 0)))
    else:
        kernel = _res_block_kernel
        out_shape = jax.ShapeDtypeStruct((N, H, W, c2p), out_dtype)
        out_specs = pl.BlockSpec((1, H, W, c2p), lambda n: (n, 0, 0, 0))
    io_alias = {}
    if alias_input and x_src.dtype == out_dtype and x_src.shape[-1] == c2p:
        io_alias = {0: 0}                 # update y2 in place
    return pl.pallas_call(
        kernel,
        out_shape=out_shape,
        grid=(N,),
        in_specs=in_specs,
        out_specs=out_specs,
        scratch_shapes=scratch,
        input_output_aliases=io_alias,
        compiler_params=_cparams(("parallel",)),
    )(x_src, w1, b1, w2, b2)


def conv12(x, w, b, *, out_dtype=jnp.bfloat16):
    N, H, W, cin_p = x.shape
    HW = H * W
    cout_tot = w.shape[1]
    x3 = x.reshape(N, HW, cin_p)
    thw = _pick_tile(HW, 1024)
    y, sums = pl.pallas_call(
        _conv12_kernel,
        out_shape=(jax.ShapeDtypeStruct((N, HW, cout_tot), out_dtype),
                   jax.ShapeDtypeStruct((N, 1, cout_tot), jnp.float32)),
        grid=(N, HW // thw),
        in_specs=[
            pl.BlockSpec((1, thw, cin_p), lambda n, t: (n, t, 0)),
            pl.BlockSpec(w.shape, lambda n, t: (0, 0)),
            pl.BlockSpec((1, cout_tot), lambda n, t: (0, 0)),
        ],
        out_specs=(pl.BlockSpec((1, thw, cout_tot), lambda n, t: (n, t, 0)),
                   pl.BlockSpec((1, 1, cout_tot), lambda n, t: (n, 0, 0))),
        # HW-tile axis stays "arbitrary": the channel-sum output block is
        # revisited (accumulated) across it.
        compiler_params=_cparams(("parallel", "arbitrary")),
    )(x3, w, b)
    return y.reshape(N, H, W, cout_tot), sums


def conv3_gated(y1_src, y1_blk, y2_src, y2_blk, gate_col, w, b, *, c2p,
                out_dtype=jnp.bfloat16):
    N, H, W, _ = y2_src.shape
    HW = H * W
    cout_p = w.shape[1]
    y1_3 = y1_src.reshape(N, HW, y1_src.shape[-1])
    y2_3 = y2_src.reshape(N, HW, y2_src.shape[-1])
    thw = _pick_tile(HW, 1024)
    out = pl.pallas_call(
        _conv3_kernel,
        out_shape=jax.ShapeDtypeStruct((N, HW, cout_p), out_dtype),
        grid=(N, HW // thw),
        in_specs=[
            pl.BlockSpec((1, thw, c2p), lambda n, t: (n, t, y1_blk)),
            pl.BlockSpec((1, thw, c2p), lambda n, t: (n, t, y2_blk)),
            pl.BlockSpec((1, 2 * c2p, 1), lambda n, t: (n, 0, 0)),
            pl.BlockSpec(w.shape, lambda n, t: (0, 0)),
            pl.BlockSpec((1, cout_p), lambda n, t: (0, 0)),
        ],
        out_specs=pl.BlockSpec((1, thw, cout_p), lambda n, t: (n, t, 0)),
        compiler_params=_cparams(("parallel", "parallel")),
    )(y1_3, y2_3, gate_col, w, b)
    return out.reshape(N, H, W, cout_p)


# --------------------------- parameter init / packing ------------------------

def init_convbn(key, ch_in, ch_out, ksize):
    k1, k2, k3, k4, k5 = jax.random.split(key, 5)
    fan_in = ch_in * ksize * ksize
    return dict(
        w=jax.random.normal(k1, (ch_out, ch_in, ksize, ksize), jnp.float32)
        / np.sqrt(fan_in),
        gamma=jax.random.uniform(k2, (ch_out,), jnp.float32, 0.5, 1.5),
        beta=jax.random.normal(k3, (ch_out,), jnp.float32) * 0.1,
        rmean=jax.random.normal(k4, (ch_out,), jnp.float32) * 0.1,
        rvar=jax.random.uniform(k5, (ch_out,), jnp.float32, 0.5, 1.5),
    )


def init_csp_res_stage(key, ch_in, ch_out, n, stride, attn=True):
    ch_mid = (ch_in + ch_out) // 2
    assert ch_mid % 2 == 0, "CSPResStage requires even ch_mid (same as torch)"
    keys = jax.random.split(key, 5 + 2 * max(n, 1))
    params = {}
    params["conv_down"] = (init_convbn(keys[0], ch_in, ch_mid, 3)
                           if stride == 2 else None)
    params["conv1"] = init_convbn(keys[1], ch_mid, ch_mid // 2, 1)
    params["conv2"] = init_convbn(keys[2], ch_mid, ch_mid // 2, 1)
    params["blocks"] = [
        dict(conv1=init_convbn(keys[5 + 2 * i], ch_mid // 2, ch_mid // 2, 3),
             conv2=init_convbn(keys[6 + 2 * i], ch_mid // 2, ch_mid // 2, 3))
        for i in range(n)
    ]
    if attn:
        ka, kb = jax.random.split(keys[3])
        params["attn"] = dict(
            w=jax.random.normal(ka, (ch_mid, ch_mid, 1, 1), jnp.float32)
            / np.sqrt(ch_mid),
            b=jax.random.normal(kb, (ch_mid,), jnp.float32) * 0.1,
        )
    else:
        params["attn"] = None
    params["conv3"] = init_convbn(keys[4], ch_mid, ch_out, 1)
    cfg = dict(ch_in=ch_in, ch_out=ch_out, ch_mid=ch_mid, n=n,
               stride=stride, attn=attn)
    return cfg, params


def pack_csp_res_stage(cfg, params):
    """Fold BN, pad every channel count to a multiple of 128 (lane-dense blocks,
    zero padded rows/cols) and cast weights to bf16 ONCE, outside the jitted
    forward (review: do not re-pack per call)."""
    cin, cout, cmid = cfg["ch_in"], cfg["ch_out"], cfg["ch_mid"]
    cmid2 = cmid // 2
    cin_p, cmid_p = _cpad(cin), _cpad(cmid)
    c2p, cout_p = _cpad(cmid2), _cpad(cout)
    packed = {}
    if cfg["stride"] == 2:
        packed["conv_down"] = _pack_conv(params["conv_down"], cin_p, cmid_p)
    else:
        assert cin == cmid, "stride==1 CSPResStage requires ch_in == ch_mid"
    w1p, b1p = _pack_conv(params["conv1"], cmid_p, c2p)
    w2p, b2p = _pack_conv(params["conv2"], cmid_p, c2p)
    packed["conv12"] = (jnp.concatenate([w1p, w2p], axis=1),
                        jnp.concatenate([b1p, b2p], axis=1))
    packed["blocks"] = [(_pack_conv(blk["conv1"], c2p, c2p),
                         _pack_conv(blk["conv2"], c2p, c2p))
                        for blk in params["blocks"]]
    if cfg["attn"]:
        packed["attn"] = _pack_attn(params["attn"], cmid2, c2p)
    packed["conv3"] = _pack_conv3(params["conv3"], cmid2, c2p, cout, cout_p)
    return packed


# --------------------------- forward (Pallas path) ---------------------------

def csp_res_stage_forward(cfg, packed, x_nchw):
    cin, cout, cmid = cfg["ch_in"], cfg["ch_out"], cfg["ch_mid"]
    cmid2 = cmid // 2
    cin_p = _cpad(cin)
    c2p = _cpad(cmid2)

    x = jnp.transpose(x_nchw, (0, 2, 3, 1)).astype(jnp.bfloat16)
    x = jnp.pad(x, ((0, 0), (0, 0), (0, 0), (0, cin_p - cin)))

    if cfg["stride"] == 2:
        wd, bd = packed["conv_down"]
        x = conv_down(x, wd, bd)                             # (N, H/2, W/2, cmid_p)

    N, H, W, _ = x.shape
    HW = H * W

    # conv1 || conv2 fused into one 1x1 matmul; also emits ESE channel sums.
    w12, b12 = packed["conv12"]
    y12, sums12 = conv12(x, w12, b12)                        # (N,H,W,2*c2p), (N,1,2*c2p)

    # Residual blocks read the y2 half of y12 via a channel-block offset, so the
    # torch.cat([y1, y2]) is never materialized.
    y2_src, y2_blk = y12, 1
    y2_sums = sums12[:, :, c2p:]
    nblk = len(packed["blocks"])
    for bi, ((wb1, bb1), (wb2, bb2)) in enumerate(packed["blocks"]):
        want_sums = cfg["attn"] and (bi == nblk - 1)
        res = res_block(y2_src, y2_blk, wb1, bb1, wb2, bb2, c2p=c2p,
                        emit_sums=want_sums, alias_input=(y2_blk == 0))
        if want_sums:
            y2_src, y2_sums = res
        else:
            y2_src = res
        y2_blk = 0

    # Effective-SE gate (mean over HW from the fused sums -> 1x1 fc ->
    # hardsigmoid), computed in XLA on tiny (N, 2*c2p) tensors.  Padded channels
    # end up with gate = 0.5, harmless since conv3's padded weight rows are 0.
    if cfg["attn"]:
        Wg, bg = packed["attn"]
        m = jnp.concatenate([sums12[:, 0, :c2p], y2_sums[:, 0, :]], axis=-1) / float(HW)
        se = m @ Wg + bg[0]
        gate = jnp.clip(se / 6.0 + 0.5, 0.0, 1.0)            # torch hardsigmoid
    else:
        gate = jnp.ones((N, 2 * c2p), jnp.float32)
    gate_col = gate[:, :, None]                               # (N, 2*c2p, 1)

    W3, b3 = packed["conv3"]
    out = conv3_gated(y12, 0, y2_src, y2_blk, gate_col, W3, b3, c2p=c2p)  # bf16
    out = out[..., :cout]                # no-op when cout is a multiple of 128
    return jnp.transpose(out, (0, 3, 1, 2)).astype(jnp.float32)           # NCHW


# --------------------------- pure-JAX reference -------------------------------

def _ref_convbn(p, x_bf, *, stride, padding):
    # Mirrors the kernel path's bf16 operand quantization with f32 accumulation.
    w, b = _fold_bn(p)
    w_bf = w.astype(jnp.bfloat16)
    out = lax.conv_general_dilated(
        x_bf.astype(jnp.float32), w_bf.astype(jnp.float32),
        window_strides=(stride, stride),
        padding=[(padding, padding)] * 2,
        dimension_numbers=("NHWC", "HWIO", "NHWC"),
        precision=lax.Precision.HIGHEST)
    return jnp.maximum(out + b, 0.0)           # f32


def csp_res_stage_reference(cfg, params, x_nchw):
    bf = jnp.bfloat16
    x = jnp.transpose(x_nchw, (0, 2, 3, 1)).astype(bf)
    if cfg["stride"] == 2:
        x = _ref_convbn(params["conv_down"], x, stride=2, padding=1).astype(bf)
    y1 = _ref_convbn(params["conv1"], x, stride=1, padding=0).astype(bf)
    y2 = _ref_convbn(params["conv2"], x, stride=1, padding=0).astype(bf)
    for blk in params["blocks"]:
        h = _ref_convbn(blk["conv1"], y2, stride=1, padding=1).astype(bf)
        y2 = (_ref_convbn(blk["conv2"], h, stride=1, padding=1)
              + y2.astype(jnp.float32)).astype(bf)
    y = jnp.concatenate([y1, y2], axis=-1)     # channel concat == torch.cat(dim=1)
    if cfg["attn"]:
        C = y.shape[-1]
        m = jnp.mean(y.astype(jnp.float32), axis=(1, 2))           # (N, C)
        se = m @ params["attn"]["w"].reshape(C, C).T + params["attn"]["b"]
        gate = jnp.clip(se / 6.0 + 0.5, 0.0, 1.0)                  # hardsigmoid
        y = (y.astype(jnp.float32) * gate[:, None, None, :]).astype(bf)
    out = _ref_convbn(params["conv3"], y, stride=1, padding=0)     # f32
    return jnp.transpose(out, (0, 3, 1, 2))


# --------------------------- main ---------------------------------------------

if __name__ == "__main__":
    def run_case(key, *, N, CH_IN, CH_OUT, H, W, n_blocks, stride, attn):
        k_x, k_p = jax.random.split(key)
        x = jax.random.normal(k_x, (N, CH_IN, H, W), jnp.float32)
        cfg, params = init_csp_res_stage(k_p, CH_IN, CH_OUT, n_blocks, stride,
                                         attn=attn)
        packed = pack_csp_res_stage(cfg, params)        # once, outside jit
        fwd = jax.jit(functools.partial(csp_res_stage_forward, cfg))
        out = jax.block_until_ready(fwd(packed, x))
        ref = jax.block_until_ready(csp_res_stage_reference(cfg, params, x))
        assert out.shape == (N, CH_OUT, H // stride, W // stride), out.shape
        err = float(np.max(np.abs(np.asarray(out) - np.asarray(ref))))
        assert np.allclose(np.asarray(out), np.asarray(ref),
                           rtol=2e-2, atol=2e-2), err

    root = jax.random.PRNGKey(0)
    k1, k2 = jax.random.split(root)
    # Stride-2 stage: conv_down + 1 residual block + Effective-SE.
    run_case(k1, N=2, CH_IN=4, CH_OUT=8, H=16, W=16, n_blocks=1, stride=2,
             attn=True)
    # Stride-1 stage: no conv_down, 2 residual blocks + Effective-SE.
    run_case(k2, N=2, CH_IN=8, CH_OUT=8, H=16, W=16, n_blocks=2, stride=1,
             attn=True)
    print("KERNEL_OK")
</pallas_src>

<mosaic_0001>
module attributes {stable_mosaic.version = 11 : i64} {
  func.func @_conv12_kernel(%arg0: i32, %arg1: i32, %arg2: memref<1x64x128xbf16, #tpu.memory_space<vmem>>, %arg3: memref<128x256xbf16, #tpu.memory_space<vmem>>, %arg4: memref<1x256xf32, #tpu.memory_space<vmem>>, %arg5: memref<1x64x256xbf16, #tpu.memory_space<vmem>>, %arg6: memref<1x1x256xf32, #tpu.memory_space<vmem>>) attributes {dimension_semantics = [#tpu.dimension_semantics<parallel>, #tpu.dimension_semantics<arbitrary>], iteration_bounds = array<i64: 2, 1>, scalar_prefetch = 0 : i64, scratch_operands = 0 : i64, tpu.core_type = #tpu.core_type<tc>, window_params = [{transform_indices = @transform_0, window_bounds = array<i64: 1, 64, 128>}, {pipeline_mode = #tpu.pipeline_mode<synchronous>, transform_indices = @transform_1, window_bounds = array<i64: 128, 256>}, {pipeline_mode = #tpu.pipeline_mode<synchronous>, transform_indices = @transform_2, window_bounds = array<i64: 1, 256>}, {transform_indices = @transform_3, window_bounds = array<i64: 1, 64, 256>}, {transform_indices = @transform_4, window_bounds = array<i64: 1, 1, 256>}]} {
    %c0 = arith.constant 0 : index
    %c0_0 = arith.constant 0 : index
    %c0_1 = arith.constant 0 : index
    %0 = vector.load %arg2[%c0, %c0_0, %c0_1] : memref<1x64x128xbf16, #tpu.memory_space<vmem>>, vector<1x64x128xbf16>
    %1 = vector.shape_cast %0 : vector<1x64x128xbf16> to vector<64x128xbf16>
    %c0_2 = arith.constant 0 : index
    %c0_3 = arith.constant 0 : index
    %2 = vector.load %arg3[%c0_2, %c0_3] : memref<128x256xbf16, #tpu.memory_space<vmem>>, vector<128x256xbf16>
    %cst = arith.constant dense<0.000000e+00> : vector<64x256xf32>
    %3 = tpu.matmul %1, %2, %cst {dimension_numbers = #tpu.dot_dimension_numbers<[1], [0], [0], [1], [0, 0, 1, 1], [], []>} : vector<64x128xbf16>, vector<128x256xbf16>, vector<64x256xf32> -> vector<64x256xf32>
    %c0_4 = arith.constant 0 : index
    %c0_5 = arith.constant 0 : index
    %4 = vector.load %arg4[%c0_4, %c0_5] : memref<1x256xf32, #tpu.memory_space<vmem>>, vector<1x256xf32>
    %5 = vector.broadcast %4 : vector<1x256xf32> to vector<64x256xf32>
    %6 = arith.addf %3, %5 : vector<64x256xf32>
    %cst_6 = arith.constant 0.000000e+00 : f32
    %7 = vector.broadcast %cst_6 : f32 to vector<64x256xf32>
    %8 = arith.maximumf %6, %7 : vector<64x256xf32>
    %9 = arith.truncf %8 : vector<64x256xf32> to vector<64x256xbf16>
    %c0_7 = arith.constant 0 : index
    %c0_8 = arith.constant 0 : index
    %c0_9 = arith.constant 0 : index
    %10 = vector.load %arg5[%c0_7, %c0_8, %c0_9] : memref<1x64x256xbf16, #tpu.memory_space<vmem>>, vector<1x64x256xbf16>
    %11 = vector.shape_cast %10 : vector<1x64x256xbf16> to vector<64x256xbf16>
    %12 = vector.shape_cast %9 : vector<64x256xbf16> to vector<1x64x256xbf16>
    tpu.vector_store %arg5[%c0_7, %c0_8, %c0_9], %12 {strides = array<i32>} : memref<1x64x256xbf16, #tpu.memory_space<vmem>>, vector<1x64x256xbf16>,
    %c0_i32 = arith.constant 0 : i32
    %13 = arith.cmpi eq, %arg1, %c0_i32 : i32
    %14 = arith.extui %13 : i1 to i32
    %c0_i32_10 = arith.constant 0 : i32
    %15 = arith.cmpi ne, %14, %c0_i32_10 : i32
    scf.if %15 {
      %cst_18 = arith.constant 0.000000e+00 : f32
      %24 = vector.broadcast %cst_18 : f32 to vector<1x1x256xf32>
      %c0_19 = arith.constant 0 : index
      %c0_20 = arith.constant 0 : index
      %c0_21 = arith.constant 0 : index
      %25 = vector.load %arg6[%c0_19, %c0_20, %c0_21] : memref<1x1x256xf32, #tpu.memory_space<vmem>>, vector<1x1x256xf32>
      tpu.vector_store %arg6[%c0_19, %c0_20, %c0_21], %24 {strides = array<i32>} : memref<1x1x256xf32, #tpu.memory_space<vmem>>, vector<1x1x256xf32>,
    } else {
    }
    %c0_11 = arith.constant 0 : index
    %c0_12 = arith.constant 0 : index
    %c0_13 = arith.constant 0 : index
    %16 = vector.load %arg6[%c0_11, %c0_12, %c0_13] : memref<1x1x256xf32, #tpu.memory_space<vmem>>, vector<1x1x256xf32>
    %17 = vector.shape_cast %16 : vector<1x1x256xf32> to vector<1x256xf32>
    %cst_14 = arith.constant dense<0.000000e+00> : vector<256xf32>
    %18 = vector.multi_reduction <add>, %8, %cst_14 [0] : vector<64x256xf32> to vector<256xf32>
    %19 = vector.shape_cast %18 : vector<256xf32> to vector<1x256xf32>
    %20 = arith.addf %17, %19 : vector<1x256xf32>
    %c0_15 = arith.constant 0 : index
    %c0_16 = arith.constant 0 : index
    %c0_17 = arith.constant 0 : index
    %21 = vector.load %arg6[%c0_15, %c0_16, %c0_17] : memref<1x1x256xf32, #tpu.memory_space<vmem>>, vector<1x1x256xf32>
    %22 = vector.shape_cast %21 : vector<1x1x256xf32> to vector<1x256xf32>
    %23 = vector.shape_cast %20 : vector<1x256xf32> to vector<1x1x256xf32>
    tpu.vector_store %arg6[%c0_15, %c0_16, %c0_17], %23 {strides = array<i32>} : memref<1x1x256xf32, #tpu.memory_space<vmem>>, vector<1x1x256xf32>,
    return
  }
  func.func @transform_0(%arg0: i32, %arg1: i32) -> (i32, i32, i32) {
    %c0_i32 = arith.constant 0 : i32
    %c0_i32_0 = arith.constant 0 : i32
    return %arg0, %arg1, %c0_i32 : i32, i32, i32
  }
  func.func @transform_1(%arg0: i32, %arg1: i32) -> (i32, i32) {
    %c0_i32 = arith.constant 0 : i32
    %c0_i32_0 = arith.constant 0 : i32
    %c0_i32_1 = arith.constant 0 : i32
    return %c0_i32, %c0_i32_0 : i32, i32
  }
  func.func @transform_2(%arg0: i32, %arg1: i32) -> (i32, i32) {
    %c0_i32 = arith.constant 0 : i32
    %c0_i32_0 = arith.constant 0 : i32
    %c0_i32_1 = arith.constant 0 : i32
    return %c0_i32, %c0_i32_0 : i32, i32
  }
  func.func @transform_3(%arg0: i32, %arg1: i32) -> (i32, i32, i32) {
    %c0_i32 = arith.constant 0 : i32
    %c0_i32_0 = arith.constant 0 : i32
    return %arg0, %arg1, %c0_i32 : i32, i32, i32
  }
  func.func @transform_4(%arg0: i32, %arg1: i32) -> (i32, i32, i32) {
    %c0_i32 = arith.constant 0 : i32
    %c0_i32_0 = arith.constant 0 : i32
    %c0_i32_1 = arith.constant 0 : i32
    return %arg0, %c0_i32, %c0_i32_0 : i32, i32, i32
  }
}

module attributes {stable_mosaic.version = 11 : i64} {
  func.func @_conv_down_kernel(%arg0: i32, %arg1: memref<1x8x8x128xbf16, #tpu.memory_space<vmem>>, %arg2: memref<1x8x8x128xbf16, #tpu.memory_space<vmem>>, %arg3: memref<1x8x8x128xbf16, #tpu.memory_space<vmem>>, %arg4: memref<1x8x8x128xbf16, #tpu.memory_space<vmem>>, %arg5: memref<1152x128xbf16, #tpu.memory_space<vmem>>, %arg6: memref<1x128xf32, #tpu.memory_space<vmem>>, %arg7: memref<1x8x8x128xbf16, #tpu.memory_space<vmem>>, %arg8: memref<8x8x1152xbf16, #tpu.memory_space<vmem>>) attributes {dimension_semantics = [#tpu.dimension_semantics<parallel>], iteration_bounds = array<i64: 2>, scalar_prefetch = 0 : i64, scratch_operands = 1 : i64, tpu.core_type = #tpu.core_type<tc>, window_params = [{transform_indices = @transform_0, window_bounds = array<i64: 1, 8, 8, 128>}, {transform_indices = @transform_1, window_bounds = array<i64: 1, 8, 8, 128>}, {transform_indices = @transform_2, window_bounds = array<i64: 1, 8, 8, 128>}, {transform_indices = @transform_3, window_bounds = array<i64: 1, 8, 8, 128>}, {pipeline_mode = #tpu.pipeline_mode<synchronous>, transform_indices = @transform_4, window_bounds = array<i64: 1152, 128>}, {pipeline_mode = #tpu.pipeline_mode<synchronous>, transform_indices = @transform_5, window_bounds = array<i64: 1, 128>}, {transform_indices = @transform_6, window_bounds = array<i64: 1, 8, 8, 128>}]} {
    %c0 = arith.constant 0 : index
    %c0_0 = arith.constant 0 : index
    %c0_1 = arith.constant 0 : index
    %c0_2 = arith.constant 0 : index
    %0 = vector.load %arg1[%c0, %c0_0, %c0_1, %c0_2] : memref<1x8x8x128xbf16, #tpu.memory_space<vmem>>, vector<1x8x8x128xbf16>
    %1 = vector.shape_cast %0 : vector<1x8x8x128xbf16> to vector<8x8x128xbf16>
    %c0_3 = arith.constant 0 : index
    %c0_4 = arith.constant 0 : index
    %c0_5 = arith.constant 0 : index
    %c0_6 = arith.constant 0 : index
    %2 = vector.load %arg2[%c0_3, %c0_4, %c0_5, %c0_6] : memref<1x8x8x128xbf16, #tpu.memory_space<vmem>>, vector<1x8x8x128xbf16>
    %3 = vector.shape_cast %2 : vector<1x8x8x128xbf16> to vector<8x8x128xbf16>
    %c0_7 = arith.constant 0 : index
    %c0_8 = arith.constant 0 : index
    %c0_9 = arith.constant 0 : index
    %c0_10 = arith.constant 0 : index
    %4 = vector.load %arg3[%c0_7, %c0_8, %c0_9, %c0_10] : memref<1x8x8x128xbf16, #tpu.memory_space<vmem>>, vector<1x8x8x128xbf16>
    %5 = vector.shape_cast %4 : vector<1x8x8x128xbf16> to vector<8x8x128xbf16>
    %c0_11 = arith.constant 0 : index
    %c0_12 = arith.constant 0 : index
    %c0_13 = arith.constant 0 : index
    %c0_14 = arith.constant 0 : index
    %6 = vector.load %arg4[%c0_11, %c0_12, %c0_13, %c0_14] : memref<1x8x8x128xbf16, #tpu.memory_space<vmem>>, vector<1x8x8x128xbf16>
    %7 = vector.shape_cast %6 : vector<1x8x8x128xbf16> to vector<8x8x128xbf16>
    %cst = arith.constant 0.000000e+00 : bf16
    %8 = vector.broadcast %cst : bf16 to vector<1x8x128xbf16>
    %c0_15 = arith.constant 0 : index
    %c0_16 = arith.constant 0 : index
    %c0_17 = arith.constant 0 : index
    %9 = vector.load %arg8[%c0_15, %c0_16, %c0_17] : memref<8x8x1152xbf16, #tpu.memory_space<vmem>>, vector<1x8x128xbf16>
    tpu.vector_store %arg8[%c0_15, %c0_16, %c0_17], %8 {strides = array<i32>} : memref<8x8x1152xbf16, #tpu.memory_space<vmem>>, vector<1x8x128xbf16>,
    %cst_18 = arith.constant 0.000000e+00 : bf16
    %10 = vector.broadcast %cst_18 : bf16 to vector<8x1x128xbf16>
    %c0_19 = arith.constant 0 : index
    %c0_20 = arith.constant 0 : index
    %c0_21 = arith.constant 0 : index
    %11 = vector.load %arg8[%c0_19, %c0_20, %c0_21] : memref<8x8x1152xbf16, #tpu.memory_space<vmem>>, vector<8x1x128xbf16>
    tpu.vector_store %arg8[%c0_19, %c0_20, %c0_21], %10 {strides = array<i32>} : memref<8x8x1152xbf16, #tpu.memory_space<vmem>>, vector<8x1x128xbf16>,
    %12 = vector.extract_strided_slice %7 {offsets = [0, 0, 0], sizes = [7, 7, 128], strides = [1, 1, 1]} : vector<8x8x128xbf16> to vector<7x7x128xbf16>
    %c1 = arith.constant 1 : index
    %c1_22 = arith.constant 1 : index
    %c0_23 = arith.constant 0 : index
    %13 = vector.load %arg8[%c1, %c1_22, %c0_23] : memref<8x8x1152xbf16, #tpu.memory_space<vmem>>, vector<7x7x128xbf16>
    tpu.vector_store %arg8[%c1, %c1_22, %c0_23], %12 {strides = array<i32>} : memref<8x8x1152xbf16, #tpu.memory_space<vmem>>, vector<7x7x128xbf16>,
    %cst_24 = arith.constant 0.000000e+00 : bf16
    %14 = vector.broadcast %cst_24 : bf16 to vector<1x8x128xbf16>
    %c0_25 = arith.constant 0 : index
    %c0_26 = arith.constant 0 : index
    %c128 = arith.constant 128 : index
    %15 = vector.load %arg8[%c0_25, %c0_26, %c128] : memref<8x8x1152xbf16, #tpu.memory_space<vmem>>, vector<1x8x128xbf16>
    tpu.vector_store %arg8[%c0_25, %c0_26, %c128], %14 {strides = array<i32>} : memref<8x8x1152xbf16, #tpu.memory_space<vmem>>, vector<1x8x128xbf16>,
    %16 = vector.extract_strided_slice %5 {offsets = [0, 0, 0], sizes = [7, 8, 128], strides = [1, 1, 1]} : vector<8x8x128xbf16> to vector<7x8x128xbf16>
    %c1_27 = arith.constant 1 : index
    %c0_28 = arith.constant 0 : index
    %c128_29 = arith.constant 128 : index
    %17 = vector.load %arg8[%c1_27, %c0_28, %c128_29] : memref<8x8x1152xbf16, #tpu.memory_space<vmem>>, vector<7x8x128xbf16>
    tpu.vector_store %arg8[%c1_27, %c0_28, %c128_29], %16 {strides = array<i32>} : memref<8x8x1152xbf16, #tpu.memory_space<vmem>>, vector<7x8x128xbf16>,
    %cst_30 = arith.constant 0.000000e+00 : bf16
    %18 = vector.broadcast %cst_30 : bf16 to vector<1x8x128xbf16>
    %c0_31 = arith.constant 0 : index
    %c0_32 = arith.constant 0 : index
    %c256 = arith.constant 256 : index
    %19 = vector.load %arg8[%c0_31, %c0_32, %c256] : memref<8x8x1152xbf16, #tpu.memory_space<vmem>>, vector<1x8x128xbf16>
    tpu.vector_store %arg8[%c0_31, %c0_32, %c256], %18 {strides = array<i32>} : memref<8x8x1152xbf16, #tpu.memory_space<vmem>>, vector<1x8x128xbf16>,
    %20 = vector.extract_strided_slice %7 {offsets = [0, 0, 0], sizes = [7, 8, 128], strides = [1, 1, 1]} : vector<8x8x128xbf16> to vector<7x8x128xbf16>
    %c1_33 = arith.constant 1 : index
    %c0_34 = arith.constant 0 : index
    %c256_35 = arith.constant 256 : index
    %21 = vector.load %arg8[%c1_33, %c0_34, %c256_35] : memref<8x8x1152xbf16, #tpu.memory_space<vmem>>, vector<7x8x128xbf16>
    tpu.vector_store %arg8[%c1_33, %c0_34, %c256_35], %20 {strides = array<i32>} : memref<8x8x1152xbf16, #tpu.memory_space<vmem>>, vector<7x8x128xbf16>,
    %cst_36 = arith.constant 0.000000e+00 : bf16
    %22 = vector.broadcast %cst_36 : bf16 to vector<8x1x128xbf16>
    %c0_37 = arith.constant 0 : index
    %c0_38 = arith.constant 0 : index
    %c384 = arith.constant 384 : index
    %23 = vector.load %arg8[%c0_37, %c0_38, %c384] : memref<8x8x1152xbf16, #tpu.memory_space<vmem>>, vector<8x1x128xbf16>
    tpu.vector_store %arg8[%c0_37, %c0_38, %c384], %22 {strides = array<i32>} : memref<8x8x1152xbf16, #tpu.memory_space<vmem>>, vector<8x1x128xbf16>,
    %24 = vector.extract_strided_slice %3 {offsets = [0, 0, 0], sizes = [8, 7, 128], strides = [1, 1, 1]} : vector<8x8x128xbf16> to vector<8x7x128xbf16>
    %c0_39 = arith.constant 0 : index
    %c1_40 = arith.constant 1 : index
    %c384_41 = arith.constant 384 : index
    %25 = vector.load %arg8[%c0_39, %c1_40, %c384_41] : memref<8x8x1152xbf16, #tpu.memory_space<vmem>>, vector<8x7x128xbf16>
    tpu.vector_store %arg8[%c0_39, %c1_40, %c384_41], %24 {strides = array<i32>} : memref<8x8x1152xbf16, #tpu.memory_space<vmem>>, vector<8x7x128xbf16>,
    %c0_42 = arith.constant 0 : index
    %c0_43 = arith.constant 0 : index
    %c512 = arith.constant 512 : index
    %26 = vector.load %arg8[%c0_42, %c0_43, %c512] : memref<8x8x1152xbf16, #tpu.memory_space<vmem>>, vector<8x8x128xbf16>
    tpu.vector_store %arg8[%c0_42, %c0_43, %c512], %1 {strides = array<i32>} : memref<8x8x1152xbf16, #tpu.memory_space<vmem>>, vector<8x8x128xbf16>,
    %c0_44 = arith.constant 0 : index
    %c0_45 = arith.constant 0 : index
    %c640 = arith.constant 640 : index
    %27 = vector.load %arg8[%c0_44, %c0_45, %c640] : memref<8x8x1152xbf16, #tpu.memory_space<vmem>>, vector<8x8x128xbf16>
    tpu.vector_store %arg8[%c0_44, %c0_45, %c640], %3 {strides = array<i32>} : memref<8x8x1152xbf16, #tpu.memory_space<vmem>>, vector<8x8x128xbf16>,
    %cst_46 = arith.constant 0.000000e+00 : bf16
    %28 = vector.broadcast %cst_46 : bf16 to vector<8x1x128xbf16>
    %c0_47 = arith.constant 0 : index
    %c0_48 = arith.constant 0 : index
    %c768 = arith.constant 768 : index
    %29 = vector.load %arg8[%c0_47, %c0_48, %c768] : memref<8x8x1152xbf16, #tpu.memory_space<vmem>>, vector<8x1x128xbf16>
    tpu.vector_store %arg8[%c0_47, %c0_48, %c768], %28 {strides = array<i32>} : memref<8x8x1152xbf16, #tpu.memory_space<vmem>>, vector<8x1x128xbf16>,
    %30 = vector.extract_strided_slice %7 {offsets = [0, 0, 0], sizes = [8, 7, 128], strides = [1, 1, 1]} : vector<8x8x128xbf16> to vector<8x7x128xbf16>
    %c0_49 = arith.constant 0 : index
    %c1_50 = arith.constant 1 : index
    %c768_51 = arith.constant 768 : index
    %31 = vector.load %arg8[%c0_49, %c1_50, %c768_51] : memref<8x8x1152xbf16, #tpu.memory_space<vmem>>, vector<8x7x128xbf16>
    tpu.vector_store %arg8[%c0_49, %c1_50, %c768_51], %30 {strides = array<i32>} : memref<8x8x1152xbf16, #tpu.memory_space<vmem>>, vector<8x7x128xbf16>,
    %c0_52 = arith.constant 0 : index
    %c0_53 = arith.constant 0 : index
    %c896 = arith.constant 896 : index
    %32 = vector.load %arg8[%c0_52, %c0_53, %c896] : memref<8x8x1152xbf16, #tpu.memory_space<vmem>>, vector<8x8x128xbf16>
    tpu.vector_store %arg8[%c0_52, %c0_53, %c896], %5 {strides = array<i32>} : memref<8x8x1152xbf16, #tpu.memory_space<vmem>>, vector<8x8x128xbf16>,
    %c0_54 = arith.constant 0 : index
    %c0_55 = arith.constant 0 : index
    %c1024 = arith.constant 1024 : index
    %33 = vector.load %arg8[%c0_54, %c0_55, %c1024] : memref<8x8x1152xbf16, #tpu.memory_space<vmem>>, vector<8x8x128xbf16>
    tpu.vector_store %arg8[%c0_54, %c0_55, %c1024], %7 {strides = array<i32>} : memref<8x8x1152xbf16, #tpu.memory_space<vmem>>, vector<8x8x128xbf16>,
    %c0_56 = arith.constant 0 : index
    %c0_57 = arith.constant 0 : index
    %c0_58 = arith.constant 0 : index
    %34 = vector.load %arg8[%c0_56, %c0_57, %c0_58] : memref<8x8x1152xbf16, #tpu.memory_space<vmem>>, vector<8x8x1152xbf16>
    %35 = vector.shape_cast %34 : vector<8x8x1152xbf16> to vector<64x1152xbf16>
    %c0_59 = arith.constant 0 : index
    %c0_60 = arith.constant 0 : index
    %36 = vector.load %arg5[%c0_59, %c0_60] : memref<1152x128xbf16, #tpu.memory_space<vmem>>, vector<1152x128xbf16>
    %cst_61 = arith.constant dense<0.000000e+00> : vector<64x128xf32>
    %37 = tpu.matmul %35, %36, %cst_61 {dimension_numbers = #tpu.dot_dimension_numbers<[1], [0], [0], [1], [0, 0, 1, 1], [], []>} : vector<64x1152xbf16>, vector<1152x128xbf16>, vector<64x128xf32> -> vector<64x128xf32>
    %c0_62 = arith.constant 0 : index
    %c0_63 = arith.constant 0 : index
    %38 = vector.load %arg6[%c0_62, %c0_63] : memref<1x128xf32, #tpu.memory_space<vmem>>, vector<1x128xf32>
    %39 = vector.broadcast %38 : vector<1x128xf32> to vector<64x128xf32>
    %40 = arith.addf %37, %39 : vector<64x128xf32>
    %cst_64 = arith.constant 0.000000e+00 : f32
    %41 = vector.broadcast %cst_64 : f32 to vector<64x128xf32>
    %42 = arith.maximumf %40, %41 : vector<64x128xf32>
    %43 = vector.shape_cast %42 : vector<64x128xf32> to vector<8x8x128xf32>
    %44 = arith.truncf %43 : vector<8x8x128xf32> to vector<8x8x128xbf16>
    %c0_65 = arith.constant 0 : index
    %c0_66 = arith.constant 0 : index
    %c0_67 = arith.constant 0 : index
    %c0_68 = arith.constant 0 : index
    %45 = vector.load %arg7[%c0_65, %c0_66, %c0_67, %c0_68] : memref<1x8x8x128xbf16, #tpu.memory_space<vmem>>, vector<1x8x8x128xbf16>
    %46 = vector.shape_cast %45 : vector<1x8x8x128xbf16> to vector<8x8x128xbf16>
    %47 = vector.shape_cast %44 : vector<8x8x128xbf16> to vector<1x8x8x128xbf16>
    tpu.vector_store %arg7[%c0_65, %c0_66, %c0_67, %c0_68], %47 {strides = array<i32>} : memref<1x8x8x128xbf16, #tpu.memory_space<vmem>>, vector<1x8x8x128xbf16>,
    return
  }
  func.func @transform_0(%arg0: i32) -> (i32, i32, i32, i32) {
    %c0_i32 = arith.constant 0 : i32
    %c0_i32_0 = arith.constant 0 : i32
    %c0_i32_1 = arith.constant 0 : i32
    %c0_i32_2 = arith.constant 0 : i32
    return %arg0, %c0_i32, %c0_i32_0, %c0_i32_1 : i32, i32, i32, i32
  }
  func.func @transform_1(%arg0: i32) -> (i32, i32, i32, i32) {
    %c0_i32 = arith.constant 0 : i32
    %c0_i32_0 = arith.constant 0 : i32
    %c0_i32_1 = arith.constant 0 : i32
    %c0_i32_2 = arith.constant 0 : i32
    return %arg0, %c0_i32, %c0_i32_0, %c0_i32_1 : i32, i32, i32, i32
  }
  func.func @transform_2(%arg0: i32) -> (i32, i32, i32, i32) {
    %c0_i32 = arith.constant 0 : i32
    %c0_i32_0 = arith.constant 0 : i32
    %c0_i32_1 = arith.constant 0 : i32
    %c0_i32_2 = arith.constant 0 : i32
    return %arg0, %c0_i32, %c0_i32_0, %c0_i32_1 : i32, i32, i32, i32
  }
  func.func @transform_3(%arg0: i32) -> (i32, i32, i32, i32) {
    %c0_i32 = arith.constant 0 : i32
    %c0_i32_0 = arith.constant 0 : i32
    %c0_i32_1 = arith.constant 0 : i32
    %c0_i32_2 = arith.constant 0 : i32
    return %arg0, %c0_i32, %c0_i32_0, %c0_i32_1 : i32, i32, i32, i32
  }
  func.func @transform_4(%arg0: i32) -> (i32, i32) {
    %c0_i32 = arith.constant 0 : i32
    %c0_i32_0 = arith.constant 0 : i32
    %c0_i32_1 = arith.constant 0 : i32
    return %c0_i32, %c0_i32_0 : i32, i32
  }
  func.func @transform_5(%arg0: i32) -> (i32, i32) {
    %c0_i32 = arith.constant 0 : i32
    %c0_i32_0 = arith.constant 0 : i32
    %c0_i32_1 = arith.constant 0 : i32
    return %c0_i32, %c0_i32_0 : i32, i32
  }
  func.func @transform_6(%arg0: i32) -> (i32, i32, i32, i32) {
    %c0_i32 = arith.constant 0 : i32
    %c0_i32_0 = arith.constant 0 : i32
    %c0_i32_1 = arith.constant 0 : i32
    %c0_i32_2 = arith.constant 0 : i32
    return %arg0, %c0_i32, %c0_i32_0, %c0_i32_1 : i32, i32, i32, i32
  }
}

module attributes {stable_mosaic.version = 11 : i64} {
  func.func @_res_block_sum_kernel(%arg0: i32, %arg1: memref<1x8x8x128xbf16, #tpu.memory_space<vmem>>, %arg2: memref<1152x128xbf16, #tpu.memory_space<vmem>>, %arg3: memref<1x128xf32, #tpu.memory_space<vmem>>, %arg4: memref<1152x128xbf16, #tpu.memory_space<vmem>>, %arg5: memref<1x128xf32, #tpu.memory_space<vmem>>, %arg6: memref<1x8x8x128xbf16, #tpu.memory_space<vmem>>, %arg7: memref<1x1x128xf32, #tpu.memory_space<vmem>>, %arg8: memref<8x8x1152xbf16, #tpu.memory_space<vmem>>) attributes {dimension_semantics = [#tpu.dimension_semantics<parallel>], iteration_bounds = array<i64: 2>, scalar_prefetch = 0 : i64, scratch_operands = 1 : i64, tpu.core_type = #tpu.core_type<tc>, window_params = [{transform_indices = @transform_0, window_bounds = array<i64: 1, 8, 8, 128>}, {pipeline_mode = #tpu.pipeline_mode<synchronous>, transform_indices = @transform_1, window_bounds = array<i64: 1152, 128>}, {pipeline_mode = #tpu.pipeline_mode<synchronous>, transform_indices = @transform_2, window_bounds = array<i64: 1, 128>}, {pipeline_mode = #tpu.pipeline_mode<synchronous>, transform_indices = @transform_3, window_bounds = array<i64: 1152, 128>}, {pipeline_mode = #tpu.pipeline_mode<synchronous>, transform_indices = @transform_4, window_bounds = array<i64: 1, 128>}, {transform_indices = @transform_5, window_bounds = array<i64: 1, 8, 8, 128>}, {transform_indices = @transform_6, window_bounds = array<i64: 1, 1, 128>}]} {
    %c0 = arith.constant 0 : index
    %c0_0 = arith.constant 0 : index
    %c0_1 = arith.constant 0 : index
    %c0_2 = arith.constant 0 : index
    %0 = vector.load %arg1[%c0, %c0_0, %c0_1, %c0_2] : memref<1x8x8x128xbf16, #tpu.memory_space<vmem>>, vector<1x8x8x128xbf16>
    %1 = vector.shape_cast %0 : vector<1x8x8x128xbf16> to vector<8x8x128xbf16>
    %cst = arith.constant 0.000000e+00 : bf16
    %2 = vector.broadcast %cst : bf16 to vector<1x8x128xbf16>
    %c0_3 = arith.constant 0 : index
    %c0_4 = arith.constant 0 : index
    %c0_5 = arith.constant 0 : index
    %3 = vector.load %arg8[%c0_3, %c0_4, %c0_5] : memref<8x8x1152xbf16, #tpu.memory_space<vmem>>, vector<1x8x128xbf16>
    tpu.vector_store %arg8[%c0_3, %c0_4, %c0_5], %2 {strides = array<i32>} : memref<8x8x1152xbf16, #tpu.memory_space<vmem>>, vector<1x8x128xbf16>,
    %cst_6 = arith.constant 0.000000e+00 : bf16
    %4 = vector.broadcast %cst_6 : bf16 to vector<8x1x128xbf16>
    %c0_7 = arith.constant 0 : index
    %c0_8 = arith.constant 0 : index
    %c0_9 = arith.constant 0 : index
    %5 = vector.load %arg8[%c0_7, %c0_8, %c0_9] : memref<8x8x1152xbf16, #tpu.memory_space<vmem>>, vector<8x1x128xbf16>
    tpu.vector_store %arg8[%c0_7, %c0_8, %c0_9], %4 {strides = array<i32>} : memref<8x8x1152xbf16, #tpu.memory_space<vmem>>, vector<8x1x128xbf16>,
    %6 = vector.extract_strided_slice %1 {offsets = [0, 0, 0], sizes = [7, 7, 128], strides = [1, 1, 1]} : vector<8x8x128xbf16> to vector<7x7x128xbf16>
    %c1 = arith.constant 1 : index
    %c1_10 = arith.constant 1 : index
    %c0_11 = arith.constant 0 : index
    %7 = vector.load %arg8[%c1, %c1_10, %c0_11] : memref<8x8x1152xbf16, #tpu.memory_space<vmem>>, vector<7x7x128xbf16>
    tpu.vector_store %arg8[%c1, %c1_10, %c0_11], %6 {strides = array<i32>} : memref<8x8x1152xbf16, #tpu.memory_space<vmem>>, vector<7x7x128xbf16>,
    %cst_12 = arith.constant 0.000000e+00 : bf16
    %8 = vector.broadcast %cst_12 : bf16 to vector<1x8x128xbf16>
    %c0_13 = arith.constant 0 : index
    %c0_14 = arith.constant 0 : index
    %c128 = arith.constant 128 : index
    %9 = vector.load %arg8[%c0_13, %c0_14, %c128] : memref<8x8x1152xbf16, #tpu.memory_space<vmem>>, vector<1x8x128xbf16>
    tpu.vector_store %arg8[%c0_13, %c0_14, %c128], %8 {strides = array<i32>} : memref<8x8x1152xbf16, #tpu.memory_space<vmem>>, vector<1x8x128xbf16>,
    %10 = vector.extract_strided_slice %1 {offsets = [0, 0, 0], sizes = [7, 8, 128], strides = [1, 1, 1]} : vector<8x8x128xbf16> to vector<7x8x128xbf16>
    %c1_15 = arith.constant 1 : index
    %c0_16 = arith.constant 0 : index
    %c128_17 = arith.constant 128 : index
    %11 = vector.load %arg8[%c1_15, %c0_16, %c128_17] : memref<8x8x1152xbf16, #tpu.memory_space<vmem>>, vector<7x8x128xbf16>
    tpu.vector_store %arg8[%c1_15, %c0_16, %c128_17], %10 {strides = array<i32>} : memref<8x8x1152xbf16, #tpu.memory_space<vmem>>, vector<7x8x128xbf16>,
    %cst_18 = arith.constant 0.000000e+00 : bf16
    %12 = vector.broadcast %cst_18 : bf16 to vector<1x8x128xbf16>
    %c0_19 = arith.constant 0 : index
    %c0_20 = arith.constant 0 : index
    %c256 = arith.constant 256 : index
    %13 = vector.load %arg8[%c0_19, %c0_20, %c256] : memref<8x8x1152xbf16, #tpu.memory_space<vmem>>, vector<1x8x128xbf16>
    tpu.vector_store %arg8[%c0_19, %c0_20, %c256], %12 {strides = array<i32>} : memref<8x8x1152xbf16, #tpu.memory_space<vmem>>, vector<1x8x128xbf16>,
    %cst_21 = arith.constant 0.000000e+00 : bf16
    %14 = vector.broadcast %cst_21 : bf16 to vector<8x1x128xbf16>
    %c0_22 = arith.constant 0 : index
    %c7 = arith.constant 7 : index
    %c256_23 = arith.constant 256 : index
    %15 = vector.load %arg8[%c0_22, %c7, %c256_23] : memref<8x8x1152xbf16, #tpu.memory_space<vmem>>, vector<8x1x128xbf16>
    tpu.vector_store %arg8[%c0_22, %c7, %c256_23], %14 {strides = array<i32>} : memref<8x8x1152xbf16, #tpu.memory_space<vmem>>, vector<8x1x128xbf16>,
    %16 = vector.extract_strided_slice %1 {offsets = [0, 1, 0], sizes = [7, 7, 128], strides = [1, 1, 1]} : vector<8x8x128xbf16> to vector<7x7x128xbf16>
    %c1_24 = arith.constant 1 : index
    %c0_25 = arith.constant 0 : index
    %c256_26 = arith.constant 256 : index
    %17 = vector.load %arg8[%c1_24, %c0_25, %c256_26] : memref<8x8x1152xbf16, #tpu.memory_space<vmem>>, vector<7x7x128xbf16>
    tpu.vector_store %arg8[%c1_24, %c0_25, %c256_26], %16 {strides = array<i32>} : memref<8x8x1152xbf16, #tpu.memory_space<vmem>>, vector<7x7x128xbf16>,
    %cst_27 = arith.constant 0.000000e+00 : bf16
    %18 = vector.broadcast %cst_27 : bf16 to vector<8x1x128xbf16>
    %c0_28 = arith.constant 0 : index
    %c0_29 = arith.constant 0 : index
    %c384 = arith.constant 384 : index
    %19 = vector.load %arg8[%c0_28, %c0_29, %c384] : memref<8x8x1152xbf16, #tpu.memory_space<vmem>>, vector<8x1x128xbf16>
    tpu.vector_store %arg8[%c0_28, %c0_29, %c384], %18 {strides = array<i32>} : memref<8x8x1152xbf16, #tpu.memory_space<vmem>>, vector<8x1x128xbf16>,
    %20 = vector.extract_strided_slice %1 {offsets = [0, 0, 0], sizes = [8, 7, 128], strides = [1, 1, 1]} : vector<8x8x128xbf16> to vector<8x7x128xbf16>
    %c0_30 = arith.constant 0 : index
    %c1_31 = arith.constant 1 : index
    %c384_32 = arith.constant 384 : index
    %21 = vector.load %arg8[%c0_30, %c1_31, %c384_32] : memref<8x8x1152xbf16, #tpu.memory_space<vmem>>, vector<8x7x128xbf16>
    tpu.vector_store %arg8[%c0_30, %c1_31, %c384_32], %20 {strides = array<i32>} : memref<8x8x1152xbf16, #tpu.memory_space<vmem>>, vector<8x7x128xbf16>,
    %c0_33 = arith.constant 0 : index
    %c0_34 = arith.constant 0 : index
    %c512 = arith.constant 512 : index
    %22 = vector.load %arg8[%c0_33, %c0_34, %c512] : memref<8x8x1152xbf16, #tpu.memory_space<vmem>>, vector<8x8x128xbf16>
    tpu.vector_store %arg8[%c0_33, %c0_34, %c512], %1 {strides = array<i32>} : memref<8x8x1152xbf16, #tpu.memory_space<vmem>>, vector<8x8x128xbf16>,
    %cst_35 = arith.constant 0.000000e+00 : bf16
    %23 = vector.broadcast %cst_35 : bf16 to vector<8x1x128xbf16>
    %c0_36 = arith.constant 0 : index
    %c7_37 = arith.constant 7 : index
    %c640 = arith.constant 640 : index
    %24 = vector.load %arg8[%c0_36, %c7_37, %c640] : memref<8x8x1152xbf16, #tpu.memory_space<vmem>>, vector<8x1x128xbf16>
    tpu.vector_store %arg8[%c0_36, %c7_37, %c640], %23 {strides = array<i32>} : memref<8x8x1152xbf16, #tpu.memory_space<vmem>>, vector<8x1x128xbf16>,
    %25 = vector.extract_strided_slice %1 {offsets = [0, 1, 0], sizes = [8, 7, 128], strides = [1, 1, 1]} : vector<8x8x128xbf16> to vector<8x7x128xbf16>
    %c0_38 = arith.constant 0 : index
    %c0_39 = arith.constant 0 : index
    %c640_40 = arith.constant 640 : index
    %26 = vector.load %arg8[%c0_38, %c0_39, %c640_40] : memref<8x8x1152xbf16, #tpu.memory_space<vmem>>, vector<8x7x128xbf16>
    tpu.vector_store %arg8[%c0_38, %c0_39, %c640_40], %25 {strides = array<i32>} : memref<8x8x1152xbf16, #tpu.memory_space<vmem>>, vector<8x7x128xbf16>,
    %cst_41 = arith.constant 0.000000e+00 : bf16
    %27 = vector.broadcast %cst_41 : bf16 to vector<1x8x128xbf16>
    %c7_42 = arith.constant 7 : index
    %c0_43 = arith.constant 0 : index
    %c768 = arith.constant 768 : index
    %28 = vector.load %arg8[%c7_42, %c0_43, %c768] : memref<8x8x1152xbf16, #tpu.memory_space<vmem>>, vector<1x8x128xbf16>
    tpu.vector_store %arg8[%c7_42, %c0_43, %c768], %27 {strides = array<i32>} : memref<8x8x1152xbf16, #tpu.memory_space<vmem>>, vector<1x8x128xbf16>,
    %cst_44 = arith.constant 0.000000e+00 : bf16
    %29 = vector.broadcast %cst_44 : bf16 to vector<8x1x128xbf16>
    %c0_45 = arith.constant 0 : index
    %c0_46 = arith.constant 0 : index
    %c768_47 = arith.constant 768 : index
    %30 = vector.load %arg8[%c0_45, %c0_46, %c768_47] : memref<8x8x1152xbf16, #tpu.memory_space<vmem>>, vector<8x1x128xbf16>
    tpu.vector_store %arg8[%c0_45, %c0_46, %c768_47], %29 {strides = array<i32>} : memref<8x8x1152xbf16, #tpu.memory_space<vmem>>, vector<8x1x128xbf16>,
    %31 = vector.extract_strided_slice %1 {offsets = [1, 0, 0], sizes = [7, 7, 128], strides = [1, 1, 1]} : vector<8x8x128xbf16> to vector<7x7x128xbf16>
    %c0_48 = arith.constant 0 : index
    %c1_49 = arith.constant 1 : index
    %c768_50 = arith.constant 768 : index
    %32 = vector.load %arg8[%c0_48, %c1_49, %c768_50] : memref<8x8x1152xbf16, #tpu.memory_space<vmem>>, vector<7x7x128xbf16>
    tpu.vector_store %arg8[%c0_48, %c1_49, %c768_50], %31 {strides = array<i32>} : memref<8x8x1152xbf16, #tpu.memory_space<vmem>>, vector<7x7x128xbf16>,
    %cst_51 = arith.constant 0.000000e+00 : bf16
    %33 = vector.broadcast %cst_51 : bf16 to vector<1x8x128xbf16>
    %c7_52 = arith.constant 7 : index
    %c0_53 = arith.constant 0 : index
    %c896 = arith.constant 896 : index
    %34 = vector.load %arg8[%c7_52, %c0_53, %c896] : memref<8x8x1152xbf16, #tpu.memory_space<vmem>>, vector<1x8x128xbf16>
    tpu.vector_store %arg8[%c7_52, %c0_53, %c896], %33 {strides = array<i32>} : memref<8x8x1152xbf16, #tpu.memory_space<vmem>>, vector<1x8x128xbf16>,
    %35 = vector.extract_strided_slice %1 {offsets = [1, 0, 0], sizes = [7, 8, 128], strides = [1, 1, 1]} : vector<8x8x128xbf16> to vector<7x8x128xbf16>
    %c0_54 = arith.constant 0 : index
    %c0_55 = arith.constant 0 : index
    %c896_56 = arith.constant 896 : index
    %36 = vector.load %arg8[%c0_54, %c0_55, %c896_56] : memref<8x8x1152xbf16, #tpu.memory_space<vmem>>, vector<7x8x128xbf16>
    tpu.vector_store %arg8[%c0_54, %c0_55, %c896_56], %35 {strides = array<i32>} : memref<8x8x1152xbf16, #tpu.memory_space<vmem>>, vector<7x8x128xbf16>,
    %cst_57 = arith.constant 0.000000e+00 : bf16
    %37 = vector.broadcast %cst_57 : bf16 to vector<1x8x128xbf16>
    %c7_58 = arith.constant 7 : index
    %c0_59 = arith.constant 0 : index
    %c1024 = arith.constant 1024 : index
    %38 = vector.load %arg8[%c7_58, %c0_59, %c1024] : memref<8x8x1152xbf16, #tpu.memory_space<vmem>>, vector<1x8x128xbf16>
    tpu.vector_store %arg8[%c7_58, %c0_59, %c1024], %37 {strides = array<i32>} : memref<8x8x1152xbf16, #tpu.memory_space<vmem>>, vector<1x8x128xbf16>,
    %cst_60 = arith.constant 0.000000e+00 : bf16
    %39 = vector.broadcast %cst_60 : bf16 to vector<8x1x128xbf16>
    %c0_61 = arith.constant 0 : index
    %c7_62 = arith.constant 7 : index
    %c1024_63 = arith.constant 1024 : index
    %40 = vector.load %arg8[%c0_61, %c7_62, %c1024_63] : memref<8x8x1152xbf16, #tpu.memory_space<vmem>>, vector<8x1x128xbf16>
    tpu.vector_store %arg8[%c0_61, %c7_62, %c1024_63], %39 {strides = array<i32>} : memref<8x8x1152xbf16, #tpu.memory_space<vmem>>, vector<8x1x128xbf16>,
    %41 = vector.extract_strided_slice %1 {offsets = [1, 1, 0], sizes = [7, 7, 128], strides = [1, 1, 1]} : vector<8x8x128xbf16> to vector<7x7x128xbf16>
    %c0_64 = arith.constant 0 : index
    %c0_65 = arith.constant 0 : index
    %c1024_66 = arith.constant 1024 : index
    %42 = vector.load %arg8[%c0_64, %c0_65, %c1024_66] : memref<8x8x1152xbf16, #tpu.memory_space<vmem>>, vector<7x7x128xbf16>
    tpu.vector_store %arg8[%c0_64, %c0_65, %c1024_66], %41 {strides = array<i32>} : memref<8x8x1152xbf16, #tpu.memory_space<vmem>>, vector<7x7x128xbf16>,
    %c0_67 = arith.constant 0 : index
    %c0_68 = arith.constant 0 : index
    %c0_69 = arith.constant 0 : index
    %43 = vector.load %arg8[%c0_67, %c0_68, %c0_69] : memref<8x8x1152xbf16, #tpu.memory_space<vmem>>, vector<8x8x1152xbf16>
    %44 = vector.shape_cast %43 : vector<8x8x1152xbf16> to vector<64x1152xbf16>
    %c0_70 = arith.constant 0 : index
    %c0_71 = arith.constant 0 : index
    %45 = vector.load %arg2[%c0_70, %c0_71] : memref<1152x128xbf16, #tpu.memory_space<vmem>>, vector<1152x128xbf16>
    %cst_72 = arith.constant dense<0.000000e+00> : vector<64x128xf32>
    %46 = tpu.matmul %44, %45, %cst_72 {dimension_numbers = #tpu.dot_dimension_numbers<[1], [0], [0], [1], [0, 0, 1, 1], [], []>} : vector<64x1152xbf16>, vector<1152x128xbf16>, vector<64x128xf32> -> vector<64x128xf32>
    %c0_73 = arith.constant 0 : index
    %c0_74 = arith.constant 0 : index
    %47 = vector.load %arg3[%c0_73, %c0_74] : memref<1x128xf32, #tpu.memory_space<vmem>>, vector<1x128xf32>
    %48 = vector.broadcast %47 : vector<1x128xf32> to vector<64x128xf32>
    %49 = arith.addf %46, %48 : vector<64x128xf32>
    %cst_75 = arith.constant 0.000000e+00 : f32
    %50 = vector.broadcast %cst_75 : f32 to vector<64x128xf32>
    %51 = arith.maximumf %49, %50 : vector<64x128xf32>
    %52 = vector.shape_cast %51 : vector<64x128xf32> to vector<8x8x128xf32>
    %53 = arith.truncf %52 : vector<8x8x128xf32> to vector<8x8x128xbf16>
    %cst_76 = arith.constant 0.000000e+00 : bf16
    %54 = vector.broadcast %cst_76 : bf16 to vector<1x8x128xbf16>
    %c0_77 = arith.constant 0 : index
    %c0_78 = arith.constant 0 : index
    %c0_79 = arith.constant 0 : index
    %55 = vector.load %arg8[%c0_77, %c0_78, %c0_79] : memref<8x8x1152xbf16, #tpu.memory_space<vmem>>, vector<1x8x128xbf16>
    tpu.vector_store %arg8[%c0_77, %c0_78, %c0_79], %54 {strides = array<i32>} : memref<8x8x1152xbf16, #tpu.memory_space<vmem>>, vector<1x8x128xbf16>,
    %cst_80 = arith.constant 0.000000e+00 : bf16
    %56 = vector.broadcast %cst_80 : bf16 to vector<8x1x128xbf16>
    %c0_81 = arith.constant 0 : index
    %c0_82 = arith.constant 0 : index
    %c0_83 = arith.constant 0 : index
    %57 = vector.load %arg8[%c0_81, %c0_82, %c0_83] : memref<8x8x1152xbf16, #tpu.memory_space<vmem>>, vector<8x1x128xbf16>
    tpu.vector_store %arg8[%c0_81, %c0_82, %c0_83], %56 {strides = array<i32>} : memref<8x8x1152xbf16, #tpu.memory_space<vmem>>, vector<8x1x128xbf16>,
    %58 = vector.extract_strided_slice %53 {offsets = [0, 0, 0], sizes = [7, 7, 128], strides = [1, 1, 1]} : vector<8x8x128xbf16> to vector<7x7x128xbf16>
    %c1_84 = arith.constant 1 : index
    %c1_85 = arith.constant 1 : index
    %c0_86 = arith.constant 0 : index
    %59 = vector.load %arg8[%c1_84, %c1_85, %c0_86] : memref<8x8x1152xbf16, #tpu.memory_space<vmem>>, vector<7x7x128xbf16>
    tpu.vector_store %arg8[%c1_84, %c1_85, %c0_86], %58 {strides = array<i32>} : memref<8x8x1152xbf16, #tpu.memory_space<vmem>>, vector<7x7x128xbf16>,
    %cst_87 = arith.constant 0.000000e+00 : bf16
    %60 = vector.broadcast %cst_87 : bf16 to vector<1x8x128xbf16>
    %c0_88 = arith.constant 0 : index
    %c0_89 = arith.constant 0 : index
    %c128_90 = arith.constant 128 : index
    %61 = vector.load %arg8[%c0_88, %c0_89, %c128_90] : memref<8x8x1152xbf16, #tpu.memory_space<vmem>>, vector<1x8x128xbf16>
    tpu.vector_store %arg8[%c0_88, %c0_89, %c128_90], %60 {strides = array<i32>} : memref<8x8x1152xbf16, #tpu.memory_space<vmem>>, vector<1x8x128xbf16>,
    %62 = vector.extract_strided_slice %53 {offsets = [0, 0, 0], sizes = [7, 8, 128], strides = [1, 1, 1]} : vector<8x8x128xbf16> to vector<7x8x128xbf16>
    %c1_91 = arith.constant 1 : index
    %c0_92 = arith.constant 0 : index
    %c128_93 = arith.constant 128 : index
    %63 = vector.load %arg8[%c1_91, %c0_92, %c128_93] : memref<8x8x1152xbf16, #tpu.memory_space<vmem>>, vector<7x8x128xbf16>
    tpu.vector_store %arg8[%c1_91, %c0_92, %c128_93], %62 {strides = array<i32>} : memref<8x8x1152xbf16, #tpu.memory_space<vmem>>, vector<7x8x128xbf16>,
    %cst_94 = arith.constant 0.000000e+00 : bf16
    %64 = vector.broadcast %cst_94 : bf16 to vector<1x8x128xbf16>
    %c0_95 = arith.constant 0 : index
    %c0_96 = arith.constant 0 : index
    %c256_97 = arith.constant 256 : index
    %65 = vector.load %arg8[%c0_95, %c0_96, %c256_97] : memref<8x8x1152xbf16, #tpu.memory_space<vmem>>, vector<1x8x128xbf16>
    tpu.vector_store %arg8[%c0_95, %c0_96, %c256_97], %64 {strides = array<i32>} : memref<8x8x1152xbf16, #tpu.memory_space<vmem>>, vector<1x8x128xbf16>,
    %cst_98 = arith.constant 0.000000e+00 : bf16
    %66 = vector.broadcast %cst_98 : bf16 to vector<8x1x128xbf16>
    %c0_99 = arith.constant 0 : index
    %c7_100 = arith.constant 7 : index
    %c256_101 = arith.constant 256 : index
    %67 = vector.load %arg8[%c0_99, %c7_100, %c256_101] : memref<8x8x1152xbf16, #tpu.memory_space<vmem>>, vector<8x1x128xbf16>
    tpu.vector_store %arg8[%c0_99, %c7_100, %c256_101], %66 {strides = array<i32>} : memref<8x8x1152xbf16, #tpu.memory_space<vmem>>, vector<8x1x128xbf16>,
    %68 = vector.extract_strided_slice %53 {offsets = [0, 1, 0], sizes = [7, 7, 128], strides = [1, 1, 1]} : vector<8x8x128xbf16> to vector<7x7x128xbf16>
    %c1_102 = arith.constant 1 : index
    %c0_103 = arith.constant 0 : index
    %c256_104 = arith.constant 256 : index
    %69 = vector.load %arg8[%c1_102, %c0_103, %c256_104] : memref<8x8x1152xbf16, #tpu.memory_space<vmem>>, vector<7x7x128xbf16>
    tpu.vector_store %arg8[%c1_102, %c0_103, %c256_104], %68 {strides = array<i32>} : memref<8x8x1152xbf16, #tpu.memory_space<vmem>>, vector<7x7x128xbf16>,
    %cst_105 = arith.constant 0.000000e+00 : bf16
    %70 = vector.broadcast %cst_105 : bf16 to vector<8x1x128xbf16>
    %c0_106 = arith.constant 0 : index
    %c0_107 = arith.constant 0 : index
    %c384_108 = arith.constant 384 : index
    %71 = vector.load %arg8[%c0_106, %c0_107, %c384_108] : memref<8x8x1152xbf16, #tpu.memory_space<vmem>>, vector<8x1x128xbf16>
    tpu.vector_store %arg8[%c0_106, %c0_107, %c384_108], %70 {strides = array<i32>} : memref<8x8x1152xbf16, #tpu.memory_space<vmem>>, vector<8x1x128xbf16>,
    %72 = vector.extract_strided_slice %53 {offsets = [0, 0, 0], sizes = [8, 7, 128], strides = [1, 1, 1]} : vector<8x8x128xbf16> to vector<8x7x128xbf16>
    %c0_109 = arith.constant 0 : index
    %c1_110 = arith.constant 1 : index
    %c384_111 = arith.constant 384 : index
    %73 = vector.load %arg8[%c0_109, %c1_110, %c384_111] : memref<8x8x1152xbf16, #tpu.memory_space<vmem>>, vector<8x7x128xbf16>
    tpu.vector_store %arg8[%c0_109, %c1_110, %c384_111], %72 {strides = array<i32>} : memref<8x8x1152xbf16, #tpu.memory_space<vmem>>, vector<8x7x128xbf16>,
    %c0_112 = arith.constant 0 : index
    %c0_113 = arith.constant 0 : index
    %c512_114 = arith.constant 512 : index
    %74 = vector.load %arg8[%c0_112, %c0_113, %c512_114] : memref<8x8x1152xbf16, #tpu.memory_space<vmem>>, vector<8x8x128xbf16>
    tpu.vector_store %arg8[%c0_112, %c0_113, %c512_114], %53 {strides = array<i32>} : memref<8x8x1152xbf16, #tpu.memory_space<vmem>>, vector<8x8x128xbf16>,
    %cst_115 = arith.constant 0.000000e+00 : bf16
    %75 = vector.broadcast %cst_115 : bf16 to vector<8x1x128xbf16>
    %c0_116 = arith.constant 0 : index
    %c7_117 = arith.constant 7 : index
    %c640_118 = arith.constant 640 : index
    %76 = vector.load %arg8[%c0_116, %c7_117, %c640_118] : memref<8x8x1152xbf16, #tpu.memory_space<vmem>>, vector<8x1x128xbf16>
    tpu.vector_store %arg8[%c0_116, %c7_117, %c640_118], %75 {strides = array<i32>} : memref<8x8x1152xbf16, #tpu.memory_space<vmem>>, vector<8x1x128xbf16>,
    %77 = vector.extract_strided_slice %53 {offsets = [0, 1, 0], sizes = [8, 7, 128], strides = [1, 1, 1]} : vector<8x8x128xbf16> to vector<8x7x128xbf16>
    %c0_119 = arith.constant 0 : index
    %c0_120 = arith.constant 0 : index
    %c640_121 = arith.constant 640 : index
    %78 = vector.load %arg8[%c0_119, %c0_120, %c640_121] : memref<8x8x1152xbf16, #tpu.memory_space<vmem>>, vector<8x7x128xbf16>
    tpu.vector_store %arg8[%c0_119, %c0_120, %c640_121], %77 {strides = array<i32>} : memref<8x8x1152xbf16, #tpu.memory_space<vmem>>, vector<8x7x128xbf16>,
    %cst_122 = arith.constant 0.000000e+00 : bf16
    %79 = vector.broadcast %cst_122 : bf16 to vector<1x8x128xbf16>
    %c7_123 = arith.constant 7 : index
    %c0_124 = arith.constant 0 : index
    %c768_125 = arith.constant 768 : index
    %80 = vector.load %arg8[%c7_123, %c0_124, %c768_125] : memref<8x8x1152xbf16, #tpu.memory_space<vmem>>, vector<1x8x128xbf16>
    tpu.vector_store %arg8[%c7_123, %c0_124, %c768_125], %79 {strides = array<i32>} : memref<8x8x1152xbf16, #tpu.memory_space<vmem>>, vector<1x8x128xbf16>,
    %cst_126 = arith.constant 0.000000e+00 : bf16
    %81 = vector.broadcast %cst_126 : bf16 to vector<8x1x128xbf16>
    %c0_127 = arith.constant 0 : index
    %c0_128 = arith.constant 0 : index
    %c768_129 = arith.constant 768 : index
    %82 = vector.load %arg8[%c0_127, %c0_128, %c768_129] : memref<8x8x1152xbf16, #tpu.memory_space<vmem>>, vector<8x1x128xbf16>
    tpu.vector_store %arg8[%c0_127, %c0_128, %c768_129], %81 {strides = array<i32>} : memref<8x8x1152xbf16, #tpu.memory_space<vmem>>, vector<8x1x128xbf16>,
    %83 = vector.extract_strided_slice %53 {offsets = [1, 0, 0], sizes = [7, 7, 128], strides = [1, 1, 1]} : vector<8x8x128xbf16> to vector<7x7x128xbf16>
    %c0_130 = arith.constant 0 : index
    %c1_131 = arith.constant 1 : index
    %c768_132 = arith.constant 768 : index
    %84 = vector.load %arg8[%c0_130, %c1_131, %c768_132] : memref<8x8x1152xbf16, #tpu.memory_space<vmem>>, vector<7x7x128xbf16>
    tpu.vector_store %arg8[%c0_130, %c1_131, %c768_132], %83 {strides = array<i32>} : memref<8x8x1152xbf16, #tpu.memory_space<vmem>>, vector<7x7x128xbf16>,
    %cst_133 = arith.constant 0.000000e+00 : bf16
    %85 = vector.broadcast %cst_133 : bf16 to vector<1x8x128xbf16>
    %c7_134 = arith.constant 7 : index
    %c0_135 = arith.constant 0 : index
    %c896_136 = arith.constant 896 : index
    %86 = vector.load %arg8[%c7_134, %c0_135, %c896_136] : memref<8x8x1152xbf16, #tpu.memory_space<vmem>>, vector<1x8x128xbf16>
    tpu.vector_store %arg8[%c7_134, %c0_135, %c896_136], %85 {strides = array<i32>} : memref<8x8x1152xbf16, #tpu.memory_space<vmem>>, vector<1x8x128xbf16>,
    %87 = vector.extract_strided_slice %53 {offsets = [1, 0, 0], sizes = [7, 8, 128], strides = [1, 1, 1]} : vector<8x8x128xbf16> to vector<7x8x128xbf16>
    %c0_137 = arith.constant 0 : index
    %c0_138 = arith.constant 0 : index
    %c896_139 = arith.constant 896 : index
    %88 = vector.load %arg8[%c0_137, %c0_138, %c896_139] : memref<8x8x1152xbf16, #tpu.memory_space<vmem>>, vector<7x8x128xbf16>
    tpu.vector_store %arg8[%c0_137, %c0_138, %c896_139], %87 {strides = array<i32>} : memref<8x8x1152xbf16, #tpu.memory_space<vmem>>, vector<7x8x128xbf16>,
    %cst_140 = arith.constant 0.000000e+00 : bf16
    %89 = vector.broadcast %cst_140 : bf16 to vector<1x8x128xbf16>
    %c7_141 = arith.constant 7 : index
    %c0_142 = arith.constant 0 : index
    %c1024_143 = arith.constant 1024 : index
    %90 = vector.load %arg8[%c7_141, %c0_142, %c1024_143] : memref<8x8x1152xbf16, #tpu.memory_space<vmem>>, vector<1x8x128xbf16>
    tpu.vector_store %arg8[%c7_141, %c0_142, %c1024_143], %89 {strides = array<i32>} : memref<8x8x1152xbf16, #tpu.memory_space<vmem>>, vector<1x8x128xbf16>,
    %cst_144 = arith.constant 0.000000e+00 : bf16
    %91 = vector.broadcast %cst_144 : bf16 to vector<8x1x128xbf16>
    %c0_145 = arith.constant 0 : index
    %c7_146 = arith.constant 7 : index
    %c1024_147 = arith.constant 1024 : index
    %92 = vector.load %arg8[%c0_145, %c7_146, %c1024_147] : memref<8x8x1152xbf16, #tpu.memory_space<vmem>>, vector<8x1x128xbf16>
    tpu.vector_store %arg8[%c0_145, %c7_146, %c1024_147], %91 {strides = array<i32>} : memref<8x8x1152xbf16, #tpu.memory_space<vmem>>, vector<8x1x128xbf16>,
    %93 = vector.extract_strided_slice %53 {offsets = [1, 1, 0], sizes = [7, 7, 128], strides = [1, 1, 1]} : vector<8x8x128xbf16> to vector<7x7x128xbf16>
    %c0_148 = arith.constant 0 : index
    %c0_149 = arith.constant 0 : index
    %c1024_150 = arith.constant 1024 : index
    %94 = vector.load %arg8[%c0_148, %c0_149, %c1024_150] : memref<8x8x1152xbf16, #tpu.memory_space<vmem>>, vector<7x7x128xbf16>
    tpu.vector_store %arg8[%c0_148, %c0_149, %c1024_150], %93 {strides = array<i32>} : memref<8x8x1152xbf16, #tpu.memory_space<vmem>>, vector<7x7x128xbf16>,
    %c0_151 = arith.constant 0 : index
    %c0_152 = arith.constant 0 : index
    %c0_153 = arith.constant 0 : index
    %95 = vector.load %arg8[%c0_151, %c0_152, %c0_153] : memref<8x8x1152xbf16, #tpu.memory_space<vmem>>, vector<8x8x1152xbf16>
    %96 = vector.shape_cast %95 : vector<8x8x1152xbf16> to vector<64x1152xbf16>
    %c0_154 = arith.constant 0 : index
    %c0_155 = arith.constant 0 : index
    %97 = vector.load %arg4[%c0_154, %c0_155] : memref<1152x128xbf16, #tpu.memory_space<vmem>>, vector<1152x128xbf16>
    %cst_156 = arith.constant dense<0.000000e+00> : vector<64x128xf32>
    %98 = tpu.matmul %96, %97, %cst_156 {dimension_numbers = #tpu.dot_dimension_numbers<[1], [0], [0], [1], [0, 0, 1, 1], [], []>} : vector<64x1152xbf16>, vector<1152x128xbf16>, vector<64x128xf32> -> vector<64x128xf32>
    %c0_157 = arith.constant 0 : index
    %c0_158 = arith.constant 0 : index
    %99 = vector.load %arg5[%c0_157, %c0_158] : memref<1x128xf32, #tpu.memory_space<vmem>>, vector<1x128xf32>
    %100 = vector.broadcast %99 : vector<1x128xf32> to vector<64x128xf32>
    %101 = arith.addf %98, %100 : vector<64x128xf32>
    %cst_159 = arith.constant 0.000000e+00 : f32
    %102 = vector.broadcast %cst_159 : f32 to vector<64x128xf32>
    %103 = arith.maximumf %101, %102 : vector<64x128xf32>
    %104 = vector.shape_cast %1 : vector<8x8x128xbf16> to vector<64x128xbf16>
    %105 = arith.extf %104 : vector<64x128xbf16> to vector<64x128xf32>
    %106 = arith.addf %103, %105 : vector<64x128xf32>
    %107 = vector.shape_cast %106 : vector<64x128xf32> to vector<8x8x128xf32>
    %108 = arith.truncf %107 : vector<8x8x128xf32> to vector<8x8x128xbf16>
    %c0_160 = arith.constant 0 : index
    %c0_161 = arith.constant 0 : index
    %c0_162 = arith.constant 0 : index
    %c0_163 = arith.constant 0 : index
    %109 = vector.load %arg6[%c0_160, %c0_161, %c0_162, %c0_163] : memref<1x8x8x128xbf16, #tpu.memory_space<vmem>>, vector<1x8x8x128xbf16>
    %110 = vector.shape_cast %109 : vector<1x8x8x128xbf16> to vector<8x8x128xbf16>
    %111 = vector.shape_cast %108 : vector<8x8x128xbf16> to vector<1x8x8x128xbf16>
    tpu.vector_store %arg6[%c0_160, %c0_161, %c0_162, %c0_163], %111 {strides = array<i32>} : memref<1x8x8x128xbf16, #tpu.memory_space<vmem>>, vector<1x8x8x128xbf16>,
    %cst_164 = arith.constant dense<0.000000e+00> : vector<128xf32>
    %112 = vector.multi_reduction <add>, %106, %cst_164 [0] : vector<64x128xf32> to vector<128xf32>
    %113 = vector.shape_cast %112 : vector<128xf32> to vector<1x128xf32>
    %c0_165 = arith.constant 0 : index
    %c0_166 = arith.constant 0 : index
    %c0_167 = arith.constant 0 : index
    %114 = vector.load %arg7[%c0_165, %c0_166, %c0_167] : memref<1x1x128xf32, #tpu.memory_space<vmem>>, vector<1x1x128xf32>
    %115 = vector.shape_cast %114 : vector<1x1x128xf32> to vector<1x128xf32>
    %116 = vector.shape_cast %113 : vector<1x128xf32> to vector<1x1x128xf32>
    tpu.vector_store %arg7[%c0_165, %c0_166, %c0_167], %116 {strides = array<i32>} : memref<1x1x128xf32, #tpu.memory_space<vmem>>, vector<1x1x128xf32>,
    return
  }
  func.func @transform_0(%arg0: i32) -> (i32, i32, i32, i32) {
    %c0_i32 = arith.constant 0 : i32
    %c0_i32_0 = arith.constant 0 : i32
    %c1_i32 = arith.constant 1 : i32
    %c0_i32_1 = arith.constant 0 : i32
    return %arg0, %c0_i32, %c0_i32_0, %c1_i32 : i32, i32, i32, i32
  }
  func.func @transform_1(%arg0: i32) -> (i32, i32) {
    %c0_i32 = arith.constant 0 : i32
    %c0_i32_0 = arith.constant 0 : i32
    %c0_i32_1 = arith.constant 0 : i32
    return %c0_i32, %c0_i32_0 : i32, i32
  }
  func.func @transform_2(%arg0: i32) -> (i32, i32) {
    %c0_i32 = arith.constant 0 : i32
    %c0_i32_0 = arith.constant 0 : i32
    %c0_i32_1 = arith.constant 0 : i32
    return %c0_i32, %c0_i32_0 : i32, i32
  }
  func.func @transform_3(%arg0: i32) -> (i32, i32) {
    %c0_i32 = arith.constant 0 : i32
    %c0_i32_0 = arith.constant 0 : i32
    %c0_i32_1 = arith.constant 0 : i32
    return %c0_i32, %c0_i32_0 : i32, i32
  }
  func.func @transform_4(%arg0: i32) -> (i32, i32) {
    %c0_i32 = arith.constant 0 : i32
    %c0_i32_0 = arith.constant 0 : i32
    %c0_i32_1 = arith.constant 0 : i32
    return %c0_i32, %c0_i32_0 : i32, i32
  }
  func.func @transform_5(%arg0: i32) -> (i32, i32, i32, i32) {
    %c0_i32 = arith.constant 0 : i32
    %c0_i32_0 = arith.constant 0 : i32
    %c0_i32_1 = arith.constant 0 : i32
    %c0_i32_2 = arith.constant 0 : i32
    return %arg0, %c0_i32, %c0_i32_0, %c0_i32_1 : i32, i32, i32, i32
  }
  func.func @transform_6(%arg0: i32) -> (i32, i32, i32) {
    %c0_i32 = arith.constant 0 : i32
    %c0_i32_0 = arith.constant 0 : i32
    %c0_i32_1 = arith.constant 0 : i32
    return %arg0, %c0_i32, %c0_i32_0 : i32, i32, i32
  }
}

module attributes {stable_mosaic.version = 11 : i64} {
  func.func @_conv3_kernel(%arg0: i32, %arg1: i32, %arg2: memref<1x64x128xbf16, #tpu.memory_space<vmem>>, %arg3: memref<1x64x128xbf16, #tpu.memory_space<vmem>>, %arg4: memref<1x256x1xf32, #tpu.memory_space<vmem>>, %arg5: memref<256x128xbf16, #tpu.memory_space<vmem>>, %arg6: memref<1x128xf32, #tpu.memory_space<vmem>>, %arg7: memref<1x64x128xbf16, #tpu.memory_space<vmem>>) attributes {dimension_semantics = [#tpu.dimension_semantics<parallel>, #tpu.dimension_semantics<parallel>], iteration_bounds = array<i64: 2, 1>, scalar_prefetch = 0 : i64, scratch_operands = 0 : i64, tpu.core_type = #tpu.core_type<tc>, window_params = [{transform_indices = @transform_0, window_bounds = array<i64: 1, 64, 128>}, {transform_indices = @transform_1, window_bounds = array<i64: 1, 64, 128>}, {transform_indices = @transform_2, window_bounds = array<i64: 1, 256, 1>}, {pipeline_mode = #tpu.pipeline_mode<synchronous>, transform_indices = @transform_3, window_bounds = array<i64: 256, 128>}, {pipeline_mode = #tpu.pipeline_mode<synchronous>, transform_indices = @transform_4, window_bounds = array<i64: 1, 128>}, {transform_indices = @transform_5, window_bounds = array<i64: 1, 64, 128>}]} {
    %c0 = arith.constant 0 : index
    %c0_0 = arith.constant 0 : index
    %0 = vector.load %arg5[%c0, %c0_0] : memref<256x128xbf16, #tpu.memory_space<vmem>>, vector<256x128xbf16>
    %c0_1 = arith.constant 0 : index
    %c0_2 = arith.constant 0 : index
    %c0_3 = arith.constant 0 : index
    %1 = vector.load %arg4[%c0_1, %c0_2, %c0_3] : memref<1x256x1xf32, #tpu.memory_space<vmem>>, vector<1x256x1xf32>
    %2 = vector.shape_cast %1 : vector<1x256x1xf32> to vector<256x1xf32>
    %3 = arith.extf %0 : vector<256x128xbf16> to vector<256x128xf32>
    %4 = vector.broadcast %2 : vector<256x1xf32> to vector<256x128xf32>
    %5 = arith.mulf %3, %4 : vector<256x128xf32>
    %6 = arith.truncf %5 : vector<256x128xf32> to vector<256x128xbf16>
    %c0_4 = arith.constant 0 : index
    %c0_5 = arith.constant 0 : index
    %c0_6 = arith.constant 0 : index
    %7 = vector.load %arg2[%c0_4, %c0_5, %c0_6] : memref<1x64x128xbf16, #tpu.memory_space<vmem>>, vector<1x64x128xbf16>
    %8 = vector.shape_cast %7 : vector<1x64x128xbf16> to vector<64x128xbf16>
    %9 = vector.extract_strided_slice %6 {offsets = [0, 0], sizes = [128, 128], strides = [1, 1]} : vector<256x128xbf16> to vector<128x128xbf16>
    %cst = arith.constant dense<0.000000e+00> : vector<64x128xf32>
    %10 = tpu.matmul %8, %9, %cst {dimension_numbers = #tpu.dot_dimension_numbers<[1], [0], [0], [1], [0, 0, 1, 1], [], []>} : vector<64x128xbf16>, vector<128x128xbf16>, vector<64x128xf32> -> vector<64x128xf32>
    %c0_7 = arith.constant 0 : index
    %c0_8 = arith.constant 0 : index
    %c0_9 = arith.constant 0 : index
    %11 = vector.load %arg3[%c0_7, %c0_8, %c0_9] : memref<1x64x128xbf16, #tpu.memory_space<vmem>>, vector<1x64x128xbf16>
    %12 = vector.shape_cast %11 : vector<1x64x128xbf16> to vector<64x128xbf16>
    %13 = vector.extract_strided_slice %6 {offsets = [128, 0], sizes = [128, 128], strides = [1, 1]} : vector<256x128xbf16> to vector<128x128xbf16>
    %cst_10 = arith.constant dense<0.000000e+00> : vector<64x128xf32>
    %14 = tpu.matmul %12, %13, %cst_10 {dimension_numbers = #tpu.dot_dimension_numbers<[1], [0], [0], [1], [0, 0, 1, 1], [], []>} : vector<64x128xbf16>, vector<128x128xbf16>, vector<64x128xf32> -> vector<64x128xf32>
    %15 = arith.addf %10, %14 : vector<64x128xf32>
    %c0_11 = arith.constant 0 : index
    %c0_12 = arith.constant 0 : index
    %16 = vector.load %arg6[%c0_11, %c0_12] : memref<1x128xf32, #tpu.memory_space<vmem>>, vector<1x128xf32>
    %17 = vector.broadcast %16 : vector<1x128xf32> to vector<64x128xf32>
    %18 = arith.addf %15, %17 : vector<64x128xf32>
    %cst_13 = arith.constant 0.000000e+00 : f32
    %19 = vector.broadcast %cst_13 : f32 to vector<64x128xf32>
    %20 = arith.maximumf %18, %19 : vector<64x128xf32>
    %21 = arith.truncf %20 : vector<64x128xf32> to vector<64x128xbf16>
    %c0_14 = arith.constant 0 : index
    %c0_15 = arith.constant 0 : index
    %c0_16 = arith.constant 0 : index
    %22 = vector.load %arg7[%c0_14, %c0_15, %c0_16] : memref<1x64x128xbf16, #tpu.memory_space<vmem>>, vector<1x64x128xbf16>
    %23 = vector.shape_cast %22 : vector<1x64x128xbf16> to vector<64x128xbf16>
    %24 = vector.shape_cast %21 : vector<64x128xbf16> to vector<1x64x128xbf16>
    tpu.vector_store %arg7[%c0_14, %c0_15, %c0_16], %24 {strides = array<i32>} : memref<1x64x128xbf16, #tpu.memory_space<vmem>>, vector<1x64x128xbf16>,
    return
  }
  func.func @transform_0(%arg0: i32, %arg1: i32) -> (i32, i32, i32) {
    %c0_i32 = arith.constant 0 : i32
    %c0_i32_0 = arith.constant 0 : i32
    return %arg0, %arg1, %c0_i32 : i32, i32, i32
  }
  func.func @transform_1(%arg0: i32, %arg1: i32) -> (i32, i32, i32) {
    %c0_i32 = arith.constant 0 : i32
    %c0_i32_0 = arith.constant 0 : i32
    return %arg0, %arg1, %c0_i32 : i32, i32, i32
  }
  func.func @transform_2(%arg0: i32, %arg1: i32) -> (i32, i32, i32) {
    %c0_i32 = arith.constant 0 : i32
    %c0_i32_0 = arith.constant 0 : i32
    %c0_i32_1 = arith.constant 0 : i32
    return %arg0, %c0_i32, %c0_i32_0 : i32, i32, i32
  }
  func.func @transform_3(%arg0: i32, %arg1: i32) -> (i32, i32) {
    %c0_i32 = arith.constant 0 : i32
    %c0_i32_0 = arith.constant 0 : i32
    %c0_i32_1 = arith.constant 0 : i32
    return %c0_i32, %c0_i32_0 : i32, i32
  }
  func.func @transform_4(%arg0: i32, %arg1: i32) -> (i32, i32) {
    %c0_i32 = arith.constant 0 : i32
    %c0_i32_0 = arith.constant 0 : i32
    %c0_i32_1 = arith.constant 0 : i32
    return %c0_i32, %c0_i32_0 : i32, i32
  }
  func.func @transform_5(%arg0: i32, %arg1: i32) -> (i32, i32, i32) {
    %c0_i32 = arith.constant 0 : i32
    %c0_i32_0 = arith.constant 0 : i32
    return %arg0, %arg1, %c0_i32 : i32, i32, i32
  }
}

</mosaic_0001>

<llo_original>
// kernel: csp_res_stage_forward.5
$region0: #{csp_res_stage_forward.5}
  #allocation0 [shape = 'u32[]', space=smem, size = 0x4, offset = 0x4, fixed_abs, tag = 'smem constant byte address 0x4 - core index']
  #allocation1 [shape = 'u32[144,128]{1,0:T(1,128)}', space=vmem, size = 0x12000, scoped, tag = 'internal scratch']
  %s0 = inlined_call_operand.hbm [shape: bf16[2,64,128], index: 0, kind: input, shape index: {}]
  %s1 = inlined_call_operand.hbm [shape: bf16[128,256], index: 1, kind: input, shape index: {}]
  %s2 = inlined_call_operand.hbm [shape: f32[1,256], index: 2, kind: input, shape index: {}]
  %s3 = inlined_call_operand.hbm [shape: bf16[2,64,256], index: 3, kind: output, shape index: {0}]
  %s4 = inlined_call_operand.hbm [shape: f32[2,1,256], index: 4, kind: output, shape index: {1}]
  %5 = xla_tuple %s3, %s4
  %s6 = sld [smem:[#allocation0]]
  $region69: #{csp_res_stage_forward.5} parent=0
    _
  %s8 = ssub.s32 1, %s6
  %s9 = scalar_select 0, %s8, %s6
  $region1: #{csp_res_stage_forward.5} parent=0
    #allocation2 [shape = 'u8[32768]{0}', space=vmem, size = 0x8000, scoped, tag = 'input window, operand 0']
    #allocation3 [shape = 's32[2]{0}', space=sflag, size = 0x8, scoped, tag = 'scoped memory for csp_res_stage_forward.5']
    #allocation4 [shape = 's32[2]{0}', space=sflag, size = 0x8, scoped, tag = 'scoped memory for csp_res_stage_forward.5']
    #allocation5 [shape = 'u8[65536]{0}', space=vmem, size = 0x10000, scoped, tag = 'input window, operand 1, single buffered']
    #allocation6 [shape = 's32[1]{0}', space=sflag, size = 0x4, scoped, tag = 'scoped memory for csp_res_stage_forward.5']
    #allocation7 [shape = 'u8[1024]{0}', space=vmem, size = 0x400, scoped, tag = 'input window, operand 2, single buffered']
    #allocation8 [shape = 'u8[65536]{0}', space=vmem, size = 0x10000, scoped, tag = 'output window, operand 0']
    #allocation9 [shape = 'u8[2048]{0}', space=vmem, size = 0x800, scoped, tag = 'output window, operand 1']
    #allocation10 [shape = 's32[2]{0}', space=sflag, size = 0x8, scoped, tag = 'scoped memory for csp_res_stage_forward.5']
    %10 = vsyncpa [#allocation3], 0
    %s11 = scalar_lea.sflag [#allocation3], 1
    %12 = vsyncpa %s11, 0
    %13 = vsyncpa [#allocation6], 0
    %14 = vsyncpa [#allocation4], 0
    %s15 = scalar_lea.sflag [#allocation4], 1
    %16 = vsyncpa %s15, 0
    %17 = vsyncpa [#allocation10], 0
    %s18 = scalar_lea.sflag [#allocation10], 1
    %19 = vsyncpa %s18, 0
    loop: start=0, step=1, limit=4
    $region2: #{csp_res_stage_forward.5} parent=1 // loop_pre_header
      _
    $region3: #{csp_res_stage_forward.5} parent=1 // loop_header
      %s21 = sphi 0, %s25
      %p22 = scmp.ge.s32.totalorder %s21, 4
      %s28 = sphi 0, %s40
      %s29 = sphi 0, %s36
      %s30 = sphi 0, %s28
      %s31 = sphi 0, %s29
      %s32 = sphi 0, %s30
      %s33 = sphi 0, %s31
      %s45 = sphi 0, %s47
      %s48 = sphi 0, %s45
      %s49 = sphi 0, %s48
      %s65 = sphi 0, %s49
      %s69 = sphi 0, %s69
      %s71 = sphi 0, %s69
      %s72 = sphi 0, %s71
      %s86 = sphi 0, %s72
      %s90 = sphi 0, %s90
      %s92 = sphi 0, %s90
      %s93 = sphi 0, %s92
      %s107 = sphi 0, %s93
      %s115 = sphi 0, %s117
      %s118 = sphi 0, %s115
      %s119 = sphi 0, %s118
      %s135 = sphi 0, %s119
      %s141 = sphi 0, %s143
      %s144 = sphi 0, %s141
      %s145 = sphi 0, %s144
      %s161 = sphi 0, %s145
    $region4: #{csp_res_stage_forward.5} parent=1 // loop_header_branch
      %24 = sbr.rel (%p22) target = $region8
    $region5: #{csp_res_stage_forward.5} parent=1 // loop_body
      %s26 = ssub.s32 %s21, 1
      %s27 = ssub.s32 %s21, 2
      %s34 = sadd.s32 1, %s29
      %p35 = scmp.ge.s32.totalorder %s34, 1
      %s36 = scalar_select %p35, 0, %s34
      %s37 = sadd.s32 1, %s28
      %s38 = scalar_select %p35, %s37, %s28
      %p39 = scmp.ge.s32.totalorder %s38, 2
      %s40 = scalar_select %p39, 0, %s38
      %s41 = ssub.s32 %s28, %s40
      %s42 = ssub.s32 %s29, %s36
      %s43 = sor.u32 %s41, %s42
      %p44 = scmp.eq.s32.totalorder %s43, 0
      %s46 = sadd.s32 %s45, 1
      %s47 = scalar_select %p44, %s45, %s46
      %p50 = pneg %p44
      %p51 = scmp.eq.s32.totalorder %s21, 1
      %p52 = por %p50, %p51
      %p53 = scmp.ne.s32.totalorder %s45, %s48
      %p54 = scmp.eq.s32.totalorder %s21, 0
      %p55 = por %p53, %p54
      %p56 = scmp.ne.s32.totalorder %s45, %s48
      %p57 = scmp.eq.s32.totalorder %s26, 1
      %p58 = por %p56, %p57
      %p59 = scmp.ne.s32.totalorder %s48, %s49
      %p60 = scmp.eq.s32.totalorder %s26, 0
      %p61 = por %p59, %p60
      %p62 = scmp.ne.s32.totalorder %s48, %s49
      %p63 = scmp.eq.s32.totalorder %s27, 1
      %p64 = por %p62, %p63
      %p66 = scmp.ne.s32.totalorder %s49, %s65
      %p67 = scmp.eq.s32.totalorder %s27, 0
      %p68 = por %p66, %p67
      %s70 = sadd.s32 %s69, 1
      %p73 = scmp.eq.s32.totalorder %s21, 1
      %p74 = scmp.ne.s32.totalorder %s69, %s71
      %p75 = scmp.eq.s32.totalorder %s21, 0
      %p76 = por %p74, %p75
      %p77 = scmp.ne.s32.totalorder %s69, %s71
      %p78 = scmp.eq.s32.totalorder %s26, 1
      %p79 = por %p77, %p78
      %p80 = scmp.ne.s32.totalorder %s71, %s72
      %p81 = scmp.eq.s32.totalorder %s26, 0
      %p82 = por %p80, %p81
      %p83 = scmp.ne.s32.totalorder %s71, %s72
      %p84 = scmp.eq.s32.totalorder %s27, 1
      %p85 = por %p83, %p84
      %p87 = scmp.ne.s32.totalorder %s72, %s86
      %p88 = scmp.eq.s32.totalorder %s27, 0
      %p89 = por %p87, %p88
      %s91 = sadd.s32 %s90, 1
      %p94 = scmp.eq.s32.totalorder %s21, 1
      %p95 = scmp.ne.s32.totalorder %s90, %s92
      %p96 = scmp.eq.s32.totalorder %s21, 0
      %p97 = por %p95, %p96
      %p98 = scmp.ne.s32.totalorder %s90, %s92
      %p99 = scmp.eq.s32.totalorder %s26, 1
      %p100 = por %p98, %p99
      %p101 = scmp.ne.s32.totalorder %s92, %s93
      %p102 = scmp.eq.s32.totalorder %s26, 0
      %p103 = por %p101, %p102
      %p104 = scmp.ne.s32.totalorder %s92, %s93
      %p105 = scmp.eq.s32.totalorder %s27, 1
      %p106 = por %p104, %p105
      %p108 = scmp.ne.s32.totalorder %s93, %s107
      %p109 = scmp.eq.s32.totalorder %s27, 0
      %p110 = por %p108, %p109
      %s111 = ssub.s32 %s28, %s40
      %s112 = ssub.s32 %s29, %s36
      %s113 = sor.u32 %s111, %s112
      %p114 = scmp.eq.s32.totalorder %s113, 0
      %s116 = sadd.s32 %s115, 1
      %s117 = scalar_select %p114, %s115, %s116
      %p120 = pneg %p114
      %p121 = scmp.eq.s32.totalorder %s21, 1
      %p122 = por %p120, %p121
      %p123 = scmp.ne.s32.totalorder %s115, %s118
      %p124 = scmp.eq.s32.totalorder %s21, 0
      %p125 = por %p123, %p124
      %p126 = scmp.ne.s32.totalorder %s115, %s118
      %p127 = scmp.eq.s32.totalorder %s26, 1
      %p128 = por %p126, %p127
      %p129 = scmp.ne.s32.totalorder %s118, %s119
      %p130 = scmp.eq.s32.totalorder %s26, 0
      %p131 = por %p129, %p130
      %p132 = scmp.ne.s32.totalorder %s118, %s119
      %p133 = scmp.eq.s32.totalorder %s27, 1
      %p134 = por %p132, %p133
      %p136 = scmp.ne.s32.totalorder %s119, %s135
      %p137 = scmp.eq.s32.totalorder %s27, 0
      %p138 = por %p136, %p137
      %s139 = ssub.s32 %s28, %s40
      %p140 = scmp.eq.s32.totalorder %s139, 0
      %s142 = sadd.s32 %s141, 1
      %s143 = scalar_select %p140, %s141, %s142
      %p146 = pneg %p140
      %p147 = scmp.eq.s32.totalorder %s21, 1
      %p148 = por %p146, %p147
      %p149 = scmp.ne.s32.totalorder %s141, %s144
      %p150 = scmp.eq.s32.totalorder %s21, 0
      %p151 = por %p149, %p150
      %p152 = scmp.ne.s32.totalorder %s141, %s144
      %p153 = scmp.eq.s32.totalorder %s26, 1
      %p154 = por %p152, %p153
      %p155 = scmp.ne.s32.totalorder %s144, %s145
      %p156 = scmp.eq.s32.totalorder %s26, 0
      %p157 = por %p155, %p156
      %p158 = scmp.ne.s32.totalorder %s144, %s145
      %p159 = scmp.eq.s32.totalorder %s27, 1
      %p160 = por %p158, %p159
      %p162 = scmp.ne.s32.totalorder %s145, %s161
      %p163 = scmp.eq.s32.totalorder %s27, 0
      %p164 = por %p162, %p163
      %p165 = scmp.le.s32.totalorder 1, %s21
      %p166 = scmp.lt.s32.totalorder %s21, 3
      %p167 = pnand %p165, %p166
      %p168 = pneg %p167
      // Predicated region
      $region9: #{csp_res_stage_forward.5} parent=5 // pred_check
        _
      $region10: #{csp_res_stage_forward.5} parent=5 // pred_check_branch
        %170 = sbr.rel (%p167) target = $region12
      $region11: #{csp_res_stage_forward.5} parent=5 // pred_region
        %s171 = ssub.s32 %s21, 1
        // Predicated region
        $region13: #{csp_res_stage_forward.5} parent=11 // pred_check
          %p172 = pneg %p82
        $region14: #{csp_res_stage_forward.5} parent=11 // pred_check_branch
          %174 = sbr.rel (%p172) target = $region16
        $region15: #{csp_res_stage_forward.5} parent=11 // pred_region
          %s176 = ssub.s32 2048, 2048
          %177 = vsyncadd [#allocation6], %s176
          %s178 = sshll.u32 [#allocation5], 4
          %s179 = int_to_ptr.vmem [resolvable:$true] %s178
          %184 = dma.hbm_to_vmem [thread:$0]  %s1, 2048, %s179, [#allocation6], 128, 128, 8
        $region16: #{csp_res_stage_forward.5} parent=11 // pred_fallthru
          _
        // Predicated region
        $region17: #{csp_res_stage_forward.5} parent=11 // pred_check
          %p185 = pneg %p103
        $region18: #{csp_res_stage_forward.5} parent=11 // pred_check_branch
          %187 = sbr.rel (%p185) target = $region20
        $region19: #{csp_res_stage_forward.5} parent=11 // pred_region
          %s189 = ssub.s32 32, 32
          %190 = vsyncadd [#allocation6], %s189
          %s192 = sshll.u32 [#allocation7], 4
          %s193 = int_to_ptr.vmem [resolvable:$true] %s192
          %195 = dma.hbm_to_vmem [thread:$0]  %s2, 32, %s193, [#allocation6]
        $region20: #{csp_res_stage_forward.5} parent=11 // pred_fallthru
          _
      $region12: #{csp_res_stage_forward.5} parent=5 // pred_fallthru
        _
      %p196 = scmp.lt.s32.totalorder %s21, 2
      // Predicated region
      $region21: #{csp_res_stage_forward.5} parent=5 // pred_check
        %p197 = pneg %p196
      $region22: #{csp_res_stage_forward.5} parent=5 // pred_check_branch
        %199 = sbr.rel (%p197) target = $region24
      $region23: #{csp_res_stage_forward.5} parent=5 // pred_region
        // Predicated region
        $region25: #{csp_res_stage_forward.5} parent=23 // pred_check
          %p200 = pneg %p55
        $region26: #{csp_res_stage_forward.5} parent=23 // pred_check_branch
          %202 = sbr.rel (%p200) target = $region28
        $region27: #{csp_res_stage_forward.5} parent=23 // pred_region
          %s203 = sand.u32 %s45, 1
          %s204 = scalar_lea.sflag [#allocation3], %s203
          %s205 = sand.u32 %s45, 1
          %s206 = smul.addr %s205, 32
          %s207 = scalar_lea.vmem [#allocation2], %s206
          %s208 = smul.u32 8, %s29
          %s210 = ssub.s32 512, 512
          %211 = vsyncadd %s204, %s210
          %s212 = smul.addr %s28, 8
          %s213 = sadd.s32 %s208, %s212
          %s214 = smul.addr %s213, 64
          %s215 = scalar_lea.hbm %s0, %s214
          %s216 = sshll.u32 %s207, 4
          %s217 = int_to_ptr.vmem [resolvable:$true] %s216
          %222 = dma.hbm_to_vmem [thread:$0]  %s215, 512, %s217, %s204, 64, 64, 4
        $region28: #{csp_res_stage_forward.5} parent=23 // pred_fallthru
          _
      $region24: #{csp_res_stage_forward.5} parent=5 // pred_fallthru
        _
      %p223 = scmp.le.s32.totalorder 1, %s21
      %p224 = scmp.lt.s32.totalorder %s21, 3
      %p225 = pnand %p223, %p224
      %p226 = pneg %p225
      // Predicated region
      $region29: #{csp_res_stage_forward.5} parent=5 // pred_check
        _
      $region30: #{csp_res_stage_forward.5} parent=5 // pred_check_branch
        %228 = sbr.rel (%p225) target = $region32
      $region31: #{csp_res_stage_forward.5} parent=5 // pred_region
        %s229 = ssub.s32 %s21, 1
        %s230 = sand.u32 %s48, 1
        %s231 = scalar_lea.sflag [#allocation3], %s230
        %s232 = sand.u32 %s48, 1
        %s233 = smul.addr %s232, 32
        %s234 = scalar_lea.vmem [#allocation2], %s233
        // Predicated region
        $region33: #{csp_res_stage_forward.5} parent=31 // pred_check
          %p235 = pneg %p61
        $region34: #{csp_res_stage_forward.5} parent=31 // pred_check_branch
          %237 = sbr.rel (%p235) target = $region36
        $region35: #{csp_res_stage_forward.5} parent=31 // pred_region
          %238 = dma.done %s231, 512
        $region36: #{csp_res_stage_forward.5} parent=31 // pred_fallthru
          _
        // Predicated region
        $region37: #{csp_res_stage_forward.5} parent=31 // pred_check
          %p239 = pneg %p82
        $region38: #{csp_res_stage_forward.5} parent=31 // pred_check_branch
          %241 = sbr.rel (%p239) target = $region40
        $region39: #{csp_res_stage_forward.5} parent=31 // pred_region
          %242 = dma.done [#allocation6], 2048
        $region40: #{csp_res_stage_forward.5} parent=31 // pred_fallthru
          _
        // Predicated region
        $region41: #{csp_res_stage_forward.5} parent=31 // pred_check
          %p243 = pneg %p103
        $region42: #{csp_res_stage_forward.5} parent=31 // pred_check_branch
          %245 = sbr.rel (%p243) target = $region44
        $region43: #{csp_res_stage_forward.5} parent=31 // pred_region
          %246 = dma.done [#allocation6], 32
        $region44: #{csp_res_stage_forward.5} parent=31 // pred_fallthru
          _
        %s247 = sand.u32 %s48, 1
        %s248 = scalar_lea.sflag [#allocation3], %s247
        %s249 = sand.u32 %s48, 1
        %s250 = smul.addr %s249, 32
        %s251 = scalar_lea.vmem [#allocation2], %s250
        %p252 = pneg %p61
        %p253 = pneg %p58
        %p254 = pneg %p82
        %p255 = pneg %p79
        %p256 = pneg %p103
        %p257 = pneg %p100
        %p258 = pneg %p131
        %p259 = pneg %p128
        %s260 = sand.u32 %s118, 1
        %s261 = scalar_lea.sflag [#allocation4], %s260
        %s262 = sand.u32 %s118, 1
        %s263 = smul.addr %s262, 64
        %s264 = scalar_lea.vmem [#allocation8], %s263
        %p265 = pneg %p157
        %p266 = pneg %p154
        %s267 = sand.u32 %s144, 1
        %s268 = scalar_lea.sflag [#allocation10], %s267
        %s269 = sand.u32 %s144, 1
        %s270 = smul.addr %s269, 2
        %s271 = scalar_lea.vmem [#allocation9], %s270
        %s272 = smul.u32 8, %s31
        %s273 = smul.u32 8, %s31
        %v275 = vld [vmem:[%s234] sm:$0xf]
        %v276 = vld [vmem:[%s234 + $0x4] sm:$0xf]
        %v277 = vld [vmem:[%s234 + $0x8] sm:$0xf]
        %v278 = vld [vmem:[%s234 + $0xc] sm:$0xf]
        %v279 = vld [vmem:[%s234 + $0x10] sm:$0xf]
        %v280 = vld [vmem:[%s234 + $0x14] sm:$0xf]
        %v281 = vld [vmem:[%s234 + $0x18] sm:$0xf]
        %v282 = vld [vmem:[%s234 + $0x1c] sm:$0xf]
        %v283 = vld [vmem:[#allocation5] sm:$0xff]
        %v284 = vld [vmem:[#allocation5 + $0x8] sm:$0xff]
        %v285 = vld [vmem:[#allocation5 + $0x10] sm:$0xff]
        %v286 = vld [vmem:[#allocation5 + $0x18] sm:$0xff]
        %v287 = vld [vmem:[#allocation5 + $0x20] sm:$0xff]
        %v288 = vld [vmem:[#allocation5 + $0x28] sm:$0xff]
        %v289 = vld [vmem:[#allocation5 + $0x30] sm:$0xff]
        %v290 = vld [vmem:[#allocation5 + $0x38] sm:$0xff]
        %v291 = vld [vmem:[#allocation5 + $0x40] sm:$0xff]
        %v292 = vld [vmem:[#allocation5 + $0x48] sm:$0xff]
        %v293 = vld [vmem:[#allocation5 + $0x50] sm:$0xff]
        %v294 = vld [vmem:[#allocation5 + $0x58] sm:$0xff]
        %v295 = vld [vmem:[#allocation5 + $0x60] sm:$0xff]
        %v296 = vld [vmem:[#allocation5 + $0x68] sm:$0xff]
        %v297 = vld [vmem:[#allocation5 + $0x70] sm:$0xff]
        %v298 = vld [vmem:[#allocation5 + $0x78] sm:$0xff]
        %v299 = vld [vmem:[#allocation7] sm:$0x3]
        %v301 = vlaneseq
        %v302 = vshrl.u32 %v301, 7
        %v303 = vsub.s32 0, %v302
        %v304 = vrot.slane %v299, %v303
        %v305 = vlaneseq
        %v306 = vshrl.u32 %v305, 7
        %v307 = vsub.s32 1, %v306
        %v308 = vrot.slane %v299, %v307
        %v319 = vunpack.c.l.b16 %v275
        %v320 = vunpack.c.l.b16 %v276
        %v321 = vunpack.c.l.b16 %v277
        %v322 = vunpack.c.l.b16 %v278
        %v323 = vunpack.c.l.b16 %v279
        %v324 = vunpack.c.l.b16 %v280
        %v325 = vunpack.c.l.b16 %v281
        %v326 = vunpack.c.l.b16 %v282
        %v327 = vpack.c.b16 %v320, %v319
        %v328 = vpack.c.b16 %v322, %v321
        %v329 = vpack.c.b16 %v324, %v323
        %v330 = vpack.c.b16 %v326, %v325
        %v351 = vunpack.c.l.b16 %v283
        %v352 = vunpack.c.h.b16 %v283
        %v353 = vunpack.c.l.b16 %v284
        %v354 = vunpack.c.h.b16 %v284
        %v355 = vunpack.c.l.b16 %v285
        %v356 = vunpack.c.h.b16 %v285
        %v357 = vunpack.c.l.b16 %v286
        %v358 = vunpack.c.h.b16 %v286
        %v359 = vunpack.c.l.b16 %v287
        %v360 = vunpack.c.h.b16 %v287
        %v361 = vunpack.c.l.b16 %v288
        %v362 = vunpack.c.h.b16 %v288
        %v363 = vunpack.c.l.b16 %v289
        %v364 = vunpack.c.h.b16 %v289
        %v365 = vunpack.c.l.b16 %v290
        %v366 = vunpack.c.h.b16 %v290
        %v367 = vunpack.c.l.b16 %v291
        %v368 = vunpack.c.h.b16 %v291
        %v369 = vunpack.c.l.b16 %v292
        %v370 = vunpack.c.h.b16 %v292
        %v371 = vunpack.c.l.b16 %v293
        %v372 = vunpack.c.h.b16 %v293
        %v373 = vunpack.c.l.b16 %v294
        %v374 = vunpack.c.h.b16 %v294
        %v375 = vunpack.c.l.b16 %v295
        %v376 = vunpack.c.h.b16 %v295
        %v377 = vunpack.c.l.b16 %v296
        %v378 = vunpack.c.h.b16 %v296
        %v379 = vunpack.c.l.b16 %v297
        %v380 = vunpack.c.h.b16 %v297
        %v381 = vunpack.c.l.b16 %v298
        %v382 = vunpack.c.h.b16 %v298
        %v383 = vpack.c.b16 %v353, %v351
        %v384 = vpack.c.b16 %v354, %v352
        %v385 = vpack.c.b16 %v357, %v355
        %v386 = vpack.c.b16 %v358, %v356
        %v387 = vpack.c.b16 %v361, %v359
        %v388 = vpack.c.b16 %v362, %v360
        %v389 = vpack.c.b16 %v365, %v363
        %v390 = vpack.c.b16 %v366, %v364
        %v391 = vpack.c.b16 %v369, %v367
        %v392 = vpack.c.b16 %v370, %v368
        %v393 = vpack.c.b16 %v373, %v371
        %v394 = vpack.c.b16 %v374, %v372
        %v395 = vpack.c.b16 %v377, %v375
        %v396 = vpack.c.b16 %v378, %v376
        %v397 = vpack.c.b16 %v381, %v379
        %v398 = vpack.c.b16 %v382, %v380
        %415 = vmatprep.subr.bf16.mxu0 %v384
        %416 = vmatpush1.bf16.msra.mxu0 %v383
        %417 = vmatprep.subr.bf16.mxu0 %v386
        %418 = vmatpush1.bf16.msra.mxu0 %v385
        %419 = vmatprep.subr.bf16.mxu0 %v388
        %420 = vmatpush1.bf16.msra.mxu0 %v387
        %421 = vmatprep.subr.bf16.mxu0 %v390
        %422 = vmatpush1.bf16.msra.mxu0 %v389
        %423 = vmatprep.subr.bf16.mxu0 %v392
        %424 = vmatpush1.bf16.msra.mxu0 %v391
        %425 = vmatprep.subr.bf16.mxu0 %v394
        %426 = vmatpush1.bf16.msra.mxu0 %v393
        %427 = vmatprep.subr.bf16.mxu0 %v396
        %428 = vmatpush1.bf16.msra.mxu0 %v395
        %429 = vmatprep.subr.bf16.mxu0 %v398
        %430 = vmatpush1.bf16.msra.mxu0 %v397
        %431 = vmatprep.subr.bf16.mxu0 0
        %432 = vmatpush1.bf16.msra.mxu0 0
        %433 = vmatprep.subr.bf16.mxu0 0
        %434 = vmatpush1.bf16.msra.mxu0 0
        %435 = vmatprep.subr.bf16.mxu0 0
        %436 = vmatpush1.bf16.msra.mxu0 0
        %437 = vmatprep.subr.bf16.mxu0 0
        %438 = vmatpush1.bf16.msra.mxu0 0
        %439 = vmatprep.subr.bf16.mxu0 0
        %440 = vmatpush1.bf16.msra.mxu0 0
        %441 = vmatprep.subr.bf16.mxu0 0
        %442 = vmatpush1.bf16.msra.mxu0 0
        %443 = vmatprep.subr.bf16.mxu0 0
        %444 = vmatpush1.bf16.msra.mxu0 0
        %445 = vmatprep.subr.bf16.mxu0 0
        %446 = vmatpush1.bf16.msra.mxu0 0
        %447 = vmatprep.mubr.bf16.mxu0 0
        %448 = vmatmul.mubr.bf16.gmra.mrb[0].mxu0 %v327
        %v449 = vpop.f32.mrb[0].mxu0
        %v450 = vadd.f32 %v304, %v449
        %v451 = vpop.f32.mrb[0].mxu0
        %v452 = vadd.f32 %v308, %v451
        %v453 = vpop.f32.mrb[0].mxu0
        %v454 = vadd.f32 %v304, %v453
        %v455 = vpop.f32.mrb[0].mxu0
        %v456 = vadd.f32 %v308, %v455
        %457 = vmatprep.mubr.bf16.mxu0 0
        %458 = vmatmul.mubr.bf16.gmra.mrb[0].mxu0 %v328
        %v459 = vpop.f32.mrb[0].mxu0
        %v460 = vadd.f32 %v304, %v459
        %v461 = vpop.f32.mrb[0].mxu0
        %v462 = vadd.f32 %v308, %v461
        %v463 = vpop.f32.mrb[0].mxu0
        %v464 = vadd.f32 %v304, %v463
        %v465 = vpop.f32.mrb[0].mxu0
        %v466 = vadd.f32 %v308, %v465
        %467 = vmatprep.mubr.bf16.mxu0 0
        %468 = vmatmul.mubr.bf16.gmra.mrb[0].mxu0 %v329
        %v469 = vpop.f32.mrb[0].mxu0
        %v470 = vadd.f32 %v304, %v469
        %v471 = vpop.f32.mrb[0].mxu0
        %v472 = vadd.f32 %v308, %v471
        %v473 = vpop.f32.mrb[0].mxu0
        %v474 = vadd.f32 %v304, %v473
        %v475 = vpop.f32.mrb[0].mxu0
        %v476 = vadd.f32 %v308, %v475
        %477 = vmatprep.mubr.bf16.mxu0 0
        %478 = vmatmul.mubr.bf16.gmra.mrb[0].mxu0 %v330
        %v479 = vpop.f32.mrb[0].mxu0
        %v480 = vadd.f32 %v304, %v479
        %v481 = vpop.f32.mrb[0].mxu0
        %v482 = vadd.f32 %v308, %v481
        %v483 = vpop.f32.mrb[0].mxu0
        %v484 = vadd.f32 %v304, %v483
        %v485 = vpop.f32.mrb[0].mxu0
        %v486 = vadd.f32 %v308, %v485
        %487 = vdwg.mxu0
        %v488 = vmax.f32 %v450, 0.0
        %v489 = vmax.f32 %v452, 0.0
        %v490 = vmax.f32 %v454, 0.0
        %v491 = vmax.f32 %v456, 0.0
        %v492 = vmax.f32 %v460, 0.0
        %v493 = vmax.f32 %v462, 0.0
        %v494 = vmax.f32 %v464, 0.0
        %v495 = vmax.f32 %v466, 0.0
        %v496 = vmax.f32 %v470, 0.0
        %v497 = vmax.f32 %v472, 0.0
        %v498 = vmax.f32 %v474, 0.0
        %v499 = vmax.f32 %v476, 0.0
        %v500 = vmax.f32 %v480, 0.0
        %v501 = vmax.f32 %v482, 0.0
        %v502 = vmax.f32 %v484, 0.0
        %v503 = vmax.f32 %v486, 0.0
        %v504 = vpack.c.bf16 %v490, %v488
        %v505 = vpack.c.bf16 %v491, %v489
        %v506 = vpack.c.bf16 %v494, %v492
        %v507 = vpack.c.bf16 %v495, %v493
        %v508 = vpack.c.bf16 %v498, %v496
        %v509 = vpack.c.bf16 %v499, %v497
        %v510 = vpack.c.bf16 %v502, %v500
        %v511 = vpack.c.bf16 %v503, %v501
        %v520 = vunpack.c.l.b16 %v504
        %v521 = vunpack.c.l.b16 %v505
        %v522 = vunpack.c.h.b16 %v504
        %v523 = vunpack.c.h.b16 %v505
        %v524 = vunpack.c.l.b16 %v506
        %v525 = vunpack.c.l.b16 %v507
        %v526 = vunpack.c.h.b16 %v506
        %v527 = vunpack.c.h.b16 %v507
        %v528 = vunpack.c.l.b16 %v508
        %v529 = vunpack.c.l.b16 %v509
        %v530 = vunpack.c.h.b16 %v508
        %v531 = vunpack.c.h.b16 %v509
        %v532 = vunpack.c.l.b16 %v510
        %v533 = vunpack.c.l.b16 %v511
        %v534 = vunpack.c.h.b16 %v510
        %v535 = vunpack.c.h.b16 %v511
        %v536 = vpack.c.b16 %v521, %v520
        %v537 = vpack.c.b16 %v523, %v522
        %v538 = vpack.c.b16 %v525, %v524
        %v539 = vpack.c.b16 %v527, %v526
        %v540 = vpack.c.b16 %v529, %v528
        %v541 = vpack.c.b16 %v531, %v530
        %v542 = vpack.c.b16 %v533, %v532
        %v543 = vpack.c.b16 %v535, %v534
        %552 = vst [vmem:[%s264] sm:$0xff] %v536
        %553 = vst [vmem:[%s264 + $0x8] sm:$0xff] %v537
        %554 = vst [vmem:[%s264 + $0x10] sm:$0xff] %v538
        %555 = vst [vmem:[%s264 + $0x18] sm:$0xff] %v539
        %556 = vst [vmem:[%s264 + $0x20] sm:$0xff] %v540
        %557 = vst [vmem:[%s264 + $0x28] sm:$0xff] %v541
        %558 = vst [vmem:[%s264 + $0x30] sm:$0xff] %v542
        %559 = vst [vmem:[%s264 + $0x38] sm:$0xff] %v543
        %p560 = scmp.eq.s32.totalorder %s31, 0
        // Predicated region
        $region45: #{csp_res_stage_forward.5} parent=31 // pred_check
          %p561 = pneg %p560
        $region46: #{csp_res_stage_forward.5} parent=31 // pred_check_branch
          %563 = sbr.rel (%p561) target = $region48
        $region47: #{csp_res_stage_forward.5} parent=31 // pred_region
          %v564 = vlaneseq
          %vm565 = vcmp.ge.s32.totalorder %v564, 0
          %vm566 = vcmp.lt.s32.totalorder %v564, 256
          %vm567 = vmand %vm565, %vm566
          %568 = vst.msk [vmem:[%s271] sm:$0x3] %vm567, 0.0
        $region48: #{csp_res_stage_forward.5} parent=31 // pred_fallthru
          _
        %v569 = vld [vmem:[%s271] sm:$0x3]
        %v570 = vadd.f32 %v488, %v490
        %v571 = vadd.f32 %v570, %v492
        %v572 = vadd.f32 %v571, %v494
        %v573 = vadd.f32 %v572, %v496
        %v574 = vadd.f32 %v573, %v498
        %v575 = vadd.f32 %v574, %v500
        %v576 = vadd.f32 %v575, %v502
        %v577 = vrot.slane %v576, 4
        %v578 = vadd.f32 %v576, %v577
        %v579 = vrot.slane %v578, 2
        %v580 = vadd.f32 %v578, %v579
        %v581 = vrot.slane %v580, 1
        %v582 = vadd.f32 %v580, %v581
        %v583 = vadd.f32 %v489, %v491
        %v584 = vadd.f32 %v583, %v493
        %v585 = vadd.f32 %v584, %v495
        %v586 = vadd.f32 %v585, %v497
        %v587 = vadd.f32 %v586, %v499
        %v588 = vadd.f32 %v587, %v501
        %v589 = vadd.f32 %v588, %v503
        %v590 = vrot.slane %v589, 4
        %v591 = vadd.f32 %v589, %v590
        %v592 = vrot.slane %v591, 2
        %v593 = vadd.f32 %v591, %v592
        %v594 = vrot.slane %v593, 1
        %v595 = vadd.f32 %v593, %v594
        %v598 = vcombine.low %v582, %v595
        %v600 = vunpack.c.l.s4 1966171168
        %v601 = vunpack.c.0.s8 %v600
        %v602 = vlaneseq
        %v603 = vshrl.u32 %v602, 7
        %v604 = vsub.s32 %v601, %v603
        %v605 = vrot.slane %v598, %v604
        %v607 = vunpack.c.l.s4 1966171168
        %v608 = vunpack.c.0.s8 %v607
        %v609 = vlaneseq
        %v610 = vshrl.u32 %v609, 7
        %v611 = vsub.s32 %v608, %v610
        %v612 = vrot.slane %v605, %v611
        %v614 = vadd.f32 %v569, %v612
        %v615 = vlaneseq
        %vm616 = vcmp.ge.s32.totalorder %v615, 0
        %vm617 = vcmp.lt.s32.totalorder %v615, 256
        %vm618 = vmand %vm616, %vm617
        %619 = vst.msk [vmem:[%s271] sm:$0x3] %vm618, %v614
        %s620 = sand.u32 %s118, 1
        %s621 = scalar_lea.sflag [#allocation4], %s620
        %s622 = sand.u32 %s118, 1
        %s623 = smul.addr %s622, 64
        %s624 = scalar_lea.vmem [#allocation8], %s623
        %s625 = sand.u32 %s144, 1
        %s626 = scalar_lea.sflag [#allocation10], %s625
        %s627 = sand.u32 %s144, 1
        %s628 = smul.addr %s627, 2
        %s629 = scalar_lea.vmem [#allocation9], %s628
        // Predicated region
        $region49: #{csp_res_stage_forward.5} parent=31 // pred_check
          %p630 = pneg %p128
        $region50: #{csp_res_stage_forward.5} parent=31 // pred_check_branch
          %632 = sbr.rel (%p630) target = $region52
        $region51: #{csp_res_stage_forward.5} parent=31 // pred_region
          %s633 = smul.u32 8, %s31
          %s635 = ssub.s32 1024, 1024
          %636 = vsyncadd %s621, %s635
          %s637 = smul.addr %s633, 2
          %s638 = smul.addr %s30, 16
          %s639 = sadd.s32 %s637, %s638
          %s640 = smul.addr %s639, 64
          %s641 = scalar_lea.hbm %s3, %s640
          %s642 = sshll.u32 %s624, 4
          %s643 = int_to_ptr.vmem [resolvable:$true] %s642
          %648 = dma.vmem_to_hbm [thread:$0]  %s643, 1024, %s641, %s621, 128, 128, 8
        $region52: #{csp_res_stage_forward.5} parent=31 // pred_fallthru
          _
        // Predicated region
        $region53: #{csp_res_stage_forward.5} parent=31 // pred_check
          %p649 = pneg %p154
        $region54: #{csp_res_stage_forward.5} parent=31 // pred_check_branch
          %651 = sbr.rel (%p649) target = $region56
        $region55: #{csp_res_stage_forward.5} parent=31 // pred_region
          %s653 = ssub.s32 32, 32
          %654 = vsyncadd %s626, %s653
          %s655 = smul.addr %s30, 2
          %s656 = smul.addr %s655, 16
          %s657 = scalar_lea.hbm %s4, %s656
          %s659 = sshll.u32 %s629, 4
          %s660 = int_to_ptr.vmem [resolvable:$true] %s659
          %662 = dma.vmem_to_hbm [thread:$0]  %s660, 32, %s657, %s626
        $region56: #{csp_res_stage_forward.5} parent=31 // pred_fallthru
          _
      $region32: #{csp_res_stage_forward.5} parent=5 // pred_fallthru
        _
      %p663 = scmp.le.s32.totalorder 2, %s21
      // Predicated region
      $region57: #{csp_res_stage_forward.5} parent=5 // pred_check
        %p664 = pneg %p663
      $region58: #{csp_res_stage_forward.5} parent=5 // pred_check_branch
        %666 = sbr.rel (%p664) target = $region60
      $region59: #{csp_res_stage_forward.5} parent=5 // pred_region
        %s667 = ssub.s32 %s21, 2
        // Predicated region
        $region61: #{csp_res_stage_forward.5} parent=59 // pred_check
          %p668 = pneg %p134
        $region62: #{csp_res_stage_forward.5} parent=59 // pred_check_branch
          %670 = sbr.rel (%p668) target = $region64
        $region63: #{csp_res_stage_forward.5} parent=59 // pred_region
          %s671 = sand.u32 %s119, 1
          %s672 = scalar_lea.sflag [#allocation4], %s671
          %s673 = sand.u32 %s119, 1
          %s674 = smul.addr %s673, 64
          %s675 = scalar_lea.vmem [#allocation8], %s674
          %676 = dma.done %s672, 1024
        $region64: #{csp_res_stage_forward.5} parent=59 // pred_fallthru
          _
        // Predicated region
        $region65: #{csp_res_stage_forward.5} parent=59 // pred_check
          %p677 = pneg %p160
        $region66: #{csp_res_stage_forward.5} parent=59 // pred_check_branch
          %679 = sbr.rel (%p677) target = $region68
        $region67: #{csp_res_stage_forward.5} parent=59 // pred_region
          %s680 = sand.u32 %s145, 1
          %s681 = scalar_lea.sflag [#allocation10], %s680
          %s682 = sand.u32 %s145, 1
          %s683 = smul.addr %s682, 2
          %s684 = scalar_lea.vmem [#allocation9], %s683
          %685 = dma.done %s681, 32
        $region68: #{csp_res_stage_forward.5} parent=59 // pred_fallthru
          _
      $region60: #{csp_res_stage_forward.5} parent=5 // pred_fallthru
        _
    $region6: #{csp_res_stage_forward.5} parent=1 // loop_footer
      %s25 = sadd.s32 1, %s21
    $region7: #{csp_res_stage_forward.5} parent=1 // loop_footer_branch
      %20 = sbr.rel target = $region3
    $region8: #{csp_res_stage_forward.5} parent=1 // loop_exit
      _
    %686 = vsyncpa [#allocation3], 1
    %s687 = scalar_lea.sflag [#allocation3], 1
    %688 = vsyncpa %s687, 1
    %689 = vsyncpa [#allocation6], 1
    %690 = vsyncpa [#allocation4], 1
    %s691 = scalar_lea.sflag [#allocation4], 1
    %692 = vsyncpa %s691, 1
    %693 = vsyncpa [#allocation10], 1
    %s694 = scalar_lea.sflag [#allocation10], 1
    %695 = vsyncpa %s694, 1

// kernel: csp_res_stage_forward.7
$region0: #{csp_res_stage_forward.7}
  #allocation0 [shape = 'u32[]', space=smem, size = 0x4, offset = 0x4, fixed_abs, tag = 'smem constant byte address 0x4 - core index']
  #allocation1 [shape = 'u32[144,128]{1,0:T(1,128)}', space=vmem, size = 0x12000, scoped, tag = 'internal scratch']
  %s0 = inlined_call_operand.hbm [shape: bf16[2,64,256], index: 0, kind: input, shape index: {}]
  %s1 = inlined_call_operand.hbm [shape: bf16[2,64,128], index: 1, kind: input, shape index: {}]
  %s2 = inlined_call_operand.hbm [shape: f32[2,256,1], index: 2, kind: input, shape index: {}]
  %s3 = inlined_call_operand.hbm [shape: bf16[256,128], index: 3, kind: input, shape index: {}]
  %s4 = inlined_call_operand.hbm [shape: f32[1,128], index: 4, kind: input, shape index: {}]
  %s5 = inlined_call_operand.hbm [shape: bf16[2,64,128], index: 5, kind: output, shape index: {}]
  %s6 = sld [smem:[#allocation0]]
  $region73: #{csp_res_stage_forward.7} parent=0
    _
  %s8 = ssub.s32 1, %s6
  %s9 = scalar_select 0, %s8, %s6
  $region1: #{csp_res_stage_forward.7} parent=0
    #allocation2 [shape = 'u8[32768]{0}', space=vmem, size = 0x8000, scoped, tag = 'input window, operand 0']
    #allocation3 [shape = 's32[2]{0}', space=sflag, size = 0x8, scoped, tag = 'scoped memory for csp_res_stage_forward.7']
    #allocation4 [shape = 's32[2]{0}', space=sflag, size = 0x8, scoped, tag = 'scoped memory for csp_res_stage_forward.7']
    #allocation5 [shape = 'u8[32768]{0}', space=vmem, size = 0x8000, scoped, tag = 'input window, operand 1']
    #allocation6 [shape = 's32[2]{0}', space=sflag, size = 0x8, scoped, tag = 'scoped memory for csp_res_stage_forward.7']
    #allocation7 [shape = 'u8[262144]{0}', space=vmem, size = 0x40000, scoped, tag = 'input window, operand 2']
    #allocation8 [shape = 'u8[65536]{0}', space=vmem, size = 0x10000, scoped, tag = 'input window, operand 3, single buffered']
    #allocation9 [shape = 's32[1]{0}', space=sflag, size = 0x4, scoped, tag = 'scoped memory for csp_res_stage_forward.7']
    #allocation10 [shape = 'u8[512]{0}', space=vmem, size = 0x400, scoped, tag = 'input window, operand 4, single buffered']
    #allocation11 [shape = 'u8[32768]{0}', space=vmem, size = 0x8000, scoped, tag = 'output window, operand 0']
    %10 = vsyncpa [#allocation3], 0
    %s11 = scalar_lea.sflag [#allocation3], 1
    %12 = vsyncpa %s11, 0
    %13 = vsyncpa [#allocation6], 0
    %s14 = scalar_lea.sflag [#allocation6], 1
    %15 = vsyncpa %s14, 0
    %16 = vsyncpa [#allocation9], 0
    %17 = vsyncpa [#allocation4], 0
    %s18 = scalar_lea.sflag [#allocation4], 1
    %19 = vsyncpa %s18, 0
    loop: start=0, step=1, limit=4
    $region2: #{csp_res_stage_forward.7} parent=1 // loop_pre_header
      _
    $region3: #{csp_res_stage_forward.7} parent=1 // loop_header
      %s21 = sphi 0, %s25
      %p22 = scmp.ge.s32.totalorder %s21, 4
      %s28 = sphi 0, %s40
      %s29 = sphi 0, %s36
      %s30 = sphi 0, %s28
      %s31 = sphi 0, %s29
      %s32 = sphi 0, %s30
      %s33 = sphi 0, %s31
      %s45 = sphi 0, %s47
      %s48 = sphi 0, %s45
      %s49 = sphi 0, %s48
      %s65 = sphi 0, %s49
      %s73 = sphi 0, %s75
      %s76 = sphi 0, %s73
      %s77 = sphi 0, %s76
      %s93 = sphi 0, %s77
      %s99 = sphi 0, %s101
      %s102 = sphi 0, %s99
      %s103 = sphi 0, %s102
      %s119 = sphi 0, %s103
      %s123 = sphi 0, %s123
      %s125 = sphi 0, %s123
      %s126 = sphi 0, %s125
      %s140 = sphi 0, %s126
      %s144 = sphi 0, %s144
      %s146 = sphi 0, %s144
      %s147 = sphi 0, %s146
      %s161 = sphi 0, %s147
      %s169 = sphi 0, %s171
      %s172 = sphi 0, %s169
      %s173 = sphi 0, %s172
      %s189 = sphi 0, %s173
    $region4: #{csp_res_stage_forward.7} parent=1 // loop_header_branch
      %24 = sbr.rel (%p22) target = $region8
    $region5: #{csp_res_stage_forward.7} parent=1 // loop_body
      %s26 = ssub.s32 %s21, 1
      %s27 = ssub.s32 %s21, 2
      %s34 = sadd.s32 1, %s29
      %p35 = scmp.ge.s32.totalorder %s34, 1
      %s36 = scalar_select %p35, 0, %s34
      %s37 = sadd.s32 1, %s28
      %s38 = scalar_select %p35, %s37, %s28
      %p39 = scmp.ge.s32.totalorder %s38, 2
      %s40 = scalar_select %p39, 0, %s38
      %s41 = ssub.s32 %s28, %s40
      %s42 = ssub.s32 %s29, %s36
      %s43 = sor.u32 %s41, %s42
      %p44 = scmp.eq.s32.totalorder %s43, 0
      %s46 = sadd.s32 %s45, 1
      %s47 = scalar_select %p44, %s45, %s46
      %p50 = pneg %p44
      %p51 = scmp.eq.s32.totalorder %s21, 1
      %p52 = por %p50, %p51
      %p53 = scmp.ne.s32.totalorder %s45, %s48
      %p54 = scmp.eq.s32.totalorder %s21, 0
      %p55 = por %p53, %p54
      %p56 = scmp.ne.s32.totalorder %s45, %s48
      %p57 = scmp.eq.s32.totalorder %s26, 1
      %p58 = por %p56, %p57
      %p59 = scmp.ne.s32.totalorder %s48, %s49
      %p60 = scmp.eq.s32.totalorder %s26, 0
      %p61 = por %p59, %p60
      %p62 = scmp.ne.s32.totalorder %s48, %s49
      %p63 = scmp.eq.s32.totalorder %s27, 1
      %p64 = por %p62, %p63
      %p66 = scmp.ne.s32.totalorder %s49, %s65
      %p67 = scmp.eq.s32.totalorder %s27, 0
      %p68 = por %p66, %p67
      %s69 = ssub.s32 %s28, %s40
      %s70 = ssub.s32 %s29, %s36
      %s71 = sor.u32 %s69, %s70
      %p72 = scmp.eq.s32.totalorder %s71, 0
      %s74 = sadd.s32 %s73, 1
      %s75 = scalar_select %p72, %s73, %s74
      %p78 = pneg %p72
      %p79 = scmp.eq.s32.totalorder %s21, 1
      %p80 = por %p78, %p79
      %p81 = scmp.ne.s32.totalorder %s73, %s76
      %p82 = scmp.eq.s32.totalorder %s21, 0
      %p83 = por %p81, %p82
      %p84 = scmp.ne.s32.totalorder %s73, %s76
      %p85 = scmp.eq.s32.totalorder %s26, 1
      %p86 = por %p84, %p85
      %p87 = scmp.ne.s32.totalorder %s76, %s77
      %p88 = scmp.eq.s32.totalorder %s26, 0
      %p89 = por %p87, %p88
      %p90 = scmp.ne.s32.totalorder %s76, %s77
      %p91 = scmp.eq.s32.totalorder %s27, 1
      %p92 = por %p90, %p91
      %p94 = scmp.ne.s32.totalorder %s77, %s93
      %p95 = scmp.eq.s32.totalorder %s27, 0
      %p96 = por %p94, %p95
      %s97 = ssub.s32 %s28, %s40
      %p98 = scmp.eq.s32.totalorder %s97, 0
      %s100 = sadd.s32 %s99, 1
      %s101 = scalar_select %p98, %s99, %s100
      %p104 = pneg %p98
      %p105 = scmp.eq.s32.totalorder %s21, 1
      %p106 = por %p104, %p105
      %p107 = scmp.ne.s32.totalorder %s99, %s102
      %p108 = scmp.eq.s32.totalorder %s21, 0
      %p109 = por %p107, %p108
      %p110 = scmp.ne.s32.totalorder %s99, %s102
      %p111 = scmp.eq.s32.totalorder %s26, 1
      %p112 = por %p110, %p111
      %p113 = scmp.ne.s32.totalorder %s102, %s103
      %p114 = scmp.eq.s32.totalorder %s26, 0
      %p115 = por %p113, %p114
      %p116 = scmp.ne.s32.totalorder %s102, %s103
      %p117 = scmp.eq.s32.totalorder %s27, 1
      %p118 = por %p116, %p117
      %p120 = scmp.ne.s32.totalorder %s103, %s119
      %p121 = scmp.eq.s32.totalorder %s27, 0
      %p122 = por %p120, %p121
      %s124 = sadd.s32 %s123, 1
      %p127 = scmp.eq.s32.totalorder %s21, 1
      %p128 = scmp.ne.s32.totalorder %s123, %s125
      %p129 = scmp.eq.s32.totalorder %s21, 0
      %p130 = por %p128, %p129
      %p131 = scmp.ne.s32.totalorder %s123, %s125
      %p132 = scmp.eq.s32.totalorder %s26, 1
      %p133 = por %p131, %p132
      %p134 = scmp.ne.s32.totalorder %s125, %s126
      %p135 = scmp.eq.s32.totalorder %s26, 0
      %p136 = por %p134, %p135
      %p137 = scmp.ne.s32.totalorder %s125, %s126
      %p138 = scmp.eq.s32.totalorder %s27, 1
      %p139 = por %p137, %p138
      %p141 = scmp.ne.s32.totalorder %s126, %s140
      %p142 = scmp.eq.s32.totalorder %s27, 0
      %p143 = por %p141, %p142
      %s145 = sadd.s32 %s144, 1
      %p148 = scmp.eq.s32.totalorder %s21, 1
      %p149 = scmp.ne.s32.totalorder %s144, %s146
      %p150 = scmp.eq.s32.totalorder %s21, 0
      %p151 = por %p149, %p150
      %p152 = scmp.ne.s32.totalorder %s144, %s146
      %p153 = scmp.eq.s32.totalorder %s26, 1
      %p154 = por %p152, %p153
      %p155 = scmp.ne.s32.totalorder %s146, %s147
      %p156 = scmp.eq.s32.totalorder %s26, 0
      %p157 = por %p155, %p156
      %p158 = scmp.ne.s32.totalorder %s146, %s147
      %p159 = scmp.eq.s32.totalorder %s27, 1
      %p160 = por %p158, %p159
      %p162 = scmp.ne.s32.totalorder %s147, %s161
      %p163 = scmp.eq.s32.totalorder %s27, 0
      %p164 = por %p162, %p163
      %s165 = ssub.s32 %s28, %s40
      %s166 = ssub.s32 %s29, %s36
      %s167 = sor.u32 %s165, %s166
      %p168 = scmp.eq.s32.totalorder %s167, 0
      %s170 = sadd.s32 %s169, 1
      %s171 = scalar_select %p168, %s169, %s170
      %p174 = pneg %p168
      %p175 = scmp.eq.s32.totalorder %s21, 1
      %p176 = por %p174, %p175
      %p177 = scmp.ne.s32.totalorder %s169, %s172
      %p178 = scmp.eq.s32.totalorder %s21, 0
      %p179 = por %p177, %p178
      %p180 = scmp.ne.s32.totalorder %s169, %s172
      %p181 = scmp.eq.s32.totalorder %s26, 1
      %p182 = por %p180, %p181
      %p183 = scmp.ne.s32.totalorder %s172, %s173
      %p184 = scmp.eq.s32.totalorder %s26, 0
      %p185 = por %p183, %p184
      %p186 = scmp.ne.s32.totalorder %s172, %s173
      %p187 = scmp.eq.s32.totalorder %s27, 1
      %p188 = por %p186, %p187
      %p190 = scmp.ne.s32.totalorder %s173, %s189
      %p191 = scmp.eq.s32.totalorder %s27, 0
      %p192 = por %p190, %p191
      %p193 = scmp.le.s32.totalorder 1, %s21
      %p194 = scmp.lt.s32.totalorder %s21, 3
      %p195 = pnand %p193, %p194
      %p196 = pneg %p195
      // Predicated region
      $region9: #{csp_res_stage_forward.7} parent=5 // pred_check
        _
      $region10: #{csp_res_stage_forward.7} parent=5 // pred_check_branch
        %198 = sbr.rel (%p195) target = $region12
      $region11: #{csp_res_stage_forward.7} parent=5 // pred_region
        %s199 = ssub.s32 %s21, 1
        // Predicated region
        $region13: #{csp_res_stage_forward.7} parent=11 // pred_check
          %p200 = pneg %p136
        $region14: #{csp_res_stage_forward.7} parent=11 // pred_check_branch
          %202 = sbr.rel (%p200) target = $region16
        $region15: #{csp_res_stage_forward.7} parent=11 // pred_region
          %s204 = ssub.s32 2048, 2048
          %205 = vsyncadd [#allocation9], %s204
          %s206 = sshll.u32 [#allocation8], 4
          %s207 = int_to_ptr.vmem [resolvable:$true] %s206
          %212 = dma.hbm_to_vmem [thread:$0]  %s3, 2048, %s207, [#allocation9], 64, 64, 4
        $region16: #{csp_res_stage_forward.7} parent=11 // pred_fallthru
          _
        // Predicated region
        $region17: #{csp_res_stage_forward.7} parent=11 // pred_check
          %p213 = pneg %p157
        $region18: #{csp_res_stage_forward.7} parent=11 // pred_check_branch
          %215 = sbr.rel (%p213) target = $region20
        $region19: #{csp_res_stage_forward.7} parent=11 // pred_region
          %s217 = ssub.s32 16, 16
          %218 = vsyncadd [#allocation9], %s217
          %s220 = sshll.u32 [#allocation10], 4
          %s221 = int_to_ptr.vmem [resolvable:$true] %s220
          %223 = dma.hbm_to_vmem [thread:$0]  %s4, 16, %s221, [#allocation9]
        $region20: #{csp_res_stage_forward.7} parent=11 // pred_fallthru
          _
      $region12: #{csp_res_stage_forward.7} parent=5 // pred_fallthru
        _
      %p224 = scmp.lt.s32.totalorder %s21, 2
      // Predicated region
      $region21: #{csp_res_stage_forward.7} parent=5 // pred_check
        %p225 = pneg %p224
      $region22: #{csp_res_stage_forward.7} parent=5 // pred_check_branch
        %227 = sbr.rel (%p225) target = $region24
      $region23: #{csp_res_stage_forward.7} parent=5 // pred_region
        // Predicated region
        $region25: #{csp_res_stage_forward.7} parent=23 // pred_check
          %p228 = pneg %p55
        $region26: #{csp_res_stage_forward.7} parent=23 // pred_check_branch
          %230 = sbr.rel (%p228) target = $region28
        $region27: #{csp_res_stage_forward.7} parent=23 // pred_region
          %s231 = sand.u32 %s45, 1
          %s232 = scalar_lea.sflag [#allocation3], %s231
          %s233 = sand.u32 %s45, 1
          %s234 = smul.addr %s233, 32
          %s235 = scalar_lea.vmem [#allocation2], %s234
          %s236 = smul.u32 8, %s29
          %s238 = ssub.s32 512, 512
          %239 = vsyncadd %s232, %s238
          %s240 = smul.addr %s236, 2
          %s241 = smul.addr %s28, 16
          %s242 = sadd.s32 %s240, %s241
          %s243 = smul.addr %s242, 64
          %s244 = scalar_lea.hbm %s0, %s243
          %s245 = sshll.u32 %s235, 4
          %s246 = int_to_ptr.vmem [resolvable:$true] %s245
          %251 = dma.hbm_to_vmem [thread:$0]  %s244, 512, %s246, %s232, 128, 64, 4
        $region28: #{csp_res_stage_forward.7} parent=23 // pred_fallthru
          _
        // Predicated region
        $region29: #{csp_res_stage_forward.7} parent=23 // pred_check
          %p252 = pneg %p83
        $region30: #{csp_res_stage_forward.7} parent=23 // pred_check_branch
          %254 = sbr.rel (%p252) target = $region32
        $region31: #{csp_res_stage_forward.7} parent=23 // pred_region
          %s255 = sand.u32 %s21, 1
          %s256 = scalar_lea.sflag [#allocation6], %s255
          %s257 = sand.u32 %s73, 1
          %s258 = smul.addr %s257, 32
          %s259 = scalar_lea.vmem [#allocation5], %s258
          %s260 = smul.u32 8, %s29
          %s262 = ssub.s32 512, 512
          %263 = vsyncadd %s256, %s262
          %s264 = smul.addr %s28, 8
          %s265 = sadd.s32 %s260, %s264
          %s266 = smul.addr %s265, 64
          %s267 = scalar_lea.hbm %s1, %s266
          %s268 = sshll.u32 %s259, 4
          %s269 = int_to_ptr.vmem [resolvable:$true] %s268
          %274 = dma.hbm_to_vmem [thread:$0]  %s267, 512, %s269, %s256, 64, 64, 4
        $region32: #{csp_res_stage_forward.7} parent=23 // pred_fallthru
          _
        // Predicated region
        $region33: #{csp_res_stage_forward.7} parent=23 // pred_check
          %p275 = pneg %p109
        $region34: #{csp_res_stage_forward.7} parent=23 // pred_check_branch
          %277 = sbr.rel (%p275) target = $region36
        $region35: #{csp_res_stage_forward.7} parent=23 // pred_region
          %s278 = sand.u32 %s21, 1
          %s279 = scalar_lea.sflag [#allocation6], %s278
          %s280 = sand.u32 %s99, 1
          %s281 = smul.addr %s280, 256
          %s282 = scalar_lea.vmem [#allocation7], %s281
          %s284 = ssub.s32 4096, 4096
          %285 = vsyncadd %s279, %s284
          %s286 = smul.addr %s28, 32
          %s287 = smul.addr %s286, 128
          %s288 = scalar_lea.hbm %s2, %s287
          %s289 = sshll.u32 %s282, 4
          %s290 = int_to_ptr.vmem [resolvable:$true] %s289
          %295 = dma.hbm_to_vmem [thread:$0]  %s288, 4096, %s290, %s279, 128, 128, 8
        $region36: #{csp_res_stage_forward.7} parent=23 // pred_fallthru
          _
      $region24: #{csp_res_stage_forward.7} parent=5 // pred_fallthru
        _
      %p296 = scmp.le.s32.totalorder 1, %s21
      %p297 = scmp.lt.s32.totalorder %s21, 3
      %p298 = pnand %p296, %p297
      %p299 = pneg %p298
      // Predicated region
      $region37: #{csp_res_stage_forward.7} parent=5 // pred_check
        _
      $region38: #{csp_res_stage_forward.7} parent=5 // pred_check_branch
        %301 = sbr.rel (%p298) target = $region40
      $region39: #{csp_res_stage_forward.7} parent=5 // pred_region
        %s302 = ssub.s32 %s21, 1
        %s303 = sand.u32 %s48, 1
        %s304 = scalar_lea.sflag [#allocation3], %s303
        %s305 = sand.u32 %s48, 1
        %s306 = smul.addr %s305, 32
        %s307 = scalar_lea.vmem [#allocation2], %s306
        // Predicated region
        $region41: #{csp_res_stage_forward.7} parent=39 // pred_check
          %p308 = pneg %p61
        $region42: #{csp_res_stage_forward.7} parent=39 // pred_check_branch
          %310 = sbr.rel (%p308) target = $region44
        $region43: #{csp_res_stage_forward.7} parent=39 // pred_region
          %311 = dma.done %s304, 512
        $region44: #{csp_res_stage_forward.7} parent=39 // pred_fallthru
          _
        %s312 = sand.u32 %s26, 1
        %s313 = scalar_lea.sflag [#allocation6], %s312
        %s314 = sand.u32 %s76, 1
        %s315 = smul.addr %s314, 32
        %s316 = scalar_lea.vmem [#allocation5], %s315
        // Predicated region
        $region45: #{csp_res_stage_forward.7} parent=39 // pred_check
          %p317 = pneg %p89
        $region46: #{csp_res_stage_forward.7} parent=39 // pred_check_branch
          %319 = sbr.rel (%p317) target = $region48
        $region47: #{csp_res_stage_forward.7} parent=39 // pred_region
          %320 = dma.done %s313, 512
        $region48: #{csp_res_stage_forward.7} parent=39 // pred_fallthru
          _
        %s321 = sand.u32 %s26, 1
        %s322 = scalar_lea.sflag [#allocation6], %s321
        %s323 = sand.u32 %s102, 1
        %s324 = smul.addr %s323, 256
        %s325 = scalar_lea.vmem [#allocation7], %s324
        // Predicated region
        $region49: #{csp_res_stage_forward.7} parent=39 // pred_check
          %p326 = pneg %p115
        $region50: #{csp_res_stage_forward.7} parent=39 // pred_check_branch
          %328 = sbr.rel (%p326) target = $region52
        $region51: #{csp_res_stage_forward.7} parent=39 // pred_region
          %329 = dma.done %s322, 4096
        $region52: #{csp_res_stage_forward.7} parent=39 // pred_fallthru
          _
        // Predicated region
        $region53: #{csp_res_stage_forward.7} parent=39 // pred_check
          %p330 = pneg %p136
        $region54: #{csp_res_stage_forward.7} parent=39 // pred_check_branch
          %332 = sbr.rel (%p330) target = $region56
        $region55: #{csp_res_stage_forward.7} parent=39 // pred_region
          %333 = dma.done [#allocation9], 2048
        $region56: #{csp_res_stage_forward.7} parent=39 // pred_fallthru
          _
        // Predicated region
        $region57: #{csp_res_stage_forward.7} parent=39 // pred_check
          %p334 = pneg %p157
        $region58: #{csp_res_stage_forward.7} parent=39 // pred_check_branch
          %336 = sbr.rel (%p334) target = $region60
        $region59: #{csp_res_stage_forward.7} parent=39 // pred_region
          %337 = dma.done [#allocation9], 16
        $region60: #{csp_res_stage_forward.7} parent=39 // pred_fallthru
          _
        %s338 = sand.u32 %s48, 1
        %s339 = scalar_lea.sflag [#allocation3], %s338
        %s340 = sand.u32 %s48, 1
        %s341 = smul.addr %s340, 32
        %s342 = scalar_lea.vmem [#allocation2], %s341
        %p343 = pneg %p61
        %p344 = pneg %p58
        %s345 = sand.u32 %s26, 1
        %s346 = scalar_lea.sflag [#allocation6], %s345
        %s347 = sand.u32 %s76, 1
        %s348 = smul.addr %s347, 32
        %s349 = scalar_lea.vmem [#allocation5], %s348
        %p350 = pneg %p89
        %p351 = pneg %p86
        %s352 = sand.u32 %s26, 1
        %s353 = scalar_lea.sflag [#allocation6], %s352
        %s354 = sand.u32 %s102, 1
        %s355 = smul.addr %s354, 256
        %s356 = scalar_lea.vmem [#allocation7], %s355
        %p357 = pneg %p115
        %p358 = pneg %p112
        %p359 = pneg %p136
        %p360 = pneg %p133
        %p361 = pneg %p157
        %p362 = pneg %p154
        %p363 = pneg %p185
        %p364 = pneg %p182
        %s365 = sand.u32 %s172, 1
        %s366 = scalar_lea.sflag [#allocation4], %s365
        %s367 = sand.u32 %s172, 1
        %s368 = smul.addr %s367, 32
        %s369 = scalar_lea.vmem [#allocation11], %s368
        %s370 = smul.u32 8, %s31
        %s371 = smul.u32 8, %s31
        %s372 = smul.u32 8, %s31
        %v374 = vld [vmem:[#allocation8] sm:$0xf]
        %v375 = vld [vmem:[#allocation8 + $0x4] sm:$0xf]
        %v376 = vld [vmem:[#allocation8 + $0x8] sm:$0xf]
        %v377 = vld [vmem:[#allocation8 + $0xc] sm:$0xf]
        %v378 = vld [vmem:[#allocation8 + $0x10] sm:$0xf]
        %v379 = vld [vmem:[#allocation8 + $0x14] sm:$0xf]
        %v380 = vld [vmem:[#allocation8 + $0x18] sm:$0xf]
        %v381 = vld [vmem:[#allocation8 + $0x1c] sm:$0xf]
        %v382 = vld [vmem:[#allocation8 + $0x20] sm:$0xf]
        %v383 = vld [vmem:[#allocation8 + $0x24] sm:$0xf]
        %v384 = vld [vmem:[#allocation8 + $0x28] sm:$0xf]
        %v385 = vld [vmem:[#allocation8 + $0x2c] sm:$0xf]
        %v386 = vld [vmem:[#allocation8 + $0x30] sm:$0xf]
        %v387 = vld [vmem:[#allocation8 + $0x34] sm:$0xf]
        %v388 = vld [vmem:[#allocation8 + $0x38] sm:$0xf]
        %v389 = vld [vmem:[#allocation8 + $0x3c] sm:$0xf]
        %v390 = vld [vmem:[#allocation8 + $0x40] sm:$0xf]
        %v391 = vld [vmem:[#allocation8 + $0x44] sm:$0xf]
        %v392 = vld [vmem:[#allocation8 + $0x48] sm:$0xf]
        %v393 = vld [vmem:[#allocation8 + $0x4c] sm:$0xf]
        %v394 = vld [vmem:[#allocation8 + $0x50] sm:$0xf]
        %v395 = vld [vmem:[#allocation8 + $0x54] sm:$0xf]
        %v396 = vld [vmem:[#allocation8 + $0x58] sm:$0xf]
        %v397 = vld [vmem:[#allocation8 + $0x5c] sm:$0xf]
        %v398 = vld [vmem:[#allocation8 + $0x60] sm:$0xf]
        %v399 = vld [vmem:[#allocation8 + $0x64] sm:$0xf]
        %v400 = vld [vmem:[#allocation8 + $0x68] sm:$0xf]
        %v401 = vld [vmem:[#allocation8 + $0x6c] sm:$0xf]
        %v402 = vld [vmem:[#allocation8 + $0x70] sm:$0xf]
        %v403 = vld [vmem:[#allocation8 + $0x74] sm:$0xf]
        %v404 = vld [vmem:[#allocation8 + $0x78] sm:$0xf]
        %v405 = vld [vmem:[#allocation8 + $0x7c] sm:$0xf]
        %v406 = vld [vmem:[%s325] sm:$0xff]
        %v407 = vld [vmem:[%s325 + $0x8] sm:$0xff]
        %v408 = vld [vmem:[%s325 + $0x10] sm:$0xff]
        %v409 = vld [vmem:[%s325 + $0x18] sm:$0xff]
        %v410 = vld [vmem:[%s325 + $0x20] sm:$0xff]
        %v411 = vld [vmem:[%s325 + $0x28] sm:$0xff]
        %v412 = vld [vmem:[%s325 + $0x30] sm:$0xff]
        %v413 = vld [vmem:[%s325 + $0x38] sm:$0xff]
        %v414 = vld [vmem:[%s325 + $0x40] sm:$0xff]
        %v415 = vld [vmem:[%s325 + $0x48] sm:$0xff]
        %v416 = vld [vmem:[%s325 + $0x50] sm:$0xff]
        %v417 = vld [vmem:[%s325 + $0x58] sm:$0xff]
        %v418 = vld [vmem:[%s325 + $0x60] sm:$0xff]
        %v419 = vld [vmem:[%s325 + $0x68] sm:$0xff]
        %v420 = vld [vmem:[%s325 + $0x70] sm:$0xff]
        %v421 = vld [vmem:[%s325 + $0x78] sm:$0xff]
        %v422 = vld [vmem:[%s325 + $0x80] sm:$0xff]
        %v423 = vld [vmem:[%s325 + $0x88] sm:$0xff]
        %v424 = vld [vmem:[%s325 + $0x90] sm:$0xff]
        %v425 = vld [vmem:[%s325 + $0x98] sm:$0xff]
        %v426 = vld [vmem:[%s325 + $0xa0] sm:$0xff]
        %v427 = vld [vmem:[%s325 + $0xa8] sm:$0xff]
        %v428 = vld [vmem:[%s325 + $0xb0] sm:$0xff]
        %v429 = vld [vmem:[%s325 + $0xb8] sm:$0xff]
        %v430 = vld [vmem:[%s325 + $0xc0] sm:$0xff]
        %v431 = vld [vmem:[%s325 + $0xc8] sm:$0xff]
        %v432 = vld [vmem:[%s325 + $0xd0] sm:$0xff]
        %v433 = vld [vmem:[%s325 + $0xd8] sm:$0xff]
        %v434 = vld [vmem:[%s325 + $0xe0] sm:$0xff]
        %v435 = vld [vmem:[%s325 + $0xe8] sm:$0xff]
        %v436 = vld [vmem:[%s325 + $0xf0] sm:$0xff]
        %v437 = vld [vmem:[%s325 + $0xf8] sm:$0xff]
        %v438 = vunpack.c.l.bf16 %v374
        %v439 = vunpack.c.l.bf16 %v375
        %v440 = vunpack.c.l.bf16 %v376
        %v441 = vunpack.c.l.bf16 %v377
        %v442 = vunpack.c.l.bf16 %v378
        %v443 = vunpack.c.l.bf16 %v379
        %v444 = vunpack.c.l.bf16 %v380
        %v445 = vunpack.c.l.bf16 %v381
        %v446 = vunpack.c.l.bf16 %v382
        %v447 = vunpack.c.l.bf16 %v383
        %v448 = vunpack.c.l.bf16 %v384
        %v449 = vunpack.c.l.bf16 %v385
        %v450 = vunpack.c.l.bf16 %v386
        %v451 = vunpack.c.l.bf16 %v387
        %v452 = vunpack.c.l.bf16 %v388
        %v453 = vunpack.c.l.bf16 %v389
        %v454 = vunpack.c.l.bf16 %v390
        %v455 = vunpack.c.l.bf16 %v391
        %v456 = vunpack.c.l.bf16 %v392
        %v457 = vunpack.c.l.bf16 %v393
        %v458 = vunpack.c.l.bf16 %v394
        %v459 = vunpack.c.l.bf16 %v395
        %v460 = vunpack.c.l.bf16 %v396
        %v461 = vunpack.c.l.bf16 %v397
        %v462 = vunpack.c.l.bf16 %v398
        %v463 = vunpack.c.l.bf16 %v399
        %v464 = vunpack.c.l.bf16 %v400
        %v465 = vunpack.c.l.bf16 %v401
        %v466 = vunpack.c.l.bf16 %v402
        %v467 = vunpack.c.l.bf16 %v403
        %v468 = vunpack.c.l.bf16 %v404
        %v469 = vunpack.c.l.bf16 %v405
        %471 = vset.pattern.permute.xlu0 0
        %472 = vperm.xlu0 %471, %v406
        %v473 = vpop.permute.xlu0 %472
        %476 = vset.pattern.permute.xlu0 0
        %477 = vperm.xlu0 %476, %v407
        %v478 = vpop.permute.xlu0 %477
        %481 = vset.pattern.permute.xlu0 0
        %482 = vperm.xlu0 %481, %v408
        %v483 = vpop.permute.xlu0 %482
        %486 = vset.pattern.permute.xlu0 0
        %487 = vperm.xlu0 %486, %v409
        %v488 = vpop.permute.xlu0 %487
        %491 = vset.pattern.permute.xlu0 0
        %492 = vperm.xlu0 %491, %v410
        %v493 = vpop.permute.xlu0 %492
        %496 = vset.pattern.permute.xlu0 0
        %497 = vperm.xlu0 %496, %v411
        %v498 = vpop.permute.xlu0 %497
        %501 = vset.pattern.permute.xlu0 0
        %502 = vperm.xlu0 %501, %v412
        %v503 = vpop.permute.xlu0 %502
        %506 = vset.pattern.permute.xlu0 0
        %507 = vperm.xlu0 %506, %v413
        %v508 = vpop.permute.xlu0 %507
        %511 = vset.pattern.permute.xlu0 0
        %512 = vperm.xlu0 %511, %v414
        %v513 = vpop.permute.xlu0 %512
        %516 = vset.pattern.permute.xlu0 0
        %517 = vperm.xlu0 %516, %v415
        %v518 = vpop.permute.xlu0 %517
        %521 = vset.pattern.permute.xlu0 0
        %522 = vperm.xlu0 %521, %v416
        %v523 = vpop.permute.xlu0 %522
        %526 = vset.pattern.permute.xlu0 0
        %527 = vperm.xlu0 %526, %v417
        %v528 = vpop.permute.xlu0 %527
        %531 = vset.pattern.permute.xlu0 0
        %532 = vperm.xlu0 %531, %v418
        %v533 = vpop.permute.xlu0 %532
        %536 = vset.pattern.permute.xlu0 0
        %537 = vperm.xlu0 %536, %v419
        %v538 = vpop.permute.xlu0 %537
        %541 = vset.pattern.permute.xlu0 0
        %542 = vperm.xlu0 %541, %v420
        %v543 = vpop.permute.xlu0 %542
        %546 = vset.pattern.permute.xlu0 0
        %547 = vperm.xlu0 %546, %v421
        %v548 = vpop.permute.xlu0 %547
        %551 = vset.pattern.permute.xlu0 0
        %552 = vperm.xlu0 %551, %v422
        %v553 = vpop.permute.xlu0 %552
        %556 = vset.pattern.permute.xlu0 0
        %557 = vperm.xlu0 %556, %v423
        %v558 = vpop.permute.xlu0 %557
        %561 = vset.pattern.permute.xlu0 0
        %562 = vperm.xlu0 %561, %v424
        %v563 = vpop.permute.xlu0 %562
        %566 = vset.pattern.permute.xlu0 0
        %567 = vperm.xlu0 %566, %v425
        %v568 = vpop.permute.xlu0 %567
        %571 = vset.pattern.permute.xlu0 0
        %572 = vperm.xlu0 %571, %v426
        %v573 = vpop.permute.xlu0 %572
        %576 = vset.pattern.permute.xlu0 0
        %577 = vperm.xlu0 %576, %v427
        %v578 = vpop.permute.xlu0 %577
        %581 = vset.pattern.permute.xlu0 0
        %582 = vperm.xlu0 %581, %v428
        %v583 = vpop.permute.xlu0 %582
        %586 = vset.pattern.permute.xlu0 0
        %587 = vperm.xlu0 %586, %v429
        %v588 = vpop.permute.xlu0 %587
        %591 = vset.pattern.permute.xlu0 0
        %592 = vperm.xlu0 %591, %v430
        %v593 = vpop.permute.xlu0 %592
        %596 = vset.pattern.permute.xlu0 0
        %597 = vperm.xlu0 %596, %v431
        %v598 = vpop.permute.xlu0 %597
        %601 = vset.pattern.permute.xlu0 0
        %602 = vperm.xlu0 %601, %v432
        %v603 = vpop.permute.xlu0 %602
        %606 = vset.pattern.permute.xlu0 0
        %607 = vperm.xlu0 %606, %v433
        %v608 = vpop.permute.xlu0 %607
        %611 = vset.pattern.permute.xlu0 0
        %612 = vperm.xlu0 %611, %v434
        %v613 = vpop.permute.xlu0 %612
        %616 = vset.pattern.permute.xlu0 0
        %617 = vperm.xlu0 %616, %v435
        %v618 = vpop.permute.xlu0 %617
        %621 = vset.pattern.permute.xlu0 0
        %622 = vperm.xlu0 %621, %v436
        %v623 = vpop.permute.xlu0 %622
        %626 = vset.pattern.permute.xlu0 0
        %627 = vperm.xlu0 %626, %v437
        %v628 = vpop.permute.xlu0 %627
        %v630 = vmul.f32 %v438, %v473
        %v631 = vmul.f32 %v439, %v478
        %v632 = vmul.f32 %v440, %v483
        %v633 = vmul.f32 %v441, %v488
        %v634 = vmul.f32 %v442, %v493
        %v635 = vmul.f32 %v443, %v498
        %v636 = vmul.f32 %v444, %v503
        %v637 = vmul.f32 %v445, %v508
        %v638 = vmul.f32 %v446, %v513
        %v639 = vmul.f32 %v447, %v518
        %v640 = vmul.f32 %v448, %v523
        %v641 = vmul.f32 %v449, %v528
        %v642 = vmul.f32 %v450, %v533
        %v643 = vmul.f32 %v451, %v538
        %v644 = vmul.f32 %v452, %v543
        %v645 = vmul.f32 %v453, %v548
        %v646 = vmul.f32 %v454, %v553
        %v647 = vmul.f32 %v455, %v558
        %v648 = vmul.f32 %v456, %v563
        %v649 = vmul.f32 %v457, %v568
        %v650 = vmul.f32 %v458, %v573
        %v651 = vmul.f32 %v459, %v578
        %v652 = vmul.f32 %v460, %v583
        %v653 = vmul.f32 %v461, %v588
        %v654 = vmul.f32 %v462, %v593
        %v655 = vmul.f32 %v463, %v598
        %v656 = vmul.f32 %v464, %v603
        %v657 = vmul.f32 %v465, %v608
        %v658 = vmul.f32 %v466, %v613
        %v659 = vmul.f32 %v467, %v618
        %v660 = vmul.f32 %v468, %v623
        %v661 = vmul.f32 %v469, %v628
        %v662 = vpack.c.bf16 %v631, %v630
        %v663 = vpack.c.bf16 %v633, %v632
        %v664 = vpack.c.bf16 %v635, %v634
        %v665 = vpack.c.bf16 %v637, %v636
        %v666 = vpack.c.bf16 %v639, %v638
        %v667 = vpack.c.bf16 %v641, %v640
        %v668 = vpack.c.bf16 %v643, %v642
        %v669 = vpack.c.bf16 %v645, %v644
        %v670 = vpack.c.bf16 %v647, %v646
        %v671 = vpack.c.bf16 %v649, %v648
        %v672 = vpack.c.bf16 %v651, %v650
        %v673 = vpack.c.bf16 %v653, %v652
        %v674 = vpack.c.bf16 %v655, %v654
        %v675 = vpack.c.bf16 %v657, %v656
        %v676 = vpack.c.bf16 %v659, %v658
        %v677 = vpack.c.bf16 %v661, %v660
        %v678 = vld [vmem:[%s307] sm:$0xf]
        %v679 = vld [vmem:[%s307 + $0x4] sm:$0xf]
        %v680 = vld [vmem:[%s307 + $0x8] sm:$0xf]
        %v681 = vld [vmem:[%s307 + $0xc] sm:$0xf]
        %v682 = vld [vmem:[%s307 + $0x10] sm:$0xf]
        %v683 = vld [vmem:[%s307 + $0x14] sm:$0xf]
        %v684 = vld [vmem:[%s307 + $0x18] sm:$0xf]
        %v685 = vld [vmem:[%s307 + $0x1c] sm:$0xf]
        %v686 = vld [vmem:[%s316] sm:$0xf]
        %v687 = vld [vmem:[%s316 + $0x4] sm:$0xf]
        %v688 = vld [vmem:[%s316 + $0x8] sm:$0xf]
        %v689 = vld [vmem:[%s316 + $0xc] sm:$0xf]
        %v690 = vld [vmem:[%s316 + $0x10] sm:$0xf]
        %v691 = vld [vmem:[%s316 + $0x14] sm:$0xf]
        %v692 = vld [vmem:[%s316 + $0x18] sm:$0xf]
        %v693 = vld [vmem:[%s316 + $0x1c] sm:$0xf]
        %v702 = vunpack.c.l.b16 %v686
        %v703 = vunpack.c.l.b16 %v687
        %v704 = vunpack.c.l.b16 %v688
        %v705 = vunpack.c.l.b16 %v689
        %v706 = vunpack.c.l.b16 %v690
        %v707 = vunpack.c.l.b16 %v691
        %v708 = vunpack.c.l.b16 %v692
        %v709 = vunpack.c.l.b16 %v693
        %v710 = vpack.c.b16 %v703, %v702
        %v711 = vpack.c.b16 %v705, %v704
        %v712 = vpack.c.b16 %v707, %v706
        %v713 = vpack.c.b16 %v709, %v708
        %718 = vmatprep.subr.bf16.mxu0 0
        %719 = vmatpush1.bf16.msra.mxu0 %v670
        %720 = vmatprep.subr.bf16.mxu0 0
        %721 = vmatpush1.bf16.msra.mxu0 %v671
        %722 = vmatprep.subr.bf16.mxu0 0
        %723 = vmatpush1.bf16.msra.mxu0 %v672
        %724 = vmatprep.subr.bf16.mxu0 0
        %725 = vmatpush1.bf16.msra.mxu0 %v673
        %726 = vmatprep.subr.bf16.mxu0 0
        %727 = vmatpush1.bf16.msra.mxu0 %v674
        %728 = vmatprep.subr.bf16.mxu0 0
        %729 = vmatpush1.bf16.msra.mxu0 %v675
        %730 = vmatprep.subr.bf16.mxu0 0
        %731 = vmatpush1.bf16.msra.mxu0 %v676
        %732 = vmatprep.subr.bf16.mxu0 0
        %733 = vmatpush1.bf16.msra.mxu0 %v677
        %734 = vmatprep.subr.bf16.mxu0 0
        %735 = vmatpush1.bf16.msra.mxu0 0
        %736 = vmatprep.subr.bf16.mxu0 0
        %737 = vmatpush1.bf16.msra.mxu0 0
        %738 = vmatprep.subr.bf16.mxu0 0
        %739 = vmatpush1.bf16.msra.mxu0 0
        %740 = vmatprep.subr.bf16.mxu0 0
        %741 = vmatpush1.bf16.msra.mxu0 0
        %742 = vmatprep.subr.bf16.mxu0 0
        %743 = vmatpush1.bf16.msra.mxu0 0
        %744 = vmatprep.subr.bf16.mxu0 0
        %745 = vmatpush1.bf16.msra.mxu0 0
        %746 = vmatprep.subr.bf16.mxu0 0
        %747 = vmatpush1.bf16.msra.mxu0 0
        %748 = vmatprep.subr.bf16.mxu0 0
        %749 = vmatpush1.bf16.msra.mxu0 0
        %750 = vmatprep.mubr.bf16.mxu0 0
        %751 = vmatmul.mubr.bf16.gmra.mrb[0].mxu0 %v710
        %v752 = vpop.f32.mrb[0].mxu0
        %v753 = vadd.f32 0.0, %v752
        %v754 = vpop.f32.mrb[0].mxu0
        %v755 = vpop.f32.mrb[0].mxu0
        %v756 = vadd.f32 0.0, %v755
        %v757 = vpop.f32.mrb[0].mxu0
        %758 = vmatprep.mubr.bf16.mxu0 0
        %759 = vmatmul.mubr.bf16.gmra.mrb[0].mxu0 %v711
        %v760 = vpop.f32.mrb[0].mxu0
        %v761 = vadd.f32 0.0, %v760
        %v762 = vpop.f32.mrb[0].mxu0
        %v763 = vpop.f32.mrb[0].mxu0
        %v764 = vadd.f32 0.0, %v763
        %v765 = vpop.f32.mrb[0].mxu0
        %766 = vmatprep.mubr.bf16.mxu0 0
        %767 = vmatmul.mubr.bf16.gmra.mrb[0].mxu0 %v712
        %v768 = vpop.f32.mrb[0].mxu0
        %v769 = vadd.f32 0.0, %v768
        %v770 = vpop.f32.mrb[0].mxu0
        %v771 = vpop.f32.mrb[0].mxu0
        %v772 = vadd.f32 0.0, %v771
        %v773 = vpop.f32.mrb[0].mxu0
        %774 = vmatprep.mubr.bf16.mxu0 0
        %775 = vmatmul.mubr.bf16.gmra.mrb[0].mxu0 %v713
        %v776 = vpop.f32.mrb[0].mxu0
        %v777 = vadd.f32 0.0, %v776
        %v778 = vpop.f32.mrb[0].mxu0
        %v779 = vpop.f32.mrb[0].mxu0
        %v780 = vadd.f32 0.0, %v779
        %v781 = vpop.f32.mrb[0].mxu0
        %782 = vdwg.mxu0
        %v791 = vunpack.c.l.b16 %v678
        %v792 = vunpack.c.l.b16 %v679
        %v793 = vunpack.c.l.b16 %v680
        %v794 = vunpack.c.l.b16 %v681
        %v795 = vunpack.c.l.b16 %v682
        %v796 = vunpack.c.l.b16 %v683
        %v797 = vunpack.c.l.b16 %v684
        %v798 = vunpack.c.l.b16 %v685
        %v799 = vpack.c.b16 %v792, %v791
        %v800 = vpack.c.b16 %v794, %v793
        %v801 = vpack.c.b16 %v796, %v795
        %v802 = vpack.c.b16 %v798, %v797
        %807 = vmatprep.subr.bf16.mxu0 0
        %808 = vmatpush1.bf16.msra.mxu0 %v662
        %809 = vmatprep.subr.bf16.mxu0 0
        %810 = vmatpush1.bf16.msra.mxu0 %v663
        %811 = vmatprep.subr.bf16.mxu0 0
        %812 = vmatpush1.bf16.msra.mxu0 %v664
        %813 = vmatprep.subr.bf16.mxu0 0
        %814 = vmatpush1.bf16.msra.mxu0 %v665
        %815 = vmatprep.subr.bf16.mxu0 0
        %816 = vmatpush1.bf16.msra.mxu0 %v666
        %817 = vmatprep.subr.bf16.mxu0 0
        %818 = vmatpush1.bf16.msra.mxu0 %v667
        %819 = vmatprep.subr.bf16.mxu0 0
        %820 = vmatpush1.bf16.msra.mxu0 %v668
        %821 = vmatprep.subr.bf16.mxu0 0
        %822 = vmatpush1.bf16.msra.mxu0 %v669
        %823 = vmatprep.subr.bf16.mxu0 0
        %824 = vmatpush1.bf16.msra.mxu0 0
        %825 = vmatprep.subr.bf16.mxu0 0
        %826 = vmatpush1.bf16.msra.mxu0 0
        %827 = vmatprep.subr.bf16.mxu0 0
        %828 = vmatpush1.bf16.msra.mxu0 0
        %829 = vmatprep.subr.bf16.mxu0 0
        %830 = vmatpush1.bf16.msra.mxu0 0
        %831 = vmatprep.subr.bf16.mxu0 0
        %832 = vmatpush1.bf16.msra.mxu0 0
        %833 = vmatprep.subr.bf16.mxu0 0
        %834 = vmatpush1.bf16.msra.mxu0 0
        %835 = vmatprep.subr.bf16.mxu0 0
        %836 = vmatpush1.bf16.msra.mxu0 0
        %837 = vmatprep.subr.bf16.mxu0 0
        %838 = vmatpush1.bf16.msra.mxu0 0
        %839 = vmatprep.mubr.bf16.mxu0 0
        %840 = vmatmul.mubr.bf16.gmra.mrb[0].mxu0 %v799
        %v841 = vpop.f32.mrb[0].mxu0
        %v842 = vadd.f32 %v753, %v841
        %v843 = vpop.f32.mrb[0].mxu0
        %v844 = vpop.f32.mrb[0].mxu0
        %v845 = vadd.f32 %v756, %v844
        %v846 = vpop.f32.mrb[0].mxu0
        %847 = vmatprep.mubr.bf16.mxu0 0
        %848 = vmatmul.mubr.bf16.gmra.mrb[0].mxu0 %v800
        %v849 = vpop.f32.mrb[0].mxu0
        %v850 = vadd.f32 %v761, %v849
        %v851 = vpop.f32.mrb[0].mxu0
        %v852 = vpop.f32.mrb[0].mxu0
        %v853 = vadd.f32 %v764, %v852
        %v854 = vpop.f32.mrb[0].mxu0
        %855 = vmatprep.mubr.bf16.mxu0 0
        %856 = vmatmul.mubr.bf16.gmra.mrb[0].mxu0 %v801
        %v857 = vpop.f32.mrb[0].mxu0
        %v858 = vadd.f32 %v769, %v857
        %v859 = vpop.f32.mrb[0].mxu0
        %v860 = vpop.f32.mrb[0].mxu0
        %v861 = vadd.f32 %v772, %v860
        %v862 = vpop.f32.mrb[0].mxu0
        %863 = vmatprep.mubr.bf16.mxu0 0
        %864 = vmatmul.mubr.bf16.gmra.mrb[0].mxu0 %v802
        %v865 = vpop.f32.mrb[0].mxu0
        %v866 = vadd.f32 %v777, %v865
        %v867 = vpop.f32.mrb[0].mxu0
        %v868 = vpop.f32.mrb[0].mxu0
        %v869 = vadd.f32 %v780, %v868
        %v870 = vpop.f32.mrb[0].mxu0
        %871 = vdwg.mxu0
        %v872 = vld [vmem:[#allocation10] sm:$0x1]
        %v874 = vlaneseq
        %v875 = vshrl.u32 %v874, 7
        %v876 = vsub.s32 0, %v875
        %v877 = vrot.slane %v872, %v876
        %v879 = vadd.f32 %v842, %v877
        %v880 = vadd.f32 %v845, %v877
        %v881 = vadd.f32 %v850, %v877
        %v882 = vadd.f32 %v853, %v877
        %v883 = vadd.f32 %v858, %v877
        %v884 = vadd.f32 %v861, %v877
        %v885 = vadd.f32 %v866, %v877
        %v886 = vadd.f32 %v869, %v877
        %v887 = vmax.f32 %v879, 0.0
        %v888 = vmax.f32 %v880, 0.0
        %v889 = vmax.f32 %v881, 0.0
        %v890 = vmax.f32 %v882, 0.0
        %v891 = vmax.f32 %v883, 0.0
        %v892 = vmax.f32 %v884, 0.0
        %v893 = vmax.f32 %v885, 0.0
        %v894 = vmax.f32 %v886, 0.0
        %v895 = vpack.c.bf16 %v888, %v887
        %v896 = vpack.c.bf16 %v890, %v889
        %v897 = vpack.c.bf16 %v892, %v891
        %v898 = vpack.c.bf16 %v894, %v893
        %v903 = vunpack.c.l.b16 %v895
        %v904 = vunpack.c.h.b16 %v895
        %v905 = vunpack.c.l.b16 %v896
        %v906 = vunpack.c.h.b16 %v896
        %v907 = vunpack.c.l.b16 %v897
        %v908 = vunpack.c.h.b16 %v897
        %v909 = vunpack.c.l.b16 %v898
        %v910 = vunpack.c.h.b16 %v898
        %v911 = vpack.c.b16 %v903, %v903
        %v912 = vpack.c.b16 %v904, %v904
        %v913 = vpack.c.b16 %v905, %v905
        %v914 = vpack.c.b16 %v906, %v906
        %v915 = vpack.c.b16 %v907, %v907
        %v916 = vpack.c.b16 %v908, %v908
        %v917 = vpack.c.b16 %v909, %v909
        %v918 = vpack.c.b16 %v910, %v910
        %927 = vst [vmem:[%s369] sm:$0xf] %v911
        %928 = vst [vmem:[%s369 + $0x4] sm:$0xf] %v912
        %929 = vst [vmem:[%s369 + $0x8] sm:$0xf] %v913
        %930 = vst [vmem:[%s369 + $0xc] sm:$0xf] %v914
        %931 = vst [vmem:[%s369 + $0x10] sm:$0xf] %v915
        %932 = vst [vmem:[%s369 + $0x14] sm:$0xf] %v916
        %933 = vst [vmem:[%s369 + $0x18] sm:$0xf] %v917
        %934 = vst [vmem:[%s369 + $0x1c] sm:$0xf] %v918
        %s935 = sand.u32 %s172, 1
        %s936 = scalar_lea.sflag [#allocation4], %s935
        %s937 = sand.u32 %s172, 1
        %s938 = smul.addr %s937, 32
        %s939 = scalar_lea.vmem [#allocation11], %s938
        // Predicated region
        $region61: #{csp_res_stage_forward.7} parent=39 // pred_check
          %p940 = pneg %p182
        $region62: #{csp_res_stage_forward.7} parent=39 // pred_check_branch
          %942 = sbr.rel (%p940) target = $region64
        $region63: #{csp_res_stage_forward.7} parent=39 // pred_region
          %s943 = smul.u32 8, %s31
          %s945 = ssub.s32 512, 512
          %946 = vsyncadd %s936, %s945
          %s947 = smul.addr %s30, 8
          %s948 = sadd.s32 %s943, %s947
          %s949 = smul.addr %s948, 64
          %s950 = scalar_lea.hbm %s5, %s949
          %s951 = sshll.u32 %s939, 4
          %s952 = int_to_ptr.vmem [resolvable:$true] %s951
          %957 = dma.vmem_to_hbm [thread:$0]  %s952, 512, %s950, %s936, 64, 64, 4
        $region64: #{csp_res_stage_forward.7} parent=39 // pred_fallthru
          _
      $region40: #{csp_res_stage_forward.7} parent=5 // pred_fallthru
        _
      %p958 = scmp.le.s32.totalorder 2, %s21
      // Predicated region
      $region65: #{csp_res_stage_forward.7} parent=5 // pred_check
        %p959 = pneg %p958
      $region66: #{csp_res_stage_forward.7} parent=5 // pred_check_branch
        %961 = sbr.rel (%p959) target = $region68
      $region67: #{csp_res_stage_forward.7} parent=5 // pred_region
        %s962 = ssub.s32 %s21, 2
        // Predicated region
        $region69: #{csp_res_stage_forward.7} parent=67 // pred_check
          %p963 = pneg %p188
        $region70: #{csp_res_stage_forward.7} parent=67 // pred_check_branch
          %965 = sbr.rel (%p963) target = $region72
        $region71: #{csp_res_stage_forward.7} parent=67 // pred_region
          %s966 = sand.u32 %s173, 1
          %s967 = scalar_lea.sflag [#allocation4], %s966
          %s968 = sand.u32 %s173, 1
          %s969 = smul.addr %s968, 32
          %s970 = scalar_lea.vmem [#allocation11], %s969
          %971 = dma.done %s967, 512
        $region72: #{csp_res_stage_forward.7} parent=67 // pred_fallthru
          _
      $region68: #{csp_res_stage_forward.7} parent=5 // pred_fallthru
        _
    $region6: #{csp_res_stage_forward.7} parent=1 // loop_footer
      %s25 = sadd.s32 1, %s21
    $region7: #{csp_res_stage_forward.7} parent=1 // loop_footer_branch
      %20 = sbr.rel target = $region3
    $region8: #{csp_res_stage_forward.7} parent=1 // loop_exit
      _
    %972 = vsyncpa [#allocation3], 1
    %s973 = scalar_lea.sflag [#allocation3], 1
    %974 = vsyncpa %s973, 1
    %975 = vsyncpa [#allocation6], 1
    %s976 = scalar_lea.sflag [#allocation6], 1
    %977 = vsyncpa %s976, 1
    %978 = vsyncpa [#allocation9], 1
    %979 = vsyncpa [#allocation4], 1
    %s980 = scalar_lea.sflag [#allocation4], 1
    %981 = vsyncpa %s980, 1

// kernel: csp_res_stage_forward.4
$region0: #{csp_res_stage_forward.4}
  #allocation0 [shape = 'u32[]', space=smem, size = 0x4, offset = 0x4, fixed_abs, tag = 'smem constant byte address 0x4 - core index']
  #allocation1 [shape = 'u32[144,128]{1,0:T(1,128)}', space=vmem, size = 0x12000, scoped, tag = 'internal scratch']
  #allocation2 [shape = 'bf16[8,8,1152]{2,1,0:T(8,128)(2,1)}', space=vmem, size = 0x24000, scoped, tag = 'scratch operand']
  %s0 = inlined_call_operand.hbm [shape: bf16[2,8,8,128], index: 0, kind: input, shape index: {}]
  %s1 = inlined_call_operand.hbm [shape: bf16[2,8,8,128], index: 1, kind: input, shape index: {}]
  %s2 = inlined_call_operand.hbm [shape: bf16[2,8,8,128], index: 2, kind: input, shape index: {}]
  %s3 = inlined_call_operand.hbm [shape: bf16[2,8,8,128], index: 3, kind: input, shape index: {}]
  %s4 = inlined_call_operand.hbm [shape: bf16[1152,128], index: 4, kind: input, shape index: {}]
  %s5 = inlined_call_operand.hbm [shape: f32[1,128], index: 5, kind: input, shape index: {}]
  %s6 = inlined_call_operand.hbm [shape: bf16[2,8,8,128], index: 6, kind: output, shape index: {}]
  %s7 = sld [smem:[#allocation0]]
  $region81: #{csp_res_stage_forward.4} parent=0
    _
  %s9 = ssub.s32 1, %s7
  %s10 = scalar_select 0, %s9, %s7
  $region1: #{csp_res_stage_forward.4} parent=0
    #allocation3 [shape = 'u8[32768]{0}', space=vmem, size = 0x8000, scoped, tag = 'input window, operand 0']
    #allocation4 [shape = 's32[2]{0}', space=sflag, size = 0x8, scoped, tag = 'scoped memory for csp_res_stage_forward.4']
    #allocation5 [shape = 's32[2]{0}', space=sflag, size = 0x8, scoped, tag = 'scoped memory for csp_res_stage_forward.4']
    #allocation6 [shape = 'u8[32768]{0}', space=vmem, size = 0x8000, scoped, tag = 'input window, operand 1']
    #allocation7 [shape = 's32[2]{0}', space=sflag, size = 0x8, scoped, tag = 'scoped memory for csp_res_stage_forward.4']
    #allocation8 [shape = 'u8[32768]{0}', space=vmem, size = 0x8000, scoped, tag = 'input window, operand 2']
    #allocation9 [shape = 'u8[32768]{0}', space=vmem, size = 0x8000, scoped, tag = 'input window, operand 3']
    #allocation10 [shape = 's32[2]{0}', space=sflag, size = 0x8, scoped, tag = 'scoped memory for csp_res_stage_forward.4']
    #allocation11 [shape = 'u8[294912]{0}', space=vmem, size = 0x48000, scoped, tag = 'input window, operand 4, single buffered']
    #allocation12 [shape = 'u8[512]{0}', space=vmem, size = 0x400, scoped, tag = 'input window, operand 5, single buffered']
    #allocation13 [shape = 's32[1]{0}', space=sflag, size = 0x4, scoped, tag = 'scoped memory for csp_res_stage_forward.4']
    #allocation14 [shape = 'u8[32768]{0}', space=vmem, size = 0x8000, scoped, tag = 'output window, operand 0']
    %11 = vsyncpa [#allocation4], 0
    %s12 = scalar_lea.sflag [#allocation4], 1
    %13 = vsyncpa %s12, 0
    %14 = vsyncpa [#allocation7], 0
    %s15 = scalar_lea.sflag [#allocation7], 1
    %16 = vsyncpa %s15, 0
    %17 = vsyncpa [#allocation10], 0
    %s18 = scalar_lea.sflag [#allocation10], 1
    %19 = vsyncpa %s18, 0
    %20 = vsyncpa [#allocation13], 0
    %21 = vsyncpa [#allocation5], 0
    %s22 = scalar_lea.sflag [#allocation5], 1
    %23 = vsyncpa %s22, 0
    loop: start=0, step=1, limit=4
    $region2: #{csp_res_stage_forward.4} parent=1 // loop_pre_header
      _
    $region3: #{csp_res_stage_forward.4} parent=1 // loop_header
      %s25 = sphi 0, %s29
      %p26 = scmp.ge.s32.totalorder %s25, 4
      %s35 = sphi 0, %s37
      %s38 = sphi 0, %s35
      %s39 = sphi 0, %s38
      %s55 = sphi 0, %s39
      %s61 = sphi 0, %s63
      %s64 = sphi 0, %s61
      %s65 = sphi 0, %s64
      %s81 = sphi 0, %s65
      %s87 = sphi 0, %s89
      %s90 = sphi 0, %s87
      %s91 = sphi 0, %s90
      %s107 = sphi 0, %s91
      %s113 = sphi 0, %s115
      %s116 = sphi 0, %s113
      %s117 = sphi 0, %s116
      %s133 = sphi 0, %s117
      %s137 = sphi 0, %s137
      %s139 = sphi 0, %s137
      %s140 = sphi 0, %s139
      %s154 = sphi 0, %s140
      %s158 = sphi 0, %s158
      %s160 = sphi 0, %s158
      %s161 = sphi 0, %s160
      %s175 = sphi 0, %s161
      %s181 = sphi 0, %s183
      %s184 = sphi 0, %s181
      %s185 = sphi 0, %s184
      %s201 = sphi 0, %s185
    $region4: #{csp_res_stage_forward.4} parent=1 // loop_header_branch
      %28 = sbr.rel (%p26) target = $region8
    $region5: #{csp_res_stage_forward.4} parent=1 // loop_body
      %s30 = ssub.s32 %s25, 1
      %s31 = ssub.s32 %s25, 2
      %s32 = sadd.s32 %s25, 1
      %s33 = ssub.s32 %s25, %s32
      %p34 = scmp.eq.s32.totalorder %s33, 0
      %s36 = sadd.s32 %s35, 1
      %s37 = scalar_select %p34, %s35, %s36
      %p40 = pneg %p34
      %p41 = scmp.eq.s32.totalorder %s25, 1
      %p42 = por %p40, %p41
      %p43 = scmp.ne.s32.totalorder %s35, %s38
      %p44 = scmp.eq.s32.totalorder %s25, 0
      %p45 = por %p43, %p44
      %p46 = scmp.ne.s32.totalorder %s35, %s38
      %p47 = scmp.eq.s32.totalorder %s30, 1
      %p48 = por %p46, %p47
      %p49 = scmp.ne.s32.totalorder %s38, %s39
      %p50 = scmp.eq.s32.totalorder %s30, 0
      %p51 = por %p49, %p50
      %p52 = scmp.ne.s32.totalorder %s38, %s39
      %p53 = scmp.eq.s32.totalorder %s31, 1
      %p54 = por %p52, %p53
      %p56 = scmp.ne.s32.totalorder %s39, %s55
      %p57 = scmp.eq.s32.totalorder %s31, 0
      %p58 = por %p56, %p57
      %s59 = ssub.s32 %s25, %s32
      %p60 = scmp.eq.s32.totalorder %s59, 0
      %s62 = sadd.s32 %s61, 1
      %s63 = scalar_select %p60, %s61, %s62
      %p66 = pneg %p60
      %p67 = scmp.eq.s32.totalorder %s25, 1
      %p68 = por %p66, %p67
      %p69 = scmp.ne.s32.totalorder %s61, %s64
      %p70 = scmp.eq.s32.totalorder %s25, 0
      %p71 = por %p69, %p70
      %p72 = scmp.ne.s32.totalorder %s61, %s64
      %p73 = scmp.eq.s32.totalorder %s30, 1
      %p74 = por %p72, %p73
      %p75 = scmp.ne.s32.totalorder %s64, %s65
      %p76 = scmp.eq.s32.totalorder %s30, 0
      %p77 = por %p75, %p76
      %p78 = scmp.ne.s32.totalorder %s64, %s65
      %p79 = scmp.eq.s32.totalorder %s31, 1
      %p80 = por %p78, %p79
      %p82 = scmp.ne.s32.totalorder %s65, %s81
      %p83 = scmp.eq.s32.totalorder %s31, 0
      %p84 = por %p82, %p83
      %s85 = ssub.s32 %s25, %s32
      %p86 = scmp.eq.s32.totalorder %s85, 0
      %s88 = sadd.s32 %s87, 1
      %s89 = scalar_select %p86, %s87, %s88
      %p92 = pneg %p86
      %p93 = scmp.eq.s32.totalorder %s25, 1
      %p94 = por %p92, %p93
      %p95 = scmp.ne.s32.totalorder %s87, %s90
      %p96 = scmp.eq.s32.totalorder %s25, 0
      %p97 = por %p95, %p96
      %p98 = scmp.ne.s32.totalorder %s87, %s90
      %p99 = scmp.eq.s32.totalorder %s30, 1
      %p100 = por %p98, %p99
      %p101 = scmp.ne.s32.totalorder %s90, %s91
      %p102 = scmp.eq.s32.totalorder %s30, 0
      %p103 = por %p101, %p102
      %p104 = scmp.ne.s32.totalorder %s90, %s91
      %p105 = scmp.eq.s32.totalorder %s31, 1
      %p106 = por %p104, %p105
      %p108 = scmp.ne.s32.totalorder %s91, %s107
      %p109 = scmp.eq.s32.totalorder %s31, 0
      %p110 = por %p108, %p109
      %s111 = ssub.s32 %s25, %s32
      %p112 = scmp.eq.s32.totalorder %s111, 0
      %s114 = sadd.s32 %s113, 1
      %s115 = scalar_select %p112, %s113, %s114
      %p118 = pneg %p112
      %p119 = scmp.eq.s32.totalorder %s25, 1
      %p120 = por %p118, %p119
      %p121 = scmp.ne.s32.totalorder %s113, %s116
      %p122 = scmp.eq.s32.totalorder %s25, 0
      %p123 = por %p121, %p122
      %p124 = scmp.ne.s32.totalorder %s113, %s116
      %p125 = scmp.eq.s32.totalorder %s30, 1
      %p126 = por %p124, %p125
      %p127 = scmp.ne.s32.totalorder %s116, %s117
      %p128 = scmp.eq.s32.totalorder %s30, 0
      %p129 = por %p127, %p128
      %p130 = scmp.ne.s32.totalorder %s116, %s117
      %p131 = scmp.eq.s32.totalorder %s31, 1
      %p132 = por %p130, %p131
      %p134 = scmp.ne.s32.totalorder %s117, %s133
      %p135 = scmp.eq.s32.totalorder %s31, 0
      %p136 = por %p134, %p135
      %s138 = sadd.s32 %s137, 1
      %p141 = scmp.eq.s32.totalorder %s25, 1
      %p142 = scmp.ne.s32.totalorder %s137, %s139
      %p143 = scmp.eq.s32.totalorder %s25, 0
      %p144 = por %p142, %p143
      %p145 = scmp.ne.s32.totalorder %s137, %s139
      %p146 = scmp.eq.s32.totalorder %s30, 1
      %p147 = por %p145, %p146
      %p148 = scmp.ne.s32.totalorder %s139, %s140
      %p149 = scmp.eq.s32.totalorder %s30, 0
      %p150 = por %p148, %p149
      %p151 = scmp.ne.s32.totalorder %s139, %s140
      %p152 = scmp.eq.s32.totalorder %s31, 1
      %p153 = por %p151, %p152
      %p155 = scmp.ne.s32.totalorder %s140, %s154
      %p156 = scmp.eq.s32.totalorder %s31, 0
      %p157 = por %p155, %p156
      %s159 = sadd.s32 %s158, 1
      %p162 = scmp.eq.s32.totalorder %s25, 1
      %p163 = scmp.ne.s32.totalorder %s158, %s160
      %p164 = scmp.eq.s32.totalorder %s25, 0
      %p165 = por %p163, %p164
      %p166 = scmp.ne.s32.totalorder %s158, %s160
      %p167 = scmp.eq.s32.totalorder %s30, 1
      %p168 = por %p166, %p167
      %p169 = scmp.ne.s32.totalorder %s160, %s161
      %p170 = scmp.eq.s32.totalorder %s30, 0
      %p171 = por %p169, %p170
      %p172 = scmp.ne.s32.totalorder %s160, %s161
      %p173 = scmp.eq.s32.totalorder %s31, 1
      %p174 = por %p172, %p173
      %p176 = scmp.ne.s32.totalorder %s161, %s175
      %p177 = scmp.eq.s32.totalorder %s31, 0
      %p178 = por %p176, %p177
      %s179 = ssub.s32 %s25, %s32
      %p180 = scmp.eq.s32.totalorder %s179, 0
      %s182 = sadd.s32 %s181, 1
      %s183 = scalar_select %p180, %s181, %s182
      %p186 = pneg %p180
      %p187 = scmp.eq.s32.totalorder %s25, 1
      %p188 = por %p186, %p187
      %p189 = scmp.ne.s32.totalorder %s181, %s184
      %p190 = scmp.eq.s32.totalorder %s25, 0
      %p191 = por %p189, %p190
      %p192 = scmp.ne.s32.totalorder %s181, %s184
      %p193 = scmp.eq.s32.totalorder %s30, 1
      %p194 = por %p192, %p193
      %p195 = scmp.ne.s32.totalorder %s184, %s185
      %p196 = scmp.eq.s32.totalorder %s30, 0
      %p197 = por %p195, %p196
      %p198 = scmp.ne.s32.totalorder %s184, %s185
      %p199 = scmp.eq.s32.totalorder %s31, 1
      %p200 = por %p198, %p199
      %p202 = scmp.ne.s32.totalorder %s185, %s201
      %p203 = scmp.eq.s32.totalorder %s31, 0
      %p204 = por %p202, %p203
      %p205 = scmp.le.s32.totalorder 1, %s25
      %p206 = scmp.lt.s32.totalorder %s25, 3
      %p207 = pnand %p205, %p206
      %p208 = pneg %p207
      // Predicated region
      $region9: #{csp_res_stage_forward.4} parent=5 // pred_check
        _
      $region10: #{csp_res_stage_forward.4} parent=5 // pred_check_branch
        %210 = sbr.rel (%p207) target = $region12
      $region11: #{csp_res_stage_forward.4} parent=5 // pred_region
        %s211 = ssub.s32 %s25, 1
        // Predicated region
        $region13: #{csp_res_stage_forward.4} parent=11 // pred_check
          %p212 = pneg %p150
        $region14: #{csp_res_stage_forward.4} parent=11 // pred_check_branch
          %214 = sbr.rel (%p212) target = $region16
        $region15: #{csp_res_stage_forward.4} parent=11 // pred_region
          %s216 = ssub.s32 9216, 9216
          %217 = vsyncadd [#allocation10], %s216
          %s218 = sshll.u32 [#allocation11], 4
          %s219 = int_to_ptr.vmem [resolvable:$true] %s218
          %224 = dma.hbm_to_vmem [thread:$0]  %s4, 9216, %s219, [#allocation10], 64, 64, 4
        $region16: #{csp_res_stage_forward.4} parent=11 // pred_fallthru
          _
        // Predicated region
        $region17: #{csp_res_stage_forward.4} parent=11 // pred_check
          %p225 = pneg %p171
        $region18: #{csp_res_stage_forward.4} parent=11 // pred_check_branch
          %227 = sbr.rel (%p225) target = $region20
        $region19: #{csp_res_stage_forward.4} parent=11 // pred_region
          %s229 = ssub.s32 16, 16
          %230 = vsyncadd [#allocation13], %s229
          %s232 = sshll.u32 [#allocation12], 4
          %s233 = int_to_ptr.vmem [resolvable:$true] %s232
          %235 = dma.hbm_to_vmem [thread:$0]  %s5, 16, %s233, [#allocation13]
        $region20: #{csp_res_stage_forward.4} parent=11 // pred_fallthru
          _
      $region12: #{csp_res_stage_forward.4} parent=5 // pred_fallthru
        _
      %p236 = scmp.lt.s32.totalorder %s25, 2
      // Predicated region
      $region21: #{csp_res_stage_forward.4} parent=5 // pred_check
        %p237 = pneg %p236
      $region22: #{csp_res_stage_forward.4} parent=5 // pred_check_branch
        %239 = sbr.rel (%p237) target = $region24
      $region23: #{csp_res_stage_forward.4} parent=5 // pred_region
        // Predicated region
        $region25: #{csp_res_stage_forward.4} parent=23 // pred_check
          %p240 = pneg %p45
        $region26: #{csp_res_stage_forward.4} parent=23 // pred_check_branch
          %242 = sbr.rel (%p240) target = $region28
        $region27: #{csp_res_stage_forward.4} parent=23 // pred_region
          %s243 = sand.u32 %s35, 1
          %s244 = scalar_lea.sflag [#allocation4], %s243
          %s245 = sand.u32 %s35, 1
          %s246 = smul.addr %s245, 32
          %s247 = scalar_lea.vmem [#allocation3], %s246
          %s249 = ssub.s32 512, 512
          %250 = vsyncadd %s244, %s249
          %s251 = smul.addr %s25, 8
          %s252 = smul.addr %s251, 64
          %s253 = scalar_lea.hbm %s0, %s252
          %s254 = sshll.u32 %s247, 4
          %s255 = int_to_ptr.vmem [resolvable:$true] %s254
          %260 = dma.hbm_to_vmem [thread:$0]  %s253, 512, %s255, %s244, 64, 64, 4
        $region28: #{csp_res_stage_forward.4} parent=23 // pred_fallthru
          _
        // Predicated region
        $region29: #{csp_res_stage_forward.4} parent=23 // pred_check
          %p261 = pneg %p71
        $region30: #{csp_res_stage_forward.4} parent=23 // pred_check_branch
          %263 = sbr.rel (%p261) target = $region32
        $region31: #{csp_res_stage_forward.4} parent=23 // pred_region
          %s264 = sand.u32 %s25, 1
          %s265 = scalar_lea.sflag [#allocation7], %s264
          %s266 = sand.u32 %s61, 1
          %s267 = smul.addr %s266, 32
          %s268 = scalar_lea.vmem [#allocation6], %s267
          %s270 = ssub.s32 512, 512
          %271 = vsyncadd %s265, %s270
          %s272 = smul.addr %s25, 8
          %s273 = smul.addr %s272, 64
          %s274 = scalar_lea.hbm %s1, %s273
          %s275 = sshll.u32 %s268, 4
          %s276 = int_to_ptr.vmem [resolvable:$true] %s275
          %281 = dma.hbm_to_vmem [thread:$0]  %s274, 512, %s276, %s265, 64, 64, 4
        $region32: #{csp_res_stage_forward.4} parent=23 // pred_fallthru
          _
        // Predicated region
        $region33: #{csp_res_stage_forward.4} parent=23 // pred_check
          %p282 = pneg %p97
        $region34: #{csp_res_stage_forward.4} parent=23 // pred_check_branch
          %284 = sbr.rel (%p282) target = $region36
        $region35: #{csp_res_stage_forward.4} parent=23 // pred_region
          %s285 = sand.u32 %s25, 1
          %s286 = scalar_lea.sflag [#allocation7], %s285
          %s287 = sand.u32 %s87, 1
          %s288 = smul.addr %s287, 32
          %s289 = scalar_lea.vmem [#allocation8], %s288
          %s291 = ssub.s32 512, 512
          %292 = vsyncadd %s286, %s291
          %s293 = smul.addr %s25, 8
          %s294 = smul.addr %s293, 64
          %s295 = scalar_lea.hbm %s2, %s294
          %s296 = sshll.u32 %s289, 4
          %s297 = int_to_ptr.vmem [resolvable:$true] %s296
          %302 = dma.hbm_to_vmem [thread:$0]  %s295, 512, %s297, %s286, 64, 64, 4
        $region36: #{csp_res_stage_forward.4} parent=23 // pred_fallthru
          _
        // Predicated region
        $region37: #{csp_res_stage_forward.4} parent=23 // pred_check
          %p303 = pneg %p123
        $region38: #{csp_res_stage_forward.4} parent=23 // pred_check_branch
          %305 = sbr.rel (%p303) target = $region40
        $region39: #{csp_res_stage_forward.4} parent=23 // pred_region
          %s306 = sand.u32 %s25, 1
          %s307 = scalar_lea.sflag [#allocation10], %s306
          %s308 = sand.u32 %s113, 1
          %s309 = smul.addr %s308, 32
          %s310 = scalar_lea.vmem [#allocation9], %s309
          %s312 = ssub.s32 512, 512
          %313 = vsyncadd %s307, %s312
          %s314 = smul.addr %s25, 8
          %s315 = smul.addr %s314, 64
          %s316 = scalar_lea.hbm %s3, %s315
          %s317 = sshll.u32 %s310, 4
          %s318 = int_to_ptr.vmem [resolvable:$true] %s317
          %323 = dma.hbm_to_vmem [thread:$0]  %s316, 512, %s318, %s307, 64, 64, 4
        $region40: #{csp_res_stage_forward.4} parent=23 // pred_fallthru
          _
      $region24: #{csp_res_stage_forward.4} parent=5 // pred_fallthru
        _
      %p324 = scmp.le.s32.totalorder 1, %s25
      %p325 = scmp.lt.s32.totalorder %s25, 3
      %p326 = pnand %p324, %p325
      %p327 = pneg %p326
      // Predicated region
      $region41: #{csp_res_stage_forward.4} parent=5 // pred_check
        _
      $region42: #{csp_res_stage_forward.4} parent=5 // pred_check_branch
        %329 = sbr.rel (%p326) target = $region44
      $region43: #{csp_res_stage_forward.4} parent=5 // pred_region
        %s330 = ssub.s32 %s25, 1
        %s331 = sand.u32 %s38, 1
        %s332 = scalar_lea.sflag [#allocation4], %s331
        %s333 = sand.u32 %s38, 1
        %s334 = smul.addr %s333, 32
        %s335 = scalar_lea.vmem [#allocation3], %s334
        // Predicated region
        $region45: #{csp_res_stage_forward.4} parent=43 // pred_check
          %p336 = pneg %p51
        $region46: #{csp_res_stage_forward.4} parent=43 // pred_check_branch
          %338 = sbr.rel (%p336) target = $region48
        $region47: #{csp_res_stage_forward.4} parent=43 // pred_region
          %339 = dma.done %s332, 512
        $region48: #{csp_res_stage_forward.4} parent=43 // pred_fallthru
          _
        %s340 = sand.u32 %s30, 1
        %s341 = scalar_lea.sflag [#allocation7], %s340
        %s342 = sand.u32 %s64, 1
        %s343 = smul.addr %s342, 32
        %s344 = scalar_lea.vmem [#allocation6], %s343
        // Predicated region
        $region49: #{csp_res_stage_forward.4} parent=43 // pred_check
          %p345 = pneg %p77
        $region50: #{csp_res_stage_forward.4} parent=43 // pred_check_branch
          %347 = sbr.rel (%p345) target = $region52
        $region51: #{csp_res_stage_forward.4} parent=43 // pred_region
          %348 = dma.done %s341, 512
        $region52: #{csp_res_stage_forward.4} parent=43 // pred_fallthru
          _
        %s349 = sand.u32 %s30, 1
        %s350 = scalar_lea.sflag [#allocation7], %s349
        %s351 = sand.u32 %s90, 1
        %s352 = smul.addr %s351, 32
        %s353 = scalar_lea.vmem [#allocation8], %s352
        // Predicated region
        $region53: #{csp_res_stage_forward.4} parent=43 // pred_check
          %p354 = pneg %p103
        $region54: #{csp_res_stage_forward.4} parent=43 // pred_check_branch
          %356 = sbr.rel (%p354) target = $region56
        $region55: #{csp_res_stage_forward.4} parent=43 // pred_region
          %357 = dma.done %s350, 512
        $region56: #{csp_res_stage_forward.4} parent=43 // pred_fallthru
          _
        %s358 = sand.u32 %s30, 1
        %s359 = scalar_lea.sflag [#allocation10], %s358
        %s360 = sand.u32 %s116, 1
        %s361 = smul.addr %s360, 32
        %s362 = scalar_lea.vmem [#allocation9], %s361
        // Predicated region
        $region57: #{csp_res_stage_forward.4} parent=43 // pred_check
          %p363 = pneg %p129
        $region58: #{csp_res_stage_forward.4} parent=43 // pred_check_branch
          %365 = sbr.rel (%p363) target = $region60
        $region59: #{csp_res_stage_forward.4} parent=43 // pred_region
          %366 = dma.done %s359, 512
        $region60: #{csp_res_stage_forward.4} parent=43 // pred_fallthru
          _
        // Predicated region
        $region61: #{csp_res_stage_forward.4} parent=43 // pred_check
          %p367 = pneg %p150
        $region62: #{csp_res_stage_forward.4} parent=43 // pred_check_branch
          %369 = sbr.rel (%p367) target = $region64
        $region63: #{csp_res_stage_forward.4} parent=43 // pred_region
          %370 = dma.done [#allocation10], 9216
        $region64: #{csp_res_stage_forward.4} parent=43 // pred_fallthru
          _
        // Predicated region
        $region65: #{csp_res_stage_forward.4} parent=43 // pred_check
          %p371 = pneg %p171
        $region66: #{csp_res_stage_forward.4} parent=43 // pred_check_branch
          %373 = sbr.rel (%p371) target = $region68
        $region67: #{csp_res_stage_forward.4} parent=43 // pred_region
          %374 = dma.done [#allocation13], 16
        $region68: #{csp_res_stage_forward.4} parent=43 // pred_fallthru
          _
        %s375 = sand.u32 %s38, 1
        %s376 = scalar_lea.sflag [#allocation4], %s375
        %s377 = sand.u32 %s38, 1
        %s378 = smul.addr %s377, 32
        %s379 = scalar_lea.vmem [#allocation3], %s378
        %p380 = pneg %p51
        %p381 = pneg %p48
        %s382 = sand.u32 %s30, 1
        %s383 = scalar_lea.sflag [#allocation7], %s382
        %s384 = sand.u32 %s64, 1
        %s385 = smul.addr %s384, 32
        %s386 = scalar_lea.vmem [#allocation6], %s385
        %p387 = pneg %p77
        %p388 = pneg %p74
        %s389 = sand.u32 %s30, 1
        %s390 = scalar_lea.sflag [#allocation7], %s389
        %s391 = sand.u32 %s90, 1
        %s392 = smul.addr %s391, 32
        %s393 = scalar_lea.vmem [#allocation8], %s392
        %p394 = pneg %p103
        %p395 = pneg %p100
        %s396 = sand.u32 %s30, 1
        %s397 = scalar_lea.sflag [#allocation10], %s396
        %s398 = sand.u32 %s116, 1
        %s399 = smul.addr %s398, 32
        %s400 = scalar_lea.vmem [#allocation9], %s399
        %p401 = pneg %p129
        %p402 = pneg %p126
        %p403 = pneg %p150
        %p404 = pneg %p147
        %p405 = pneg %p171
        %p406 = pneg %p168
        %p407 = pneg %p197
        %p408 = pneg %p194
        %s409 = sand.u32 %s184, 1
        %s410 = scalar_lea.sflag [#allocation5], %s409
        %s411 = sand.u32 %s184, 1
        %s412 = smul.addr %s411, 32
        %s413 = scalar_lea.vmem [#allocation14], %s412
        %v415 = vld [vmem:[%s335] sm:$0xf]
        %v416 = vld [vmem:[%s335 + $0x4] sm:$0xf]
        %v417 = vld [vmem:[%s335 + $0x8] sm:$0xf]
        %v418 = vld [vmem:[%s335 + $0xc] sm:$0xf]
        %v419 = vld [vmem:[%s335 + $0x10] sm:$0xf]
        %v420 = vld [vmem:[%s335 + $0x14] sm:$0xf]
        %v421 = vld [vmem:[%s335 + $0x18] sm:$0xf]
        %v422 = vld [vmem:[%s335 + $0x1c] sm:$0xf]
        %v423 = vld [vmem:[%s344] sm:$0xf]
        %v424 = vld [vmem:[%s344 + $0x4] sm:$0xf]
        %v425 = vld [vmem:[%s344 + $0x8] sm:$0xf]
        %v426 = vld [vmem:[%s344 + $0xc] sm:$0xf]
        %v427 = vld [vmem:[%s344 + $0x10] sm:$0xf]
        %v428 = vld [vmem:[%s344 + $0x14] sm:$0xf]
        %v429 = vld [vmem:[%s344 + $0x18] sm:$0xf]
        %v430 = vld [vmem:[%s344 + $0x1c] sm:$0xf]
        %v431 = vld [vmem:[%s353] sm:$0xf]
        %v432 = vld [vmem:[%s353 + $0x4] sm:$0xf]
        %v433 = vld [vmem:[%s353 + $0x8] sm:$0xf]
        %v434 = vld [vmem:[%s353 + $0xc] sm:$0xf]
        %v435 = vld [vmem:[%s353 + $0x10] sm:$0xf]
        %v436 = vld [vmem:[%s353 + $0x14] sm:$0xf]
        %v437 = vld [vmem:[%s353 + $0x18] sm:$0xf]
        %v438 = vld [vmem:[%s353 + $0x1c] sm:$0xf]
        %v439 = vld [vmem:[%s362] sm:$0xf]
        %v440 = vld [vmem:[%s362 + $0x4] sm:$0xf]
        %v441 = vld [vmem:[%s362 + $0x8] sm:$0xf]
        %v442 = vld [vmem:[%s362 + $0xc] sm:$0xf]
        %v443 = vld [vmem:[%s362 + $0x10] sm:$0xf]
        %v444 = vld [vmem:[%s362 + $0x14] sm:$0xf]
        %v445 = vld [vmem:[%s362 + $0x18] sm:$0xf]
        %v446 = vld [vmem:[%s362 + $0x1c] sm:$0xf]
        %447 = vst [vmem:[#allocation2] sm:$0xf] 0
        %vm448 = vcmask 1040384
        %vm449 = vsmask.f32 256
        %vm450 = vmand %vm448, %vm449
        %v451 = vld [vmem:[#allocation2] sm:$0x1]
        %v452 = vsel %vm450, 0, %v451
        %453 = vst [vmem:[#allocation2] sm:$0x1] %v452
        %v454 = vld [vmem:[#allocation2 + $0x24] sm:$0x1]
        %v455 = vsel %vm450, 0, %v454
        %456 = vst [vmem:[#allocation2 + $0x24] sm:$0x1] %v455
        %v457 = vld [vmem:[#allocation2 + $0x48] sm:$0x1]
        %v458 = vsel %vm450, 0, %v457
        %459 = vst [vmem:[#allocation2 + $0x48] sm:$0x1] %v458
        %v460 = vld [vmem:[#allocation2 + $0x6c] sm:$0x1]
        %v461 = vsel %vm450, 0, %v460
        %462 = vst [vmem:[#allocation2 + $0x6c] sm:$0x1] %v461
        %v463 = vld [vmem:[#allocation2 + $0x90] sm:$0x1]
        %v464 = vsel %vm450, 0, %v463
        %465 = vst [vmem:[#allocation2 + $0x90] sm:$0x1] %v464
        %v466 = vld [vmem:[#allocation2 + $0xb4] sm:$0x1]
        %v467 = vsel %vm450, 0, %v466
        %468 = vst [vmem:[#allocation2 + $0xb4] sm:$0x1] %v467
        %v469 = vld [vmem:[#allocation2 + $0xd8] sm:$0x1]
        %v470 = vsel %vm450, 0, %v469
        %471 = vst [vmem:[#allocation2 + $0xd8] sm:$0x1] %v470
        %v472 = vld [vmem:[#allocation2 + $0xfc] sm:$0x1]
        %v473 = vsel %vm450, 0, %v472
        %474 = vst [vmem:[#allocation2 + $0xfc] sm:$0x1] %v473
        %v476 = vshrl.u32 %v439, 16
        %v478 = vrot.slane %v476, 7
        %v479 = vshll.u32 %v439, 16
        %v481 = vor.u32 %v478, %v479
        %v483 = vshrl.u32 %v440, 16
        %v485 = vrot.slane %v483, 7
        %v486 = vshll.u32 %v440, 16
        %v488 = vor.u32 %v485, %v486
        %v490 = vshrl.u32 %v441, 16
        %v492 = vrot.slane %v490, 7
        %v493 = vshll.u32 %v441, 16
        %v495 = vor.u32 %v492, %v493
        %v497 = vshrl.u32 %v442, 16
        %v499 = vrot.slane %v497, 7
        %v500 = vshll.u32 %v442, 16
        %v502 = vor.u32 %v499, %v500
        %v504 = vshrl.u32 %v443, 16
        %v506 = vrot.slane %v504, 7
        %v507 = vshll.u32 %v443, 16
        %v509 = vor.u32 %v506, %v507
        %v511 = vshrl.u32 %v444, 16
        %v513 = vrot.slane %v511, 7
        %v514 = vshll.u32 %v444, 16
        %v516 = vor.u32 %v513, %v514
        %v518 = vshrl.u32 %v445, 16
        %v520 = vrot.slane %v518, 7
        %v521 = vshll.u32 %v445, 16
        %v523 = vor.u32 %v520, %v521
        %s531 = scalar_lea.vmem [#allocation2], 36
        %vm532 = vcmask 1043456
        %vm533 = vsmask.f32 7938
        %vm534 = vmand %vm532, %vm533
        %v535 = vld [vmem:[%s531] sm:$0xf]
        %v536 = vsel %vm534, %v481, %v535
        %537 = vst [vmem:[%s531] sm:$0xf] %v536
        %v538 = vld [vmem:[%s531 + $0x24] sm:$0xf]
        %v539 = vsel %vm534, %v488, %v538
        %540 = vst [vmem:[%s531 + $0x24] sm:$0xf] %v539
        %v541 = vld [vmem:[%s531 + $0x48] sm:$0xf]
        %v542 = vsel %vm534, %v495, %v541
        %543 = vst [vmem:[%s531 + $0x48] sm:$0xf] %v542
        %v544 = vld [vmem:[%s531 + $0x6c] sm:$0xf]
        %v545 = vsel %vm534, %v502, %v544
        %546 = vst [vmem:[%s531 + $0x6c] sm:$0xf] %v545
        %v547 = vld [vmem:[%s531 + $0x90] sm:$0xf]
        %v548 = vsel %vm534, %v509, %v547
        %549 = vst [vmem:[%s531 + $0x90] sm:$0xf] %v548
        %v550 = vld [vmem:[%s531 + $0xb4] sm:$0xf]
        %v551 = vsel %vm534, %v516, %v550
        %552 = vst [vmem:[%s531 + $0xb4] sm:$0xf] %v551
        %v553 = vld [vmem:[%s531 + $0xd8] sm:$0xf]
        %v554 = vsel %vm534, %v523, %v553
        %555 = vst [vmem:[%s531 + $0xd8] sm:$0xf] %v554
        %556 = vst [vmem:[#allocation2 + $0x4] sm:$0xf] 0
        %557 = vst [vmem:[%s531 + $0x4] sm:$0xf] %v431
        %558 = vst [vmem:[%s531 + $0x28] sm:$0xf] %v432
        %559 = vst [vmem:[%s531 + $0x4c] sm:$0xf] %v433
        %560 = vst [vmem:[%s531 + $0x70] sm:$0xf] %v434
        %561 = vst [vmem:[%s531 + $0x94] sm:$0xf] %v435
        %562 = vst [vmem:[%s531 + $0xb8] sm:$0xf] %v436
        %563 = vst [vmem:[%s531 + $0xdc] sm:$0xf] %v437
        %564 = vst [vmem:[#allocation2 + $0x8] sm:$0xf] 0
        %565 = vst [vmem:[%s531 + $0x8] sm:$0xf] %v439
        %566 = vst [vmem:[%s531 + $0x2c] sm:$0xf] %v440
        %567 = vst [vmem:[%s531 + $0x50] sm:$0xf] %v441
        %568 = vst [vmem:[%s531 + $0x74] sm:$0xf] %v442
        %569 = vst [vmem:[%s531 + $0x98] sm:$0xf] %v443
        %570 = vst [vmem:[%s531 + $0xbc] sm:$0xf] %v444
        %571 = vst [vmem:[%s531 + $0xe0] sm:$0xf] %v445
        %v572 = vld [vmem:[#allocation2 + $0xc] sm:$0x1]
        %v573 = vsel %vm450, 0, %v572
        %574 = vst [vmem:[#allocation2 + $0xc] sm:$0x1] %v573
        %v575 = vld [vmem:[#allocation2 + $0x30] sm:$0x1]
        %v576 = vsel %vm450, 0, %v575
        %577 = vst [vmem:[#allocation2 + $0x30] sm:$0x1] %v576
        %v578 = vld [vmem:[#allocation2 + $0x54] sm:$0x1]
        %v579 = vsel %vm450, 0, %v578
        %580 = vst [vmem:[#allocation2 + $0x54] sm:$0x1] %v579
        %v581 = vld [vmem:[#allocation2 + $0x78] sm:$0x1]
        %v582 = vsel %vm450, 0, %v581
        %583 = vst [vmem:[#allocation2 + $0x78] sm:$0x1] %v582
        %v584 = vld [vmem:[#allocation2 + $0x9c] sm:$0x1]
        %v585 = vsel %vm450, 0, %v584
        %586 = vst [vmem:[#allocation2 + $0x9c] sm:$0x1] %v585
        %v587 = vld [vmem:[#allocation2 + $0xc0] sm:$0x1]
        %v588 = vsel %vm450, 0, %v587
        %589 = vst [vmem:[#allocation2 + $0xc0] sm:$0x1] %v588
        %v590 = vld [vmem:[#allocation2 + $0xe4] sm:$0x1]
        %v591 = vsel %vm450, 0, %v590
        %592 = vst [vmem:[#allocation2 + $0xe4] sm:$0x1] %v591
        %v593 = vld [vmem:[#allocation2 + $0x108] sm:$0x1]
        %v594 = vsel %vm450, 0, %v593
        %595 = vst [vmem:[#allocation2 + $0x108] sm:$0x1] %v594
        %v597 = vshrl.u32 %v423, 16
        %v599 = vrot.slane %v597, 7
        %v600 = vshll.u32 %v423, 16
        %v602 = vor.u32 %v599, %v600
        %v604 = vshrl.u32 %v424, 16
        %v606 = vrot.slane %v604, 7
        %v607 = vshll.u32 %v424, 16
        %v609 = vor.u32 %v606, %v607
        %v611 = vshrl.u32 %v425, 16
        %v613 = vrot.slane %v611, 7
        %v614 = vshll.u32 %v425, 16
        %v616 = vor.u32 %v613, %v614
        %v618 = vshrl.u32 %v426, 16
        %v620 = vrot.slane %v618, 7
        %v621 = vshll.u32 %v426, 16
        %v623 = vor.u32 %v620, %v621
        %v625 = vshrl.u32 %v427, 16
        %v627 = vrot.slane %v625, 7
        %v628 = vshll.u32 %v427, 16
        %v630 = vor.u32 %v627, %v628
        %v632 = vshrl.u32 %v428, 16
        %v634 = vrot.slane %v632, 7
        %v635 = vshll.u32 %v428, 16
        %v637 = vor.u32 %v634, %v635
        %v639 = vshrl.u32 %v429, 16
        %v641 = vrot.slane %v639, 7
        %v642 = vshll.u32 %v429, 16
        %v644 = vor.u32 %v641, %v642
        %v646 = vshrl.u32 %v430, 16
        %v648 = vrot.slane %v646, 7
        %v649 = vshll.u32 %v430, 16
        %v651 = vor.u32 %v648, %v649
        %v660 = vld [vmem:[#allocation2 + $0xc] sm:$0xf]
        %v661 = vsel %vm534, %v602, %v660
        %662 = vst [vmem:[#allocation2 + $0xc] sm:$0xf] %v661
        %v663 = vld [vmem:[#allocation2 + $0x30] sm:$0xf]
        %v664 = vsel %vm534, %v609, %v663
        %665 = vst [vmem:[#allocation2 + $0x30] sm:$0xf] %v664
        %v666 = vld [vmem:[#allocation2 + $0x54] sm:$0xf]
        %v667 = vsel %vm534, %v616, %v666
        %668 = vst [vmem:[#allocation2 + $0x54] sm:$0xf] %v667
        %v669 = vld [vmem:[#allocation2 + $0x78] sm:$0xf]
        %v670 = vsel %vm534, %v623, %v669
        %671 = vst [vmem:[#allocation2 + $0x78] sm:$0xf] %v670
        %v672 = vld [vmem:[#allocation2 + $0x9c] sm:$0xf]
        %v673 = vsel %vm534, %v630, %v672
        %674 = vst [vmem:[#allocation2 + $0x9c] sm:$0xf] %v673
        %v675 = vld [vmem:[#allocation2 + $0xc0] sm:$0xf]
        %v676 = vsel %vm534, %v637, %v675
        %677 = vst [vmem:[#allocation2 + $0xc0] sm:$0xf] %v676
        %v678 = vld [vmem:[#allocation2 + $0xe4] sm:$0xf]
        %v679 = vsel %vm534, %v644, %v678
        %680 = vst [vmem:[#allocation2 + $0xe4] sm:$0xf] %v679
        %v681 = vld [vmem:[#allocation2 + $0x108] sm:$0xf]
        %v682 = vsel %vm534, %v651, %v681
        %683 = vst [vmem:[#allocation2 + $0x108] sm:$0xf] %v682
        %684 = vst [vmem:[#allocation2 + $0x10] sm:$0xf] %v415
        %685 = vst [vmem:[#allocation2 + $0x34] sm:$0xf] %v416
        %686 = vst [vmem:[#allocation2 + $0x58] sm:$0xf] %v417
        %687 = vst [vmem:[#allocation2 + $0x7c] sm:$0xf] %v418
        %688 = vst [vmem:[#allocation2 + $0xa0] sm:$0xf] %v419
        %689 = vst [vmem:[#allocation2 + $0xc4] sm:$0xf] %v420
        %690 = vst [vmem:[#allocation2 + $0xe8] sm:$0xf] %v421
        %691 = vst [vmem:[#allocation2 + $0x10c] sm:$0xf] %v422
        %692 = vst [vmem:[#allocation2 + $0x14] sm:$0xf] %v423
        %693 = vst [vmem:[#allocation2 + $0x38] sm:$0xf] %v424
        %694 = vst [vmem:[#allocation2 + $0x5c] sm:$0xf] %v425
        %695 = vst [vmem:[#allocation2 + $0x80] sm:$0xf] %v426
        %696 = vst [vmem:[#allocation2 + $0xa4] sm:$0xf] %v427
        %697 = vst [vmem:[#allocation2 + $0xc8] sm:$0xf] %v428
        %698 = vst [vmem:[#allocation2 + $0xec] sm:$0xf] %v429
        %699 = vst [vmem:[#allocation2 + $0x110] sm:$0xf] %v430
        %v700 = vld [vmem:[#allocation2 + $0x18] sm:$0x1]
        %v701 = vsel %vm450, 0, %v700
        %702 = vst [vmem:[#allocation2 + $0x18] sm:$0x1] %v701
        %v703 = vld [vmem:[#allocation2 + $0x3c] sm:$0x1]
        %v704 = vsel %vm450, 0, %v703
        %705 = vst [vmem:[#allocation2 + $0x3c] sm:$0x1] %v704
        %v706 = vld [vmem:[#allocation2 + $0x60] sm:$0x1]
        %v707 = vsel %vm450, 0, %v706
        %708 = vst [vmem:[#allocation2 + $0x60] sm:$0x1] %v707
        %v709 = vld [vmem:[#allocation2 + $0x84] sm:$0x1]
        %v710 = vsel %vm450, 0, %v709
        %711 = vst [vmem:[#allocation2 + $0x84] sm:$0x1] %v710
        %v712 = vld [vmem:[#allocation2 + $0xa8] sm:$0x1]
        %v713 = vsel %vm450, 0, %v712
        %714 = vst [vmem:[#allocation2 + $0xa8] sm:$0x1] %v713
        %v715 = vld [vmem:[#allocation2 + $0xcc] sm:$0x1]
        %v716 = vsel %vm450, 0, %v715
        %717 = vst [vmem:[#allocation2 + $0xcc] sm:$0x1] %v716
        %v718 = vld [vmem:[#allocation2 + $0xf0] sm:$0x1]
        %v719 = vsel %vm450, 0, %v718
        %720 = vst [vmem:[#allocation2 + $0xf0] sm:$0x1] %v719
        %v721 = vld [vmem:[#allocation2 + $0x114] sm:$0x1]
        %v722 = vsel %vm450, 0, %v721
        %723 = vst [vmem:[#allocation2 + $0x114] sm:$0x1] %v722
        %v725 = vshrl.u32 %v446, 16
        %v727 = vrot.slane %v725, 7
        %v728 = vshll.u32 %v446, 16
        %v730 = vor.u32 %v727, %v728
        %v732 = vld [vmem:[#allocation2 + $0x18] sm:$0xf]
        %v733 = vsel %vm534, %v481, %v732
        %734 = vst [vmem:[#allocation2 + $0x18] sm:$0xf] %v733
        %v735 = vld [vmem:[#allocation2 + $0x3c] sm:$0xf]
        %v736 = vsel %vm534, %v488, %v735
        %737 = vst [vmem:[#allocation2 + $0x3c] sm:$0xf] %v736
        %v738 = vld [vmem:[#allocation2 + $0x60] sm:$0xf]
        %v739 = vsel %vm534, %v495, %v738
        %740 = vst [vmem:[#allocation2 + $0x60] sm:$0xf] %v739
        %v741 = vld [vmem:[#allocation2 + $0x84] sm:$0xf]
        %v742 = vsel %vm534, %v502, %v741
        %743 = vst [vmem:[#allocation2 + $0x84] sm:$0xf] %v742
        %v744 = vld [vmem:[#allocation2 + $0xa8] sm:$0xf]
        %v745 = vsel %vm534, %v509, %v744
        %746 = vst [vmem:[#allocation2 + $0xa8] sm:$0xf] %v745
        %v747 = vld [vmem:[#allocation2 + $0xcc] sm:$0xf]
        %v748 = vsel %vm534, %v516, %v747
        %749 = vst [vmem:[#allocation2 + $0xcc] sm:$0xf] %v748
        %v750 = vld [vmem:[#allocation2 + $0xf0] sm:$0xf]
        %v751 = vsel %vm534, %v523, %v750
        %752 = vst [vmem:[#allocation2 + $0xf0] sm:$0xf] %v751
        %v753 = vld [vmem:[#allocation2 + $0x114] sm:$0xf]
        %v754 = vsel %vm534, %v730, %v753
        %755 = vst [vmem:[#allocation2 + $0x114] sm:$0xf] %v754
        %756 = vst [vmem:[#allocation2 + $0x1c] sm:$0xf] %v431
        %757 = vst [vmem:[#allocation2 + $0x40] sm:$0xf] %v432
        %758 = vst [vmem:[#allocation2 + $0x64] sm:$0xf] %v433
        %759 = vst [vmem:[#allocation2 + $0x88] sm:$0xf] %v434
        %760 = vst [vmem:[#allocation2 + $0xac] sm:$0xf] %v435
        %761 = vst [vmem:[#allocation2 + $0xd0] sm:$0xf] %v436
        %762 = vst [vmem:[#allocation2 + $0xf4] sm:$0xf] %v437
        %763 = vst [vmem:[#allocation2 + $0x118] sm:$0xf] %v438
        %764 = vst [vmem:[#allocation2 + $0x20] sm:$0xf] %v439
        %765 = vst [vmem:[#allocation2 + $0x44] sm:$0xf] %v440
        %766 = vst [vmem:[#allocation2 + $0x68] sm:$0xf] %v441
        %767 = vst [vmem:[#allocation2 + $0x8c] sm:$0xf] %v442
        %768 = vst [vmem:[#allocation2 + $0xb0] sm:$0xf] %v443
        %769 = vst [vmem:[#allocation2 + $0xd4] sm:$0xf] %v444
        %770 = vst [vmem:[#allocation2 + $0xf8] sm:$0xf] %v445
        %771 = vst [vmem:[#allocation2 + $0x11c] sm:$0xf] %v446
        %v772 = vld [vmem:[#allocation2] sm:$0xff]
        %v773 = vld [vmem:[#allocation2 + $0x8] sm:$0xff]
        %v774 = vld [vmem:[#allocation2 + $0x10] sm:$0xff]
        %v775 = vld [vmem:[#allocation2 + $0x18] sm:$0xff]
        %v776 = vld [vmem:[#allocation2 + $0x20] sm:$0xf]
        %v777 = vld [vmem:[#allocation2 + $0x24] sm:$0xff]
        %v778 = vld [vmem:[#allocation2 + $0x2c] sm:$0xff]
        %v779 = vld [vmem:[#allocation2 + $0x34] sm:$0xff]
        %v780 = vld [vmem:[#allocation2 + $0x3c] sm:$0xff]
        %v781 = vld [vmem:[#allocation2 + $0x44] sm:$0xf]
        %v782 = vld [vmem:[#allocation2 + $0x48] sm:$0xff]
        %v783 = vld [vmem:[#allocation2 + $0x50] sm:$0xff]
        %v784 = vld [vmem:[#allocation2 + $0x58] sm:$0xff]
        %v785 = vld [vmem:[#allocation2 + $0x60] sm:$0xff]
        %v786 = vld [vmem:[#allocation2 + $0x68] sm:$0xf]
        %v787 = vld [vmem:[#allocation2 + $0x6c] sm:$0xff]
        %v788 = vld [vmem:[#allocation2 + $0x74] sm:$0xff]
        %v789 = vld [vmem:[#allocation2 + $0x7c] sm:$0xff]
        %v790 = vld [vmem:[#allocation2 + $0x84] sm:$0xff]
        %v791 = vld [vmem:[#allocation2 + $0x8c] sm:$0xf]
        %v792 = vld [vmem:[#allocation2 + $0x90] sm:$0xff]
        %v793 = vld [vmem:[#allocation2 + $0x98] sm:$0xff]
        %v794 = vld [vmem:[#allocation2 + $0xa0] sm:$0xff]
        %v795 = vld [vmem:[#allocation2 + $0xa8] sm:$0xff]
        %v796 = vld [vmem:[#allocation2 + $0xb0] sm:$0xf]
        %v797 = vld [vmem:[#allocation2 + $0xb4] sm:$0xff]
        %v798 = vld [vmem:[#allocation2 + $0xbc] sm:$0xff]
        %v799 = vld [vmem:[#allocation2 + $0xc4] sm:$0xff]
        %v800 = vld [vmem:[#allocation2 + $0xcc] sm:$0xff]
        %v801 = vld [vmem:[#allocation2 + $0xd4] sm:$0xf]
        %v802 = vld [vmem:[#allocation2 + $0xd8] sm:$0xff]
        %v803 = vld [vmem:[#allocation2 + $0xe0] sm:$0xff]
        %v804 = vld [vmem:[#allocation2 + $0xe8] sm:$0xff]
        %v805 = vld [vmem:[#allocation2 + $0xf0] sm:$0xff]
        %v806 = vld [vmem:[#allocation2 + $0xf8] sm:$0xf]
        %v807 = vld [vmem:[#allocation2 + $0xfc] sm:$0xff]
        %v808 = vld [vmem:[#allocation2 + $0x104] sm:$0xff]
        %v809 = vld [vmem:[#allocation2 + $0x10c] sm:$0xff]
        %v810 = vld [vmem:[#allocation2 + $0x114] sm:$0xff]
        %v811 = vld [vmem:[#allocation2 + $0x11c] sm:$0xf]
        %v812 = vld [vmem:[#allocation11] sm:$0xf]
        %v813 = vld [vmem:[#allocation11 + $0x4] sm:$0xf]
        %v814 = vld [vmem:[#allocation11 + $0x8] sm:$0xf]
        %v815 = vld [vmem:[#allocation11 + $0xc] sm:$0xf]
        %v816 = vld [vmem:[#allocation11 + $0x10] sm:$0xf]
        %v817 = vld [vmem:[#allocation11 + $0x14] sm:$0xf]
        %v818 = vld [vmem:[#allocation11 + $0x18] sm:$0xf]
        %v819 = vld [vmem:[#allocation11 + $0x1c] sm:$0xf]
        %v820 = vld [vmem:[#allocation11 + $0x20] sm:$0xf]
        %v821 = vld [vmem:[#allocation11 + $0x24] sm:$0xf]
        %v822 = vld [vmem:[#allocation11 + $0x28] sm:$0xf]
        %v823 = vld [vmem:[#allocation11 + $0x2c] sm:$0xf]
        %v824 = vld [vmem:[#allocation11 + $0x30] sm:$0xf]
        %v825 = vld [vmem:[#allocation11 + $0x34] sm:$0xf]
        %v826 = vld [vmem:[#allocation11 + $0x38] sm:$0xf]
        %v827 = vld [vmem:[#allocation11 + $0x3c] sm:$0xf]
        %v828 = vld [vmem:[#allocation11 + $0x40] sm:$0xf]
        %v829 = vld [vmem:[#allocation11 + $0x44] sm:$0xf]
        %v830 = vld [vmem:[#allocation11 + $0x48] sm:$0xf]
        %v831 = vld [vmem:[#allocation11 + $0x4c] sm:$0xf]
        %v832 = vld [vmem:[#allocation11 + $0x50] sm:$0xf]
        %v833 = vld [vmem:[#allocation11 + $0x54] sm:$0xf]
        %v834 = vld [vmem:[#allocation11 + $0x58] sm:$0xf]
        %v835 = vld [vmem:[#allocation11 + $0x5c] sm:$0xf]
        %v836 = vld [vmem:[#allocation11 + $0x60] sm:$0xf]
        %v837 = vld [vmem:[#allocation11 + $0x64] sm:$0xf]
        %v838 = vld [vmem:[#allocation11 + $0x68] sm:$0xf]
        %v839 = vld [vmem:[#allocation11 + $0x6c] sm:$0xf]
        %v840 = vld [vmem:[#allocation11 + $0x70] sm:$0xf]
        %v841 = vld [vmem:[#allocation11 + $0x74] sm:$0xf]
        %v842 = vld [vmem:[#allocation11 + $0x78] sm:$0xf]
        %v843 = vld [vmem:[#allocation11 + $0x7c] sm:$0xf]
        %v844 = vld [vmem:[#allocation11 + $0x80] sm:$0xf]
        %v845 = vld [vmem:[#allocation11 + $0x84] sm:$0xf]
        %v846 = vld [vmem:[#allocation11 + $0x88] sm:$0xf]
        %v847 = vld [vmem:[#allocation11 + $0x8c] sm:$0xf]
        %v848 = vld [vmem:[#allocation11 + $0x90] sm:$0xf]
        %v849 = vld [vmem:[#allocation11 + $0x94] sm:$0xf]
        %v850 = vld [vmem:[#allocation11 + $0x98] sm:$0xf]
        %v851 = vld [vmem:[#allocation11 + $0x9c] sm:$0xf]
        %v852 = vld [vmem:[#allocation11 + $0xa0] sm:$0xf]
        %v853 = vld [vmem:[#allocation11 + $0xa4] sm:$0xf]
        %v854 = vld [vmem:[#allocation11 + $0xa8] sm:$0xf]
        %v855 = vld [vmem:[#allocation11 + $0xac] sm:$0xf]
        %v856 = vld [vmem:[#allocation11 + $0xb0] sm:$0xf]
        %v857 = vld [vmem:[#allocation11 + $0xb4] sm:$0xf]
        %v858 = vld [vmem:[#allocation11 + $0xb8] sm:$0xf]
        %v859 = vld [vmem:[#allocation11 + $0xbc] sm:$0xf]
        %v860 = vld [vmem:[#allocation11 + $0xc0] sm:$0xf]
        %v861 = vld [vmem:[#allocation11 + $0xc4] sm:$0xf]
        %v862 = vld [vmem:[#allocation11 + $0xc8] sm:$0xf]
        %v863 = vld [vmem:[#allocation11 + $0xcc] sm:$0xf]
        %v864 = vld [vmem:[#allocation11 + $0xd0] sm:$0xf]
        %v865 = vld [vmem:[#allocation11 + $0xd4] sm:$0xf]
        %v866 = vld [vmem:[#allocation11 + $0xd8] sm:$0xf]
        %v867 = vld [vmem:[#allocation11 + $0xdc] sm:$0xf]
        %v868 = vld [vmem:[#allocation11 + $0xe0] sm:$0xf]
        %v869 = vld [vmem:[#allocation11 + $0xe4] sm:$0xf]
        %v870 = vld [vmem:[#allocation11 + $0xe8] sm:$0xf]
        %v871 = vld [vmem:[#allocation11 + $0xec] sm:$0xf]
        %v872 = vld [vmem:[#allocation11 + $0xf0] sm:$0xf]
        %v873 = vld [vmem:[#allocation11 + $0xf4] sm:$0xf]
        %v874 = vld [vmem:[#allocation11 + $0xf8] sm:$0xf]
        %v875 = vld [vmem:[#allocation11 + $0xfc] sm:$0xf]
        %v876 = vld [vmem:[#allocation11 + $0x100] sm:$0xf]
        %v877 = vld [vmem:[#allocation11 + $0x104] sm:$0xf]
        %v878 = vld [vmem:[#allocation11 + $0x108] sm:$0xf]
        %v879 = vld [vmem:[#allocation11 + $0x10c] sm:$0xf]
        %v880 = vld [vmem:[#allocation11 + $0x110] sm:$0xf]
        %v881 = vld [vmem:[#allocation11 + $0x114] sm:$0xf]
        %v882 = vld [vmem:[#allocation11 + $0x118] sm:$0xf]
        %v883 = vld [vmem:[#allocation11 + $0x11c] sm:$0xf]
        %v884 = vld [vmem:[#allocation11 + $0x120] sm:$0xf]
        %v885 = vld [vmem:[#allocation11 + $0x124] sm:$0xf]
        %v886 = vld [vmem:[#allocation11 + $0x128] sm:$0xf]
        %v887 = vld [vmem:[#allocation11 + $0x12c] sm:$0xf]
        %v888 = vld [vmem:[#allocation11 + $0x130] sm:$0xf]
        %v889 = vld [vmem:[#allocation11 + $0x134] sm:$0xf]
        %v890 = vld [vmem:[#allocation11 + $0x138] sm:$0xf]
        %v891 = vld [vmem:[#allocation11 + $0x13c] sm:$0xf]
        %v892 = vld [vmem:[#allocation11 + $0x140] sm:$0xf]
        %v893 = vld [vmem:[#allocation11 + $0x144] sm:$0xf]
        %v894 = vld [vmem:[#allocation11 + $0x148] sm:$0xf]
        %v895 = vld [vmem:[#allocation11 + $0x14c] sm:$0xf]
        %v896 = vld [vmem:[#allocation11 + $0x150] sm:$0xf]
        %v897 = vld [vmem:[#allocation11 + $0x154] sm:$0xf]
        %v898 = vld [vmem:[#allocation11 + $0x158] sm:$0xf]
        %v899 = vld [vmem:[#allocation11 + $0x15c] sm:$0xf]
        %v900 = vld [vmem:[#allocation11 + $0x160] sm:$0xf]
        %v901 = vld [vmem:[#allocation11 + $0x164] sm:$0xf]
        %v902 = vld [vmem:[#allocation11 + $0x168] sm:$0xf]
        %v903 = vld [vmem:[#allocation11 + $0x16c] sm:$0xf]
        %v904 = vld [vmem:[#allocation11 + $0x170] sm:$0xf]
        %v905 = vld [vmem:[#allocation11 + $0x174] sm:$0xf]
        %v906 = vld [vmem:[#allocation11 + $0x178] sm:$0xf]
        %v907 = vld [vmem:[#allocation11 + $0x17c] sm:$0xf]
        %v908 = vld [vmem:[#allocation11 + $0x180] sm:$0xf]
        %v909 = vld [vmem:[#allocation11 + $0x184] sm:$0xf]
        %v910 = vld [vmem:[#allocation11 + $0x188] sm:$0xf]
        %v911 = vld [vmem:[#allocation11 + $0x18c] sm:$0xf]
        %v912 = vld [vmem:[#allocation11 + $0x190] sm:$0xf]
        %v913 = vld [vmem:[#allocation11 + $0x194] sm:$0xf]
        %v914 = vld [vmem:[#allocation11 + $0x198] sm:$0xf]
        %v915 = vld [vmem:[#allocation11 + $0x19c] sm:$0xf]
        %v916 = vld [vmem:[#allocation11 + $0x1a0] sm:$0xf]
        %v917 = vld [vmem:[#allocation11 + $0x1a4] sm:$0xf]
        %v918 = vld [vmem:[#allocation11 + $0x1a8] sm:$0xf]
        %v919 = vld [vmem:[#allocation11 + $0x1ac] sm:$0xf]
        %v920 = vld [vmem:[#allocation11 + $0x1b0] sm:$0xf]
        %v921 = vld [vmem:[#allocation11 + $0x1b4] sm:$0xf]
        %v922 = vld [vmem:[#allocation11 + $0x1b8] sm:$0xf]
        %v923 = vld [vmem:[#allocation11 + $0x1bc] sm:$0xf]
        %v924 = vld [vmem:[#allocation11 + $0x1c0] sm:$0xf]
        %v925 = vld [vmem:[#allocation11 + $0x1c4] sm:$0xf]
        %v926 = vld [vmem:[#allocation11 + $0x1c8] sm:$0xf]
        %v927 = vld [vmem:[#allocation11 + $0x1cc] sm:$0xf]
        %v928 = vld [vmem:[#allocation11 + $0x1d0] sm:$0xf]
        %v929 = vld [vmem:[#allocation11 + $0x1d4] sm:$0xf]
        %v930 = vld [vmem:[#allocation11 + $0x1d8] sm:$0xf]
        %v931 = vld [vmem:[#allocation11 + $0x1dc] sm:$0xf]
        %v932 = vld [vmem:[#allocation11 + $0x1e0] sm:$0xf]
        %v933 = vld [vmem:[#allocation11 + $0x1e4] sm:$0xf]
        %v934 = vld [vmem:[#allocation11 + $0x1e8] sm:$0xf]
        %v935 = vld [vmem:[#allocation11 + $0x1ec] sm:$0xf]
        %v936 = vld [vmem:[#allocation11 + $0x1f0] sm:$0xf]
        %v937 = vld [vmem:[#allocation11 + $0x1f4] sm:$0xf]
        %v938 = vld [vmem:[#allocation11 + $0x1f8] sm:$0xf]
        %v939 = vld [vmem:[#allocation11 + $0x1fc] sm:$0xf]
        %v940 = vld [vmem:[#allocation11 + $0x200] sm:$0xf]
        %v941 = vld [vmem:[#allocation11 + $0x204] sm:$0xf]
        %v942 = vld [vmem:[#allocation11 + $0x208] sm:$0xf]
        %v943 = vld [vmem:[#allocation11 + $0x20c] sm:$0xf]
        %v944 = vld [vmem:[#allocation11 + $0x210] sm:$0xf]
        %v945 = vld [vmem:[#allocation11 + $0x214] sm:$0xf]
        %v946 = vld [vmem:[#allocation11 + $0x218] sm:$0xf]
        %v947 = vld [vmem:[#allocation11 + $0x21c] sm:$0xf]
        %v948 = vld [vmem:[#allocation11 + $0x220] sm:$0xf]
        %v949 = vld [vmem:[#allocation11 + $0x224] sm:$0xf]
        %v950 = vld [vmem:[#allocation11 + $0x228] sm:$0xf]
        %v951 = vld [vmem:[#allocation11 + $0x22c] sm:$0xf]
        %v952 = vld [vmem:[#allocation11 + $0x230] sm:$0xf]
        %v953 = vld [vmem:[#allocation11 + $0x234] sm:$0xf]
        %v954 = vld [vmem:[#allocation11 + $0x238] sm:$0xf]
        %v955 = vld [vmem:[#allocation11 + $0x23c] sm:$0xf]
        %v956 = vld [vmem:[#allocation12] sm:$0x1]
        %v958 = vlaneseq
        %v959 = vshrl.u32 %v958, 7
        %v960 = vsub.s32 0, %v959
        %v961 = vrot.slane %v956, %v960
        %v1003 = vunpack.c.l.b16 %v772
        %v1004 = vunpack.c.h.b16 %v772
        %v1005 = vunpack.c.l.b16 %v773
        %v1006 = vunpack.c.h.b16 %v773
        %v1007 = vunpack.c.l.b16 %v774
        %v1008 = vunpack.c.h.b16 %v774
        %v1009 = vunpack.c.l.b16 %v775
        %v1010 = vunpack.c.h.b16 %v775
        %v1011 = vunpack.c.l.b16 %v776
        %v1012 = vunpack.c.l.b16 %v777
        %v1013 = vunpack.c.h.b16 %v777
        %v1014 = vunpack.c.l.b16 %v778
        %v1015 = vunpack.c.h.b16 %v778
        %v1016 = vunpack.c.l.b16 %v779
        %v1017 = vunpack.c.h.b16 %v779
        %v1018 = vunpack.c.l.b16 %v780
        %v1019 = vunpack.c.h.b16 %v780
        %v1020 = vunpack.c.l.b16 %v781
        %v1021 = vunpack.c.l.b16 %v782
        %v1022 = vunpack.c.h.b16 %v782
        %v1023 = vunpack.c.l.b16 %v783
        %v1024 = vunpack.c.h.b16 %v783
        %v1025 = vunpack.c.l.b16 %v784
        %v1026 = vunpack.c.h.b16 %v784
        %v1027 = vunpack.c.l.b16 %v785
        %v1028 = vunpack.c.h.b16 %v785
        %v1029 = vunpack.c.l.b16 %v786
        %v1030 = vunpack.c.l.b16 %v787
        %v1031 = vunpack.c.h.b16 %v787
        %v1032 = vunpack.c.l.b16 %v788
        %v1033 = vunpack.c.h.b16 %v788
        %v1034 = vunpack.c.l.b16 %v789
        %v1035 = vunpack.c.h.b16 %v789
        %v1036 = vunpack.c.l.b16 %v790
        %v1037 = vunpack.c.h.b16 %v790
        %v1038 = vunpack.c.l.b16 %v791
        %v1039 = vunpack.c.l.b16 %v792
        %v1040 = vunpack.c.h.b16 %v792
        %v1041 = vunpack.c.l.b16 %v793
        %v1042 = vunpack.c.h.b16 %v793
        %v1043 = vunpack.c.l.b16 %v794
        %v1044 = vunpack.c.h.b16 %v794
        %v1045 = vunpack.c.l.b16 %v795
        %v1046 = vunpack.c.h.b16 %v795
        %v1047 = vunpack.c.l.b16 %v796
        %v1048 = vunpack.c.l.b16 %v797
        %v1049 = vunpack.c.h.b16 %v797
        %v1050 = vunpack.c.l.b16 %v798
        %v1051 = vunpack.c.h.b16 %v798
        %v1052 = vunpack.c.l.b16 %v799
        %v1053 = vunpack.c.h.b16 %v799
        %v1054 = vunpack.c.l.b16 %v800
        %v1055 = vunpack.c.h.b16 %v800
        %v1056 = vunpack.c.l.b16 %v801
        %v1057 = vunpack.c.l.b16 %v802
        %v1058 = vunpack.c.h.b16 %v802
        %v1059 = vunpack.c.l.b16 %v803
        %v1060 = vunpack.c.h.b16 %v803
        %v1061 = vunpack.c.l.b16 %v804
        %v1062 = vunpack.c.h.b16 %v804
        %v1063 = vunpack.c.l.b16 %v805
        %v1064 = vunpack.c.h.b16 %v805
        %v1065 = vunpack.c.l.b16 %v806
        %v1066 = vunpack.c.l.b16 %v807
        %v1067 = vunpack.c.h.b16 %v807
        %v1068 = vunpack.c.l.b16 %v808
        %v1069 = vunpack.c.h.b16 %v808
        %v1070 = vunpack.c.l.b16 %v809
        %v1071 = vunpack.c.h.b16 %v809
        %v1072 = vunpack.c.l.b16 %v810
        %v1073 = vunpack.c.h.b16 %v810
        %v1074 = vunpack.c.l.b16 %v811
        %v1075 = vpack.c.b16 %v1012, %v1003
        %v1076 = vpack.c.b16 %v1013, %v1004
        %v1077 = vpack.c.b16 %v1014, %v1005
        %v1078 = vpack.c.b16 %v1015, %v1006
        %v1079 = vpack.c.b16 %v1016, %v1007
        %v1080 = vpack.c.b16 %v1017, %v1008
        %v1081 = vpack.c.b16 %v1018, %v1009
        %v1082 = vpack.c.b16 %v1019, %v1010
        %v1083 = vpack.c.b16 %v1020, %v1011
        %v1084 = vpack.c.b16 %v1030, %v1021
        %v1085 = vpack.c.b16 %v1031, %v1022
        %v1086 = vpack.c.b16 %v1032, %v1023
        %v1087 = vpack.c.b16 %v1033, %v1024
        %v1088 = vpack.c.b16 %v1034, %v1025
        %v1089 = vpack.c.b16 %v1035, %v1026
        %v1090 = vpack.c.b16 %v1036, %v1027
        %v1091 = vpack.c.b16 %v1037, %v1028
        %v1092 = vpack.c.b16 %v1038, %v1029
        %v1093 = vpack.c.b16 %v1048, %v1039
        %v1094 = vpack.c.b16 %v1049, %v1040
        %v1095 = vpack.c.b16 %v1050, %v1041
        %v1096 = vpack.c.b16 %v1051, %v1042
        %v1097 = vpack.c.b16 %v1052, %v1043
        %v1098 = vpack.c.b16 %v1053, %v1044
        %v1099 = vpack.c.b16 %v1054, %v1045
        %v1100 = vpack.c.b16 %v1055, %v1046
        %v1101 = vpack.c.b16 %v1056, %v1047
        %v1102 = vpack.c.b16 %v1066, %v1057
        %v1103 = vpack.c.b16 %v1067, %v1058
        %v1104 = vpack.c.b16 %v1068, %v1059
        %v1105 = vpack.c.b16 %v1069, %v1060
        %v1106 = vpack.c.b16 %v1070, %v1061
        %v1107 = vpack.c.b16 %v1071, %v1062
        %v1108 = vpack.c.b16 %v1072, %v1063
        %v1109 = vpack.c.b16 %v1073, %v1064
        %v1110 = vpack.c.b16 %v1074, %v1065
        %v1291 = vunpack.c.l.b16 %v812
        %v1292 = vunpack.c.l.b16 %v813
        %v1293 = vunpack.c.l.b16 %v814
        %v1294 = vunpack.c.l.b16 %v815
        %v1295 = vunpack.c.l.b16 %v816
        %v1296 = vunpack.c.l.b16 %v817
        %v1297 = vunpack.c.l.b16 %v818
        %v1298 = vunpack.c.l.b16 %v819
        %v1299 = vunpack.c.l.b16 %v820
        %v1300 = vunpack.c.l.b16 %v821
        %v1301 = vunpack.c.l.b16 %v822
        %v1302 = vunpack.c.l.b16 %v823
        %v1303 = vunpack.c.l.b16 %v824
        %v1304 = vunpack.c.l.b16 %v825
        %v1305 = vunpack.c.l.b16 %v826
        %v1306 = vunpack.c.l.b16 %v827
        %v1307 = vunpack.c.l.b16 %v828
        %v1308 = vunpack.c.l.b16 %v829
        %v1309 = vunpack.c.l.b16 %v830
        %v1310 = vunpack.c.l.b16 %v831
        %v1311 = vunpack.c.l.b16 %v832
        %v1312 = vunpack.c.l.b16 %v833
        %v1313 = vunpack.c.l.b16 %v834
        %v1314 = vunpack.c.l.b16 %v835
        %v1315 = vunpack.c.l.b16 %v836
        %v1316 = vunpack.c.l.b16 %v837
        %v1317 = vunpack.c.l.b16 %v838
        %v1318 = vunpack.c.l.b16 %v839
        %v1319 = vunpack.c.l.b16 %v840
        %v1320 = vunpack.c.l.b16 %v841
        %v1321 = vunpack.c.l.b16 %v842
        %v1322 = vunpack.c.l.b16 %v843
        %v1323 = vunpack.c.l.b16 %v844
        %v1324 = vunpack.c.l.b16 %v845
        %v1325 = vunpack.c.l.b16 %v846
        %v1326 = vunpack.c.l.b16 %v847
        %v1327 = vunpack.c.l.b16 %v848
        %v1328 = vunpack.c.l.b16 %v849
        %v1329 = vunpack.c.l.b16 %v850
        %v1330 = vunpack.c.l.b16 %v851
        %v1331 = vunpack.c.l.b16 %v852
        %v1332 = vunpack.c.l.b16 %v853
        %v1333 = vunpack.c.l.b16 %v854
        %v1334 = vunpack.c.l.b16 %v855
        %v1335 = vunpack.c.l.b16 %v856
        %v1336 = vunpack.c.l.b16 %v857
        %v1337 = vunpack.c.l.b16 %v858
        %v1338 = vunpack.c.l.b16 %v859
        %v1339 = vunpack.c.l.b16 %v860
        %v1340 = vunpack.c.l.b16 %v861
        %v1341 = vunpack.c.l.b16 %v862
        %v1342 = vunpack.c.l.b16 %v863
        %v1343 = vunpack.c.l.b16 %v864
        %v1344 = vunpack.c.l.b16 %v865
        %v1345 = vunpack.c.l.b16 %v866
        %v1346 = vunpack.c.l.b16 %v867
        %v1347 = vunpack.c.l.b16 %v868
        %v1348 = vunpack.c.l.b16 %v869
        %v1349 = vunpack.c.l.b16 %v870
        %v1350 = vunpack.c.l.b16 %v871
        %v1351 = vunpack.c.l.b16 %v872
        %v1352 = vunpack.c.l.b16 %v873
        %v1353 = vunpack.c.l.b16 %v874
        %v1354 = vunpack.c.l.b16 %v875
        %v1355 = vunpack.c.l.b16 %v876
        %v1356 = vunpack.c.l.b16 %v877
        %v1357 = vunpack.c.l.b16 %v878
        %v1358 = vunpack.c.l.b16 %v879
        %v1359 = vunpack.c.l.b16 %v880
        %v1360 = vunpack.c.l.b16 %v881
        %v1361 = vunpack.c.l.b16 %v882
        %v1362 = vunpack.c.l.b16 %v883
        %v1363 = vunpack.c.l.b16 %v884
        %v1364 = vunpack.c.l.b16 %v885
        %v1365 = vunpack.c.l.b16 %v886
        %v1366 = vunpack.c.l.b16 %v887
        %v1367 = vunpack.c.l.b16 %v888
        %v1368 = vunpack.c.l.b16 %v889
        %v1369 = vunpack.c.l.b16 %v890
        %v1370 = vunpack.c.l.b16 %v891
        %v1371 = vunpack.c.l.b16 %v892
        %v1372 = vunpack.c.l.b16 %v893
        %v1373 = vunpack.c.l.b16 %v894
        %v1374 = vunpack.c.l.b16 %v895
        %v1375 = vunpack.c.l.b16 %v896
        %v1376 = vunpack.c.l.b16 %v897
        %v1377 = vunpack.c.l.b16 %v898
        %v1378 = vunpack.c.l.b16 %v899
        %v1379 = vunpack.c.l.b16 %v900
        %v1380 = vunpack.c.l.b16 %v901
        %v1381 = vunpack.c.l.b16 %v902
        %v1382 = vunpack.c.l.b16 %v903
        %v1383 = vunpack.c.l.b16 %v904
        %v1384 = vunpack.c.l.b16 %v905
        %v1385 = vunpack.c.l.b16 %v906
        %v1386 = vunpack.c.l.b16 %v907
        %v1387 = vunpack.c.l.b16 %v908
        %v1388 = vunpack.c.l.b16 %v909
        %v1389 = vunpack.c.l.b16 %v910
        %v1390 = vunpack.c.l.b16 %v911
        %v1391 = vunpack.c.l.b16 %v912
        %v1392 = vunpack.c.l.b16 %v913
        %v1393 = vunpack.c.l.b16 %v914
        %v1394 = vunpack.c.l.b16 %v915
        %v1395 = vunpack.c.l.b16 %v916
        %v1396 = vunpack.c.l.b16 %v917
        %v1397 = vunpack.c.l.b16 %v918
        %v1398 = vunpack.c.l.b16 %v919
        %v1399 = vunpack.c.l.b16 %v920
        %v1400 = vunpack.c.l.b16 %v921
        %v1401 = vunpack.c.l.b16 %v922
        %v1402 = vunpack.c.l.b16 %v923
        %v1403 = vunpack.c.l.b16 %v924
        %v1404 = vunpack.c.l.b16 %v925
        %v1405 = vunpack.c.l.b16 %v926
        %v1406 = vunpack.c.l.b16 %v927
        %v1407 = vunpack.c.l.b16 %v928
        %v1408 = vunpack.c.l.b16 %v929
        %v1409 = vunpack.c.l.b16 %v930
        %v1410 = vunpack.c.l.b16 %v931
        %v1411 = vunpack.c.l.b16 %v932
        %v1412 = vunpack.c.l.b16 %v933
        %v1413 = vunpack.c.l.b16 %v934
        %v1414 = vunpack.c.l.b16 %v935
        %v1415 = vunpack.c.l.b16 %v936
        %v1416 = vunpack.c.l.b16 %v937
        %v1417 = vunpack.c.l.b16 %v938
        %v1418 = vunpack.c.l.b16 %v939
        %v1419 = vunpack.c.l.b16 %v940
        %v1420 = vunpack.c.l.b16 %v941
        %v1421 = vunpack.c.l.b16 %v942
        %v1422 = vunpack.c.l.b16 %v943
        %v1423 = vunpack.c.l.b16 %v944
        %v1424 = vunpack.c.l.b16 %v945
        %v1425 = vunpack.c.l.b16 %v946
        %v1426 = vunpack.c.l.b16 %v947
        %v1427 = vunpack.c.l.b16 %v948
        %v1428 = vunpack.c.l.b16 %v949
        %v1429 = vunpack.c.l.b16 %v950
        %v1430 = vunpack.c.l.b16 %v951
        %v1431 = vunpack.c.l.b16 %v952
        %v1432 = vunpack.c.l.b16 %v953
        %v1433 = vunpack.c.l.b16 %v954
        %v1434 = vunpack.c.l.b16 %v955
        %v1435 = vpack.c.b16 %v1292, %v1291
        %v1436 = vpack.c.b16 %v1294, %v1293
        %v1437 = vpack.c.b16 %v1296, %v1295
        %v1438 = vpack.c.b16 %v1298, %v1297
        %v1439 = vpack.c.b16 %v1300, %v1299
        %v1440 = vpack.c.b16 %v1302, %v1301
        %v1441 = vpack.c.b16 %v1304, %v1303
        %v1442 = vpack.c.b16 %v1306, %v1305
        %v1443 = vpack.c.b16 %v1308, %v1307
        %v1444 = vpack.c.b16 %v1310, %v1309
        %v1445 = vpack.c.b16 %v1312, %v1311
        %v1446 = vpack.c.b16 %v1314, %v1313
        %v1447 = vpack.c.b16 %v1316, %v1315
        %v1448 = vpack.c.b16 %v1318, %v1317
        %v1449 = vpack.c.b16 %v1320, %v1319
        %v1450 = vpack.c.b16 %v1322, %v1321
        %v1451 = vpack.c.b16 %v1324, %v1323
        %v1452 = vpack.c.b16 %v1326, %v1325
        %v1453 = vpack.c.b16 %v1328, %v1327
        %v1454 = vpack.c.b16 %v1330, %v1329
        %v1455 = vpack.c.b16 %v1332, %v1331
        %v1456 = vpack.c.b16 %v1334, %v1333
        %v1457 = vpack.c.b16 %v1336, %v1335
        %v1458 = vpack.c.b16 %v1338, %v1337
        %v1459 = vpack.c.b16 %v1340, %v1339
        %v1460 = vpack.c.b16 %v1342, %v1341
        %v1461 = vpack.c.b16 %v1344, %v1343
        %v1462 = vpack.c.b16 %v1346, %v1345
        %v1463 = vpack.c.b16 %v1348, %v1347
        %v1464 = vpack.c.b16 %v1350, %v1349
        %v1465 = vpack.c.b16 %v1352, %v1351
        %v1466 = vpack.c.b16 %v1354, %v1353
        %v1467 = vpack.c.b16 %v1356, %v1355
        %v1468 = vpack.c.b16 %v1358, %v1357
        %v1469 = vpack.c.b16 %v1360, %v1359
        %v1470 = vpack.c.b16 %v1362, %v1361
        %v1471 = vpack.c.b16 %v1364, %v1363
        %v1472 = vpack.c.b16 %v1366, %v1365
        %v1473 = vpack.c.b16 %v1368, %v1367
        %v1474 = vpack.c.b16 %v1370, %v1369
        %v1475 = vpack.c.b16 %v1372, %v1371
        %v1476 = vpack.c.b16 %v1374, %v1373
        %v1477 = vpack.c.b16 %v1376, %v1375
        %v1478 = vpack.c.b16 %v1378, %v1377
        %v1479 = vpack.c.b16 %v1380, %v1379
        %v1480 = vpack.c.b16 %v1382, %v1381
        %v1481 = vpack.c.b16 %v1384, %v1383
        %v1482 = vpack.c.b16 %v1386, %v1385
        %v1483 = vpack.c.b16 %v1388, %v1387
        %v1484 = vpack.c.b16 %v1390, %v1389
        %v1485 = vpack.c.b16 %v1392, %v1391
        %v1486 = vpack.c.b16 %v1394, %v1393
        %v1487 = vpack.c.b16 %v1396, %v1395
        %v1488 = vpack.c.b16 %v1398, %v1397
        %v1489 = vpack.c.b16 %v1400, %v1399
        %v1490 = vpack.c.b16 %v1402, %v1401
        %v1491 = vpack.c.b16 %v1404, %v1403
        %v1492 = vpack.c.b16 %v1406, %v1405
        %v1493 = vpack.c.b16 %v1408, %v1407
        %v1494 = vpack.c.b16 %v1410, %v1409
        %v1495 = vpack.c.b16 %v1412, %v1411
        %v1496 = vpack.c.b16 %v1414, %v1413
        %v1497 = vpack.c.b16 %v1416, %v1415
        %v1498 = vpack.c.b16 %v1418, %v1417
        %v1499 = vpack.c.b16 %v1420, %v1419
        %v1500 = vpack.c.b16 %v1422, %v1421
        %v1501 = vpack.c.b16 %v1424, %v1423
        %v1502 = vpack.c.b16 %v1426, %v1425
        %v1503 = vpack.c.b16 %v1428, %v1427
        %v1504 = vpack.c.b16 %v1430, %v1429
        %v1505 = vpack.c.b16 %v1432, %v1431
        %v1506 = vpack.c.b16 %v1434, %v1433
        %1579 = vmatprep.subr.bf16.mxu0 0
        %1580 = vmatpush1.bf16.msra.mxu0 %v1435
        %1581 = vmatprep.subr.bf16.mxu0 0
        %1582 = vmatpush1.bf16.msra.mxu0 %v1436
        %1583 = vmatprep.subr.bf16.mxu0 0
        %1584 = vmatpush1.bf16.msra.mxu0 %v1437
        %1585 = vmatprep.subr.bf16.mxu0 0
        %1586 = vmatpush1.bf16.msra.mxu0 %v1438
        %1587 = vmatprep.subr.bf16.mxu0 0
        %1588 = vmatpush1.bf16.msra.mxu0 %v1439
        %1589 = vmatprep.subr.bf16.mxu0 0
        %1590 = vmatpush1.bf16.msra.mxu0 %v1440
        %1591 = vmatprep.subr.bf16.mxu0 0
        %1592 = vmatpush1.bf16.msra.mxu0 %v1441
        %1593 = vmatprep.subr.bf16.mxu0 0
        %1594 = vmatpush1.bf16.msra.mxu0 %v1442
        %1595 = vmatprep.subr.bf16.mxu0 0
        %1596 = vmatpush1.bf16.msra.mxu0 %v1443
        %1597 = vmatprep.subr.bf16.mxu0 0
        %1598 = vmatpush1.bf16.msra.mxu0 %v1444
        %1599 = vmatprep.subr.bf16.mxu0 0
        %1600 = vmatpush1.bf16.msra.mxu0 %v1445
        %1601 = vmatprep.subr.bf16.mxu0 0
        %1602 = vmatpush1.bf16.msra.mxu0 %v1446
        %1603 = vmatprep.subr.bf16.mxu0 0
        %1604 = vmatpush1.bf16.msra.mxu0 %v1447
        %1605 = vmatprep.subr.bf16.mxu0 0
        %1606 = vmatpush1.bf16.msra.mxu0 %v1448
        %1607 = vmatprep.subr.bf16.mxu0 0
        %1608 = vmatpush1.bf16.msra.mxu0 %v1449
        %1609 = vmatprep.subr.bf16.mxu0 0
        %1610 = vmatpush1.bf16.msra.mxu0 %v1450
        %1611 = vmatprep.mubr.bf16.mxu0 %v1076
        %1612 = vmatmul.mubr.bf16.gmra.mrb[0].mxu0 %v1075
        %v1613 = vpop.f32.mrb[0].mxu0
        %v1614 = vadd.f32 %v961, %v1613
        %v1615 = vpop.f32.mrb[0].mxu0
        %v1616 = vpop.f32.mrb[0].mxu0
        %v1617 = vadd.f32 %v961, %v1616
        %v1618 = vpop.f32.mrb[0].mxu0
        %1619 = vmatprep.mubr.bf16.mxu0 %v1085
        %1620 = vmatmul.mubr.bf16.gmra.mrb[0].mxu0 %v1084
        %v1621 = vpop.f32.mrb[0].mxu0
        %v1622 = vadd.f32 %v961, %v1621
        %v1623 = vpop.f32.mrb[0].mxu0
        %v1624 = vpop.f32.mrb[0].mxu0
        %v1625 = vadd.f32 %v961, %v1624
        %v1626 = vpop.f32.mrb[0].mxu0
        %1627 = vmatprep.mubr.bf16.mxu0 %v1094
        %1628 = vmatmul.mubr.bf16.gmra.mrb[0].mxu0 %v1093
        %v1629 = vpop.f32.mrb[0].mxu0
        %v1630 = vadd.f32 %v961, %v1629
        %v1631 = vpop.f32.mrb[0].mxu0
        %v1632 = vpop.f32.mrb[0].mxu0
        %v1633 = vadd.f32 %v961, %v1632
        %v1634 = vpop.f32.mrb[0].mxu0
        %1635 = vmatprep.mubr.bf16.mxu0 %v1103
        %1636 = vmatmul.mubr.bf16.gmra.mrb[0].mxu0 %v1102
        %v1637 = vpop.f32.mrb[0].mxu0
        %v1638 = vadd.f32 %v961, %v1637
        %v1639 = vpop.f32.mrb[0].mxu0
        %v1640 = vpop.f32.mrb[0].mxu0
        %v1641 = vadd.f32 %v961, %v1640
        %v1642 = vpop.f32.mrb[0].mxu0
        %1643 = vdwg.mxu0
        %1644 = vmatprep.subr.bf16.mxu0 0
        %1645 = vmatpush1.bf16.msra.mxu0 %v1451
        %1646 = vmatprep.subr.bf16.mxu0 0
        %1647 = vmatpush1.bf16.msra.mxu0 %v1452
        %1648 = vmatprep.subr.bf16.mxu0 0
        %1649 = vmatpush1.bf16.msra.mxu0 %v1453
        %1650 = vmatprep.subr.bf16.mxu0 0
        %1651 = vmatpush1.bf16.msra.mxu0 %v1454
        %1652 = vmatprep.subr.bf16.mxu0 0
        %1653 = vmatpush1.bf16.msra.mxu0 %v1455
        %1654 = vmatprep.subr.bf16.mxu0 0
        %1655 = vmatpush1.bf16.msra.mxu0 %v1456
        %1656 = vmatprep.subr.bf16.mxu0 0
        %1657 = vmatpush1.bf16.msra.mxu0 %v1457
        %1658 = vmatprep.subr.bf16.mxu0 0
        %1659 = vmatpush1.bf16.msra.mxu0 %v1458
        %1660 = vmatprep.subr.bf16.mxu0 0
        %1661 = vmatpush1.bf16.msra.mxu0 %v1459
        %1662 = vmatprep.subr.bf16.mxu0 0
        %1663 = vmatpush1.bf16.msra.mxu0 %v1460
        %1664 = vmatprep.subr.bf16.mxu0 0
        %1665 = vmatpush1.bf16.msra.mxu0 %v1461
        %1666 = vmatprep.subr.bf16.mxu0 0
        %1667 = vmatpush1.bf16.msra.mxu0 %v1462
        %1668 = vmatprep.subr.bf16.mxu0 0
        %1669 = vmatpush1.bf16.msra.mxu0 %v1463
        %1670 = vmatprep.subr.bf16.mxu0 0
        %1671 = vmatpush1.bf16.msra.mxu0 %v1464
        %1672 = vmatprep.subr.bf16.mxu0 0
        %1673 = vmatpush1.bf16.msra.mxu0 %v1465
        %1674 = vmatprep.subr.bf16.mxu0 0
        %1675 = vmatpush1.bf16.msra.mxu0 %v1466
        %1676 = vmatprep.mubr.bf16.mxu0 %v1078
        %1677 = vmatmul.mubr.bf16.gmra.mrb[0].mxu0 %v1077
        %v1678 = vpop.f32.mrb[0].mxu0
        %v1679 = vadd.f32 %v1614, %v1678
        %v1680 = vpop.f32.mrb[0].mxu0
        %v1681 = vpop.f32.mrb[0].mxu0
        %v1682 = vadd.f32 %v1617, %v1681
        %v1683 = vpop.f32.mrb[0].mxu0
        %1684 = vmatprep.mubr.bf16.mxu0 %v1087
        %1685 = vmatmul.mubr.bf16.gmra.mrb[0].mxu0 %v1086
        %v1686 = vpop.f32.mrb[0].mxu0
        %v1687 = vadd.f32 %v1622, %v1686
        %v1688 = vpop.f32.mrb[0].mxu0
        %v1689 = vpop.f32.mrb[0].mxu0
        %v1690 = vadd.f32 %v1625, %v1689
        %v1691 = vpop.f32.mrb[0].mxu0
        %1692 = vmatprep.mubr.bf16.mxu0 %v1096
        %1693 = vmatmul.mubr.bf16.gmra.mrb[0].mxu0 %v1095
        %v1694 = vpop.f32.mrb[0].mxu0
        %v1695 = vadd.f32 %v1630, %v1694
        %v1696 = vpop.f32.mrb[0].mxu0
        %v1697 = vpop.f32.mrb[0].mxu0
        %v1698 = vadd.f32 %v1633, %v1697
        %v1699 = vpop.f32.mrb[0].mxu0
        %1700 = vmatprep.mubr.bf16.mxu0 %v1105
        %1701 = vmatmul.mubr.bf16.gmra.mrb[0].mxu0 %v1104
        %v1702 = vpop.f32.mrb[0].mxu0
        %v1703 = vadd.f32 %v1638, %v1702
        %v1704 = vpop.f32.mrb[0].mxu0
        %v1705 = vpop.f32.mrb[0].mxu0
        %v1706 = vadd.f32 %v1641, %v1705
        %v1707 = vpop.f32.mrb[0].mxu0
        %1708 = vdwg.mxu0
        %1709 = vmatprep.subr.bf16.mxu0 0
        %1710 = vmatpush1.bf16.msra.mxu0 %v1467
        %1711 = vmatprep.subr.bf16.mxu0 0
        %1712 = vmatpush1.bf16.msra.mxu0 %v1468
        %1713 = vmatprep.subr.bf16.mxu0 0
        %1714 = vmatpush1.bf16.msra.mxu0 %v1469
        %1715 = vmatprep.subr.bf16.mxu0 0
        %1716 = vmatpush1.bf16.msra.mxu0 %v1470
        %1717 = vmatprep.subr.bf16.mxu0 0
        %1718 = vmatpush1.bf16.msra.mxu0 %v1471
        %1719 = vmatprep.subr.bf16.mxu0 0
        %1720 = vmatpush1.bf16.msra.mxu0 %v1472
        %1721 = vmatprep.subr.bf16.mxu0 0
        %1722 = vmatpush1.bf16.msra.mxu0 %v1473
        %1723 = vmatprep.subr.bf16.mxu0 0
        %1724 = vmatpush1.bf16.msra.mxu0 %v1474
        %1725 = vmatprep.subr.bf16.mxu0 0
        %1726 = vmatpush1.bf16.msra.mxu0 %v1475
        %1727 = vmatprep.subr.bf16.mxu0 0
        %1728 = vmatpush1.bf16.msra.mxu0 %v1476
        %1729 = vmatprep.subr.bf16.mxu0 0
        %1730 = vmatpush1.bf16.msra.mxu0 %v1477
        %1731 = vmatprep.subr.bf16.mxu0 0
        %1732 = vmatpush1.bf16.msra.mxu0 %v1478
        %1733 = vmatprep.subr.bf16.mxu0 0
        %1734 = vmatpush1.bf16.msra.mxu0 %v1479
        %1735 = vmatprep.subr.bf16.mxu0 0
        %1736 = vmatpush1.bf16.msra.mxu0 %v1480
        %1737 = vmatprep.subr.bf16.mxu0 0
        %1738 = vmatpush1.bf16.msra.mxu0 %v1481
        %1739 = vmatprep.subr.bf16.mxu0 0
        %1740 = vmatpush1.bf16.msra.mxu0 %v1482
        %1741 = vmatprep.mubr.bf16.mxu0 %v1080
        %1742 = vmatmul.mubr.bf16.gmra.mrb[0].mxu0 %v1079
        %v1743 = vpop.f32.mrb[0].mxu0
        %v1744 = vadd.f32 %v1679, %v1743
        %v1745 = vpop.f32.mrb[0].mxu0
        %v1746 = vpop.f32.mrb[0].mxu0
        %v1747 = vadd.f32 %v1682, %v1746
        %v1748 = vpop.f32.mrb[0].mxu0
        %1749 = vmatprep.mubr.bf16.mxu0 %v1089
        %1750 = vmatmul.mubr.bf16.gmra.mrb[0].mxu0 %v1088
        %v1751 = vpop.f32.mrb[0].mxu0
        %v1752 = vadd.f32 %v1687, %v1751
        %v1753 = vpop.f32.mrb[0].mxu0
        %v1754 = vpop.f32.mrb[0].mxu0
        %v1755 = vadd.f32 %v1690, %v1754
        %v1756 = vpop.f32.mrb[0].mxu0
        %1757 = vmatprep.mubr.bf16.mxu0 %v1098
        %1758 = vmatmul.mubr.bf16.gmra.mrb[0].mxu0 %v1097
        %v1759 = vpop.f32.mrb[0].mxu0
        %v1760 = vadd.f32 %v1695, %v1759
        %v1761 = vpop.f32.mrb[0].mxu0
        %v1762 = vpop.f32.mrb[0].mxu0
        %v1763 = vadd.f32 %v1698, %v1762
        %v1764 = vpop.f32.mrb[0].mxu0
        %1765 = vmatprep.mubr.bf16.mxu0 %v1107
        %1766 = vmatmul.mubr.bf16.gmra.mrb[0].mxu0 %v1106
        %v1767 = vpop.f32.mrb[0].mxu0
        %v1768 = vadd.f32 %v1703, %v1767
        %v1769 = vpop.f32.mrb[0].mxu0
        %v1770 = vpop.f32.mrb[0].mxu0
        %v1771 = vadd.f32 %v1706, %v1770
        %v1772 = vpop.f32.mrb[0].mxu0
        %1773 = vdwg.mxu0
        %1774 = vmatprep.subr.bf16.mxu0 0
        %1775 = vmatpush1.bf16.msra.mxu0 %v1483
        %1776 = vmatprep.subr.bf16.mxu0 0
        %1777 = vmatpush1.bf16.msra.mxu0 %v1484
        %1778 = vmatprep.subr.bf16.mxu0 0
        %1779 = vmatpush1.bf16.msra.mxu0 %v1485
        %1780 = vmatprep.subr.bf16.mxu0 0
        %1781 = vmatpush1.bf16.msra.mxu0 %v1486
        %1782 = vmatprep.subr.bf16.mxu0 0
        %1783 = vmatpush1.bf16.msra.mxu0 %v1487
        %1784 = vmatprep.subr.bf16.mxu0 0
        %1785 = vmatpush1.bf16.msra.mxu0 %v1488
        %1786 = vmatprep.subr.bf16.mxu0 0
        %1787 = vmatpush1.bf16.msra.mxu0 %v1489
        %1788 = vmatprep.subr.bf16.mxu0 0
        %1789 = vmatpush1.bf16.msra.mxu0 %v1490
        %1790 = vmatprep.subr.bf16.mxu0 0
        %1791 = vmatpush1.bf16.msra.mxu0 %v1491
        %1792 = vmatprep.subr.bf16.mxu0 0
        %1793 = vmatpush1.bf16.msra.mxu0 %v1492
        %1794 = vmatprep.subr.bf16.mxu0 0
        %1795 = vmatpush1.bf16.msra.mxu0 %v1493
        %1796 = vmatprep.subr.bf16.mxu0 0
        %1797 = vmatpush1.bf16.msra.mxu0 %v1494
        %1798 = vmatprep.subr.bf16.mxu0 0
        %1799 = vmatpush1.bf16.msra.mxu0 %v1495
        %1800 = vmatprep.subr.bf16.mxu0 0
        %1801 = vmatpush1.bf16.msra.mxu0 %v1496
        %1802 = vmatprep.subr.bf16.mxu0 0
        %1803 = vmatpush1.bf16.msra.mxu0 %v1497
        %1804 = vmatprep.subr.bf16.mxu0 0
        %1805 = vmatpush1.bf16.msra.mxu0 %v1498
        %1806 = vmatprep.mubr.bf16.mxu0 %v1082
        %1807 = vmatmul.mubr.bf16.gmra.mrb[0].mxu0 %v1081
        %v1808 = vpop.f32.mrb[0].mxu0
        %v1809 = vadd.f32 %v1744, %v1808
        %v1810 = vpop.f32.mrb[0].mxu0
        %v1811 = vpop.f32.mrb[0].mxu0
        %v1812 = vadd.f32 %v1747, %v1811
        %v1813 = vpop.f32.mrb[0].mxu0
        %1814 = vmatprep.mubr.bf16.mxu0 %v1091
        %1815 = vmatmul.mubr.bf16.gmra.mrb[0].mxu0 %v1090
        %v1816 = vpop.f32.mrb[0].mxu0
        %v1817 = vadd.f32 %v1752, %v1816
        %v1818 = vpop.f32.mrb[0].mxu0
        %v1819 = vpop.f32.mrb[0].mxu0
        %v1820 = vadd.f32 %v1755, %v1819
        %v1821 = vpop.f32.mrb[0].mxu0
        %1822 = vmatprep.mubr.bf16.mxu0 %v1100
        %1823 = vmatmul.mubr.bf16.gmra.mrb[0].mxu0 %v1099
        %v1824 = vpop.f32.mrb[0].mxu0
        %v1825 = vadd.f32 %v1760, %v1824
        %v1826 = vpop.f32.mrb[0].mxu0
        %v1827 = vpop.f32.mrb[0].mxu0
        %v1828 = vadd.f32 %v1763, %v1827
        %v1829 = vpop.f32.mrb[0].mxu0
        %1830 = vmatprep.mubr.bf16.mxu0 %v1109
        %1831 = vmatmul.mubr.bf16.gmra.mrb[0].mxu0 %v1108
        %v1832 = vpop.f32.mrb[0].mxu0
        %v1833 = vadd.f32 %v1768, %v1832
        %v1834 = vpop.f32.mrb[0].mxu0
        %v1835 = vpop.f32.mrb[0].mxu0
        %v1836 = vadd.f32 %v1771, %v1835
        %v1837 = vpop.f32.mrb[0].mxu0
        %1838 = vdwg.mxu0
        %1839 = vmatprep.subr.bf16.mxu0 0
        %1840 = vmatpush1.bf16.msra.mxu0 %v1499
        %1841 = vmatprep.subr.bf16.mxu0 0
        %1842 = vmatpush1.bf16.msra.mxu0 %v1500
        %1843 = vmatprep.subr.bf16.mxu0 0
        %1844 = vmatpush1.bf16.msra.mxu0 %v1501
        %1845 = vmatprep.subr.bf16.mxu0 0
        %1846 = vmatpush1.bf16.msra.mxu0 %v1502
        %1847 = vmatprep.subr.bf16.mxu0 0
        %1848 = vmatpush1.bf16.msra.mxu0 %v1503
        %1849 = vmatprep.subr.bf16.mxu0 0
        %1850 = vmatpush1.bf16.msra.mxu0 %v1504
        %1851 = vmatprep.subr.bf16.mxu0 0
        %1852 = vmatpush1.bf16.msra.mxu0 %v1505
        %1853 = vmatprep.subr.bf16.mxu0 0
        %1854 = vmatpush1.bf16.msra.mxu0 %v1506
        %1855 = vmatprep.subr.bf16.mxu0 0
        %1856 = vmatpush1.bf16.msra.mxu0 0
        %1857 = vmatprep.subr.bf16.mxu0 0
        %1858 = vmatpush1.bf16.msra.mxu0 0
        %1859 = vmatprep.subr.bf16.mxu0 0
        %1860 = vmatpush1.bf16.msra.mxu0 0
        %1861 = vmatprep.subr.bf16.mxu0 0
        %1862 = vmatpush1.bf16.msra.mxu0 0
        %1863 = vmatprep.subr.bf16.mxu0 0
        %1864 = vmatpush1.bf16.msra.mxu0 0
        %1865 = vmatprep.subr.bf16.mxu0 0
        %1866 = vmatpush1.bf16.msra.mxu0 0
        %1867 = vmatprep.subr.bf16.mxu0 0
        %1868 = vmatpush1.bf16.msra.mxu0 0
        %1869 = vmatprep.subr.bf16.mxu0 0
        %1870 = vmatpush1.bf16.msra.mxu0 0
        %1871 = vmatprep.mubr.bf16.mxu0 0
        %1872 = vmatmul.mubr.bf16.gmra.mrb[0].mxu0 %v1083
        %v1873 = vpop.f32.mrb[0].mxu0
        %v1874 = vadd.f32 %v1809, %v1873
        %v1875 = vpop.f32.mrb[0].mxu0
        %v1876 = vpop.f32.mrb[0].mxu0
        %v1877 = vadd.f32 %v1812, %v1876
        %v1878 = vpop.f32.mrb[0].mxu0
        %1879 = vmatprep.mubr.bf16.mxu0 0
        %1880 = vmatmul.mubr.bf16.gmra.mrb[0].mxu0 %v1092
        %v1881 = vpop.f32.mrb[0].mxu0
        %v1882 = vadd.f32 %v1817, %v1881
        %v1883 = vpop.f32.mrb[0].mxu0
        %v1884 = vpop.f32.mrb[0].mxu0
        %v1885 = vadd.f32 %v1820, %v1884
        %v1886 = vpop.f32.mrb[0].mxu0
        %1887 = vmatprep.mubr.bf16.mxu0 0
        %1888 = vmatmul.mubr.bf16.gmra.mrb[0].mxu0 %v1101
        %v1889 = vpop.f32.mrb[0].mxu0
        %v1890 = vadd.f32 %v1825, %v1889
        %v1891 = vpop.f32.mrb[0].mxu0
        %v1892 = vpop.f32.mrb[0].mxu0
        %v1893 = vadd.f32 %v1828, %v1892
        %v1894 = vpop.f32.mrb[0].mxu0
        %1895 = vmatprep.mubr.bf16.mxu0 0
        %1896 = vmatmul.mubr.bf16.gmra.mrb[0].mxu0 %v1110
        %v1897 = vpop.f32.mrb[0].mxu0
        %v1898 = vadd.f32 %v1833, %v1897
        %v1899 = vpop.f32.mrb[0].mxu0
        %v1900 = vpop.f32.mrb[0].mxu0
        %v1901 = vadd.f32 %v1836, %v1900
        %v1902 = vpop.f32.mrb[0].mxu0
        %1903 = vdwg.mxu0
        %v1904 = vmax.f32 %v1874, 0.0
        %v1905 = vmax.f32 %v1877, 0.0
        %v1906 = vmax.f32 %v1882, 0.0
        %v1907 = vmax.f32 %v1885, 0.0
        %v1908 = vmax.f32 %v1890, 0.0
        %v1909 = vmax.f32 %v1893, 0.0
        %v1910 = vmax.f32 %v1898, 0.0
        %v1911 = vmax.f32 %v1901, 0.0
        %v1912 = vpack.c.bf16 %v1904, %v1904
        %v1913 = vpack.c.bf16 %v1905, %v1905
        %v1914 = vpack.c.bf16 %v1906, %v1906
        %v1915 = vpack.c.bf16 %v1907, %v1907
        %v1916 = vpack.c.bf16 %v1908, %v1908
        %v1917 = vpack.c.bf16 %v1909, %v1909
        %v1918 = vpack.c.bf16 %v1910, %v1910
        %v1919 = vpack.c.bf16 %v1911, %v1911
        %1920 = vst [vmem:[%s413] sm:$0xf] %v1912
        %1921 = vst [vmem:[%s413 + $0x4] sm:$0xf] %v1913
        %1922 = vst [vmem:[%s413 + $0x8] sm:$0xf] %v1914
        %1923 = vst [vmem:[%s413 + $0xc] sm:$0xf] %v1915
        %1924 = vst [vmem:[%s413 + $0x10] sm:$0xf] %v1916
        %1925 = vst [vmem:[%s413 + $0x14] sm:$0xf] %v1917
        %1926 = vst [vmem:[%s413 + $0x18] sm:$0xf] %v1918
        %1927 = vst [vmem:[%s413 + $0x1c] sm:$0xf] %v1919
        %s1928 = sand.u32 %s184, 1
        %s1929 = scalar_lea.sflag [#allocation5], %s1928
        %s1930 = sand.u32 %s184, 1
        %s1931 = smul.addr %s1930, 32
        %s1932 = scalar_lea.vmem [#allocation14], %s1931
        // Predicated region
        $region69: #{csp_res_stage_forward.4} parent=43 // pred_check
          %p1933 = pneg %p194
        $region70: #{csp_res_stage_forward.4} parent=43 // pred_check_branch
          %1935 = sbr.rel (%p1933) target = $region72
        $region71: #{csp_res_stage_forward.4} parent=43 // pred_region
          %s1937 = ssub.s32 512, 512
          %1938 = vsyncadd %s1929, %s1937
          %s1939 = smul.addr %s30, 8
          %s1940 = smul.addr %s1939, 64
          %s1941 = scalar_lea.hbm %s6, %s1940
          %s1942 = sshll.u32 %s1932, 4
          %s1943 = int_to_ptr.vmem [resolvable:$true] %s1942
          %1948 = dma.vmem_to_hbm [thread:$0]  %s1943, 512, %s1941, %s1929, 64, 64, 4
        $region72: #{csp_res_stage_forward.4} parent=43 // pred_fallthru
          _
      $region44: #{csp_res_stage_forward.4} parent=5 // pred_fallthru
        _
      %p1949 = scmp.le.s32.totalorder 2, %s25
      // Predicated region
      $region73: #{csp_res_stage_forward.4} parent=5 // pred_check
        %p1950 = pneg %p1949
      $region74: #{csp_res_stage_forward.4} parent=5 // pred_check_branch
        %1952 = sbr.rel (%p1950) target = $region76
      $region75: #{csp_res_stage_forward.4} parent=5 // pred_region
        %s1953 = ssub.s32 %s25, 2
        // Predicated region
        $region77: #{csp_res_stage_forward.4} parent=75 // pred_check
          %p1954 = pneg %p200
        $region78: #{csp_res_stage_forward.4} parent=75 // pred_check_branch
          %1956 = sbr.rel (%p1954) target = $region80
        $region79: #{csp_res_stage_forward.4} parent=75 // pred_region
          %s1957 = sand.u32 %s185, 1
          %s1958 = scalar_lea.sflag [#allocation5], %s1957
          %s1959 = sand.u32 %s185, 1
          %s1960 = smul.addr %s1959, 32
          %s1961 = scalar_lea.vmem [#allocation14], %s1960
          %1962 = dma.done %s1958, 512
        $region80: #{csp_res_stage_forward.4} parent=75 // pred_fallthru
          _
      $region76: #{csp_res_stage_forward.4} parent=5 // pred_fallthru
        _
    $region6: #{csp_res_stage_forward.4} parent=1 // loop_footer
      %s29 = sadd.s32 1, %s25
    $region7: #{csp_res_stage_forward.4} parent=1 // loop_footer_branch
      %24 = sbr.rel target = $region3
    $region8: #{csp_res_stage_forward.4} parent=1 // loop_exit
      _
    %1963 = vsyncpa [#allocation4], 1
    %s1964 = scalar_lea.sflag [#allocation4], 1
    %1965 = vsyncpa %s1964, 1
    %1966 = vsyncpa [#allocation7], 1
    %s1967 = scalar_lea.sflag [#allocation7], 1
    %1968 = vsyncpa %s1967, 1
    %1969 = vsyncpa [#allocation10], 1
    %s1970 = scalar_lea.sflag [#allocation10], 1
    %1971 = vsyncpa %s1970, 1
    %1972 = vsyncpa [#allocation13], 1
    %1973 = vsyncpa [#allocation5], 1
    %s1974 = scalar_lea.sflag [#allocation5], 1
    %1975 = vsyncpa %s1974, 1

// kernel: csp_res_stage_forward.6
$region0: #{csp_res_stage_forward.6}
  #allocation0 [shape = 'u32[]', space=smem, size = 0x4, offset = 0x4, fixed_abs, tag = 'smem constant byte address 0x4 - core index']
  #allocation1 [shape = 'u32[144,128]{1,0:T(1,128)}', space=vmem, size = 0x12000, scoped, tag = 'internal scratch']
  #allocation2 [shape = 'bf16[8,8,1152]{2,1,0:T(8,128)(2,1)}', space=vmem, size = 0x24000, scoped, tag = 'scratch operand']
  %s0 = inlined_call_operand.hbm [shape: bf16[2,8,8,256], index: 0, kind: input, shape index: {}]
  %s1 = inlined_call_operand.hbm [shape: bf16[1152,128], index: 1, kind: input, shape index: {}]
  %s2 = inlined_call_operand.hbm [shape: f32[1,128], index: 2, kind: input, shape index: {}]
  %s3 = inlined_call_operand.hbm [shape: bf16[1152,128], index: 3, kind: input, shape index: {}]
  %s4 = inlined_call_operand.hbm [shape: f32[1,128], index: 4, kind: input, shape index: {}]
  %s5 = inlined_call_operand.hbm [shape: bf16[2,8,8,128], index: 5, kind: output, shape index: {0}]
  %s6 = inlined_call_operand.hbm [shape: f32[2,1,128], index: 6, kind: output, shape index: {1}]
  %7 = xla_tuple %s5, %s6
  %s8 = sld [smem:[#allocation0]]
  $region81: #{csp_res_stage_forward.6} parent=0
    _
  %s10 = ssub.s32 1, %s8
  %s11 = scalar_select 0, %s10, %s8
  $region1: #{csp_res_stage_forward.6} parent=0
    #allocation3 [shape = 'u8[32768]{0}', space=vmem, size = 0x8000, scoped, tag = 'input window, operand 0']
    #allocation4 [shape = 's32[2]{0}', space=sflag, size = 0x8, scoped, tag = 'scoped memory for csp_res_stage_forward.6']
    #allocation5 [shape = 's32[2]{0}', space=sflag, size = 0x8, scoped, tag = 'scoped memory for csp_res_stage_forward.6']
    #allocation6 [shape = 'u8[294912]{0}', space=vmem, size = 0x48000, scoped, tag = 'input window, operand 1, single buffered']
    #allocation7 [shape = 's32[1]{0}', space=sflag, size = 0x4, scoped, tag = 'scoped memory for csp_res_stage_forward.6']
    #allocation8 [shape = 'u8[512]{0}', space=vmem, size = 0x400, scoped, tag = 'input window, operand 2, single buffered']
    #allocation9 [shape = 'u8[294912]{0}', space=vmem, size = 0x48000, scoped, tag = 'input window, operand 3, single buffered']
    #allocation10 [shape = 's32[1]{0}', space=sflag, size = 0x4, scoped, tag = 'scoped memory for csp_res_stage_forward.6']
    #allocation11 [shape = 'u8[512]{0}', space=vmem, size = 0x400, scoped, tag = 'input window, operand 4, single buffered']
    #allocation12 [shape = 'u8[32768]{0}', space=vmem, size = 0x8000, scoped, tag = 'output window, operand 0']
    #allocation13 [shape = 'u8[1024]{0}', space=vmem, size = 0x400, scoped, tag = 'output window, operand 1']
    #allocation14 [shape = 's32[2]{0}', space=sflag, size = 0x8, scoped, tag = 'scoped memory for csp_res_stage_forward.6']
    %12 = vsyncpa [#allocation4], 0
    %s13 = scalar_lea.sflag [#allocation4], 1
    %14 = vsyncpa %s13, 0
    %15 = vsyncpa [#allocation7], 0
    %16 = vsyncpa [#allocation10], 0
    %17 = vsyncpa [#allocation5], 0
    %s18 = scalar_lea.sflag [#allocation5], 1
    %19 = vsyncpa %s18, 0
    %20 = vsyncpa [#allocation14], 0
    %s21 = scalar_lea.sflag [#allocation14], 1
    %22 = vsyncpa %s21, 0
    loop: start=0, step=1, limit=4
    $region2: #{csp_res_stage_forward.6} parent=1 // loop_pre_header
      _
    $region3: #{csp_res_stage_forward.6} parent=1 // loop_header
      %s24 = sphi 0, %s28
      %p25 = scmp.ge.s32.totalorder %s24, 4
      %s34 = sphi 0, %s36
      %s37 = sphi 0, %s34
      %s38 = sphi 0, %s37
      %s54 = sphi 0, %s38
      %s58 = sphi 0, %s58
      %s60 = sphi 0, %s58
      %s61 = sphi 0, %s60
      %s75 = sphi 0, %s61
      %s79 = sphi 0, %s79
      %s81 = sphi 0, %s79
      %s82 = sphi 0, %s81
      %s96 = sphi 0, %s82
      %s100 = sphi 0, %s100
      %s102 = sphi 0, %s100
      %s103 = sphi 0, %s102
      %s117 = sphi 0, %s103
      %s121 = sphi 0, %s121
      %s123 = sphi 0, %s121
      %s124 = sphi 0, %s123
      %s138 = sphi 0, %s124
      %s144 = sphi 0, %s146
      %s147 = sphi 0, %s144
      %s148 = sphi 0, %s147
      %s164 = sphi 0, %s148
      %s170 = sphi 0, %s172
      %s173 = sphi 0, %s170
      %s174 = sphi 0, %s173
      %s190 = sphi 0, %s174
    $region4: #{csp_res_stage_forward.6} parent=1 // loop_header_branch
      %27 = sbr.rel (%p25) target = $region8
    $region5: #{csp_res_stage_forward.6} parent=1 // loop_body
      %s29 = ssub.s32 %s24, 1
      %s30 = ssub.s32 %s24, 2
      %s31 = sadd.s32 %s24, 1
      %s32 = ssub.s32 %s24, %s31
      %p33 = scmp.eq.s32.totalorder %s32, 0
      %s35 = sadd.s32 %s34, 1
      %s36 = scalar_select %p33, %s34, %s35
      %p39 = pneg %p33
      %p40 = scmp.eq.s32.totalorder %s24, 1
      %p41 = por %p39, %p40
      %p42 = scmp.ne.s32.totalorder %s34, %s37
      %p43 = scmp.eq.s32.totalorder %s24, 0
      %p44 = por %p42, %p43
      %p45 = scmp.ne.s32.totalorder %s34, %s37
      %p46 = scmp.eq.s32.totalorder %s29, 1
      %p47 = por %p45, %p46
      %p48 = scmp.ne.s32.totalorder %s37, %s38
      %p49 = scmp.eq.s32.totalorder %s29, 0
      %p50 = por %p48, %p49
      %p51 = scmp.ne.s32.totalorder %s37, %s38
      %p52 = scmp.eq.s32.totalorder %s30, 1
      %p53 = por %p51, %p52
      %p55 = scmp.ne.s32.totalorder %s38, %s54
      %p56 = scmp.eq.s32.totalorder %s30, 0
      %p57 = por %p55, %p56
      %s59 = sadd.s32 %s58, 1
      %p62 = scmp.eq.s32.totalorder %s24, 1
      %p63 = scmp.ne.s32.totalorder %s58, %s60
      %p64 = scmp.eq.s32.totalorder %s24, 0
      %p65 = por %p63, %p64
      %p66 = scmp.ne.s32.totalorder %s58, %s60
      %p67 = scmp.eq.s32.totalorder %s29, 1
      %p68 = por %p66, %p67
      %p69 = scmp.ne.s32.totalorder %s60, %s61
      %p70 = scmp.eq.s32.totalorder %s29, 0
      %p71 = por %p69, %p70
      %p72 = scmp.ne.s32.totalorder %s60, %s61
      %p73 = scmp.eq.s32.totalorder %s30, 1
      %p74 = por %p72, %p73
      %p76 = scmp.ne.s32.totalorder %s61, %s75
      %p77 = scmp.eq.s32.totalorder %s30, 0
      %p78 = por %p76, %p77
      %s80 = sadd.s32 %s79, 1
      %p83 = scmp.eq.s32.totalorder %s24, 1
      %p84 = scmp.ne.s32.totalorder %s79, %s81
      %p85 = scmp.eq.s32.totalorder %s24, 0
      %p86 = por %p84, %p85
      %p87 = scmp.ne.s32.totalorder %s79, %s81
      %p88 = scmp.eq.s32.totalorder %s29, 1
      %p89 = por %p87, %p88
      %p90 = scmp.ne.s32.totalorder %s81, %s82
      %p91 = scmp.eq.s32.totalorder %s29, 0
      %p92 = por %p90, %p91
      %p93 = scmp.ne.s32.totalorder %s81, %s82
      %p94 = scmp.eq.s32.totalorder %s30, 1
      %p95 = por %p93, %p94
      %p97 = scmp.ne.s32.totalorder %s82, %s96
      %p98 = scmp.eq.s32.totalorder %s30, 0
      %p99 = por %p97, %p98
      %s101 = sadd.s32 %s100, 1
      %p104 = scmp.eq.s32.totalorder %s24, 1
      %p105 = scmp.ne.s32.totalorder %s100, %s102
      %p106 = scmp.eq.s32.totalorder %s24, 0
      %p107 = por %p105, %p106
      %p108 = scmp.ne.s32.totalorder %s100, %s102
      %p109 = scmp.eq.s32.totalorder %s29, 1
      %p110 = por %p108, %p109
      %p111 = scmp.ne.s32.totalorder %s102, %s103
      %p112 = scmp.eq.s32.totalorder %s29, 0
      %p113 = por %p111, %p112
      %p114 = scmp.ne.s32.totalorder %s102, %s103
      %p115 = scmp.eq.s32.totalorder %s30, 1
      %p116 = por %p114, %p115
      %p118 = scmp.ne.s32.totalorder %s103, %s117
      %p119 = scmp.eq.s32.totalorder %s30, 0
      %p120 = por %p118, %p119
      %s122 = sadd.s32 %s121, 1
      %p125 = scmp.eq.s32.totalorder %s24, 1
      %p126 = scmp.ne.s32.totalorder %s121, %s123
      %p127 = scmp.eq.s32.totalorder %s24, 0
      %p128 = por %p126, %p127
      %p129 = scmp.ne.s32.totalorder %s121, %s123
      %p130 = scmp.eq.s32.totalorder %s29, 1
      %p131 = por %p129, %p130
      %p132 = scmp.ne.s32.totalorder %s123, %s124
      %p133 = scmp.eq.s32.totalorder %s29, 0
      %p134 = por %p132, %p133
      %p135 = scmp.ne.s32.totalorder %s123, %s124
      %p136 = scmp.eq.s32.totalorder %s30, 1
      %p137 = por %p135, %p136
      %p139 = scmp.ne.s32.totalorder %s124, %s138
      %p140 = scmp.eq.s32.totalorder %s30, 0
      %p141 = por %p139, %p140
      %s142 = ssub.s32 %s24, %s31
      %p143 = scmp.eq.s32.totalorder %s142, 0
      %s145 = sadd.s32 %s144, 1
      %s146 = scalar_select %p143, %s144, %s145
      %p149 = pneg %p143
      %p150 = scmp.eq.s32.totalorder %s24, 1
      %p151 = por %p149, %p150
      %p152 = scmp.ne.s32.totalorder %s144, %s147
      %p153 = scmp.eq.s32.totalorder %s24, 0
      %p154 = por %p152, %p153
      %p155 = scmp.ne.s32.totalorder %s144, %s147
      %p156 = scmp.eq.s32.totalorder %s29, 1
      %p157 = por %p155, %p156
      %p158 = scmp.ne.s32.totalorder %s147, %s148
      %p159 = scmp.eq.s32.totalorder %s29, 0
      %p160 = por %p158, %p159
      %p161 = scmp.ne.s32.totalorder %s147, %s148
      %p162 = scmp.eq.s32.totalorder %s30, 1
      %p163 = por %p161, %p162
      %p165 = scmp.ne.s32.totalorder %s148, %s164
      %p166 = scmp.eq.s32.totalorder %s30, 0
      %p167 = por %p165, %p166
      %s168 = ssub.s32 %s24, %s31
      %p169 = scmp.eq.s32.totalorder %s168, 0
      %s171 = sadd.s32 %s170, 1
      %s172 = scalar_select %p169, %s170, %s171
      %p175 = pneg %p169
      %p176 = scmp.eq.s32.totalorder %s24, 1
      %p177 = por %p175, %p176
      %p178 = scmp.ne.s32.totalorder %s170, %s173
      %p179 = scmp.eq.s32.totalorder %s24, 0
      %p180 = por %p178, %p179
      %p181 = scmp.ne.s32.totalorder %s170, %s173
      %p182 = scmp.eq.s32.totalorder %s29, 1
      %p183 = por %p181, %p182
      %p184 = scmp.ne.s32.totalorder %s173, %s174
      %p185 = scmp.eq.s32.totalorder %s29, 0
      %p186 = por %p184, %p185
      %p187 = scmp.ne.s32.totalorder %s173, %s174
      %p188 = scmp.eq.s32.totalorder %s30, 1
      %p189 = por %p187, %p188
      %p191 = scmp.ne.s32.totalorder %s174, %s190
      %p192 = scmp.eq.s32.totalorder %s30, 0
      %p193 = por %p191, %p192
      %p194 = scmp.le.s32.totalorder 1, %s24
      %p195 = scmp.lt.s32.totalorder %s24, 3
      %p196 = pnand %p194, %p195
      %p197 = pneg %p196
      // Predicated region
      $region9: #{csp_res_stage_forward.6} parent=5 // pred_check
        _
      $region10: #{csp_res_stage_forward.6} parent=5 // pred_check_branch
        %199 = sbr.rel (%p196) target = $region12
      $region11: #{csp_res_stage_forward.6} parent=5 // pred_region
        %s200 = ssub.s32 %s24, 1
        // Predicated region
        $region13: #{csp_res_stage_forward.6} parent=11 // pred_check
          %p201 = pneg %p71
        $region14: #{csp_res_stage_forward.6} parent=11 // pred_check_branch
          %203 = sbr.rel (%p201) target = $region16
        $region15: #{csp_res_stage_forward.6} parent=11 // pred_region
          %s205 = ssub.s32 9216, 9216
          %206 = vsyncadd [#allocation7], %s205
          %s207 = sshll.u32 [#allocation6], 4
          %s208 = int_to_ptr.vmem [resolvable:$true] %s207
          %213 = dma.hbm_to_vmem [thread:$0]  %s1, 9216, %s208, [#allocation7], 64, 64, 4
        $region16: #{csp_res_stage_forward.6} parent=11 // pred_fallthru
          _
        // Predicated region
        $region17: #{csp_res_stage_forward.6} parent=11 // pred_check
          %p214 = pneg %p92
        $region18: #{csp_res_stage_forward.6} parent=11 // pred_check_branch
          %216 = sbr.rel (%p214) target = $region20
        $region19: #{csp_res_stage_forward.6} parent=11 // pred_region
          %s218 = ssub.s32 16, 16
          %219 = vsyncadd [#allocation7], %s218
          %s221 = sshll.u32 [#allocation8], 4
          %s222 = int_to_ptr.vmem [resolvable:$true] %s221
          %224 = dma.hbm_to_vmem [thread:$0]  %s2, 16, %s222, [#allocation7]
        $region20: #{csp_res_stage_forward.6} parent=11 // pred_fallthru
          _
        // Predicated region
        $region21: #{csp_res_stage_forward.6} parent=11 // pred_check
          %p225 = pneg %p113
        $region22: #{csp_res_stage_forward.6} parent=11 // pred_check_branch
          %227 = sbr.rel (%p225) target = $region24
        $region23: #{csp_res_stage_forward.6} parent=11 // pred_region
          %s229 = ssub.s32 9216, 9216
          %230 = vsyncadd [#allocation10], %s229
          %s231 = sshll.u32 [#allocation9], 4
          %s232 = int_to_ptr.vmem [resolvable:$true] %s231
          %237 = dma.hbm_to_vmem [thread:$0]  %s3, 9216, %s232, [#allocation10], 64, 64, 4
        $region24: #{csp_res_stage_forward.6} parent=11 // pred_fallthru
          _
        // Predicated region
        $region25: #{csp_res_stage_forward.6} parent=11 // pred_check
          %p238 = pneg %p134
        $region26: #{csp_res_stage_forward.6} parent=11 // pred_check_branch
          %240 = sbr.rel (%p238) target = $region28
        $region27: #{csp_res_stage_forward.6} parent=11 // pred_region
          %s242 = ssub.s32 16, 16
          %243 = vsyncadd [#allocation10], %s242
          %s245 = sshll.u32 [#allocation11], 4
          %s246 = int_to_ptr.vmem [resolvable:$true] %s245
          %248 = dma.hbm_to_vmem [thread:$0]  %s4, 16, %s246, [#allocation10]
        $region28: #{csp_res_stage_forward.6} parent=11 // pred_fallthru
          _
      $region12: #{csp_res_stage_forward.6} parent=5 // pred_fallthru
        _
      %p249 = scmp.lt.s32.totalorder %s24, 2
      // Predicated region
      $region29: #{csp_res_stage_forward.6} parent=5 // pred_check
        %p250 = pneg %p249
      $region30: #{csp_res_stage_forward.6} parent=5 // pred_check_branch
        %252 = sbr.rel (%p250) target = $region32
      $region31: #{csp_res_stage_forward.6} parent=5 // pred_region
        // Predicated region
        $region33: #{csp_res_stage_forward.6} parent=31 // pred_check
          %p253 = pneg %p44
        $region34: #{csp_res_stage_forward.6} parent=31 // pred_check_branch
          %255 = sbr.rel (%p253) target = $region36
        $region35: #{csp_res_stage_forward.6} parent=31 // pred_region
          %s256 = sand.u32 %s34, 1
          %s257 = scalar_lea.sflag [#allocation4], %s256
          %s258 = sand.u32 %s34, 1
          %s259 = smul.addr %s258, 32
          %s260 = scalar_lea.vmem [#allocation3], %s259
          %s262 = ssub.s32 512, 512
          %263 = vsyncadd %s257, %s262
          %s264 = smul.addr %s24, 16
          %s265 = sadd.s32 1, %s264
          %s266 = smul.addr %s265, 64
          %s267 = scalar_lea.hbm %s0, %s266
          %s268 = sshll.u32 %s260, 4
          %s269 = int_to_ptr.vmem [resolvable:$true] %s268
          %274 = dma.hbm_to_vmem [thread:$0]  %s267, 512, %s269, %s257, 128, 64, 4
        $region36: #{csp_res_stage_forward.6} parent=31 // pred_fallthru
          _
      $region32: #{csp_res_stage_forward.6} parent=5 // pred_fallthru
        _
      %p275 = scmp.le.s32.totalorder 1, %s24
      %p276 = scmp.lt.s32.totalorder %s24, 3
      %p277 = pnand %p275, %p276
      %p278 = pneg %p277
      // Predicated region
      $region37: #{csp_res_stage_forward.6} parent=5 // pred_check
        _
      $region38: #{csp_res_stage_forward.6} parent=5 // pred_check_branch
        %280 = sbr.rel (%p277) target = $region40
      $region39: #{csp_res_stage_forward.6} parent=5 // pred_region
        %s281 = ssub.s32 %s24, 1
        %s282 = sand.u32 %s37, 1
        %s283 = scalar_lea.sflag [#allocation4], %s282
        %s284 = sand.u32 %s37, 1
        %s285 = smul.addr %s284, 32
        %s286 = scalar_lea.vmem [#allocation3], %s285
        // Predicated region
        $region41: #{csp_res_stage_forward.6} parent=39 // pred_check
          %p287 = pneg %p50
        $region42: #{csp_res_stage_forward.6} parent=39 // pred_check_branch
          %289 = sbr.rel (%p287) target = $region44
        $region43: #{csp_res_stage_forward.6} parent=39 // pred_region
          %290 = dma.done %s283, 512
        $region44: #{csp_res_stage_forward.6} parent=39 // pred_fallthru
          _
        // Predicated region
        $region45: #{csp_res_stage_forward.6} parent=39 // pred_check
          %p291 = pneg %p71
        $region46: #{csp_res_stage_forward.6} parent=39 // pred_check_branch
          %293 = sbr.rel (%p291) target = $region48
        $region47: #{csp_res_stage_forward.6} parent=39 // pred_region
          %294 = dma.done [#allocation7], 9216
        $region48: #{csp_res_stage_forward.6} parent=39 // pred_fallthru
          _
        // Predicated region
        $region49: #{csp_res_stage_forward.6} parent=39 // pred_check
          %p295 = pneg %p92
        $region50: #{csp_res_stage_forward.6} parent=39 // pred_check_branch
          %297 = sbr.rel (%p295) target = $region52
        $region51: #{csp_res_stage_forward.6} parent=39 // pred_region
          %298 = dma.done [#allocation7], 16
        $region52: #{csp_res_stage_forward.6} parent=39 // pred_fallthru
          _
        // Predicated region
        $region53: #{csp_res_stage_forward.6} parent=39 // pred_check
          %p299 = pneg %p113
        $region54: #{csp_res_stage_forward.6} parent=39 // pred_check_branch
          %301 = sbr.rel (%p299) target = $region56
        $region55: #{csp_res_stage_forward.6} parent=39 // pred_region
          %302 = dma.done [#allocation10], 9216
        $region56: #{csp_res_stage_forward.6} parent=39 // pred_fallthru
          _
        // Predicated region
        $region57: #{csp_res_stage_forward.6} parent=39 // pred_check
          %p303 = pneg %p134
        $region58: #{csp_res_stage_forward.6} parent=39 // pred_check_branch
          %305 = sbr.rel (%p303) target = $region60
        $region59: #{csp_res_stage_forward.6} parent=39 // pred_region
          %306 = dma.done [#allocation10], 16
        $region60: #{csp_res_stage_forward.6} parent=39 // pred_fallthru
          _
        %s307 = sand.u32 %s37, 1
        %s308 = scalar_lea.sflag [#allocation4], %s307
        %s309 = sand.u32 %s37, 1
        %s310 = smul.addr %s309, 32
        %s311 = scalar_lea.vmem [#allocation3], %s310
        %p312 = pneg %p50
        %p313 = pneg %p47
        %p314 = pneg %p71
        %p315 = pneg %p68
        %p316 = pneg %p92
        %p317 = pneg %p89
        %p318 = pneg %p113
        %p319 = pneg %p110
        %p320 = pneg %p134
        %p321 = pneg %p131
        %p322 = pneg %p160
        %p323 = pneg %p157
        %s324 = sand.u32 %s147, 1
        %s325 = scalar_lea.sflag [#allocation5], %s324
        %s326 = sand.u32 %s147, 1
        %s327 = smul.addr %s326, 32
        %s328 = scalar_lea.vmem [#allocation12], %s327
        %p329 = pneg %p186
        %p330 = pneg %p183
        %s331 = sand.u32 %s173, 1
        %s332 = scalar_lea.sflag [#allocation14], %s331
        %s333 = sand.u32 %s173, 1
        %s334 = scalar_lea.vmem [#allocation13], %s333
        %v336 = vld [vmem:[%s286] sm:$0xf]
        %v337 = vld [vmem:[%s286 + $0x4] sm:$0xf]
        %v338 = vld [vmem:[%s286 + $0x8] sm:$0xf]
        %v339 = vld [vmem:[%s286 + $0xc] sm:$0xf]
        %v340 = vld [vmem:[%s286 + $0x10] sm:$0xf]
        %v341 = vld [vmem:[%s286 + $0x14] sm:$0xf]
        %v342 = vld [vmem:[%s286 + $0x18] sm:$0xf]
        %v343 = vld [vmem:[%s286 + $0x1c] sm:$0xf]
        %344 = vst [vmem:[#allocation2] sm:$0xf] 0
        %vm345 = vcmask 1040384
        %vm346 = vsmask.f32 256
        %vm347 = vmand %vm345, %vm346
        %v348 = vld [vmem:[#allocation2] sm:$0x1]
        %v349 = vsel %vm347, 0, %v348
        %350 = vst [vmem:[#allocation2] sm:$0x1] %v349
        %v351 = vld [vmem:[#allocation2 + $0x24] sm:$0x1]
        %v352 = vsel %vm347, 0, %v351
        %353 = vst [vmem:[#allocation2 + $0x24] sm:$0x1] %v352
        %v354 = vld [vmem:[#allocation2 + $0x48] sm:$0x1]
        %v355 = vsel %vm347, 0, %v354
        %356 = vst [vmem:[#allocation2 + $0x48] sm:$0x1] %v355
        %v357 = vld [vmem:[#allocation2 + $0x6c] sm:$0x1]
        %v358 = vsel %vm347, 0, %v357
        %359 = vst [vmem:[#allocation2 + $0x6c] sm:$0x1] %v358
        %v360 = vld [vmem:[#allocation2 + $0x90] sm:$0x1]
        %v361 = vsel %vm347, 0, %v360
        %362 = vst [vmem:[#allocation2 + $0x90] sm:$0x1] %v361
        %v363 = vld [vmem:[#allocation2 + $0xb4] sm:$0x1]
        %v364 = vsel %vm347, 0, %v363
        %365 = vst [vmem:[#allocation2 + $0xb4] sm:$0x1] %v364
        %v366 = vld [vmem:[#allocation2 + $0xd8] sm:$0x1]
        %v367 = vsel %vm347, 0, %v366
        %368 = vst [vmem:[#allocation2 + $0xd8] sm:$0x1] %v367
        %v369 = vld [vmem:[#allocation2 + $0xfc] sm:$0x1]
        %v370 = vsel %vm347, 0, %v369
        %371 = vst [vmem:[#allocation2 + $0xfc] sm:$0x1] %v370
        %v373 = vshrl.u32 %v336, 16
        %v375 = vrot.slane %v373, 7
        %v376 = vshll.u32 %v336, 16
        %v378 = vor.u32 %v375, %v376
        %v380 = vshrl.u32 %v337, 16
        %v382 = vrot.slane %v380, 7
        %v383 = vshll.u32 %v337, 16
        %v385 = vor.u32 %v382, %v383
        %v387 = vshrl.u32 %v338, 16
        %v389 = vrot.slane %v387, 7
        %v390 = vshll.u32 %v338, 16
        %v392 = vor.u32 %v389, %v390
        %v394 = vshrl.u32 %v339, 16
        %v396 = vrot.slane %v394, 7
        %v397 = vshll.u32 %v339, 16
        %v399 = vor.u32 %v396, %v397
        %v401 = vshrl.u32 %v340, 16
        %v403 = vrot.slane %v401, 7
        %v404 = vshll.u32 %v340, 16
        %v406 = vor.u32 %v403, %v404
        %v408 = vshrl.u32 %v341, 16
        %v410 = vrot.slane %v408, 7
        %v411 = vshll.u32 %v341, 16
        %v413 = vor.u32 %v410, %v411
        %v415 = vshrl.u32 %v342, 16
        %v417 = vrot.slane %v415, 7
        %v418 = vshll.u32 %v342, 16
        %v420 = vor.u32 %v417, %v418
        %s428 = scalar_lea.vmem [#allocation2], 36
        %vm429 = vcmask 1043456
        %vm430 = vsmask.f32 7938
        %vm431 = vmand %vm429, %vm430
        %v432 = vld [vmem:[%s428] sm:$0xf]
        %v433 = vsel %vm431, %v378, %v432
        %434 = vst [vmem:[%s428] sm:$0xf] %v433
        %v435 = vld [vmem:[%s428 + $0x24] sm:$0xf]
        %v436 = vsel %vm431, %v385, %v435
        %437 = vst [vmem:[%s428 + $0x24] sm:$0xf] %v436
        %v438 = vld [vmem:[%s428 + $0x48] sm:$0xf]
        %v439 = vsel %vm431, %v392, %v438
        %440 = vst [vmem:[%s428 + $0x48] sm:$0xf] %v439
        %v441 = vld [vmem:[%s428 + $0x6c] sm:$0xf]
        %v442 = vsel %vm431, %v399, %v441
        %443 = vst [vmem:[%s428 + $0x6c] sm:$0xf] %v442
        %v444 = vld [vmem:[%s428 + $0x90] sm:$0xf]
        %v445 = vsel %vm431, %v406, %v444
        %446 = vst [vmem:[%s428 + $0x90] sm:$0xf] %v445
        %v447 = vld [vmem:[%s428 + $0xb4] sm:$0xf]
        %v448 = vsel %vm431, %v413, %v447
        %449 = vst [vmem:[%s428 + $0xb4] sm:$0xf] %v448
        %v450 = vld [vmem:[%s428 + $0xd8] sm:$0xf]
        %v451 = vsel %vm431, %v420, %v450
        %452 = vst [vmem:[%s428 + $0xd8] sm:$0xf] %v451
        %453 = vst [vmem:[#allocation2 + $0x4] sm:$0xf] 0
        %454 = vst [vmem:[%s428 + $0x4] sm:$0xf] %v336
        %455 = vst [vmem:[%s428 + $0x28] sm:$0xf] %v337
        %456 = vst [vmem:[%s428 + $0x4c] sm:$0xf] %v338
        %457 = vst [vmem:[%s428 + $0x70] sm:$0xf] %v339
        %458 = vst [vmem:[%s428 + $0x94] sm:$0xf] %v340
        %459 = vst [vmem:[%s428 + $0xb8] sm:$0xf] %v341
        %460 = vst [vmem:[%s428 + $0xdc] sm:$0xf] %v342
        %461 = vst [vmem:[#allocation2 + $0x8] sm:$0xf] 0
        %vm462 = vcmask 1043459
        %vm463 = vsmask.f32 7950
        %vm464 = vmand %vm462, %vm463
        %v465 = vld [vmem:[#allocation2 + $0x8] sm:$0x8]
        %v466 = vsel %vm464, 0, %v465
        %467 = vst [vmem:[#allocation2 + $0x8] sm:$0x8] %v466
        %v468 = vld [vmem:[#allocation2 + $0x2c] sm:$0x8]
        %v469 = vsel %vm464, 0, %v468
        %470 = vst [vmem:[#allocation2 + $0x2c] sm:$0x8] %v469
        %v471 = vld [vmem:[#allocation2 + $0x50] sm:$0x8]
        %v472 = vsel %vm464, 0, %v471
        %473 = vst [vmem:[#allocation2 + $0x50] sm:$0x8] %v472
        %v474 = vld [vmem:[#allocation2 + $0x74] sm:$0x8]
        %v475 = vsel %vm464, 0, %v474
        %476 = vst [vmem:[#allocation2 + $0x74] sm:$0x8] %v475
        %v477 = vld [vmem:[#allocation2 + $0x98] sm:$0x8]
        %v478 = vsel %vm464, 0, %v477
        %479 = vst [vmem:[#allocation2 + $0x98] sm:$0x8] %v478
        %v480 = vld [vmem:[#allocation2 + $0xbc] sm:$0x8]
        %v481 = vsel %vm464, 0, %v480
        %482 = vst [vmem:[#allocation2 + $0xbc] sm:$0x8] %v481
        %v483 = vld [vmem:[#allocation2 + $0xe0] sm:$0x8]
        %v484 = vsel %vm464, 0, %v483
        %485 = vst [vmem:[#allocation2 + $0xe0] sm:$0x8] %v484
        %v486 = vld [vmem:[#allocation2 + $0x104] sm:$0x8]
        %v487 = vsel %vm464, 0, %v486
        %488 = vst [vmem:[#allocation2 + $0x104] sm:$0x8] %v487
        %v489 = vrot.slane %v373, 4
        %v490 = vrot.slane %v376, 5
        %v491 = vor.u32 %v489, %v490
        %v492 = vrot.slane %v491, 4
        %v493 = vrot.slane %v380, 4
        %v494 = vrot.slane %v383, 5
        %v495 = vor.u32 %v493, %v494
        %v496 = vrot.slane %v495, 4
        %v497 = vrot.slane %v387, 4
        %v498 = vrot.slane %v390, 5
        %v499 = vor.u32 %v497, %v498
        %v500 = vrot.slane %v499, 4
        %v501 = vrot.slane %v394, 4
        %v502 = vrot.slane %v397, 5
        %v503 = vor.u32 %v501, %v502
        %v504 = vrot.slane %v503, 4
        %v505 = vrot.slane %v401, 4
        %v506 = vrot.slane %v404, 5
        %v507 = vor.u32 %v505, %v506
        %v508 = vrot.slane %v507, 4
        %v509 = vrot.slane %v408, 4
        %v510 = vrot.slane %v411, 5
        %v511 = vor.u32 %v509, %v510
        %v512 = vrot.slane %v511, 4
        %v513 = vrot.slane %v415, 4
        %v514 = vrot.slane %v418, 5
        %v515 = vor.u32 %v513, %v514
        %v516 = vrot.slane %v515, 4
        %vm524 = vsmask.f32 3328
        %vm525 = vmand %vm429, %vm524
        %v526 = vld [vmem:[%s428 + $0x8] sm:$0xf]
        %v527 = vsel %vm525, %v492, %v526
        %528 = vst [vmem:[%s428 + $0x8] sm:$0xf] %v527
        %v529 = vld [vmem:[%s428 + $0x2c] sm:$0xf]
        %v530 = vsel %vm525, %v496, %v529
        %531 = vst [vmem:[%s428 + $0x2c] sm:$0xf] %v530
        %v532 = vld [vmem:[%s428 + $0x50] sm:$0xf]
        %v533 = vsel %vm525, %v500, %v532
        %534 = vst [vmem:[%s428 + $0x50] sm:$0xf] %v533
        %v535 = vld [vmem:[%s428 + $0x74] sm:$0xf]
        %v536 = vsel %vm525, %v504, %v535
        %537 = vst [vmem:[%s428 + $0x74] sm:$0xf] %v536
        %v538 = vld [vmem:[%s428 + $0x98] sm:$0xf]
        %v539 = vsel %vm525, %v508, %v538
        %540 = vst [vmem:[%s428 + $0x98] sm:$0xf] %v539
        %v541 = vld [vmem:[%s428 + $0xbc] sm:$0xf]
        %v542 = vsel %vm525, %v512, %v541
        %543 = vst [vmem:[%s428 + $0xbc] sm:$0xf] %v542
        %v544 = vld [vmem:[%s428 + $0xe0] sm:$0xf]
        %v545 = vsel %vm525, %v516, %v544
        %546 = vst [vmem:[%s428 + $0xe0] sm:$0xf] %v545
        %v547 = vld [vmem:[#allocation2 + $0xc] sm:$0x1]
        %v548 = vsel %vm347, 0, %v547
        %549 = vst [vmem:[#allocation2 + $0xc] sm:$0x1] %v548
        %v550 = vld [vmem:[#allocation2 + $0x30] sm:$0x1]
        %v551 = vsel %vm347, 0, %v550
        %552 = vst [vmem:[#allocation2 + $0x30] sm:$0x1] %v551
        %v553 = vld [vmem:[#allocation2 + $0x54] sm:$0x1]
        %v554 = vsel %vm347, 0, %v553
        %555 = vst [vmem:[#allocation2 + $0x54] sm:$0x1] %v554
        %v556 = vld [vmem:[#allocation2 + $0x78] sm:$0x1]
        %v557 = vsel %vm347, 0, %v556
        %558 = vst [vmem:[#allocation2 + $0x78] sm:$0x1] %v557
        %v559 = vld [vmem:[#allocation2 + $0x9c] sm:$0x1]
        %v560 = vsel %vm347, 0, %v559
        %561 = vst [vmem:[#allocation2 + $0x9c] sm:$0x1] %v560
        %v562 = vld [vmem:[#allocation2 + $0xc0] sm:$0x1]
        %v563 = vsel %vm347, 0, %v562
        %564 = vst [vmem:[#allocation2 + $0xc0] sm:$0x1] %v563
        %v565 = vld [vmem:[#allocation2 + $0xe4] sm:$0x1]
        %v566 = vsel %vm347, 0, %v565
        %567 = vst [vmem:[#allocation2 + $0xe4] sm:$0x1] %v566
        %v568 = vld [vmem:[#allocation2 + $0x108] sm:$0x1]
        %v569 = vsel %vm347, 0, %v568
        %570 = vst [vmem:[#allocation2 + $0x108] sm:$0x1] %v569
        %v572 = vshrl.u32 %v343, 16
        %v574 = vrot.slane %v572, 7
        %v575 = vshll.u32 %v343, 16
        %v577 = vor.u32 %v574, %v575
        %v579 = vld [vmem:[#allocation2 + $0xc] sm:$0xf]
        %v580 = vsel %vm431, %v378, %v579
        %581 = vst [vmem:[#allocation2 + $0xc] sm:$0xf] %v580
        %v582 = vld [vmem:[#allocation2 + $0x30] sm:$0xf]
        %v583 = vsel %vm431, %v385, %v582
        %584 = vst [vmem:[#allocation2 + $0x30] sm:$0xf] %v583
        %v585 = vld [vmem:[#allocation2 + $0x54] sm:$0xf]
        %v586 = vsel %vm431, %v392, %v585
        %587 = vst [vmem:[#allocation2 + $0x54] sm:$0xf] %v586
        %v588 = vld [vmem:[#allocation2 + $0x78] sm:$0xf]
        %v589 = vsel %vm431, %v399, %v588
        %590 = vst [vmem:[#allocation2 + $0x78] sm:$0xf] %v589
        %v591 = vld [vmem:[#allocation2 + $0x9c] sm:$0xf]
        %v592 = vsel %vm431, %v406, %v591
        %593 = vst [vmem:[#allocation2 + $0x9c] sm:$0xf] %v592
        %v594 = vld [vmem:[#allocation2 + $0xc0] sm:$0xf]
        %v595 = vsel %vm431, %v413, %v594
        %596 = vst [vmem:[#allocation2 + $0xc0] sm:$0xf] %v595
        %v597 = vld [vmem:[#allocation2 + $0xe4] sm:$0xf]
        %v598 = vsel %vm431, %v420, %v597
        %599 = vst [vmem:[#allocation2 + $0xe4] sm:$0xf] %v598
        %v600 = vld [vmem:[#allocation2 + $0x108] sm:$0xf]
        %v601 = vsel %vm431, %v577, %v600
        %602 = vst [vmem:[#allocation2 + $0x108] sm:$0xf] %v601
        %603 = vst [vmem:[#allocation2 + $0x10] sm:$0xf] %v336
        %604 = vst [vmem:[#allocation2 + $0x34] sm:$0xf] %v337
        %605 = vst [vmem:[#allocation2 + $0x58] sm:$0xf] %v338
        %606 = vst [vmem:[#allocation2 + $0x7c] sm:$0xf] %v339
        %607 = vst [vmem:[#allocation2 + $0xa0] sm:$0xf] %v340
        %608 = vst [vmem:[#allocation2 + $0xc4] sm:$0xf] %v341
        %609 = vst [vmem:[#allocation2 + $0xe8] sm:$0xf] %v342
        %610 = vst [vmem:[#allocation2 + $0x10c] sm:$0xf] %v343
        %v611 = vld [vmem:[#allocation2 + $0x14] sm:$0x8]
        %v612 = vsel %vm464, 0, %v611
        %613 = vst [vmem:[#allocation2 + $0x14] sm:$0x8] %v612
        %v614 = vld [vmem:[#allocation2 + $0x38] sm:$0x8]
        %v615 = vsel %vm464, 0, %v614
        %616 = vst [vmem:[#allocation2 + $0x38] sm:$0x8] %v615
        %v617 = vld [vmem:[#allocation2 + $0x5c] sm:$0x8]
        %v618 = vsel %vm464, 0, %v617
        %619 = vst [vmem:[#allocation2 + $0x5c] sm:$0x8] %v618
        %v620 = vld [vmem:[#allocation2 + $0x80] sm:$0x8]
        %v621 = vsel %vm464, 0, %v620
        %622 = vst [vmem:[#allocation2 + $0x80] sm:$0x8] %v621
        %v623 = vld [vmem:[#allocation2 + $0xa4] sm:$0x8]
        %v624 = vsel %vm464, 0, %v623
        %625 = vst [vmem:[#allocation2 + $0xa4] sm:$0x8] %v624
        %v626 = vld [vmem:[#allocation2 + $0xc8] sm:$0x8]
        %v627 = vsel %vm464, 0, %v626
        %628 = vst [vmem:[#allocation2 + $0xc8] sm:$0x8] %v627
        %v629 = vld [vmem:[#allocation2 + $0xec] sm:$0x8]
        %v630 = vsel %vm464, 0, %v629
        %631 = vst [vmem:[#allocation2 + $0xec] sm:$0x8] %v630
        %v632 = vld [vmem:[#allocation2 + $0x110] sm:$0x8]
        %v633 = vsel %vm464, 0, %v632
        %634 = vst [vmem:[#allocation2 + $0x110] sm:$0x8] %v633
        %v635 = vrot.slane %v572, 4
        %v636 = vrot.slane %v575, 5
        %v637 = vor.u32 %v635, %v636
        %v638 = vrot.slane %v637, 4
        %v640 = vld [vmem:[#allocation2 + $0x14] sm:$0xf]
        %v641 = vsel %vm525, %v492, %v640
        %642 = vst [vmem:[#allocation2 + $0x14] sm:$0xf] %v641
        %v643 = vld [vmem:[#allocation2 + $0x38] sm:$0xf]
        %v644 = vsel %vm525, %v496, %v643
        %645 = vst [vmem:[#allocation2 + $0x38] sm:$0xf] %v644
        %v646 = vld [vmem:[#allocation2 + $0x5c] sm:$0xf]
        %v647 = vsel %vm525, %v500, %v646
        %648 = vst [vmem:[#allocation2 + $0x5c] sm:$0xf] %v647
        %v649 = vld [vmem:[#allocation2 + $0x80] sm:$0xf]
        %v650 = vsel %vm525, %v504, %v649
        %651 = vst [vmem:[#allocation2 + $0x80] sm:$0xf] %v650
        %v652 = vld [vmem:[#allocation2 + $0xa4] sm:$0xf]
        %v653 = vsel %vm525, %v508, %v652
        %654 = vst [vmem:[#allocation2 + $0xa4] sm:$0xf] %v653
        %v655 = vld [vmem:[#allocation2 + $0xc8] sm:$0xf]
        %v656 = vsel %vm525, %v512, %v655
        %657 = vst [vmem:[#allocation2 + $0xc8] sm:$0xf] %v656
        %v658 = vld [vmem:[#allocation2 + $0xec] sm:$0xf]
        %v659 = vsel %vm525, %v516, %v658
        %660 = vst [vmem:[#allocation2 + $0xec] sm:$0xf] %v659
        %v661 = vld [vmem:[#allocation2 + $0x110] sm:$0xf]
        %v662 = vsel %vm525, %v638, %v661
        %663 = vst [vmem:[#allocation2 + $0x110] sm:$0xf] %v662
        %s664 = scalar_lea.vmem [#allocation2], 252
        %665 = vst [vmem:[%s664 + $0x18] sm:$0xf] 0
        %v666 = vld [vmem:[#allocation2 + $0x18] sm:$0x1]
        %v667 = vsel %vm347, 0, %v666
        %668 = vst [vmem:[#allocation2 + $0x18] sm:$0x1] %v667
        %v669 = vld [vmem:[#allocation2 + $0x3c] sm:$0x1]
        %v670 = vsel %vm347, 0, %v669
        %671 = vst [vmem:[#allocation2 + $0x3c] sm:$0x1] %v670
        %v672 = vld [vmem:[#allocation2 + $0x60] sm:$0x1]
        %v673 = vsel %vm347, 0, %v672
        %674 = vst [vmem:[#allocation2 + $0x60] sm:$0x1] %v673
        %v675 = vld [vmem:[#allocation2 + $0x84] sm:$0x1]
        %v676 = vsel %vm347, 0, %v675
        %677 = vst [vmem:[#allocation2 + $0x84] sm:$0x1] %v676
        %v678 = vld [vmem:[#allocation2 + $0xa8] sm:$0x1]
        %v679 = vsel %vm347, 0, %v678
        %680 = vst [vmem:[#allocation2 + $0xa8] sm:$0x1] %v679
        %v681 = vld [vmem:[#allocation2 + $0xcc] sm:$0x1]
        %v682 = vsel %vm347, 0, %v681
        %683 = vst [vmem:[#allocation2 + $0xcc] sm:$0x1] %v682
        %v684 = vld [vmem:[#allocation2 + $0xf0] sm:$0x1]
        %v685 = vsel %vm347, 0, %v684
        %686 = vst [vmem:[#allocation2 + $0xf0] sm:$0x1] %v685
        %v687 = vld [vmem:[#allocation2 + $0x114] sm:$0x1]
        %v688 = vsel %vm347, 0, %v687
        %689 = vst [vmem:[#allocation2 + $0x114] sm:$0x1] %v688
        %v690 = vld [vmem:[#allocation2 + $0x18] sm:$0xf]
        %v691 = vsel %vm431, %v385, %v690
        %692 = vst [vmem:[#allocation2 + $0x18] sm:$0xf] %v691
        %v693 = vld [vmem:[#allocation2 + $0x3c] sm:$0xf]
        %v694 = vsel %vm431, %v392, %v693
        %695 = vst [vmem:[#allocation2 + $0x3c] sm:$0xf] %v694
        %v696 = vld [vmem:[#allocation2 + $0x60] sm:$0xf]
        %v697 = vsel %vm431, %v399, %v696
        %698 = vst [vmem:[#allocation2 + $0x60] sm:$0xf] %v697
        %v699 = vld [vmem:[#allocation2 + $0x84] sm:$0xf]
        %v700 = vsel %vm431, %v406, %v699
        %701 = vst [vmem:[#allocation2 + $0x84] sm:$0xf] %v700
        %v702 = vld [vmem:[#allocation2 + $0xa8] sm:$0xf]
        %v703 = vsel %vm431, %v413, %v702
        %704 = vst [vmem:[#allocation2 + $0xa8] sm:$0xf] %v703
        %v705 = vld [vmem:[#allocation2 + $0xcc] sm:$0xf]
        %v706 = vsel %vm431, %v420, %v705
        %707 = vst [vmem:[#allocation2 + $0xcc] sm:$0xf] %v706
        %v708 = vld [vmem:[#allocation2 + $0xf0] sm:$0xf]
        %v709 = vsel %vm431, %v577, %v708
        %710 = vst [vmem:[#allocation2 + $0xf0] sm:$0xf] %v709
        %711 = vst [vmem:[%s664 + $0x1c] sm:$0xf] 0
        %712 = vst [vmem:[#allocation2 + $0x1c] sm:$0xf] %v337
        %713 = vst [vmem:[#allocation2 + $0x40] sm:$0xf] %v338
        %714 = vst [vmem:[#allocation2 + $0x64] sm:$0xf] %v339
        %715 = vst [vmem:[#allocation2 + $0x88] sm:$0xf] %v340
        %716 = vst [vmem:[#allocation2 + $0xac] sm:$0xf] %v341
        %717 = vst [vmem:[#allocation2 + $0xd0] sm:$0xf] %v342
        %718 = vst [vmem:[#allocation2 + $0xf4] sm:$0xf] %v343
        %719 = vst [vmem:[%s664 + $0x20] sm:$0xf] 0
        %v720 = vld [vmem:[#allocation2 + $0x20] sm:$0x8]
        %v721 = vsel %vm464, 0, %v720
        %722 = vst [vmem:[#allocation2 + $0x20] sm:$0x8] %v721
        %v723 = vld [vmem:[#allocation2 + $0x44] sm:$0x8]
        %v724 = vsel %vm464, 0, %v723
        %725 = vst [vmem:[#allocation2 + $0x44] sm:$0x8] %v724
        %v726 = vld [vmem:[#allocation2 + $0x68] sm:$0x8]
        %v727 = vsel %vm464, 0, %v726
        %728 = vst [vmem:[#allocation2 + $0x68] sm:$0x8] %v727
        %v729 = vld [vmem:[#allocation2 + $0x8c] sm:$0x8]
        %v730 = vsel %vm464, 0, %v729
        %731 = vst [vmem:[#allocation2 + $0x8c] sm:$0x8] %v730
        %v732 = vld [vmem:[#allocation2 + $0xb0] sm:$0x8]
        %v733 = vsel %vm464, 0, %v732
        %734 = vst [vmem:[#allocation2 + $0xb0] sm:$0x8] %v733
        %v735 = vld [vmem:[#allocation2 + $0xd4] sm:$0x8]
        %v736 = vsel %vm464, 0, %v735
        %737 = vst [vmem:[#allocation2 + $0xd4] sm:$0x8] %v736
        %v738 = vld [vmem:[#allocation2 + $0xf8] sm:$0x8]
        %v739 = vsel %vm464, 0, %v738
        %740 = vst [vmem:[#allocation2 + $0xf8] sm:$0x8] %v739
        %v741 = vld [vmem:[#allocation2 + $0x11c] sm:$0x8]
        %v742 = vsel %vm464, 0, %v741
        %743 = vst [vmem:[#allocation2 + $0x11c] sm:$0x8] %v742
        %v744 = vld [vmem:[#allocation2 + $0x20] sm:$0xf]
        %v745 = vsel %vm525, %v496, %v744
        %746 = vst [vmem:[#allocation2 + $0x20] sm:$0xf] %v745
        %v747 = vld [vmem:[#allocation2 + $0x44] sm:$0xf]
        %v748 = vsel %vm525, %v500, %v747
        %749 = vst [vmem:[#allocation2 + $0x44] sm:$0xf] %v748
        %v750 = vld [vmem:[#allocation2 + $0x68] sm:$0xf]
        %v751 = vsel %vm525, %v504, %v750
        %752 = vst [vmem:[#allocation2 + $0x68] sm:$0xf] %v751
        %v753 = vld [vmem:[#allocation2 + $0x8c] sm:$0xf]
        %v754 = vsel %vm525, %v508, %v753
        %755 = vst [vmem:[#allocation2 + $0x8c] sm:$0xf] %v754
        %v756 = vld [vmem:[#allocation2 + $0xb0] sm:$0xf]
        %v757 = vsel %vm525, %v512, %v756
        %758 = vst [vmem:[#allocation2 + $0xb0] sm:$0xf] %v757
        %v759 = vld [vmem:[#allocation2 + $0xd4] sm:$0xf]
        %v760 = vsel %vm525, %v516, %v759
        %761 = vst [vmem:[#allocation2 + $0xd4] sm:$0xf] %v760
        %v762 = vld [vmem:[#allocation2 + $0xf8] sm:$0xf]
        %v763 = vsel %vm525, %v638, %v762
        %764 = vst [vmem:[#allocation2 + $0xf8] sm:$0xf] %v763
        %v765 = vld [vmem:[#allocation2] sm:$0xff]
        %v766 = vld [vmem:[#allocation2 + $0x8] sm:$0xff]
        %v767 = vld [vmem:[#allocation2 + $0x10] sm:$0xff]
        %v768 = vld [vmem:[#allocation2 + $0x18] sm:$0xff]
        %v769 = vld [vmem:[#allocation2 + $0x20] sm:$0xf]
        %v770 = vld [vmem:[#allocation2 + $0x24] sm:$0xff]
        %v771 = vld [vmem:[#allocation2 + $0x2c] sm:$0xff]
        %v772 = vld [vmem:[#allocation2 + $0x34] sm:$0xff]
        %v773 = vld [vmem:[#allocation2 + $0x3c] sm:$0xff]
        %v774 = vld [vmem:[#allocation2 + $0x44] sm:$0xf]
        %v775 = vld [vmem:[#allocation2 + $0x48] sm:$0xff]
        %v776 = vld [vmem:[#allocation2 + $0x50] sm:$0xff]
        %v777 = vld [vmem:[#allocation2 + $0x58] sm:$0xff]
        %v778 = vld [vmem:[#allocation2 + $0x60] sm:$0xff]
        %v779 = vld [vmem:[#allocation2 + $0x68] sm:$0xf]
        %v780 = vld [vmem:[#allocation2 + $0x6c] sm:$0xff]
        %v781 = vld [vmem:[#allocation2 + $0x74] sm:$0xff]
        %v782 = vld [vmem:[#allocation2 + $0x7c] sm:$0xff]
        %v783 = vld [vmem:[#allocation2 + $0x84] sm:$0xff]
        %v784 = vld [vmem:[#allocation2 + $0x8c] sm:$0xf]
        %v785 = vld [vmem:[#allocation2 + $0x90] sm:$0xff]
        %v786 = vld [vmem:[#allocation2 + $0x98] sm:$0xff]
        %v787 = vld [vmem:[#allocation2 + $0xa0] sm:$0xff]
        %v788 = vld [vmem:[#allocation2 + $0xa8] sm:$0xff]
        %v789 = vld [vmem:[#allocation2 + $0xb0] sm:$0xf]
        %v790 = vld [vmem:[#allocation2 + $0xb4] sm:$0xff]
        %v791 = vld [vmem:[#allocation2 + $0xbc] sm:$0xff]
        %v792 = vld [vmem:[#allocation2 + $0xc4] sm:$0xff]
        %v793 = vld [vmem:[#allocation2 + $0xcc] sm:$0xff]
        %v794 = vld [vmem:[#allocation2 + $0xd4] sm:$0xf]
        %v795 = vld [vmem:[#allocation2 + $0xd8] sm:$0xff]
        %v796 = vld [vmem:[#allocation2 + $0xe0] sm:$0xff]
        %v797 = vld [vmem:[#allocation2 + $0xe8] sm:$0xff]
        %v798 = vld [vmem:[#allocation2 + $0xf0] sm:$0xff]
        %v799 = vld [vmem:[#allocation2 + $0xf8] sm:$0xf]
        %v800 = vld [vmem:[#allocation2 + $0xfc] sm:$0xff]
        %v801 = vld [vmem:[#allocation2 + $0x104] sm:$0xff]
        %v802 = vld [vmem:[#allocation2 + $0x10c] sm:$0xff]
        %v803 = vld [vmem:[#allocation2 + $0x114] sm:$0xff]
        %v804 = vld [vmem:[#allocation2 + $0x11c] sm:$0xf]
        %v805 = vld [vmem:[#allocation6] sm:$0xf]
        %v806 = vld [vmem:[#allocation6 + $0x4] sm:$0xf]
        %v807 = vld [vmem:[#allocation6 + $0x8] sm:$0xf]
        %v808 = vld [vmem:[#allocation6 + $0xc] sm:$0xf]
        %v809 = vld [vmem:[#allocation6 + $0x10] sm:$0xf]
        %v810 = vld [vmem:[#allocation6 + $0x14] sm:$0xf]
        %v811 = vld [vmem:[#allocation6 + $0x18] sm:$0xf]
        %v812 = vld [vmem:[#allocation6 + $0x1c] sm:$0xf]
        %v813 = vld [vmem:[#allocation6 + $0x20] sm:$0xf]
        %v814 = vld [vmem:[#allocation6 + $0x24] sm:$0xf]
        %v815 = vld [vmem:[#allocation6 + $0x28] sm:$0xf]
        %v816 = vld [vmem:[#allocation6 + $0x2c] sm:$0xf]
        %v817 = vld [vmem:[#allocation6 + $0x30] sm:$0xf]
        %v818 = vld [vmem:[#allocation6 + $0x34] sm:$0xf]
        %v819 = vld [vmem:[#allocation6 + $0x38] sm:$0xf]
        %v820 = vld [vmem:[#allocation6 + $0x3c] sm:$0xf]
        %v821 = vld [vmem:[#allocation6 + $0x40] sm:$0xf]
        %v822 = vld [vmem:[#allocation6 + $0x44] sm:$0xf]
        %v823 = vld [vmem:[#allocation6 + $0x48] sm:$0xf]
        %v824 = vld [vmem:[#allocation6 + $0x4c] sm:$0xf]
        %v825 = vld [vmem:[#allocation6 + $0x50] sm:$0xf]
        %v826 = vld [vmem:[#allocation6 + $0x54] sm:$0xf]
        %v827 = vld [vmem:[#allocation6 + $0x58] sm:$0xf]
        %v828 = vld [vmem:[#allocation6 + $0x5c] sm:$0xf]
        %v829 = vld [vmem:[#allocation6 + $0x60] sm:$0xf]
        %v830 = vld [vmem:[#allocation6 + $0x64] sm:$0xf]
        %v831 = vld [vmem:[#allocation6 + $0x68] sm:$0xf]
        %v832 = vld [vmem:[#allocation6 + $0x6c] sm:$0xf]
        %v833 = vld [vmem:[#allocation6 + $0x70] sm:$0xf]
        %v834 = vld [vmem:[#allocation6 + $0x74] sm:$0xf]
        %v835 = vld [vmem:[#allocation6 + $0x78] sm:$0xf]
        %v836 = vld [vmem:[#allocation6 + $0x7c] sm:$0xf]
        %v837 = vld [vmem:[#allocation6 + $0x80] sm:$0xf]
        %v838 = vld [vmem:[#allocation6 + $0x84] sm:$0xf]
        %v839 = vld [vmem:[#allocation6 + $0x88] sm:$0xf]
        %v840 = vld [vmem:[#allocation6 + $0x8c] sm:$0xf]
        %v841 = vld [vmem:[#allocation6 + $0x90] sm:$0xf]
        %v842 = vld [vmem:[#allocation6 + $0x94] sm:$0xf]
        %v843 = vld [vmem:[#allocation6 + $0x98] sm:$0xf]
        %v844 = vld [vmem:[#allocation6 + $0x9c] sm:$0xf]
        %v845 = vld [vmem:[#allocation6 + $0xa0] sm:$0xf]
        %v846 = vld [vmem:[#allocation6 + $0xa4] sm:$0xf]
        %v847 = vld [vmem:[#allocation6 + $0xa8] sm:$0xf]
        %v848 = vld [vmem:[#allocation6 + $0xac] sm:$0xf]
        %v849 = vld [vmem:[#allocation6 + $0xb0] sm:$0xf]
        %v850 = vld [vmem:[#allocation6 + $0xb4] sm:$0xf]
        %v851 = vld [vmem:[#allocation6 + $0xb8] sm:$0xf]
        %v852 = vld [vmem:[#allocation6 + $0xbc] sm:$0xf]
        %v853 = vld [vmem:[#allocation6 + $0xc0] sm:$0xf]
        %v854 = vld [vmem:[#allocation6 + $0xc4] sm:$0xf]
        %v855 = vld [vmem:[#allocation6 + $0xc8] sm:$0xf]
        %v856 = vld [vmem:[#allocation6 + $0xcc] sm:$0xf]
        %v857 = vld [vmem:[#allocation6 + $0xd0] sm:$0xf]
        %v858 = vld [vmem:[#allocation6 + $0xd4] sm:$0xf]
        %v859 = vld [vmem:[#allocation6 + $0xd8] sm:$0xf]
        %v860 = vld [vmem:[#allocation6 + $0xdc] sm:$0xf]
        %v861 = vld [vmem:[#allocation6 + $0xe0] sm:$0xf]
        %v862 = vld [vmem:[#allocation6 + $0xe4] sm:$0xf]
        %v863 = vld [vmem:[#allocation6 + $0xe8] sm:$0xf]
        %v864 = vld [vmem:[#allocation6 + $0xec] sm:$0xf]
        %v865 = vld [vmem:[#allocation6 + $0xf0] sm:$0xf]
        %v866 = vld [vmem:[#allocation6 + $0xf4] sm:$0xf]
        %v867 = vld [vmem:[#allocation6 + $0xf8] sm:$0xf]
        %v868 = vld [vmem:[#allocation6 + $0xfc] sm:$0xf]
        %v869 = vld [vmem:[#allocation6 + $0x100] sm:$0xf]
        %v870 = vld [vmem:[#allocation6 + $0x104] sm:$0xf]
        %v871 = vld [vmem:[#allocation6 + $0x108] sm:$0xf]
        %v872 = vld [vmem:[#allocation6 + $0x10c] sm:$0xf]
        %v873 = vld [vmem:[#allocation6 + $0x110] sm:$0xf]
        %v874 = vld [vmem:[#allocation6 + $0x114] sm:$0xf]
        %v875 = vld [vmem:[#allocation6 + $0x118] sm:$0xf]
        %v876 = vld [vmem:[#allocation6 + $0x11c] sm:$0xf]
        %v877 = vld [vmem:[#allocation6 + $0x120] sm:$0xf]
        %v878 = vld [vmem:[#allocation6 + $0x124] sm:$0xf]
        %v879 = vld [vmem:[#allocation6 + $0x128] sm:$0xf]
        %v880 = vld [vmem:[#allocation6 + $0x12c] sm:$0xf]
        %v881 = vld [vmem:[#allocation6 + $0x130] sm:$0xf]
        %v882 = vld [vmem:[#allocation6 + $0x134] sm:$0xf]
        %v883 = vld [vmem:[#allocation6 + $0x138] sm:$0xf]
        %v884 = vld [vmem:[#allocation6 + $0x13c] sm:$0xf]
        %v885 = vld [vmem:[#allocation6 + $0x140] sm:$0xf]
        %v886 = vld [vmem:[#allocation6 + $0x144] sm:$0xf]
        %v887 = vld [vmem:[#allocation6 + $0x148] sm:$0xf]
        %v888 = vld [vmem:[#allocation6 + $0x14c] sm:$0xf]
        %v889 = vld [vmem:[#allocation6 + $0x150] sm:$0xf]
        %v890 = vld [vmem:[#allocation6 + $0x154] sm:$0xf]
        %v891 = vld [vmem:[#allocation6 + $0x158] sm:$0xf]
        %v892 = vld [vmem:[#allocation6 + $0x15c] sm:$0xf]
        %v893 = vld [vmem:[#allocation6 + $0x160] sm:$0xf]
        %v894 = vld [vmem:[#allocation6 + $0x164] sm:$0xf]
        %v895 = vld [vmem:[#allocation6 + $0x168] sm:$0xf]
        %v896 = vld [vmem:[#allocation6 + $0x16c] sm:$0xf]
        %v897 = vld [vmem:[#allocation6 + $0x170] sm:$0xf]
        %v898 = vld [vmem:[#allocation6 + $0x174] sm:$0xf]
        %v899 = vld [vmem:[#allocation6 + $0x178] sm:$0xf]
        %v900 = vld [vmem:[#allocation6 + $0x17c] sm:$0xf]
        %v901 = vld [vmem:[#allocation6 + $0x180] sm:$0xf]
        %v902 = vld [vmem:[#allocation6 + $0x184] sm:$0xf]
        %v903 = vld [vmem:[#allocation6 + $0x188] sm:$0xf]
        %v904 = vld [vmem:[#allocation6 + $0x18c] sm:$0xf]
        %v905 = vld [vmem:[#allocation6 + $0x190] sm:$0xf]
        %v906 = vld [vmem:[#allocation6 + $0x194] sm:$0xf]
        %v907 = vld [vmem:[#allocation6 + $0x198] sm:$0xf]
        %v908 = vld [vmem:[#allocation6 + $0x19c] sm:$0xf]
        %v909 = vld [vmem:[#allocation6 + $0x1a0] sm:$0xf]
        %v910 = vld [vmem:[#allocation6 + $0x1a4] sm:$0xf]
        %v911 = vld [vmem:[#allocation6 + $0x1a8] sm:$0xf]
        %v912 = vld [vmem:[#allocation6 + $0x1ac] sm:$0xf]
        %v913 = vld [vmem:[#allocation6 + $0x1b0] sm:$0xf]
        %v914 = vld [vmem:[#allocation6 + $0x1b4] sm:$0xf]
        %v915 = vld [vmem:[#allocation6 + $0x1b8] sm:$0xf]
        %v916 = vld [vmem:[#allocation6 + $0x1bc] sm:$0xf]
        %v917 = vld [vmem:[#allocation6 + $0x1c0] sm:$0xf]
        %v918 = vld [vmem:[#allocation6 + $0x1c4] sm:$0xf]
        %v919 = vld [vmem:[#allocation6 + $0x1c8] sm:$0xf]
        %v920 = vld [vmem:[#allocation6 + $0x1cc] sm:$0xf]
        %v921 = vld [vmem:[#allocation6 + $0x1d0] sm:$0xf]
        %v922 = vld [vmem:[#allocation6 + $0x1d4] sm:$0xf]
        %v923 = vld [vmem:[#allocation6 + $0x1d8] sm:$0xf]
        %v924 = vld [vmem:[#allocation6 + $0x1dc] sm:$0xf]
        %v925 = vld [vmem:[#allocation6 + $0x1e0] sm:$0xf]
        %v926 = vld [vmem:[#allocation6 + $0x1e4] sm:$0xf]
        %v927 = vld [vmem:[#allocation6 + $0x1e8] sm:$0xf]
        %v928 = vld [vmem:[#allocation6 + $0x1ec] sm:$0xf]
        %v929 = vld [vmem:[#allocation6 + $0x1f0] sm:$0xf]
        %v930 = vld [vmem:[#allocation6 + $0x1f4] sm:$0xf]
        %v931 = vld [vmem:[#allocation6 + $0x1f8] sm:$0xf]
        %v932 = vld [vmem:[#allocation6 + $0x1fc] sm:$0xf]
        %v933 = vld [vmem:[#allocation6 + $0x200] sm:$0xf]
        %v934 = vld [vmem:[#allocation6 + $0x204] sm:$0xf]
        %v935 = vld [vmem:[#allocation6 + $0x208] sm:$0xf]
        %v936 = vld [vmem:[#allocation6 + $0x20c] sm:$0xf]
        %v937 = vld [vmem:[#allocation6 + $0x210] sm:$0xf]
        %v938 = vld [vmem:[#allocation6 + $0x214] sm:$0xf]
        %v939 = vld [vmem:[#allocation6 + $0x218] sm:$0xf]
        %v940 = vld [vmem:[#allocation6 + $0x21c] sm:$0xf]
        %v941 = vld [vmem:[#allocation6 + $0x220] sm:$0xf]
        %v942 = vld [vmem:[#allocation6 + $0x224] sm:$0xf]
        %v943 = vld [vmem:[#allocation6 + $0x228] sm:$0xf]
        %v944 = vld [vmem:[#allocation6 + $0x22c] sm:$0xf]
        %v945 = vld [vmem:[#allocation6 + $0x230] sm:$0xf]
        %v946 = vld [vmem:[#allocation6 + $0x234] sm:$0xf]
        %v947 = vld [vmem:[#allocation6 + $0x238] sm:$0xf]
        %v948 = vld [vmem:[#allocation6 + $0x23c] sm:$0xf]
        %v949 = vld [vmem:[#allocation8] sm:$0x1]
        %v951 = vlaneseq
        %v952 = vshrl.u32 %v951, 7
        %v953 = vsub.s32 0, %v952
        %v954 = vrot.slane %v949, %v953
        %v996 = vunpack.c.l.b16 %v765
        %v997 = vunpack.c.h.b16 %v765
        %v998 = vunpack.c.l.b16 %v766
        %v999 = vunpack.c.h.b16 %v766
        %v1000 = vunpack.c.l.b16 %v767
        %v1001 = vunpack.c.h.b16 %v767
        %v1002 = vunpack.c.l.b16 %v768
        %v1003 = vunpack.c.h.b16 %v768
        %v1004 = vunpack.c.l.b16 %v769
        %v1005 = vunpack.c.l.b16 %v770
        %v1006 = vunpack.c.h.b16 %v770
        %v1007 = vunpack.c.l.b16 %v771
        %v1008 = vunpack.c.h.b16 %v771
        %v1009 = vunpack.c.l.b16 %v772
        %v1010 = vunpack.c.h.b16 %v772
        %v1011 = vunpack.c.l.b16 %v773
        %v1012 = vunpack.c.h.b16 %v773
        %v1013 = vunpack.c.l.b16 %v774
        %v1014 = vunpack.c.l.b16 %v775
        %v1015 = vunpack.c.h.b16 %v775
        %v1016 = vunpack.c.l.b16 %v776
        %v1017 = vunpack.c.h.b16 %v776
        %v1018 = vunpack.c.l.b16 %v777
        %v1019 = vunpack.c.h.b16 %v777
        %v1020 = vunpack.c.l.b16 %v778
        %v1021 = vunpack.c.h.b16 %v778
        %v1022 = vunpack.c.l.b16 %v779
        %v1023 = vunpack.c.l.b16 %v780
        %v1024 = vunpack.c.h.b16 %v780
        %v1025 = vunpack.c.l.b16 %v781
        %v1026 = vunpack.c.h.b16 %v781
        %v1027 = vunpack.c.l.b16 %v782
        %v1028 = vunpack.c.h.b16 %v782
        %v1029 = vunpack.c.l.b16 %v783
        %v1030 = vunpack.c.h.b16 %v783
        %v1031 = vunpack.c.l.b16 %v784
        %v1032 = vunpack.c.l.b16 %v785
        %v1033 = vunpack.c.h.b16 %v785
        %v1034 = vunpack.c.l.b16 %v786
        %v1035 = vunpack.c.h.b16 %v786
        %v1036 = vunpack.c.l.b16 %v787
        %v1037 = vunpack.c.h.b16 %v787
        %v1038 = vunpack.c.l.b16 %v788
        %v1039 = vunpack.c.h.b16 %v788
        %v1040 = vunpack.c.l.b16 %v789
        %v1041 = vunpack.c.l.b16 %v790
        %v1042 = vunpack.c.h.b16 %v790
        %v1043 = vunpack.c.l.b16 %v791
        %v1044 = vunpack.c.h.b16 %v791
        %v1045 = vunpack.c.l.b16 %v792
        %v1046 = vunpack.c.h.b16 %v792
        %v1047 = vunpack.c.l.b16 %v793
        %v1048 = vunpack.c.h.b16 %v793
        %v1049 = vunpack.c.l.b16 %v794
        %v1050 = vunpack.c.l.b16 %v795
        %v1051 = vunpack.c.h.b16 %v795
        %v1052 = vunpack.c.l.b16 %v796
        %v1053 = vunpack.c.h.b16 %v796
        %v1054 = vunpack.c.l.b16 %v797
        %v1055 = vunpack.c.h.b16 %v797
        %v1056 = vunpack.c.l.b16 %v798
        %v1057 = vunpack.c.h.b16 %v798
        %v1058 = vunpack.c.l.b16 %v799
        %v1059 = vunpack.c.l.b16 %v800
        %v1060 = vunpack.c.h.b16 %v800
        %v1061 = vunpack.c.l.b16 %v801
        %v1062 = vunpack.c.h.b16 %v801
        %v1063 = vunpack.c.l.b16 %v802
        %v1064 = vunpack.c.h.b16 %v802
        %v1065 = vunpack.c.l.b16 %v803
        %v1066 = vunpack.c.h.b16 %v803
        %v1067 = vunpack.c.l.b16 %v804
        %v1068 = vpack.c.b16 %v1005, %v996
        %v1069 = vpack.c.b16 %v1006, %v997
        %v1070 = vpack.c.b16 %v1007, %v998
        %v1071 = vpack.c.b16 %v1008, %v999
        %v1072 = vpack.c.b16 %v1009, %v1000
        %v1073 = vpack.c.b16 %v1010, %v1001
        %v1074 = vpack.c.b16 %v1011, %v1002
        %v1075 = vpack.c.b16 %v1012, %v1003
        %v1076 = vpack.c.b16 %v1013, %v1004
        %v1077 = vpack.c.b16 %v1023, %v1014
        %v1078 = vpack.c.b16 %v1024, %v1015
        %v1079 = vpack.c.b16 %v1025, %v1016
        %v1080 = vpack.c.b16 %v1026, %v1017
        %v1081 = vpack.c.b16 %v1027, %v1018
        %v1082 = vpack.c.b16 %v1028, %v1019
        %v1083 = vpack.c.b16 %v1029, %v1020
        %v1084 = vpack.c.b16 %v1030, %v1021
        %v1085 = vpack.c.b16 %v1031, %v1022
        %v1086 = vpack.c.b16 %v1041, %v1032
        %v1087 = vpack.c.b16 %v1042, %v1033
        %v1088 = vpack.c.b16 %v1043, %v1034
        %v1089 = vpack.c.b16 %v1044, %v1035
        %v1090 = vpack.c.b16 %v1045, %v1036
        %v1091 = vpack.c.b16 %v1046, %v1037
        %v1092 = vpack.c.b16 %v1047, %v1038
        %v1093 = vpack.c.b16 %v1048, %v1039
        %v1094 = vpack.c.b16 %v1049, %v1040
        %v1095 = vpack.c.b16 %v1059, %v1050
        %v1096 = vpack.c.b16 %v1060, %v1051
        %v1097 = vpack.c.b16 %v1061, %v1052
        %v1098 = vpack.c.b16 %v1062, %v1053
        %v1099 = vpack.c.b16 %v1063, %v1054
        %v1100 = vpack.c.b16 %v1064, %v1055
        %v1101 = vpack.c.b16 %v1065, %v1056
        %v1102 = vpack.c.b16 %v1066, %v1057
        %v1103 = vpack.c.b16 %v1067, %v1058
        %v1284 = vunpack.c.l.b16 %v805
        %v1285 = vunpack.c.l.b16 %v806
        %v1286 = vunpack.c.l.b16 %v807
        %v1287 = vunpack.c.l.b16 %v808
        %v1288 = vunpack.c.l.b16 %v809
        %v1289 = vunpack.c.l.b16 %v810
        %v1290 = vunpack.c.l.b16 %v811
        %v1291 = vunpack.c.l.b16 %v812
        %v1292 = vunpack.c.l.b16 %v813
        %v1293 = vunpack.c.l.b16 %v814
        %v1294 = vunpack.c.l.b16 %v815
        %v1295 = vunpack.c.l.b16 %v816
        %v1296 = vunpack.c.l.b16 %v817
        %v1297 = vunpack.c.l.b16 %v818
        %v1298 = vunpack.c.l.b16 %v819
        %v1299 = vunpack.c.l.b16 %v820
        %v1300 = vunpack.c.l.b16 %v821
        %v1301 = vunpack.c.l.b16 %v822
        %v1302 = vunpack.c.l.b16 %v823
        %v1303 = vunpack.c.l.b16 %v824
        %v1304 = vunpack.c.l.b16 %v825
        %v1305 = vunpack.c.l.b16 %v826
        %v1306 = vunpack.c.l.b16 %v827
        %v1307 = vunpack.c.l.b16 %v828
        %v1308 = vunpack.c.l.b16 %v829
        %v1309 = vunpack.c.l.b16 %v830
        %v1310 = vunpack.c.l.b16 %v831
        %v1311 = vunpack.c.l.b16 %v832
        %v1312 = vunpack.c.l.b16 %v833
        %v1313 = vunpack.c.l.b16 %v834
        %v1314 = vunpack.c.l.b16 %v835
        %v1315 = vunpack.c.l.b16 %v836
        %v1316 = vunpack.c.l.b16 %v837
        %v1317 = vunpack.c.l.b16 %v838
        %v1318 = vunpack.c.l.b16 %v839
        %v1319 = vunpack.c.l.b16 %v840
        %v1320 = vunpack.c.l.b16 %v841
        %v1321 = vunpack.c.l.b16 %v842
        %v1322 = vunpack.c.l.b16 %v843
        %v1323 = vunpack.c.l.b16 %v844
        %v1324 = vunpack.c.l.b16 %v845
        %v1325 = vunpack.c.l.b16 %v846
        %v1326 = vunpack.c.l.b16 %v847
        %v1327 = vunpack.c.l.b16 %v848
        %v1328 = vunpack.c.l.b16 %v849
        %v1329 = vunpack.c.l.b16 %v850
        %v1330 = vunpack.c.l.b16 %v851
        %v1331 = vunpack.c.l.b16 %v852
        %v1332 = vunpack.c.l.b16 %v853
        %v1333 = vunpack.c.l.b16 %v854
        %v1334 = vunpack.c.l.b16 %v855
        %v1335 = vunpack.c.l.b16 %v856
        %v1336 = vunpack.c.l.b16 %v857
        %v1337 = vunpack.c.l.b16 %v858
        %v1338 = vunpack.c.l.b16 %v859
        %v1339 = vunpack.c.l.b16 %v860
        %v1340 = vunpack.c.l.b16 %v861
        %v1341 = vunpack.c.l.b16 %v862
        %v1342 = vunpack.c.l.b16 %v863
        %v1343 = vunpack.c.l.b16 %v864
        %v1344 = vunpack.c.l.b16 %v865
        %v1345 = vunpack.c.l.b16 %v866
        %v1346 = vunpack.c.l.b16 %v867
        %v1347 = vunpack.c.l.b16 %v868
        %v1348 = vunpack.c.l.b16 %v869
        %v1349 = vunpack.c.l.b16 %v870
        %v1350 = vunpack.c.l.b16 %v871
        %v1351 = vunpack.c.l.b16 %v872
        %v1352 = vunpack.c.l.b16 %v873
        %v1353 = vunpack.c.l.b16 %v874
        %v1354 = vunpack.c.l.b16 %v875
        %v1355 = vunpack.c.l.b16 %v876
        %v1356 = vunpack.c.l.b16 %v877
        %v1357 = vunpack.c.l.b16 %v878
        %v1358 = vunpack.c.l.b16 %v879
        %v1359 = vunpack.c.l.b16 %v880
        %v1360 = vunpack.c.l.b16 %v881
        %v1361 = vunpack.c.l.b16 %v882
        %v1362 = vunpack.c.l.b16 %v883
        %v1363 = vunpack.c.l.b16 %v884
        %v1364 = vunpack.c.l.b16 %v885
        %v1365 = vunpack.c.l.b16 %v886
        %v1366 = vunpack.c.l.b16 %v887
        %v1367 = vunpack.c.l.b16 %v888
        %v1368 = vunpack.c.l.b16 %v889
        %v1369 = vunpack.c.l.b16 %v890
        %v1370 = vunpack.c.l.b16 %v891
        %v1371 = vunpack.c.l.b16 %v892
        %v1372 = vunpack.c.l.b16 %v893
        %v1373 = vunpack.c.l.b16 %v894
        %v1374 = vunpack.c.l.b16 %v895
        %v1375 = vunpack.c.l.b16 %v896
        %v1376 = vunpack.c.l.b16 %v897
        %v1377 = vunpack.c.l.b16 %v898
        %v1378 = vunpack.c.l.b16 %v899
        %v1379 = vunpack.c.l.b16 %v900
        %v1380 = vunpack.c.l.b16 %v901
        %v1381 = vunpack.c.l.b16 %v902
        %v1382 = vunpack.c.l.b16 %v903
        %v1383 = vunpack.c.l.b16 %v904
        %v1384 = vunpack.c.l.b16 %v905
        %v1385 = vunpack.c.l.b16 %v906
        %v1386 = vunpack.c.l.b16 %v907
        %v1387 = vunpack.c.l.b16 %v908
        %v1388 = vunpack.c.l.b16 %v909
        %v1389 = vunpack.c.l.b16 %v910
        %v1390 = vunpack.c.l.b16 %v911
        %v1391 = vunpack.c.l.b16 %v912
        %v1392 = vunpack.c.l.b16 %v913
        %v1393 = vunpack.c.l.b16 %v914
        %v1394 = vunpack.c.l.b16 %v915
        %v1395 = vunpack.c.l.b16 %v916
        %v1396 = vunpack.c.l.b16 %v917
        %v1397 = vunpack.c.l.b16 %v918
        %v1398 = vunpack.c.l.b16 %v919
        %v1399 = vunpack.c.l.b16 %v920
        %v1400 = vunpack.c.l.b16 %v921
        %v1401 = vunpack.c.l.b16 %v922
        %v1402 = vunpack.c.l.b16 %v923
        %v1403 = vunpack.c.l.b16 %v924
        %v1404 = vunpack.c.l.b16 %v925
        %v1405 = vunpack.c.l.b16 %v926
        %v1406 = vunpack.c.l.b16 %v927
        %v1407 = vunpack.c.l.b16 %v928
        %v1408 = vunpack.c.l.b16 %v929
        %v1409 = vunpack.c.l.b16 %v930
        %v1410 = vunpack.c.l.b16 %v931
        %v1411 = vunpack.c.l.b16 %v932
        %v1412 = vunpack.c.l.b16 %v933
        %v1413 = vunpack.c.l.b16 %v934
        %v1414 = vunpack.c.l.b16 %v935
        %v1415 = vunpack.c.l.b16 %v936
        %v1416 = vunpack.c.l.b16 %v937
        %v1417 = vunpack.c.l.b16 %v938
        %v1418 = vunpack.c.l.b16 %v939
        %v1419 = vunpack.c.l.b16 %v940
        %v1420 = vunpack.c.l.b16 %v941
        %v1421 = vunpack.c.l.b16 %v942
        %v1422 = vunpack.c.l.b16 %v943
        %v1423 = vunpack.c.l.b16 %v944
        %v1424 = vunpack.c.l.b16 %v945
        %v1425 = vunpack.c.l.b16 %v946
        %v1426 = vunpack.c.l.b16 %v947
        %v1427 = vunpack.c.l.b16 %v948
        %v1428 = vpack.c.b16 %v1285, %v1284
        %v1429 = vpack.c.b16 %v1287, %v1286
        %v1430 = vpack.c.b16 %v1289, %v1288
        %v1431 = vpack.c.b16 %v1291, %v1290
        %v1432 = vpack.c.b16 %v1293, %v1292
        %v1433 = vpack.c.b16 %v1295, %v1294
        %v1434 = vpack.c.b16 %v1297, %v1296
        %v1435 = vpack.c.b16 %v1299, %v1298
        %v1436 = vpack.c.b16 %v1301, %v1300
        %v1437 = vpack.c.b16 %v1303, %v1302
        %v1438 = vpack.c.b16 %v1305, %v1304
        %v1439 = vpack.c.b16 %v1307, %v1306
        %v1440 = vpack.c.b16 %v1309, %v1308
        %v1441 = vpack.c.b16 %v1311, %v1310
        %v1442 = vpack.c.b16 %v1313, %v1312
        %v1443 = vpack.c.b16 %v1315, %v1314
        %v1444 = vpack.c.b16 %v1317, %v1316
        %v1445 = vpack.c.b16 %v1319, %v1318
        %v1446 = vpack.c.b16 %v1321, %v1320
        %v1447 = vpack.c.b16 %v1323, %v1322
        %v1448 = vpack.c.b16 %v1325, %v1324
        %v1449 = vpack.c.b16 %v1327, %v1326
        %v1450 = vpack.c.b16 %v1329, %v1328
        %v1451 = vpack.c.b16 %v1331, %v1330
        %v1452 = vpack.c.b16 %v1333, %v1332
        %v1453 = vpack.c.b16 %v1335, %v1334
        %v1454 = vpack.c.b16 %v1337, %v1336
        %v1455 = vpack.c.b16 %v1339, %v1338
        %v1456 = vpack.c.b16 %v1341, %v1340
        %v1457 = vpack.c.b16 %v1343, %v1342
        %v1458 = vpack.c.b16 %v1345, %v1344
        %v1459 = vpack.c.b16 %v1347, %v1346
        %v1460 = vpack.c.b16 %v1349, %v1348
        %v1461 = vpack.c.b16 %v1351, %v1350
        %v1462 = vpack.c.b16 %v1353, %v1352
        %v1463 = vpack.c.b16 %v1355, %v1354
        %v1464 = vpack.c.b16 %v1357, %v1356
        %v1465 = vpack.c.b16 %v1359, %v1358
        %v1466 = vpack.c.b16 %v1361, %v1360
        %v1467 = vpack.c.b16 %v1363, %v1362
        %v1468 = vpack.c.b16 %v1365, %v1364
        %v1469 = vpack.c.b16 %v1367, %v1366
        %v1470 = vpack.c.b16 %v1369, %v1368
        %v1471 = vpack.c.b16 %v1371, %v1370
        %v1472 = vpack.c.b16 %v1373, %v1372
        %v1473 = vpack.c.b16 %v1375, %v1374
        %v1474 = vpack.c.b16 %v1377, %v1376
        %v1475 = vpack.c.b16 %v1379, %v1378
        %v1476 = vpack.c.b16 %v1381, %v1380
        %v1477 = vpack.c.b16 %v1383, %v1382
        %v1478 = vpack.c.b16 %v1385, %v1384
        %v1479 = vpack.c.b16 %v1387, %v1386
        %v1480 = vpack.c.b16 %v1389, %v1388
        %v1481 = vpack.c.b16 %v1391, %v1390
        %v1482 = vpack.c.b16 %v1393, %v1392
        %v1483 = vpack.c.b16 %v1395, %v1394
        %v1484 = vpack.c.b16 %v1397, %v1396
        %v1485 = vpack.c.b16 %v1399, %v1398
        %v1486 = vpack.c.b16 %v1401, %v1400
        %v1487 = vpack.c.b16 %v1403, %v1402
        %v1488 = vpack.c.b16 %v1405, %v1404
        %v1489 = vpack.c.b16 %v1407, %v1406
        %v1490 = vpack.c.b16 %v1409, %v1408
        %v1491 = vpack.c.b16 %v1411, %v1410
        %v1492 = vpack.c.b16 %v1413, %v1412
        %v1493 = vpack.c.b16 %v1415, %v1414
        %v1494 = vpack.c.b16 %v1417, %v1416
        %v1495 = vpack.c.b16 %v1419, %v1418
        %v1496 = vpack.c.b16 %v1421, %v1420
        %v1497 = vpack.c.b16 %v1423, %v1422
        %v1498 = vpack.c.b16 %v1425, %v1424
        %v1499 = vpack.c.b16 %v1427, %v1426
        %1572 = vmatprep.subr.bf16.mxu0 0
        %1573 = vmatpush1.bf16.msra.mxu0 %v1428
        %1574 = vmatprep.subr.bf16.mxu0 0
        %1575 = vmatpush1.bf16.msra.mxu0 %v1429
        %1576 = vmatprep.subr.bf16.mxu0 0
        %1577 = vmatpush1.bf16.msra.mxu0 %v1430
        %1578 = vmatprep.subr.bf16.mxu0 0
        %1579 = vmatpush1.bf16.msra.mxu0 %v1431
        %1580 = vmatprep.subr.bf16.mxu0 0
        %1581 = vmatpush1.bf16.msra.mxu0 %v1432
        %1582 = vmatprep.subr.bf16.mxu0 0
        %1583 = vmatpush1.bf16.msra.mxu0 %v1433
        %1584 = vmatprep.subr.bf16.mxu0 0
        %1585 = vmatpush1.bf16.msra.mxu0 %v1434
        %1586 = vmatprep.subr.bf16.mxu0 0
        %1587 = vmatpush1.bf16.msra.mxu0 %v1435
        %1588 = vmatprep.subr.bf16.mxu0 0
        %1589 = vmatpush1.bf16.msra.mxu0 %v1436
        %1590 = vmatprep.subr.bf16.mxu0 0
        %1591 = vmatpush1.bf16.msra.mxu0 %v1437
        %1592 = vmatprep.subr.bf16.mxu0 0
        %1593 = vmatpush1.bf16.msra.mxu0 %v1438
        %1594 = vmatprep.subr.bf16.mxu0 0
        %1595 = vmatpush1.bf16.msra.mxu0 %v1439
        %1596 = vmatprep.subr.bf16.mxu0 0
        %1597 = vmatpush1.bf16.msra.mxu0 %v1440
        %1598 = vmatprep.subr.bf16.mxu0 0
        %1599 = vmatpush1.bf16.msra.mxu0 %v1441
        %1600 = vmatprep.subr.bf16.mxu0 0
        %1601 = vmatpush1.bf16.msra.mxu0 %v1442
        %1602 = vmatprep.subr.bf16.mxu0 0
        %1603 = vmatpush1.bf16.msra.mxu0 %v1443
        %1604 = vmatprep.mubr.bf16.mxu0 %v1069
        %1605 = vmatmul.mubr.bf16.gmra.mrb[0].mxu0 %v1068
        %v1606 = vpop.f32.mrb[0].mxu0
        %v1607 = vadd.f32 %v954, %v1606
        %v1608 = vpop.f32.mrb[0].mxu0
        %v1609 = vpop.f32.mrb[0].mxu0
        %v1610 = vadd.f32 %v954, %v1609
        %v1611 = vpop.f32.mrb[0].mxu0
        %1612 = vmatprep.mubr.bf16.mxu0 %v1078
        %1613 = vmatmul.mubr.bf16.gmra.mrb[0].mxu0 %v1077
        %v1614 = vpop.f32.mrb[0].mxu0
        %v1615 = vadd.f32 %v954, %v1614
        %v1616 = vpop.f32.mrb[0].mxu0
        %v1617 = vpop.f32.mrb[0].mxu0
        %v1618 = vadd.f32 %v954, %v1617
        %v1619 = vpop.f32.mrb[0].mxu0
        %1620 = vmatprep.mubr.bf16.mxu0 %v1087
        %1621 = vmatmul.mubr.bf16.gmra.mrb[0].mxu0 %v1086
        %v1622 = vpop.f32.mrb[0].mxu0
        %v1623 = vadd.f32 %v954, %v1622
        %v1624 = vpop.f32.mrb[0].mxu0
        %v1625 = vpop.f32.mrb[0].mxu0
        %v1626 = vadd.f32 %v954, %v1625
        %v1627 = vpop.f32.mrb[0].mxu0
        %1628 = vmatprep.mubr.bf16.mxu0 %v1096
        %1629 = vmatmul.mubr.bf16.gmra.mrb[0].mxu0 %v1095
        %v1630 = vpop.f32.mrb[0].mxu0
        %v1631 = vadd.f32 %v954, %v1630
        %v1632 = vpop.f32.mrb[0].mxu0
        %v1633 = vpop.f32.mrb[0].mxu0
        %v1634 = vadd.f32 %v954, %v1633
        %v1635 = vpop.f32.mrb[0].mxu0
        %1636 = vdwg.mxu0
        %1637 = vmatprep.subr.bf16.mxu0 0
        %1638 = vmatpush1.bf16.msra.mxu0 %v1444
        %1639 = vmatprep.subr.bf16.mxu0 0
        %1640 = vmatpush1.bf16.msra.mxu0 %v1445
        %1641 = vmatprep.subr.bf16.mxu0 0
        %1642 = vmatpush1.bf16.msra.mxu0 %v1446
        %1643 = vmatprep.subr.bf16.mxu0 0
        %1644 = vmatpush1.bf16.msra.mxu0 %v1447
        %1645 = vmatprep.subr.bf16.mxu0 0
        %1646 = vmatpush1.bf16.msra.mxu0 %v1448
        %1647 = vmatprep.subr.bf16.mxu0 0
        %1648 = vmatpush1.bf16.msra.mxu0 %v1449
        %1649 = vmatprep.subr.bf16.mxu0 0
        %1650 = vmatpush1.bf16.msra.mxu0 %v1450
        %1651 = vmatprep.subr.bf16.mxu0 0
        %1652 = vmatpush1.bf16.msra.mxu0 %v1451
        %1653 = vmatprep.subr.bf16.mxu0 0
        %1654 = vmatpush1.bf16.msra.mxu0 %v1452
        %1655 = vmatprep.subr.bf16.mxu0 0
        %1656 = vmatpush1.bf16.msra.mxu0 %v1453
        %1657 = vmatprep.subr.bf16.mxu0 0
        %1658 = vmatpush1.bf16.msra.mxu0 %v1454
        %1659 = vmatprep.subr.bf16.mxu0 0
        %1660 = vmatpush1.bf16.msra.mxu0 %v1455
        %1661 = vmatprep.subr.bf16.mxu0 0
        %1662 = vmatpush1.bf16.msra.mxu0 %v1456
        %1663 = vmatprep.subr.bf16.mxu0 0
        %1664 = vmatpush1.bf16.msra.mxu0 %v1457
        %1665 = vmatprep.subr.bf16.mxu0 0
        %1666 = vmatpush1.bf16.msra.mxu0 %v1458
        %1667 = vmatprep.subr.bf16.mxu0 0
        %1668 = vmatpush1.bf16.msra.mxu0 %v1459
        %1669 = vmatprep.mubr.bf16.mxu0 %v1071
        %1670 = vmatmul.mubr.bf16.gmra.mrb[0].mxu0 %v1070
        %v1671 = vpop.f32.mrb[0].mxu0
        %v1672 = vadd.f32 %v1607, %v1671
        %v1673 = vpop.f32.mrb[0].mxu0
        %v1674 = vpop.f32.mrb[0].mxu0
        %v1675 = vadd.f32 %v1610, %v1674
        %v1676 = vpop.f32.mrb[0].mxu0
        %1677 = vmatprep.mubr.bf16.mxu0 %v1080
        %1678 = vmatmul.mubr.bf16.gmra.mrb[0].mxu0 %v1079
        %v1679 = vpop.f32.mrb[0].mxu0
        %v1680 = vadd.f32 %v1615, %v1679
        %v1681 = vpop.f32.mrb[0].mxu0
        %v1682 = vpop.f32.mrb[0].mxu0
        %v1683 = vadd.f32 %v1618, %v1682
        %v1684 = vpop.f32.mrb[0].mxu0
        %1685 = vmatprep.mubr.bf16.mxu0 %v1089
        %1686 = vmatmul.mubr.bf16.gmra.mrb[0].mxu0 %v1088
        %v1687 = vpop.f32.mrb[0].mxu0
        %v1688 = vadd.f32 %v1623, %v1687
        %v1689 = vpop.f32.mrb[0].mxu0
        %v1690 = vpop.f32.mrb[0].mxu0
        %v1691 = vadd.f32 %v1626, %v1690
        %v1692 = vpop.f32.mrb[0].mxu0
        %1693 = vmatprep.mubr.bf16.mxu0 %v1098
        %1694 = vmatmul.mubr.bf16.gmra.mrb[0].mxu0 %v1097
        %v1695 = vpop.f32.mrb[0].mxu0
        %v1696 = vadd.f32 %v1631, %v1695
        %v1697 = vpop.f32.mrb[0].mxu0
        %v1698 = vpop.f32.mrb[0].mxu0
        %v1699 = vadd.f32 %v1634, %v1698
        %v1700 = vpop.f32.mrb[0].mxu0
        %1701 = vdwg.mxu0
        %1702 = vmatprep.subr.bf16.mxu0 0
        %1703 = vmatpush1.bf16.msra.mxu0 %v1460
        %1704 = vmatprep.subr.bf16.mxu0 0
        %1705 = vmatpush1.bf16.msra.mxu0 %v1461
        %1706 = vmatprep.subr.bf16.mxu0 0
        %1707 = vmatpush1.bf16.msra.mxu0 %v1462
        %1708 = vmatprep.subr.bf16.mxu0 0
        %1709 = vmatpush1.bf16.msra.mxu0 %v1463
        %1710 = vmatprep.subr.bf16.mxu0 0
        %1711 = vmatpush1.bf16.msra.mxu0 %v1464
        %1712 = vmatprep.subr.bf16.mxu0 0
        %1713 = vmatpush1.bf16.msra.mxu0 %v1465
        %1714 = vmatprep.subr.bf16.mxu0 0
        %1715 = vmatpush1.bf16.msra.mxu0 %v1466
        %1716 = vmatprep.subr.bf16.mxu0 0
        %1717 = vmatpush1.bf16.msra.mxu0 %v1467
        %1718 = vmatprep.subr.bf16.mxu0 0
        %1719 = vmatpush1.bf16.msra.mxu0 %v1468
        %1720 = vmatprep.subr.bf16.mxu0 0
        %1721 = vmatpush1.bf16.msra.mxu0 %v1469
        %1722 = vmatprep.subr.bf16.mxu0 0
        %1723 = vmatpush1.bf16.msra.mxu0 %v1470
        %1724 = vmatprep.subr.bf16.mxu0 0
        %1725 = vmatpush1.bf16.msra.mxu0 %v1471
        %1726 = vmatprep.subr.bf16.mxu0 0
        %1727 = vmatpush1.bf16.msra.mxu0 %v1472
        %1728 = vmatprep.subr.bf16.mxu0 0
        %1729 = vmatpush1.bf16.msra.mxu0 %v1473
        %1730 = vmatprep.subr.bf16.mxu0 0
        %1731 = vmatpush1.bf16.msra.mxu0 %v1474
        %1732 = vmatprep.subr.bf16.mxu0 0
        %1733 = vmatpush1.bf16.msra.mxu0 %v1475
        %1734 = vmatprep.mubr.bf16.mxu0 %v1073
        %1735 = vmatmul.mubr.bf16.gmra.mrb[0].mxu0 %v1072
        %v1736 = vpop.f32.mrb[0].mxu0
        %v1737 = vadd.f32 %v1672, %v1736
        %v1738 = vpop.f32.mrb[0].mxu0
        %v1739 = vpop.f32.mrb[0].mxu0
        %v1740 = vadd.f32 %v1675, %v1739
        %v1741 = vpop.f32.mrb[0].mxu0
        %1742 = vmatprep.mubr.bf16.mxu0 %v1082
        %1743 = vmatmul.mubr.bf16.gmra.mrb[0].mxu0 %v1081
        %v1744 = vpop.f32.mrb[0].mxu0
        %v1745 = vadd.f32 %v1680, %v1744
        %v1746 = vpop.f32.mrb[0].mxu0
        %v1747 = vpop.f32.mrb[0].mxu0
        %v1748 = vadd.f32 %v1683, %v1747
        %v1749 = vpop.f32.mrb[0].mxu0
        %1750 = vmatprep.mubr.bf16.mxu0 %v1091
        %1751 = vmatmul.mubr.bf16.gmra.mrb[0].mxu0 %v1090
        %v1752 = vpop.f32.mrb[0].mxu0
        %v1753 = vadd.f32 %v1688, %v1752
        %v1754 = vpop.f32.mrb[0].mxu0
        %v1755 = vpop.f32.mrb[0].mxu0
        %v1756 = vadd.f32 %v1691, %v1755
        %v1757 = vpop.f32.mrb[0].mxu0
        %1758 = vmatprep.mubr.bf16.mxu0 %v1100
        %1759 = vmatmul.mubr.bf16.gmra.mrb[0].mxu0 %v1099
        %v1760 = vpop.f32.mrb[0].mxu0
        %v1761 = vadd.f32 %v1696, %v1760
        %v1762 = vpop.f32.mrb[0].mxu0
        %v1763 = vpop.f32.mrb[0].mxu0
        %v1764 = vadd.f32 %v1699, %v1763
        %v1765 = vpop.f32.mrb[0].mxu0
        %1766 = vdwg.mxu0
        %1767 = vmatprep.subr.bf16.mxu0 0
        %1768 = vmatpush1.bf16.msra.mxu0 %v1476
        %1769 = vmatprep.subr.bf16.mxu0 0
        %1770 = vmatpush1.bf16.msra.mxu0 %v1477
        %1771 = vmatprep.subr.bf16.mxu0 0
        %1772 = vmatpush1.bf16.msra.mxu0 %v1478
        %1773 = vmatprep.subr.bf16.mxu0 0
        %1774 = vmatpush1.bf16.msra.mxu0 %v1479
        %1775 = vmatprep.subr.bf16.mxu0 0
        %1776 = vmatpush1.bf16.msra.mxu0 %v1480
        %1777 = vmatprep.subr.bf16.mxu0 0
        %1778 = vmatpush1.bf16.msra.mxu0 %v1481
        %1779 = vmatprep.subr.bf16.mxu0 0
        %1780 = vmatpush1.bf16.msra.mxu0 %v1482
        %1781 = vmatprep.subr.bf16.mxu0 0
        %1782 = vmatpush1.bf16.msra.mxu0 %v1483
        %1783 = vmatprep.subr.bf16.mxu0 0
        %1784 = vmatpush1.bf16.msra.mxu0 %v1484
        %1785 = vmatprep.subr.bf16.mxu0 0
        %1786 = vmatpush1.bf16.msra.mxu0 %v1485
        %1787 = vmatprep.subr.bf16.mxu0 0
        %1788 = vmatpush1.bf16.msra.mxu0 %v1486
        %1789 = vmatprep.subr.bf16.mxu0 0
        %1790 = vmatpush1.bf16.msra.mxu0 %v1487
        %1791 = vmatprep.subr.bf16.mxu0 0
        %1792 = vmatpush1.bf16.msra.mxu0 %v1488
        %1793 = vmatprep.subr.bf16.mxu0 0
        %1794 = vmatpush1.bf16.msra.mxu0 %v1489
        %1795 = vmatprep.subr.bf16.mxu0 0
        %1796 = vmatpush1.bf16.msra.mxu0 %v1490
        %1797 = vmatprep.subr.bf16.mxu0 0
        %1798 = vmatpush1.bf16.msra.mxu0 %v1491
        %1799 = vmatprep.mubr.bf16.mxu0 %v1075
        %1800 = vmatmul.mubr.bf16.gmra.mrb[0].mxu0 %v1074
        %v1801 = vpop.f32.mrb[0].mxu0
        %v1802 = vadd.f32 %v1737, %v1801
        %v1803 = vpop.f32.mrb[0].mxu0
        %v1804 = vpop.f32.mrb[0].mxu0
        %v1805 = vadd.f32 %v1740, %v1804
        %v1806 = vpop.f32.mrb[0].mxu0
        %1807 = vmatprep.mubr.bf16.mxu0 %v1084
        %1808 = vmatmul.mubr.bf16.gmra.mrb[0].mxu0 %v1083
        %v1809 = vpop.f32.mrb[0].mxu0
        %v1810 = vadd.f32 %v1745, %v1809
        %v1811 = vpop.f32.mrb[0].mxu0
        %v1812 = vpop.f32.mrb[0].mxu0
        %v1813 = vadd.f32 %v1748, %v1812
        %v1814 = vpop.f32.mrb[0].mxu0
        %1815 = vmatprep.mubr.bf16.mxu0 %v1093
        %1816 = vmatmul.mubr.bf16.gmra.mrb[0].mxu0 %v1092
        %v1817 = vpop.f32.mrb[0].mxu0
        %v1818 = vadd.f32 %v1753, %v1817
        %v1819 = vpop.f32.mrb[0].mxu0
        %v1820 = vpop.f32.mrb[0].mxu0
        %v1821 = vadd.f32 %v1756, %v1820
        %v1822 = vpop.f32.mrb[0].mxu0
        %1823 = vmatprep.mubr.bf16.mxu0 %v1102
        %1824 = vmatmul.mubr.bf16.gmra.mrb[0].mxu0 %v1101
        %v1825 = vpop.f32.mrb[0].mxu0
        %v1826 = vadd.f32 %v1761, %v1825
        %v1827 = vpop.f32.mrb[0].mxu0
        %v1828 = vpop.f32.mrb[0].mxu0
        %v1829 = vadd.f32 %v1764, %v1828
        %v1830 = vpop.f32.mrb[0].mxu0
        %1831 = vdwg.mxu0
        %1832 = vmatprep.subr.bf16.mxu0 0
        %1833 = vmatpush1.bf16.msra.mxu0 %v1492
        %1834 = vmatprep.subr.bf16.mxu0 0
        %1835 = vmatpush1.bf16.msra.mxu0 %v1493
        %1836 = vmatprep.subr.bf16.mxu0 0
        %1837 = vmatpush1.bf16.msra.mxu0 %v1494
        %1838 = vmatprep.subr.bf16.mxu0 0
        %1839 = vmatpush1.bf16.msra.mxu0 %v1495
        %1840 = vmatprep.subr.bf16.mxu0 0
        %1841 = vmatpush1.bf16.msra.mxu0 %v1496
        %1842 = vmatprep.subr.bf16.mxu0 0
        %1843 = vmatpush1.bf16.msra.mxu0 %v1497
        %1844 = vmatprep.subr.bf16.mxu0 0
        %1845 = vmatpush1.bf16.msra.mxu0 %v1498
        %1846 = vmatprep.subr.bf16.mxu0 0
        %1847 = vmatpush1.bf16.msra.mxu0 %v1499
        %1848 = vmatprep.subr.bf16.mxu0 0
        %1849 = vmatpush1.bf16.msra.mxu0 0
        %1850 = vmatprep.subr.bf16.mxu0 0
        %1851 = vmatpush1.bf16.msra.mxu0 0
        %1852 = vmatprep.subr.bf16.mxu0 0
        %1853 = vmatpush1.bf16.msra.mxu0 0
        %1854 = vmatprep.subr.bf16.mxu0 0
        %1855 = vmatpush1.bf16.msra.mxu0 0
        %1856 = vmatprep.subr.bf16.mxu0 0
        %1857 = vmatpush1.bf16.msra.mxu0 0
        %1858 = vmatprep.subr.bf16.mxu0 0
        %1859 = vmatpush1.bf16.msra.mxu0 0
        %1860 = vmatprep.subr.bf16.mxu0 0
        %1861 = vmatpush1.bf16.msra.mxu0 0
        %1862 = vmatprep.subr.bf16.mxu0 0
        %1863 = vmatpush1.bf16.msra.mxu0 0
        %1864 = vmatprep.mubr.bf16.mxu0 0
        %1865 = vmatmul.mubr.bf16.gmra.mrb[0].mxu0 %v1076
        %v1866 = vpop.f32.mrb[0].mxu0
        %v1867 = vadd.f32 %v1802, %v1866
        %v1868 = vpop.f32.mrb[0].mxu0
        %v1869 = vpop.f32.mrb[0].mxu0
        %v1870 = vadd.f32 %v1805, %v1869
        %v1871 = vpop.f32.mrb[0].mxu0
        %1872 = vmatprep.mubr.bf16.mxu0 0
        %1873 = vmatmul.mubr.bf16.gmra.mrb[0].mxu0 %v1085
        %v1874 = vpop.f32.mrb[0].mxu0
        %v1875 = vadd.f32 %v1810, %v1874
        %v1876 = vpop.f32.mrb[0].mxu0
        %v1877 = vpop.f32.mrb[0].mxu0
        %v1878 = vadd.f32 %v1813, %v1877
        %v1879 = vpop.f32.mrb[0].mxu0
        %1880 = vmatprep.mubr.bf16.mxu0 0
        %1881 = vmatmul.mubr.bf16.gmra.mrb[0].mxu0 %v1094
        %v1882 = vpop.f32.mrb[0].mxu0
        %v1883 = vadd.f32 %v1818, %v1882
        %v1884 = vpop.f32.mrb[0].mxu0
        %v1885 = vpop.f32.mrb[0].mxu0
        %v1886 = vadd.f32 %v1821, %v1885
        %v1887 = vpop.f32.mrb[0].mxu0
        %1888 = vmatprep.mubr.bf16.mxu0 0
        %1889 = vmatmul.mubr.bf16.gmra.mrb[0].mxu0 %v1103
        %v1890 = vpop.f32.mrb[0].mxu0
        %v1891 = vadd.f32 %v1826, %v1890
        %v1892 = vpop.f32.mrb[0].mxu0
        %v1893 = vpop.f32.mrb[0].mxu0
        %v1894 = vadd.f32 %v1829, %v1893
        %v1895 = vpop.f32.mrb[0].mxu0
        %1896 = vdwg.mxu0
        %v1897 = vmax.f32 %v1867, 0.0
        %v1898 = vmax.f32 %v1870, 0.0
        %v1899 = vmax.f32 %v1875, 0.0
        %v1900 = vmax.f32 %v1878, 0.0
        %v1901 = vmax.f32 %v1883, 0.0
        %v1902 = vmax.f32 %v1886, 0.0
        %v1903 = vmax.f32 %v1891, 0.0
        %v1904 = vmax.f32 %v1894, 0.0
        %v1905 = vpack.c.bf16 %v1897, %v1897
        %v1906 = vpack.c.bf16 %v1898, %v1898
        %v1907 = vpack.c.bf16 %v1899, %v1899
        %v1908 = vpack.c.bf16 %v1900, %v1900
        %v1909 = vpack.c.bf16 %v1901, %v1901
        %v1910 = vpack.c.bf16 %v1902, %v1902
        %v1911 = vpack.c.bf16 %v1903, %v1903
        %v1912 = vpack.c.bf16 %v1904, %v1904
        %1913 = vst [vmem:[#allocation2] sm:$0xf] 0
        %v1914 = vld [vmem:[#allocation2] sm:$0x1]
        %v1915 = vsel %vm347, 0, %v1914
        %1916 = vst [vmem:[#allocation2] sm:$0x1] %v1915
        %v1917 = vld [vmem:[#allocation2 + $0x24] sm:$0x1]
        %v1918 = vsel %vm347, 0, %v1917
        %1919 = vst [vmem:[#allocation2 + $0x24] sm:$0x1] %v1918
        %v1920 = vld [vmem:[#allocation2 + $0x48] sm:$0x1]
        %v1921 = vsel %vm347, 0, %v1920
        %1922 = vst [vmem:[#allocation2 + $0x48] sm:$0x1] %v1921
        %v1923 = vld [vmem:[#allocation2 + $0x6c] sm:$0x1]
        %v1924 = vsel %vm347, 0, %v1923
        %1925 = vst [vmem:[#allocation2 + $0x6c] sm:$0x1] %v1924
        %v1926 = vld [vmem:[#allocation2 + $0x90] sm:$0x1]
        %v1927 = vsel %vm347, 0, %v1926
        %1928 = vst [vmem:[#allocation2 + $0x90] sm:$0x1] %v1927
        %v1929 = vld [vmem:[#allocation2 + $0xb4] sm:$0x1]
        %v1930 = vsel %vm347, 0, %v1929
        %1931 = vst [vmem:[#allocation2 + $0xb4] sm:$0x1] %v1930
        %v1932 = vld [vmem:[#allocation2 + $0xd8] sm:$0x1]
        %v1933 = vsel %vm347, 0, %v1932
        %1934 = vst [vmem:[#allocation2 + $0xd8] sm:$0x1] %v1933
        %v1935 = vld [vmem:[#allocation2 + $0xfc] sm:$0x1]
        %v1936 = vsel %vm347, 0, %v1935
        %1937 = vst [vmem:[#allocation2 + $0xfc] sm:$0x1] %v1936
        %v1945 = vunpack.c.l.b16 %v1905
        %v1946 = vunpack.c.l.b16 %v1906
        %v1947 = vunpack.c.l.b16 %v1907
        %v1948 = vunpack.c.l.b16 %v1908
        %v1949 = vunpack.c.l.b16 %v1909
        %v1950 = vunpack.c.l.b16 %v1910
        %v1951 = vunpack.c.l.b16 %v1911
        %v1952 = vpack.c.b16 %v1945, %v1945
        %v1953 = vpack.c.b16 %v1946, %v1946
        %v1954 = vpack.c.b16 %v1947, %v1947
        %v1955 = vpack.c.b16 %v1948, %v1948
        %v1956 = vpack.c.b16 %v1949, %v1949
        %v1957 = vpack.c.b16 %v1950, %v1950
        %v1958 = vpack.c.b16 %v1951, %v1951
        %v1960 = vshrl.u32 %v1952, 16
        %v1962 = vrot.slane %v1960, 7
        %v1963 = vshll.u32 %v1952, 16
        %v1965 = vor.u32 %v1962, %v1963
        %v1967 = vshrl.u32 %v1953, 16
        %v1969 = vrot.slane %v1967, 7
        %v1970 = vshll.u32 %v1953, 16
        %v1972 = vor.u32 %v1969, %v1970
        %v1974 = vshrl.u32 %v1954, 16
        %v1976 = vrot.slane %v1974, 7
        %v1977 = vshll.u32 %v1954, 16
        %v1979 = vor.u32 %v1976, %v1977
        %v1981 = vshrl.u32 %v1955, 16
        %v1983 = vrot.slane %v1981, 7
        %v1984 = vshll.u32 %v1955, 16
        %v1986 = vor.u32 %v1983, %v1984
        %v1988 = vshrl.u32 %v1956, 16
        %v1990 = vrot.slane %v1988, 7
        %v1991 = vshll.u32 %v1956, 16
        %v1993 = vor.u32 %v1990, %v1991
        %v1995 = vshrl.u32 %v1957, 16
        %v1997 = vrot.slane %v1995, 7
        %v1998 = vshll.u32 %v1957, 16
        %v2000 = vor.u32 %v1997, %v1998
        %v2002 = vshrl.u32 %v1958, 16
        %v2004 = vrot.slane %v2002, 7
        %v2005 = vshll.u32 %v1958, 16
        %v2007 = vor.u32 %v2004, %v2005
        %v2015 = vld [vmem:[%s428] sm:$0xf]
        %v2016 = vsel %vm431, %v1965, %v2015
        %2017 = vst [vmem:[%s428] sm:$0xf] %v2016
        %v2018 = vld [vmem:[%s428 + $0x24] sm:$0xf]
        %v2019 = vsel %vm431, %v1972, %v2018
        %2020 = vst [vmem:[%s428 + $0x24] sm:$0xf] %v2019
        %v2021 = vld [vmem:[%s428 + $0x48] sm:$0xf]
        %v2022 = vsel %vm431, %v1979, %v2021
        %2023 = vst [vmem:[%s428 + $0x48] sm:$0xf] %v2022
        %v2024 = vld [vmem:[%s428 + $0x6c] sm:$0xf]
        %v2025 = vsel %vm431, %v1986, %v2024
        %2026 = vst [vmem:[%s428 + $0x6c] sm:$0xf] %v2025
        %v2027 = vld [vmem:[%s428 + $0x90] sm:$0xf]
        %v2028 = vsel %vm431, %v1993, %v2027
        %2029 = vst [vmem:[%s428 + $0x90] sm:$0xf] %v2028
        %v2030 = vld [vmem:[%s428 + $0xb4] sm:$0xf]
        %v2031 = vsel %vm431, %v2000, %v2030
        %2032 = vst [vmem:[%s428 + $0xb4] sm:$0xf] %v2031
        %v2033 = vld [vmem:[%s428 + $0xd8] sm:$0xf]
        %v2034 = vsel %vm431, %v2007, %v2033
        %2035 = vst [vmem:[%s428 + $0xd8] sm:$0xf] %v2034
        %2036 = vst [vmem:[#allocation2 + $0x4] sm:$0xf] 0
        %2037 = vst [vmem:[%s428 + $0x4] sm:$0xf] %v1905
        %2038 = vst [vmem:[%s428 + $0x28] sm:$0xf] %v1906
        %2039 = vst [vmem:[%s428 + $0x4c] sm:$0xf] %v1907
        %2040 = vst [vmem:[%s428 + $0x70] sm:$0xf] %v1908
        %2041 = vst [vmem:[%s428 + $0x94] sm:$0xf] %v1909
        %2042 = vst [vmem:[%s428 + $0xb8] sm:$0xf] %v1910
        %2043 = vst [vmem:[%s428 + $0xdc] sm:$0xf] %v1911
        %2044 = vst [vmem:[#allocation2 + $0x8] sm:$0xf] 0
        %v2045 = vld [vmem:[#allocation2 + $0x8] sm:$0x8]
        %v2046 = vsel %vm464, 0, %v2045
        %2047 = vst [vmem:[#allocation2 + $0x8] sm:$0x8] %v2046
        %v2048 = vld [vmem:[#allocation2 + $0x2c] sm:$0x8]
        %v2049 = vsel %vm464, 0, %v2048
        %2050 = vst [vmem:[#allocation2 + $0x2c] sm:$0x8] %v2049
        %v2051 = vld [vmem:[#allocation2 + $0x50] sm:$0x8]
        %v2052 = vsel %vm464, 0, %v2051
        %2053 = vst [vmem:[#allocation2 + $0x50] sm:$0x8] %v2052
        %v2054 = vld [vmem:[#allocation2 + $0x74] sm:$0x8]
        %v2055 = vsel %vm464, 0, %v2054
        %2056 = vst [vmem:[#allocation2 + $0x74] sm:$0x8] %v2055
        %v2057 = vld [vmem:[#allocation2 + $0x98] sm:$0x8]
        %v2058 = vsel %vm464, 0, %v2057
        %2059 = vst [vmem:[#allocation2 + $0x98] sm:$0x8] %v2058
        %v2060 = vld [vmem:[#allocation2 + $0xbc] sm:$0x8]
        %v2061 = vsel %vm464, 0, %v2060
        %2062 = vst [vmem:[#allocation2 + $0xbc] sm:$0x8] %v2061
        %v2063 = vld [vmem:[#allocation2 + $0xe0] sm:$0x8]
        %v2064 = vsel %vm464, 0, %v2063
        %2065 = vst [vmem:[#allocation2 + $0xe0] sm:$0x8] %v2064
        %v2066 = vld [vmem:[#allocation2 + $0x104] sm:$0x8]
        %v2067 = vsel %vm464, 0, %v2066
        %2068 = vst [vmem:[#allocation2 + $0x104] sm:$0x8] %v2067
        %v2069 = vrot.slane %v1960, 4
        %v2070 = vrot.slane %v1963, 5
        %v2071 = vor.u32 %v2069, %v2070
        %v2072 = vrot.slane %v2071, 4
        %v2073 = vrot.slane %v1967, 4
        %v2074 = vrot.slane %v1970, 5
        %v2075 = vor.u32 %v2073, %v2074
        %v2076 = vrot.slane %v2075, 4
        %v2077 = vrot.slane %v1974, 4
        %v2078 = vrot.slane %v1977, 5
        %v2079 = vor.u32 %v2077, %v2078
        %v2080 = vrot.slane %v2079, 4
        %v2081 = vrot.slane %v1981, 4
        %v2082 = vrot.slane %v1984, 5
        %v2083 = vor.u32 %v2081, %v2082
        %v2084 = vrot.slane %v2083, 4
        %v2085 = vrot.slane %v1988, 4
        %v2086 = vrot.slane %v1991, 5
        %v2087 = vor.u32 %v2085, %v2086
        %v2088 = vrot.slane %v2087, 4
        %v2089 = vrot.slane %v1995, 4
        %v2090 = vrot.slane %v1998, 5
        %v2091 = vor.u32 %v2089, %v2090
        %v2092 = vrot.slane %v2091, 4
        %v2093 = vrot.slane %v2002, 4
        %v2094 = vrot.slane %v2005, 5
        %v2095 = vor.u32 %v2093, %v2094
        %v2096 = vrot.slane %v2095, 4
        %v2104 = vld [vmem:[%s428 + $0x8] sm:$0xf]
        %v2105 = vsel %vm525, %v2072, %v2104
        %2106 = vst [vmem:[%s428 + $0x8] sm:$0xf] %v2105
        %v2107 = vld [vmem:[%s428 + $0x2c] sm:$0xf]
        %v2108 = vsel %vm525, %v2076, %v2107
        %2109 = vst [vmem:[%s428 + $0x2c] sm:$0xf] %v2108
        %v2110 = vld [vmem:[%s428 + $0x50] sm:$0xf]
        %v2111 = vsel %vm525, %v2080, %v2110
        %2112 = vst [vmem:[%s428 + $0x50] sm:$0xf] %v2111
        %v2113 = vld [vmem:[%s428 + $0x74] sm:$0xf]
        %v2114 = vsel %vm525, %v2084, %v2113
        %2115 = vst [vmem:[%s428 + $0x74] sm:$0xf] %v2114
        %v2116 = vld [vmem:[%s428 + $0x98] sm:$0xf]
        %v2117 = vsel %vm525, %v2088, %v2116
        %2118 = vst [vmem:[%s428 + $0x98] sm:$0xf] %v2117
        %v2119 = vld [vmem:[%s428 + $0xbc] sm:$0xf]
        %v2120 = vsel %vm525, %v2092, %v2119
        %2121 = vst [vmem:[%s428 + $0xbc] sm:$0xf] %v2120
        %v2122 = vld [vmem:[%s428 + $0xe0] sm:$0xf]
        %v2123 = vsel %vm525, %v2096, %v2122
        %2124 = vst [vmem:[%s428 + $0xe0] sm:$0xf] %v2123
        %v2125 = vld [vmem:[#allocation2 + $0xc] sm:$0x1]
        %v2126 = vsel %vm347, 0, %v2125
        %2127 = vst [vmem:[#allocation2 + $0xc] sm:$0x1] %v2126
        %v2128 = vld [vmem:[#allocation2 + $0x30] sm:$0x1]
        %v2129 = vsel %vm347, 0, %v2128
        %2130 = vst [vmem:[#allocation2 + $0x30] sm:$0x1] %v2129
        %v2131 = vld [vmem:[#allocation2 + $0x54] sm:$0x1]
        %v2132 = vsel %vm347, 0, %v2131
        %2133 = vst [vmem:[#allocation2 + $0x54] sm:$0x1] %v2132
        %v2134 = vld [vmem:[#allocation2 + $0x78] sm:$0x1]
        %v2135 = vsel %vm347, 0, %v2134
        %2136 = vst [vmem:[#allocation2 + $0x78] sm:$0x1] %v2135
        %v2137 = vld [vmem:[#allocation2 + $0x9c] sm:$0x1]
        %v2138 = vsel %vm347, 0, %v2137
        %2139 = vst [vmem:[#allocation2 + $0x9c] sm:$0x1] %v2138
        %v2140 = vld [vmem:[#allocation2 + $0xc0] sm:$0x1]
        %v2141 = vsel %vm347, 0, %v2140
        %2142 = vst [vmem:[#allocation2 + $0xc0] sm:$0x1] %v2141
        %v2143 = vld [vmem:[#allocation2 + $0xe4] sm:$0x1]
        %v2144 = vsel %vm347, 0, %v2143
        %2145 = vst [vmem:[#allocation2 + $0xe4] sm:$0x1] %v2144
        %v2146 = vld [vmem:[#allocation2 + $0x108] sm:$0x1]
        %v2147 = vsel %vm347, 0, %v2146
        %2148 = vst [vmem:[#allocation2 + $0x108] sm:$0x1] %v2147
        %v2150 = vunpack.c.l.b16 %v1912
        %v2151 = vpack.c.b16 %v2150, %v2150
        %v2153 = vshrl.u32 %v2151, 16
        %v2155 = vrot.slane %v2153, 7
        %v2156 = vshll.u32 %v2151, 16
        %v2158 = vor.u32 %v2155, %v2156
        %v2160 = vld [vmem:[#allocation2 + $0xc] sm:$0xf]
        %v2161 = vsel %vm431, %v1965, %v2160
        %2162 = vst [vmem:[#allocation2 + $0xc] sm:$0xf] %v2161
        %v2163 = vld [vmem:[#allocation2 + $0x30] sm:$0xf]
        %v2164 = vsel %vm431, %v1972, %v2163
        %2165 = vst [vmem:[#allocation2 + $0x30] sm:$0xf] %v2164
        %v2166 = vld [vmem:[#allocation2 + $0x54] sm:$0xf]
        %v2167 = vsel %vm431, %v1979, %v2166
        %2168 = vst [vmem:[#allocation2 + $0x54] sm:$0xf] %v2167
        %v2169 = vld [vmem:[#allocation2 + $0x78] sm:$0xf]
        %v2170 = vsel %vm431, %v1986, %v2169
        %2171 = vst [vmem:[#allocation2 + $0x78] sm:$0xf] %v2170
        %v2172 = vld [vmem:[#allocation2 + $0x9c] sm:$0xf]
        %v2173 = vsel %vm431, %v1993, %v2172
        %2174 = vst [vmem:[#allocation2 + $0x9c] sm:$0xf] %v2173
        %v2175 = vld [vmem:[#allocation2 + $0xc0] sm:$0xf]
        %v2176 = vsel %vm431, %v2000, %v2175
        %2177 = vst [vmem:[#allocation2 + $0xc0] sm:$0xf] %v2176
        %v2178 = vld [vmem:[#allocation2 + $0xe4] sm:$0xf]
        %v2179 = vsel %vm431, %v2007, %v2178
        %2180 = vst [vmem:[#allocation2 + $0xe4] sm:$0xf] %v2179
        %v2181 = vld [vmem:[#allocation2 + $0x108] sm:$0xf]
        %v2182 = vsel %vm431, %v2158, %v2181
        %2183 = vst [vmem:[#allocation2 + $0x108] sm:$0xf] %v2182
        %2184 = vst [vmem:[#allocation2 + $0x10] sm:$0xf] %v1905
        %2185 = vst [vmem:[#allocation2 + $0x34] sm:$0xf] %v1906
        %2186 = vst [vmem:[#allocation2 + $0x58] sm:$0xf] %v1907
        %2187 = vst [vmem:[#allocation2 + $0x7c] sm:$0xf] %v1908
        %2188 = vst [vmem:[#allocation2 + $0xa0] sm:$0xf] %v1909
        %2189 = vst [vmem:[#allocation2 + $0xc4] sm:$0xf] %v1910
        %2190 = vst [vmem:[#allocation2 + $0xe8] sm:$0xf] %v1911
        %2191 = vst [vmem:[#allocation2 + $0x10c] sm:$0xf] %v1912
        %v2192 = vld [vmem:[#allocation2 + $0x14] sm:$0x8]
        %v2193 = vsel %vm464, 0, %v2192
        %2194 = vst [vmem:[#allocation2 + $0x14] sm:$0x8] %v2193
        %v2195 = vld [vmem:[#allocation2 + $0x38] sm:$0x8]
        %v2196 = vsel %vm464, 0, %v2195
        %2197 = vst [vmem:[#allocation2 + $0x38] sm:$0x8] %v2196
        %v2198 = vld [vmem:[#allocation2 + $0x5c] sm:$0x8]
        %v2199 = vsel %vm464, 0, %v2198
        %2200 = vst [vmem:[#allocation2 + $0x5c] sm:$0x8] %v2199
        %v2201 = vld [vmem:[#allocation2 + $0x80] sm:$0x8]
        %v2202 = vsel %vm464, 0, %v2201
        %2203 = vst [vmem:[#allocation2 + $0x80] sm:$0x8] %v2202
        %v2204 = vld [vmem:[#allocation2 + $0xa4] sm:$0x8]
        %v2205 = vsel %vm464, 0, %v2204
        %2206 = vst [vmem:[#allocation2 + $0xa4] sm:$0x8] %v2205
        %v2207 = vld [vmem:[#allocation2 + $0xc8] sm:$0x8]
        %v2208 = vsel %vm464, 0, %v2207
        %2209 = vst [vmem:[#allocation2 + $0xc8] sm:$0x8] %v2208
        %v2210 = vld [vmem:[#allocation2 + $0xec] sm:$0x8]
        %v2211 = vsel %vm464, 0, %v2210
        %2212 = vst [vmem:[#allocation2 + $0xec] sm:$0x8] %v2211
        %v2213 = vld [vmem:[#allocation2 + $0x110] sm:$0x8]
        %v2214 = vsel %vm464, 0, %v2213
        %2215 = vst [vmem:[#allocation2 + $0x110] sm:$0x8] %v2214
        %v2216 = vrot.slane %v2153, 4
        %v2217 = vrot.slane %v2156, 5
        %v2218 = vor.u32 %v2216, %v2217
        %v2219 = vrot.slane %v2218, 4
        %v2221 = vld [vmem:[#allocation2 + $0x14] sm:$0xf]
        %v2222 = vsel %vm525, %v2072, %v2221
        %2223 = vst [vmem:[#allocation2 + $0x14] sm:$0xf] %v2222
        %v2224 = vld [vmem:[#allocation2 + $0x38] sm:$0xf]
        %v2225 = vsel %vm525, %v2076, %v2224
        %2226 = vst [vmem:[#allocation2 + $0x38] sm:$0xf] %v2225
        %v2227 = vld [vmem:[#allocation2 + $0x5c] sm:$0xf]
        %v2228 = vsel %vm525, %v2080, %v2227
        %2229 = vst [vmem:[#allocation2 + $0x5c] sm:$0xf] %v2228
        %v2230 = vld [vmem:[#allocation2 + $0x80] sm:$0xf]
        %v2231 = vsel %vm525, %v2084, %v2230
        %2232 = vst [vmem:[#allocation2 + $0x80] sm:$0xf] %v2231
        %v2233 = vld [vmem:[#allocation2 + $0xa4] sm:$0xf]
        %v2234 = vsel %vm525, %v2088, %v2233
        %2235 = vst [vmem:[#allocation2 + $0xa4] sm:$0xf] %v2234
        %v2236 = vld [vmem:[#allocation2 + $0xc8] sm:$0xf]
        %v2237 = vsel %vm525, %v2092, %v2236
        %2238 = vst [vmem:[#allocation2 + $0xc8] sm:$0xf] %v2237
        %v2239 = vld [vmem:[#allocation2 + $0xec] sm:$0xf]
        %v2240 = vsel %vm525, %v2096, %v2239
        %2241 = vst [vmem:[#allocation2 + $0xec] sm:$0xf] %v2240
        %v2242 = vld [vmem:[#allocation2 + $0x110] sm:$0xf]
        %v2243 = vsel %vm525, %v2219, %v2242
        %2244 = vst [vmem:[#allocation2 + $0x110] sm:$0xf] %v2243
        %2245 = vst [vmem:[%s664 + $0x18] sm:$0xf] 0
        %v2246 = vld [vmem:[#allocation2 + $0x18] sm:$0x1]
        %v2247 = vsel %vm347, 0, %v2246
        %2248 = vst [vmem:[#allocation2 + $0x18] sm:$0x1] %v2247
        %v2249 = vld [vmem:[#allocation2 + $0x3c] sm:$0x1]
        %v2250 = vsel %vm347, 0, %v2249
        %2251 = vst [vmem:[#allocation2 + $0x3c] sm:$0x1] %v2250
        %v2252 = vld [vmem:[#allocation2 + $0x60] sm:$0x1]
        %v2253 = vsel %vm347, 0, %v2252
        %2254 = vst [vmem:[#allocation2 + $0x60] sm:$0x1] %v2253
        %v2255 = vld [vmem:[#allocation2 + $0x84] sm:$0x1]
        %v2256 = vsel %vm347, 0, %v2255
        %2257 = vst [vmem:[#allocation2 + $0x84] sm:$0x1] %v2256
        %v2258 = vld [vmem:[#allocation2 + $0xa8] sm:$0x1]
        %v2259 = vsel %vm347, 0, %v2258
        %2260 = vst [vmem:[#allocation2 + $0xa8] sm:$0x1] %v2259
        %v2261 = vld [vmem:[#allocation2 + $0xcc] sm:$0x1]
        %v2262 = vsel %vm347, 0, %v2261
        %2263 = vst [vmem:[#allocation2 + $0xcc] sm:$0x1] %v2262
        %v2264 = vld [vmem:[#allocation2 + $0xf0] sm:$0x1]
        %v2265 = vsel %vm347, 0, %v2264
        %2266 = vst [vmem:[#allocation2 + $0xf0] sm:$0x1] %v2265
        %v2267 = vld [vmem:[#allocation2 + $0x114] sm:$0x1]
        %v2268 = vsel %vm347, 0, %v2267
        %2269 = vst [vmem:[#allocation2 + $0x114] sm:$0x1] %v2268
        %v2270 = vld [vmem:[#allocation2 + $0x18] sm:$0xf]
        %v2271 = vsel %vm431, %v1972, %v2270
        %2272 = vst [vmem:[#allocation2 + $0x18] sm:$0xf] %v2271
        %v2273 = vld [vmem:[#allocation2 + $0x3c] sm:$0xf]
        %v2274 = vsel %vm431, %v1979, %v2273
        %2275 = vst [vmem:[#allocation2 + $0x3c] sm:$0xf] %v2274
        %v2276 = vld [vmem:[#allocation2 + $0x60] sm:$0xf]
        %v2277 = vsel %vm431, %v1986, %v2276
        %2278 = vst [vmem:[#allocation2 + $0x60] sm:$0xf] %v2277
        %v2279 = vld [vmem:[#allocation2 + $0x84] sm:$0xf]
        %v2280 = vsel %vm431, %v1993, %v2279
        %2281 = vst [vmem:[#allocation2 + $0x84] sm:$0xf] %v2280
        %v2282 = vld [vmem:[#allocation2 + $0xa8] sm:$0xf]
        %v2283 = vsel %vm431, %v2000, %v2282
        %2284 = vst [vmem:[#allocation2 + $0xa8] sm:$0xf] %v2283
        %v2285 = vld [vmem:[#allocation2 + $0xcc] sm:$0xf]
        %v2286 = vsel %vm431, %v2007, %v2285
        %2287 = vst [vmem:[#allocation2 + $0xcc] sm:$0xf] %v2286
        %v2288 = vld [vmem:[#allocation2 + $0xf0] sm:$0xf]
        %v2289 = vsel %vm431, %v2158, %v2288
        %2290 = vst [vmem:[#allocation2 + $0xf0] sm:$0xf] %v2289
        %2291 = vst [vmem:[%s664 + $0x1c] sm:$0xf] 0
        %2292 = vst [vmem:[#allocation2 + $0x1c] sm:$0xf] %v1906
        %2293 = vst [vmem:[#allocation2 + $0x40] sm:$0xf] %v1907
        %2294 = vst [vmem:[#allocation2 + $0x64] sm:$0xf] %v1908
        %2295 = vst [vmem:[#allocation2 + $0x88] sm:$0xf] %v1909
        %2296 = vst [vmem:[#allocation2 + $0xac] sm:$0xf] %v1910
        %2297 = vst [vmem:[#allocation2 + $0xd0] sm:$0xf] %v1911
        %2298 = vst [vmem:[#allocation2 + $0xf4] sm:$0xf] %v1912
        %2299 = vst [vmem:[%s664 + $0x20] sm:$0xf] 0
        %v2300 = vld [vmem:[#allocation2 + $0x20] sm:$0x8]
        %v2301 = vsel %vm464, 0, %v2300
        %2302 = vst [vmem:[#allocation2 + $0x20] sm:$0x8] %v2301
        %v2303 = vld [vmem:[#allocation2 + $0x44] sm:$0x8]
        %v2304 = vsel %vm464, 0, %v2303
        %2305 = vst [vmem:[#allocation2 + $0x44] sm:$0x8] %v2304
        %v2306 = vld [vmem:[#allocation2 + $0x68] sm:$0x8]
        %v2307 = vsel %vm464, 0, %v2306
        %2308 = vst [vmem:[#allocation2 + $0x68] sm:$0x8] %v2307
        %v2309 = vld [vmem:[#allocation2 + $0x8c] sm:$0x8]
        %v2310 = vsel %vm464, 0, %v2309
        %2311 = vst [vmem:[#allocation2 + $0x8c] sm:$0x8] %v2310
        %v2312 = vld [vmem:[#allocation2 + $0xb0] sm:$0x8]
        %v2313 = vsel %vm464, 0, %v2312
        %2314 = vst [vmem:[#allocation2 + $0xb0] sm:$0x8] %v2313
        %v2315 = vld [vmem:[#allocation2 + $0xd4] sm:$0x8]
        %v2316 = vsel %vm464, 0, %v2315
        %2317 = vst [vmem:[#allocation2 + $0xd4] sm:$0x8] %v2316
        %v2318 = vld [vmem:[#allocation2 + $0xf8] sm:$0x8]
        %v2319 = vsel %vm464, 0, %v2318
        %2320 = vst [vmem:[#allocation2 + $0xf8] sm:$0x8] %v2319
        %v2321 = vld [vmem:[#allocation2 + $0x11c] sm:$0x8]
        %v2322 = vsel %vm464, 0, %v2321
        %2323 = vst [vmem:[#allocation2 + $0x11c] sm:$0x8] %v2322
        %v2324 = vld [vmem:[#allocation2 + $0x20] sm:$0xf]
        %v2325 = vsel %vm525, %v2076, %v2324
        %2326 = vst [vmem:[#allocation2 + $0x20] sm:$0xf] %v2325
        %v2327 = vld [vmem:[#allocation2 + $0x44] sm:$0xf]
        %v2328 = vsel %vm525, %v2080, %v2327
        %2329 = vst [vmem:[#allocation2 + $0x44] sm:$0xf] %v2328
        %v2330 = vld [vmem:[#allocation2 + $0x68] sm:$0xf]
        %v2331 = vsel %vm525, %v2084, %v2330
        %2332 = vst [vmem:[#allocation2 + $0x68] sm:$0xf] %v2331
        %v2333 = vld [vmem:[#allocation2 + $0x8c] sm:$0xf]
        %v2334 = vsel %vm525, %v2088, %v2333
        %2335 = vst [vmem:[#allocation2 + $0x8c] sm:$0xf] %v2334
        %v2336 = vld [vmem:[#allocation2 + $0xb0] sm:$0xf]
        %v2337 = vsel %vm525, %v2092, %v2336
        %2338 = vst [vmem:[#allocation2 + $0xb0] sm:$0xf] %v2337
        %v2339 = vld [vmem:[#allocation2 + $0xd4] sm:$0xf]
        %v2340 = vsel %vm525, %v2096, %v2339
        %2341 = vst [vmem:[#allocation2 + $0xd4] sm:$0xf] %v2340
        %v2342 = vld [vmem:[#allocation2 + $0xf8] sm:$0xf]
        %v2343 = vsel %vm525, %v2219, %v2342
        %2344 = vst [vmem:[#allocation2 + $0xf8] sm:$0xf] %v2343
        %v2345 = vld [vmem:[#allocation2] sm:$0xff]
        %v2346 = vld [vmem:[#allocation2 + $0x8] sm:$0xff]
        %v2347 = vld [vmem:[#allocation2 + $0x10] sm:$0xff]
        %v2348 = vld [vmem:[#allocation2 + $0x18] sm:$0xff]
        %v2349 = vld [vmem:[#allocation2 + $0x20] sm:$0xf]
        %v2350 = vld [vmem:[#allocation2 + $0x24] sm:$0xff]
        %v2351 = vld [vmem:[#allocation2 + $0x2c] sm:$0xff]
        %v2352 = vld [vmem:[#allocation2 + $0x34] sm:$0xff]
        %v2353 = vld [vmem:[#allocation2 + $0x3c] sm:$0xff]
        %v2354 = vld [vmem:[#allocation2 + $0x44] sm:$0xf]
        %v2355 = vld [vmem:[#allocation2 + $0x48] sm:$0xff]
        %v2356 = vld [vmem:[#allocation2 + $0x50] sm:$0xff]
        %v2357 = vld [vmem:[#allocation2 + $0x58] sm:$0xff]
        %v2358 = vld [vmem:[#allocation2 + $0x60] sm:$0xff]
        %v2359 = vld [vmem:[#allocation2 + $0x68] sm:$0xf]
        %v2360 = vld [vmem:[#allocation2 + $0x6c] sm:$0xff]
        %v2361 = vld [vmem:[#allocation2 + $0x74] sm:$0xff]
        %v2362 = vld [vmem:[#allocation2 + $0x7c] sm:$0xff]
        %v2363 = vld [vmem:[#allocation2 + $0x84] sm:$0xff]
        %v2364 = vld [vmem:[#allocation2 + $0x8c] sm:$0xf]
        %v2365 = vld [vmem:[#allocation2 + $0x90] sm:$0xff]
        %v2366 = vld [vmem:[#allocation2 + $0x98] sm:$0xff]
        %v2367 = vld [vmem:[#allocation2 + $0xa0] sm:$0xff]
        %v2368 = vld [vmem:[#allocation2 + $0xa8] sm:$0xff]
        %v2369 = vld [vmem:[#allocation2 + $0xb0] sm:$0xf]
        %v2370 = vld [vmem:[#allocation2 + $0xb4] sm:$0xff]
        %v2371 = vld [vmem:[#allocation2 + $0xbc] sm:$0xff]
        %v2372 = vld [vmem:[#allocation2 + $0xc4] sm:$0xff]
        %v2373 = vld [vmem:[#allocation2 + $0xcc] sm:$0xff]
        %v2374 = vld [vmem:[#allocation2 + $0xd4] sm:$0xf]
        %v2375 = vld [vmem:[#allocation2 + $0xd8] sm:$0xff]
        %v2376 = vld [vmem:[#allocation2 + $0xe0] sm:$0xff]
        %v2377 = vld [vmem:[#allocation2 + $0xe8] sm:$0xff]
        %v2378 = vld [vmem:[#allocation2 + $0xf0] sm:$0xff]
        %v2379 = vld [vmem:[#allocation2 + $0xf8] sm:$0xf]
        %v2380 = vld [vmem:[#allocation2 + $0xfc] sm:$0xff]
        %v2381 = vld [vmem:[#allocation2 + $0x104] sm:$0xff]
        %v2382 = vld [vmem:[#allocation2 + $0x10c] sm:$0xff]
        %v2383 = vld [vmem:[#allocation2 + $0x114] sm:$0xff]
        %v2384 = vld [vmem:[#allocation2 + $0x11c] sm:$0xf]
        %v2385 = vld [vmem:[#allocation9] sm:$0xf]
        %v2386 = vld [vmem:[#allocation9 + $0x4] sm:$0xf]
        %v2387 = vld [vmem:[#allocation9 + $0x8] sm:$0xf]
        %v2388 = vld [vmem:[#allocation9 + $0xc] sm:$0xf]
        %v2389 = vld [vmem:[#allocation9 + $0x10] sm:$0xf]
        %v2390 = vld [vmem:[#allocation9 + $0x14] sm:$0xf]
        %v2391 = vld [vmem:[#allocation9 + $0x18] sm:$0xf]
        %v2392 = vld [vmem:[#allocation9 + $0x1c] sm:$0xf]
        %v2393 = vld [vmem:[#allocation9 + $0x20] sm:$0xf]
        %v2394 = vld [vmem:[#allocation9 + $0x24] sm:$0xf]
        %v2395 = vld [vmem:[#allocation9 + $0x28] sm:$0xf]
        %v2396 = vld [vmem:[#allocation9 + $0x2c] sm:$0xf]
        %v2397 = vld [vmem:[#allocation9 + $0x30] sm:$0xf]
        %v2398 = vld [vmem:[#allocation9 + $0x34] sm:$0xf]
        %v2399 = vld [vmem:[#allocation9 + $0x38] sm:$0xf]
        %v2400 = vld [vmem:[#allocation9 + $0x3c] sm:$0xf]
        %v2401 = vld [vmem:[#allocation9 + $0x40] sm:$0xf]
        %v2402 = vld [vmem:[#allocation9 + $0x44] sm:$0xf]
        %v2403 = vld [vmem:[#allocation9 + $0x48] sm:$0xf]
        %v2404 = vld [vmem:[#allocation9 + $0x4c] sm:$0xf]
        %v2405 = vld [vmem:[#allocation9 + $0x50] sm:$0xf]
        %v2406 = vld [vmem:[#allocation9 + $0x54] sm:$0xf]
        %v2407 = vld [vmem:[#allocation9 + $0x58] sm:$0xf]
        %v2408 = vld [vmem:[#allocation9 + $0x5c] sm:$0xf]
        %v2409 = vld [vmem:[#allocation9 + $0x60] sm:$0xf]
        %v2410 = vld [vmem:[#allocation9 + $0x64] sm:$0xf]
        %v2411 = vld [vmem:[#allocation9 + $0x68] sm:$0xf]
        %v2412 = vld [vmem:[#allocation9 + $0x6c] sm:$0xf]
        %v2413 = vld [vmem:[#allocation9 + $0x70] sm:$0xf]
        %v2414 = vld [vmem:[#allocation9 + $0x74] sm:$0xf]
        %v2415 = vld [vmem:[#allocation9 + $0x78] sm:$0xf]
        %v2416 = vld [vmem:[#allocation9 + $0x7c] sm:$0xf]
        %v2417 = vld [vmem:[#allocation9 + $0x80] sm:$0xf]
        %v2418 = vld [vmem:[#allocation9 + $0x84] sm:$0xf]
        %v2419 = vld [vmem:[#allocation9 + $0x88] sm:$0xf]
        %v2420 = vld [vmem:[#allocation9 + $0x8c] sm:$0xf]
        %v2421 = vld [vmem:[#allocation9 + $0x90] sm:$0xf]
        %v2422 = vld [vmem:[#allocation9 + $0x94] sm:$0xf]
        %v2423 = vld [vmem:[#allocation9 + $0x98] sm:$0xf]
        %v2424 = vld [vmem:[#allocation9 + $0x9c] sm:$0xf]
        %v2425 = vld [vmem:[#allocation9 + $0xa0] sm:$0xf]
        %v2426 = vld [vmem:[#allocation9 + $0xa4] sm:$0xf]
        %v2427 = vld [vmem:[#allocation9 + $0xa8] sm:$0xf]
        %v2428 = vld [vmem:[#allocation9 + $0xac] sm:$0xf]
        %v2429 = vld [vmem:[#allocation9 + $0xb0] sm:$0xf]
        %v2430 = vld [vmem:[#allocation9 + $0xb4] sm:$0xf]
        %v2431 = vld [vmem:[#allocation9 + $0xb8] sm:$0xf]
        %v2432 = vld [vmem:[#allocation9 + $0xbc] sm:$0xf]
        %v2433 = vld [vmem:[#allocation9 + $0xc0] sm:$0xf]
        %v2434 = vld [vmem:[#allocation9 + $0xc4] sm:$0xf]
        %v2435 = vld [vmem:[#allocation9 + $0xc8] sm:$0xf]
        %v2436 = vld [vmem:[#allocation9 + $0xcc] sm:$0xf]
        %v2437 = vld [vmem:[#allocation9 + $0xd0] sm:$0xf]
        %v2438 = vld [vmem:[#allocation9 + $0xd4] sm:$0xf]
        %v2439 = vld [vmem:[#allocation9 + $0xd8] sm:$0xf]
        %v2440 = vld [vmem:[#allocation9 + $0xdc] sm:$0xf]
        %v2441 = vld [vmem:[#allocation9 + $0xe0] sm:$0xf]
        %v2442 = vld [vmem:[#allocation9 + $0xe4] sm:$0xf]
        %v2443 = vld [vmem:[#allocation9 + $0xe8] sm:$0xf]
        %v2444 = vld [vmem:[#allocation9 + $0xec] sm:$0xf]
        %v2445 = vld [vmem:[#allocation9 + $0xf0] sm:$0xf]
        %v2446 = vld [vmem:[#allocation9 + $0xf4] sm:$0xf]
        %v2447 = vld [vmem:[#allocation9 + $0xf8] sm:$0xf]
        %v2448 = vld [vmem:[#allocation9 + $0xfc] sm:$0xf]
        %v2449 = vld [vmem:[#allocation9 + $0x100] sm:$0xf]
        %v2450 = vld [vmem:[#allocation9 + $0x104] sm:$0xf]
        %v2451 = vld [vmem:[#allocation9 + $0x108] sm:$0xf]
        %v2452 = vld [vmem:[#allocation9 + $0x10c] sm:$0xf]
        %v2453 = vld [vmem:[#allocation9 + $0x110] sm:$0xf]
        %v2454 = vld [vmem:[#allocation9 + $0x114] sm:$0xf]
        %v2455 = vld [vmem:[#allocation9 + $0x118] sm:$0xf]
        %v2456 = vld [vmem:[#allocation9 + $0x11c] sm:$0xf]
        %v2457 = vld [vmem:[#allocation9 + $0x120] sm:$0xf]
        %v2458 = vld [vmem:[#allocation9 + $0x124] sm:$0xf]
        %v2459 = vld [vmem:[#allocation9 + $0x128] sm:$0xf]
        %v2460 = vld [vmem:[#allocation9 + $0x12c] sm:$0xf]
        %v2461 = vld [vmem:[#allocation9 + $0x130] sm:$0xf]
        %v2462 = vld [vmem:[#allocation9 + $0x134] sm:$0xf]
        %v2463 = vld [vmem:[#allocation9 + $0x138] sm:$0xf]
        %v2464 = vld [vmem:[#allocation9 + $0x13c] sm:$0xf]
        %v2465 = vld [vmem:[#allocation9 + $0x140] sm:$0xf]
        %v2466 = vld [vmem:[#allocation9 + $0x144] sm:$0xf]
        %v2467 = vld [vmem:[#allocation9 + $0x148] sm:$0xf]
        %v2468 = vld [vmem:[#allocation9 + $0x14c] sm:$0xf]
        %v2469 = vld [vmem:[#allocation9 + $0x150] sm:$0xf]
        %v2470 = vld [vmem:[#allocation9 + $0x154] sm:$0xf]
        %v2471 = vld [vmem:[#allocation9 + $0x158] sm:$0xf]
        %v2472 = vld [vmem:[#allocation9 + $0x15c] sm:$0xf]
        %v2473 = vld [vmem:[#allocation9 + $0x160] sm:$0xf]
        %v2474 = vld [vmem:[#allocation9 + $0x164] sm:$0xf]
        %v2475 = vld [vmem:[#allocation9 + $0x168] sm:$0xf]
        %v2476 = vld [vmem:[#allocation9 + $0x16c] sm:$0xf]
        %v2477 = vld [vmem:[#allocation9 + $0x170] sm:$0xf]
        %v2478 = vld [vmem:[#allocation9 + $0x174] sm:$0xf]
        %v2479 = vld [vmem:[#allocation9 + $0x178] sm:$0xf]
        %v2480 = vld [vmem:[#allocation9 + $0x17c] sm:$0xf]
        %v2481 = vld [vmem:[#allocation9 + $0x180] sm:$0xf]
        %v2482 = vld [vmem:[#allocation9 + $0x184] sm:$0xf]
        %v2483 = vld [vmem:[#allocation9 + $0x188] sm:$0xf]
        %v2484 = vld [vmem:[#allocation9 + $0x18c] sm:$0xf]
        %v2485 = vld [vmem:[#allocation9 + $0x190] sm:$0xf]
        %v2486 = vld [vmem:[#allocation9 + $0x194] sm:$0xf]
        %v2487 = vld [vmem:[#allocation9 + $0x198] sm:$0xf]
        %v2488 = vld [vmem:[#allocation9 + $0x19c] sm:$0xf]
        %v2489 = vld [vmem:[#allocation9 + $0x1a0] sm:$0xf]
        %v2490 = vld [vmem:[#allocation9 + $0x1a4] sm:$0xf]
        %v2491 = vld [vmem:[#allocation9 + $0x1a8] sm:$0xf]
        %v2492 = vld [vmem:[#allocation9 + $0x1ac] sm:$0xf]
        %v2493 = vld [vmem:[#allocation9 + $0x1b0] sm:$0xf]
        %v2494 = vld [vmem:[#allocation9 + $0x1b4] sm:$0xf]
        %v2495 = vld [vmem:[#allocation9 + $0x1b8] sm:$0xf]
        %v2496 = vld [vmem:[#allocation9 + $0x1bc] sm:$0xf]
        %v2497 = vld [vmem:[#allocation9 + $0x1c0] sm:$0xf]
        %v2498 = vld [vmem:[#allocation9 + $0x1c4] sm:$0xf]
        %v2499 = vld [vmem:[#allocation9 + $0x1c8] sm:$0xf]
        %v2500 = vld [vmem:[#allocation9 + $0x1cc] sm:$0xf]
        %v2501 = vld [vmem:[#allocation9 + $0x1d0] sm:$0xf]
        %v2502 = vld [vmem:[#allocation9 + $0x1d4] sm:$0xf]
        %v2503 = vld [vmem:[#allocation9 + $0x1d8] sm:$0xf]
        %v2504 = vld [vmem:[#allocation9 + $0x1dc] sm:$0xf]
        %v2505 = vld [vmem:[#allocation9 + $0x1e0] sm:$0xf]
        %v2506 = vld [vmem:[#allocation9 + $0x1e4] sm:$0xf]
        %v2507 = vld [vmem:[#allocation9 + $0x1e8] sm:$0xf]
        %v2508 = vld [vmem:[#allocation9 + $0x1ec] sm:$0xf]
        %v2509 = vld [vmem:[#allocation9 + $0x1f0] sm:$0xf]
        %v2510 = vld [vmem:[#allocation9 + $0x1f4] sm:$0xf]
        %v2511 = vld [vmem:[#allocation9 + $0x1f8] sm:$0xf]
        %v2512 = vld [vmem:[#allocation9 + $0x1fc] sm:$0xf]
        %v2513 = vld [vmem:[#allocation9 + $0x200] sm:$0xf]
        %v2514 = vld [vmem:[#allocation9 + $0x204] sm:$0xf]
        %v2515 = vld [vmem:[#allocation9 + $0x208] sm:$0xf]
        %v2516 = vld [vmem:[#allocation9 + $0x20c] sm:$0xf]
        %v2517 = vld [vmem:[#allocation9 + $0x210] sm:$0xf]
        %v2518 = vld [vmem:[#allocation9 + $0x214] sm:$0xf]
        %v2519 = vld [vmem:[#allocation9 + $0x218] sm:$0xf]
        %v2520 = vld [vmem:[#allocation9 + $0x21c] sm:$0xf]
        %v2521 = vld [vmem:[#allocation9 + $0x220] sm:$0xf]
        %v2522 = vld [vmem:[#allocation9 + $0x224] sm:$0xf]
        %v2523 = vld [vmem:[#allocation9 + $0x228] sm:$0xf]
        %v2524 = vld [vmem:[#allocation9 + $0x22c] sm:$0xf]
        %v2525 = vld [vmem:[#allocation9 + $0x230] sm:$0xf]
        %v2526 = vld [vmem:[#allocation9 + $0x234] sm:$0xf]
        %v2527 = vld [vmem:[#allocation9 + $0x238] sm:$0xf]
        %v2528 = vld [vmem:[#allocation9 + $0x23c] sm:$0xf]
        %v2529 = vld [vmem:[#allocation11] sm:$0x1]
        %v2531 = vlaneseq
        %v2532 = vshrl.u32 %v2531, 7
        %v2533 = vsub.s32 0, %v2532
        %v2534 = vrot.slane %v2529, %v2533
        %v2576 = vunpack.c.l.b16 %v2345
        %v2577 = vunpack.c.h.b16 %v2345
        %v2578 = vunpack.c.l.b16 %v2346
        %v2579 = vunpack.c.h.b16 %v2346
        %v2580 = vunpack.c.l.b16 %v2347
        %v2581 = vunpack.c.h.b16 %v2347
        %v2582 = vunpack.c.l.b16 %v2348
        %v2583 = vunpack.c.h.b16 %v2348
        %v2584 = vunpack.c.l.b16 %v2349
        %v2585 = vunpack.c.l.b16 %v2350
        %v2586 = vunpack.c.h.b16 %v2350
        %v2587 = vunpack.c.l.b16 %v2351
        %v2588 = vunpack.c.h.b16 %v2351
        %v2589 = vunpack.c.l.b16 %v2352
        %v2590 = vunpack.c.h.b16 %v2352
        %v2591 = vunpack.c.l.b16 %v2353
        %v2592 = vunpack.c.h.b16 %v2353
        %v2593 = vunpack.c.l.b16 %v2354
        %v2594 = vunpack.c.l.b16 %v2355
        %v2595 = vunpack.c.h.b16 %v2355
        %v2596 = vunpack.c.l.b16 %v2356
        %v2597 = vunpack.c.h.b16 %v2356
        %v2598 = vunpack.c.l.b16 %v2357
        %v2599 = vunpack.c.h.b16 %v2357
        %v2600 = vunpack.c.l.b16 %v2358
        %v2601 = vunpack.c.h.b16 %v2358
        %v2602 = vunpack.c.l.b16 %v2359
        %v2603 = vunpack.c.l.b16 %v2360
        %v2604 = vunpack.c.h.b16 %v2360
        %v2605 = vunpack.c.l.b16 %v2361
        %v2606 = vunpack.c.h.b16 %v2361
        %v2607 = vunpack.c.l.b16 %v2362
        %v2608 = vunpack.c.h.b16 %v2362
        %v2609 = vunpack.c.l.b16 %v2363
        %v2610 = vunpack.c.h.b16 %v2363
        %v2611 = vunpack.c.l.b16 %v2364
        %v2612 = vunpack.c.l.b16 %v2365
        %v2613 = vunpack.c.h.b16 %v2365
        %v2614 = vunpack.c.l.b16 %v2366
        %v2615 = vunpack.c.h.b16 %v2366
        %v2616 = vunpack.c.l.b16 %v2367
        %v2617 = vunpack.c.h.b16 %v2367
        %v2618 = vunpack.c.l.b16 %v2368
        %v2619 = vunpack.c.h.b16 %v2368
        %v2620 = vunpack.c.l.b16 %v2369
        %v2621 = vunpack.c.l.b16 %v2370
        %v2622 = vunpack.c.h.b16 %v2370
        %v2623 = vunpack.c.l.b16 %v2371
        %v2624 = vunpack.c.h.b16 %v2371
        %v2625 = vunpack.c.l.b16 %v2372
        %v2626 = vunpack.c.h.b16 %v2372
        %v2627 = vunpack.c.l.b16 %v2373
        %v2628 = vunpack.c.h.b16 %v2373
        %v2629 = vunpack.c.l.b16 %v2374
        %v2630 = vunpack.c.l.b16 %v2375
        %v2631 = vunpack.c.h.b16 %v2375
        %v2632 = vunpack.c.l.b16 %v2376
        %v2633 = vunpack.c.h.b16 %v2376
        %v2634 = vunpack.c.l.b16 %v2377
        %v2635 = vunpack.c.h.b16 %v2377
        %v2636 = vunpack.c.l.b16 %v2378
        %v2637 = vunpack.c.h.b16 %v2378
        %v2638 = vunpack.c.l.b16 %v2379
        %v2639 = vunpack.c.l.b16 %v2380
        %v2640 = vunpack.c.h.b16 %v2380
        %v2641 = vunpack.c.l.b16 %v2381
        %v2642 = vunpack.c.h.b16 %v2381
        %v2643 = vunpack.c.l.b16 %v2382
        %v2644 = vunpack.c.h.b16 %v2382
        %v2645 = vunpack.c.l.b16 %v2383
        %v2646 = vunpack.c.h.b16 %v2383
        %v2647 = vunpack.c.l.b16 %v2384
        %v2648 = vpack.c.b16 %v2585, %v2576
        %v2649 = vpack.c.b16 %v2586, %v2577
        %v2650 = vpack.c.b16 %v2587, %v2578
        %v2651 = vpack.c.b16 %v2588, %v2579
        %v2652 = vpack.c.b16 %v2589, %v2580
        %v2653 = vpack.c.b16 %v2590, %v2581
        %v2654 = vpack.c.b16 %v2591, %v2582
        %v2655 = vpack.c.b16 %v2592, %v2583
        %v2656 = vpack.c.b16 %v2593, %v2584
        %v2657 = vpack.c.b16 %v2603, %v2594
        %v2658 = vpack.c.b16 %v2604, %v2595
        %v2659 = vpack.c.b16 %v2605, %v2596
        %v2660 = vpack.c.b16 %v2606, %v2597
        %v2661 = vpack.c.b16 %v2607, %v2598
        %v2662 = vpack.c.b16 %v2608, %v2599
        %v2663 = vpack.c.b16 %v2609, %v2600
        %v2664 = vpack.c.b16 %v2610, %v2601
        %v2665 = vpack.c.b16 %v2611, %v2602
        %v2666 = vpack.c.b16 %v2621, %v2612
        %v2667 = vpack.c.b16 %v2622, %v2613
        %v2668 = vpack.c.b16 %v2623, %v2614
        %v2669 = vpack.c.b16 %v2624, %v2615
        %v2670 = vpack.c.b16 %v2625, %v2616
        %v2671 = vpack.c.b16 %v2626, %v2617
        %v2672 = vpack.c.b16 %v2627, %v2618
        %v2673 = vpack.c.b16 %v2628, %v2619
        %v2674 = vpack.c.b16 %v2629, %v2620
        %v2675 = vpack.c.b16 %v2639, %v2630
        %v2676 = vpack.c.b16 %v2640, %v2631
        %v2677 = vpack.c.b16 %v2641, %v2632
        %v2678 = vpack.c.b16 %v2642, %v2633
        %v2679 = vpack.c.b16 %v2643, %v2634
        %v2680 = vpack.c.b16 %v2644, %v2635
        %v2681 = vpack.c.b16 %v2645, %v2636
        %v2682 = vpack.c.b16 %v2646, %v2637
        %v2683 = vpack.c.b16 %v2647, %v2638
        %v2864 = vunpack.c.l.b16 %v2385
        %v2865 = vunpack.c.l.b16 %v2386
        %v2866 = vunpack.c.l.b16 %v2387
        %v2867 = vunpack.c.l.b16 %v2388
        %v2868 = vunpack.c.l.b16 %v2389
        %v2869 = vunpack.c.l.b16 %v2390
        %v2870 = vunpack.c.l.b16 %v2391
        %v2871 = vunpack.c.l.b16 %v2392
        %v2872 = vunpack.c.l.b16 %v2393
        %v2873 = vunpack.c.l.b16 %v2394
        %v2874 = vunpack.c.l.b16 %v2395
        %v2875 = vunpack.c.l.b16 %v2396
        %v2876 = vunpack.c.l.b16 %v2397
        %v2877 = vunpack.c.l.b16 %v2398
        %v2878 = vunpack.c.l.b16 %v2399
        %v2879 = vunpack.c.l.b16 %v2400
        %v2880 = vunpack.c.l.b16 %v2401
        %v2881 = vunpack.c.l.b16 %v2402
        %v2882 = vunpack.c.l.b16 %v2403
        %v2883 = vunpack.c.l.b16 %v2404
        %v2884 = vunpack.c.l.b16 %v2405
        %v2885 = vunpack.c.l.b16 %v2406
        %v2886 = vunpack.c.l.b16 %v2407
        %v2887 = vunpack.c.l.b16 %v2408
        %v2888 = vunpack.c.l.b16 %v2409
        %v2889 = vunpack.c.l.b16 %v2410
        %v2890 = vunpack.c.l.b16 %v2411
        %v2891 = vunpack.c.l.b16 %v2412
        %v2892 = vunpack.c.l.b16 %v2413
        %v2893 = vunpack.c.l.b16 %v2414
        %v2894 = vunpack.c.l.b16 %v2415
        %v2895 = vunpack.c.l.b16 %v2416
        %v2896 = vunpack.c.l.b16 %v2417
        %v2897 = vunpack.c.l.b16 %v2418
        %v2898 = vunpack.c.l.b16 %v2419
        %v2899 = vunpack.c.l.b16 %v2420
        %v2900 = vunpack.c.l.b16 %v2421
        %v2901 = vunpack.c.l.b16 %v2422
        %v2902 = vunpack.c.l.b16 %v2423
        %v2903 = vunpack.c.l.b16 %v2424
        %v2904 = vunpack.c.l.b16 %v2425
        %v2905 = vunpack.c.l.b16 %v2426
        %v2906 = vunpack.c.l.b16 %v2427
        %v2907 = vunpack.c.l.b16 %v2428
        %v2908 = vunpack.c.l.b16 %v2429
        %v2909 = vunpack.c.l.b16 %v2430
        %v2910 = vunpack.c.l.b16 %v2431
        %v2911 = vunpack.c.l.b16 %v2432
        %v2912 = vunpack.c.l.b16 %v2433
        %v2913 = vunpack.c.l.b16 %v2434
        %v2914 = vunpack.c.l.b16 %v2435
        %v2915 = vunpack.c.l.b16 %v2436
        %v2916 = vunpack.c.l.b16 %v2437
        %v2917 = vunpack.c.l.b16 %v2438
        %v2918 = vunpack.c.l.b16 %v2439
        %v2919 = vunpack.c.l.b16 %v2440
        %v2920 = vunpack.c.l.b16 %v2441
        %v2921 = vunpack.c.l.b16 %v2442
        %v2922 = vunpack.c.l.b16 %v2443
        %v2923 = vunpack.c.l.b16 %v2444
        %v2924 = vunpack.c.l.b16 %v2445
        %v2925 = vunpack.c.l.b16 %v2446
        %v2926 = vunpack.c.l.b16 %v2447
        %v2927 = vunpack.c.l.b16 %v2448
        %v2928 = vunpack.c.l.b16 %v2449
        %v2929 = vunpack.c.l.b16 %v2450
        %v2930 = vunpack.c.l.b16 %v2451
        %v2931 = vunpack.c.l.b16 %v2452
        %v2932 = vunpack.c.l.b16 %v2453
        %v2933 = vunpack.c.l.b16 %v2454
        %v2934 = vunpack.c.l.b16 %v2455
        %v2935 = vunpack.c.l.b16 %v2456
        %v2936 = vunpack.c.l.b16 %v2457
        %v2937 = vunpack.c.l.b16 %v2458
        %v2938 = vunpack.c.l.b16 %v2459
        %v2939 = vunpack.c.l.b16 %v2460
        %v2940 = vunpack.c.l.b16 %v2461
        %v2941 = vunpack.c.l.b16 %v2462
        %v2942 = vunpack.c.l.b16 %v2463
        %v2943 = vunpack.c.l.b16 %v2464
        %v2944 = vunpack.c.l.b16 %v2465
        %v2945 = vunpack.c.l.b16 %v2466
        %v2946 = vunpack.c.l.b16 %v2467
        %v2947 = vunpack.c.l.b16 %v2468
        %v2948 = vunpack.c.l.b16 %v2469
        %v2949 = vunpack.c.l.b16 %v2470
        %v2950 = vunpack.c.l.b16 %v2471
        %v2951 = vunpack.c.l.b16 %v2472
        %v2952 = vunpack.c.l.b16 %v2473
        %v2953 = vunpack.c.l.b16 %v2474
        %v2954 = vunpack.c.l.b16 %v2475
        %v2955 = vunpack.c.l.b16 %v2476
        %v2956 = vunpack.c.l.b16 %v2477
        %v2957 = vunpack.c.l.b16 %v2478
        %v2958 = vunpack.c.l.b16 %v2479
        %v2959 = vunpack.c.l.b16 %v2480
        %v2960 = vunpack.c.l.b16 %v2481
        %v2961 = vunpack.c.l.b16 %v2482
        %v2962 = vunpack.c.l.b16 %v2483
        %v2963 = vunpack.c.l.b16 %v2484
        %v2964 = vunpack.c.l.b16 %v2485
        %v2965 = vunpack.c.l.b16 %v2486
        %v2966 = vunpack.c.l.b16 %v2487
        %v2967 = vunpack.c.l.b16 %v2488
        %v2968 = vunpack.c.l.b16 %v2489
        %v2969 = vunpack.c.l.b16 %v2490
        %v2970 = vunpack.c.l.b16 %v2491
        %v2971 = vunpack.c.l.b16 %v2492
        %v2972 = vunpack.c.l.b16 %v2493
        %v2973 = vunpack.c.l.b16 %v2494
        %v2974 = vunpack.c.l.b16 %v2495
        %v2975 = vunpack.c.l.b16 %v2496
        %v2976 = vunpack.c.l.b16 %v2497
        %v2977 = vunpack.c.l.b16 %v2498
        %v2978 = vunpack.c.l.b16 %v2499
        %v2979 = vunpack.c.l.b16 %v2500
        %v2980 = vunpack.c.l.b16 %v2501
        %v2981 = vunpack.c.l.b16 %v2502
        %v2982 = vunpack.c.l.b16 %v2503
        %v2983 = vunpack.c.l.b16 %v2504
        %v2984 = vunpack.c.l.b16 %v2505
        %v2985 = vunpack.c.l.b16 %v2506
        %v2986 = vunpack.c.l.b16 %v2507
        %v2987 = vunpack.c.l.b16 %v2508
        %v2988 = vunpack.c.l.b16 %v2509
        %v2989 = vunpack.c.l.b16 %v2510
        %v2990 = vunpack.c.l.b16 %v2511
        %v2991 = vunpack.c.l.b16 %v2512
        %v2992 = vunpack.c.l.b16 %v2513
        %v2993 = vunpack.c.l.b16 %v2514
        %v2994 = vunpack.c.l.b16 %v2515
        %v2995 = vunpack.c.l.b16 %v2516
        %v2996 = vunpack.c.l.b16 %v2517
        %v2997 = vunpack.c.l.b16 %v2518
        %v2998 = vunpack.c.l.b16 %v2519
        %v2999 = vunpack.c.l.b16 %v2520
        %v3000 = vunpack.c.l.b16 %v2521
        %v3001 = vunpack.c.l.b16 %v2522
        %v3002 = vunpack.c.l.b16 %v2523
        %v3003 = vunpack.c.l.b16 %v2524
        %v3004 = vunpack.c.l.b16 %v2525
        %v3005 = vunpack.c.l.b16 %v2526
        %v3006 = vunpack.c.l.b16 %v2527
        %v3007 = vunpack.c.l.b16 %v2528
        %v3008 = vpack.c.b16 %v2865, %v2864
        %v3009 = vpack.c.b16 %v2867, %v2866
        %v3010 = vpack.c.b16 %v2869, %v2868
        %v3011 = vpack.c.b16 %v2871, %v2870
        %v3012 = vpack.c.b16 %v2873, %v2872
        %v3013 = vpack.c.b16 %v2875, %v2874
        %v3014 = vpack.c.b16 %v2877, %v2876
        %v3015 = vpack.c.b16 %v2879, %v2878
        %v3016 = vpack.c.b16 %v2881, %v2880
        %v3017 = vpack.c.b16 %v2883, %v2882
        %v3018 = vpack.c.b16 %v2885, %v2884
        %v3019 = vpack.c.b16 %v2887, %v2886
        %v3020 = vpack.c.b16 %v2889, %v2888
        %v3021 = vpack.c.b16 %v2891, %v2890
        %v3022 = vpack.c.b16 %v2893, %v2892
        %v3023 = vpack.c.b16 %v2895, %v2894
        %v3024 = vpack.c.b16 %v2897, %v2896
        %v3025 = vpack.c.b16 %v2899, %v2898
        %v3026 = vpack.c.b16 %v2901, %v2900
        %v3027 = vpack.c.b16 %v2903, %v2902
        %v3028 = vpack.c.b16 %v2905, %v2904
        %v3029 = vpack.c.b16 %v2907, %v2906
        %v3030 = vpack.c.b16 %v2909, %v2908
        %v3031 = vpack.c.b16 %v2911, %v2910
        %v3032 = vpack.c.b16 %v2913, %v2912
        %v3033 = vpack.c.b16 %v2915, %v2914
        %v3034 = vpack.c.b16 %v2917, %v2916
        %v3035 = vpack.c.b16 %v2919, %v2918
        %v3036 = vpack.c.b16 %v2921, %v2920
        %v3037 = vpack.c.b16 %v2923, %v2922
        %v3038 = vpack.c.b16 %v2925, %v2924
        %v3039 = vpack.c.b16 %v2927, %v2926
        %v3040 = vpack.c.b16 %v2929, %v2928
        %v3041 = vpack.c.b16 %v2931, %v2930
        %v3042 = vpack.c.b16 %v2933, %v2932
        %v3043 = vpack.c.b16 %v2935, %v2934
        %v3044 = vpack.c.b16 %v2937, %v2936
        %v3045 = vpack.c.b16 %v2939, %v2938
        %v3046 = vpack.c.b16 %v2941, %v2940
        %v3047 = vpack.c.b16 %v2943, %v2942
        %v3048 = vpack.c.b16 %v2945, %v2944
        %v3049 = vpack.c.b16 %v2947, %v2946
        %v3050 = vpack.c.b16 %v2949, %v2948
        %v3051 = vpack.c.b16 %v2951, %v2950
        %v3052 = vpack.c.b16 %v2953, %v2952
        %v3053 = vpack.c.b16 %v2955, %v2954
        %v3054 = vpack.c.b16 %v2957, %v2956
        %v3055 = vpack.c.b16 %v2959, %v2958
        %v3056 = vpack.c.b16 %v2961, %v2960
        %v3057 = vpack.c.b16 %v2963, %v2962
        %v3058 = vpack.c.b16 %v2965, %v2964
        %v3059 = vpack.c.b16 %v2967, %v2966
        %v3060 = vpack.c.b16 %v2969, %v2968
        %v3061 = vpack.c.b16 %v2971, %v2970
        %v3062 = vpack.c.b16 %v2973, %v2972
        %v3063 = vpack.c.b16 %v2975, %v2974
        %v3064 = vpack.c.b16 %v2977, %v2976
        %v3065 = vpack.c.b16 %v2979, %v2978
        %v3066 = vpack.c.b16 %v2981, %v2980
        %v3067 = vpack.c.b16 %v2983, %v2982
        %v3068 = vpack.c.b16 %v2985, %v2984
        %v3069 = vpack.c.b16 %v2987, %v2986
        %v3070 = vpack.c.b16 %v2989, %v2988
        %v3071 = vpack.c.b16 %v2991, %v2990
        %v3072 = vpack.c.b16 %v2993, %v2992
        %v3073 = vpack.c.b16 %v2995, %v2994
        %v3074 = vpack.c.b16 %v2997, %v2996
        %v3075 = vpack.c.b16 %v2999, %v2998
        %v3076 = vpack.c.b16 %v3001, %v3000
        %v3077 = vpack.c.b16 %v3003, %v3002
        %v3078 = vpack.c.b16 %v3005, %v3004
        %v3079 = vpack.c.b16 %v3007, %v3006
        %3152 = vmatprep.subr.bf16.mxu0 0
        %3153 = vmatpush1.bf16.msra.mxu0 %v3008
        %3154 = vmatprep.subr.bf16.mxu0 0
        %3155 = vmatpush1.bf16.msra.mxu0 %v3009
        %3156 = vmatprep.subr.bf16.mxu0 0
        %3157 = vmatpush1.bf16.msra.mxu0 %v3010
        %3158 = vmatprep.subr.bf16.mxu0 0
        %3159 = vmatpush1.bf16.msra.mxu0 %v3011
        %3160 = vmatprep.subr.bf16.mxu0 0
        %3161 = vmatpush1.bf16.msra.mxu0 %v3012
        %3162 = vmatprep.subr.bf16.mxu0 0
        %3163 = vmatpush1.bf16.msra.mxu0 %v3013
        %3164 = vmatprep.subr.bf16.mxu0 0
        %3165 = vmatpush1.bf16.msra.mxu0 %v3014
        %3166 = vmatprep.subr.bf16.mxu0 0
        %3167 = vmatpush1.bf16.msra.mxu0 %v3015
        %3168 = vmatprep.subr.bf16.mxu0 0
        %3169 = vmatpush1.bf16.msra.mxu0 %v3016
        %3170 = vmatprep.subr.bf16.mxu0 0
        %3171 = vmatpush1.bf16.msra.mxu0 %v3017
        %3172 = vmatprep.subr.bf16.mxu0 0
        %3173 = vmatpush1.bf16.msra.mxu0 %v3018
        %3174 = vmatprep.subr.bf16.mxu0 0
        %3175 = vmatpush1.bf16.msra.mxu0 %v3019
        %3176 = vmatprep.subr.bf16.mxu0 0
        %3177 = vmatpush1.bf16.msra.mxu0 %v3020
        %3178 = vmatprep.subr.bf16.mxu0 0
        %3179 = vmatpush1.bf16.msra.mxu0 %v3021
        %3180 = vmatprep.subr.bf16.mxu0 0
        %3181 = vmatpush1.bf16.msra.mxu0 %v3022
        %3182 = vmatprep.subr.bf16.mxu0 0
        %3183 = vmatpush1.bf16.msra.mxu0 %v3023
        %3184 = vmatprep.mubr.bf16.mxu0 %v2649
        %3185 = vmatmul.mubr.bf16.gmra.mrb[0].mxu0 %v2648
        %v3186 = vpop.f32.mrb[0].mxu0
        %v3187 = vadd.f32 %v2534, %v3186
        %v3188 = vpop.f32.mrb[0].mxu0
        %v3189 = vpop.f32.mrb[0].mxu0
        %v3190 = vadd.f32 %v2534, %v3189
        %v3191 = vpop.f32.mrb[0].mxu0
        %3192 = vmatprep.mubr.bf16.mxu0 %v2658
        %3193 = vmatmul.mubr.bf16.gmra.mrb[0].mxu0 %v2657
        %v3194 = vpop.f32.mrb[0].mxu0
        %v3195 = vadd.f32 %v2534, %v3194
        %v3196 = vpop.f32.mrb[0].mxu0
        %v3197 = vpop.f32.mrb[0].mxu0
        %v3198 = vadd.f32 %v2534, %v3197
        %v3199 = vpop.f32.mrb[0].mxu0
        %3200 = vmatprep.mubr.bf16.mxu0 %v2667
        %3201 = vmatmul.mubr.bf16.gmra.mrb[0].mxu0 %v2666
        %v3202 = vpop.f32.mrb[0].mxu0
        %v3203 = vadd.f32 %v2534, %v3202
        %v3204 = vpop.f32.mrb[0].mxu0
        %v3205 = vpop.f32.mrb[0].mxu0
        %v3206 = vadd.f32 %v2534, %v3205
        %v3207 = vpop.f32.mrb[0].mxu0
        %3208 = vmatprep.mubr.bf16.mxu0 %v2676
        %3209 = vmatmul.mubr.bf16.gmra.mrb[0].mxu0 %v2675
        %v3210 = vpop.f32.mrb[0].mxu0
        %v3211 = vadd.f32 %v2534, %v3210
        %v3212 = vpop.f32.mrb[0].mxu0
        %v3213 = vpop.f32.mrb[0].mxu0
        %v3214 = vadd.f32 %v2534, %v3213
        %v3215 = vpop.f32.mrb[0].mxu0
        %3216 = vdwg.mxu0
        %3217 = vmatprep.subr.bf16.mxu0 0
        %3218 = vmatpush1.bf16.msra.mxu0 %v3024
        %3219 = vmatprep.subr.bf16.mxu0 0
        %3220 = vmatpush1.bf16.msra.mxu0 %v3025
        %3221 = vmatprep.subr.bf16.mxu0 0
        %3222 = vmatpush1.bf16.msra.mxu0 %v3026
        %3223 = vmatprep.subr.bf16.mxu0 0
        %3224 = vmatpush1.bf16.msra.mxu0 %v3027
        %3225 = vmatprep.subr.bf16.mxu0 0
        %3226 = vmatpush1.bf16.msra.mxu0 %v3028
        %3227 = vmatprep.subr.bf16.mxu0 0
        %3228 = vmatpush1.bf16.msra.mxu0 %v3029
        %3229 = vmatprep.subr.bf16.mxu0 0
        %3230 = vmatpush1.bf16.msra.mxu0 %v3030
        %3231 = vmatprep.subr.bf16.mxu0 0
        %3232 = vmatpush1.bf16.msra.mxu0 %v3031
        %3233 = vmatprep.subr.bf16.mxu0 0
        %3234 = vmatpush1.bf16.msra.mxu0 %v3032
        %3235 = vmatprep.subr.bf16.mxu0 0
        %3236 = vmatpush1.bf16.msra.mxu0 %v3033
        %3237 = vmatprep.subr.bf16.mxu0 0
        %3238 = vmatpush1.bf16.msra.mxu0 %v3034
        %3239 = vmatprep.subr.bf16.mxu0 0
        %3240 = vmatpush1.bf16.msra.mxu0 %v3035
        %3241 = vmatprep.subr.bf16.mxu0 0
        %3242 = vmatpush1.bf16.msra.mxu0 %v3036
        %3243 = vmatprep.subr.bf16.mxu0 0
        %3244 = vmatpush1.bf16.msra.mxu0 %v3037
        %3245 = vmatprep.subr.bf16.mxu0 0
        %3246 = vmatpush1.bf16.msra.mxu0 %v3038
        %3247 = vmatprep.subr.bf16.mxu0 0
        %3248 = vmatpush1.bf16.msra.mxu0 %v3039
        %3249 = vmatprep.mubr.bf16.mxu0 %v2651
        %3250 = vmatmul.mubr.bf16.gmra.mrb[0].mxu0 %v2650
        %v3251 = vpop.f32.mrb[0].mxu0
        %v3252 = vadd.f32 %v3187, %v3251
        %v3253 = vpop.f32.mrb[0].mxu0
        %v3254 = vpop.f32.mrb[0].mxu0
        %v3255 = vadd.f32 %v3190, %v3254
        %v3256 = vpop.f32.mrb[0].mxu0
        %3257 = vmatprep.mubr.bf16.mxu0 %v2660
        %3258 = vmatmul.mubr.bf16.gmra.mrb[0].mxu0 %v2659
        %v3259 = vpop.f32.mrb[0].mxu0
        %v3260 = vadd.f32 %v3195, %v3259
        %v3261 = vpop.f32.mrb[0].mxu0
        %v3262 = vpop.f32.mrb[0].mxu0
        %v3263 = vadd.f32 %v3198, %v3262
        %v3264 = vpop.f32.mrb[0].mxu0
        %3265 = vmatprep.mubr.bf16.mxu0 %v2669
        %3266 = vmatmul.mubr.bf16.gmra.mrb[0].mxu0 %v2668
        %v3267 = vpop.f32.mrb[0].mxu0
        %v3268 = vadd.f32 %v3203, %v3267
        %v3269 = vpop.f32.mrb[0].mxu0
        %v3270 = vpop.f32.mrb[0].mxu0
        %v3271 = vadd.f32 %v3206, %v3270
        %v3272 = vpop.f32.mrb[0].mxu0
        %3273 = vmatprep.mubr.bf16.mxu0 %v2678
        %3274 = vmatmul.mubr.bf16.gmra.mrb[0].mxu0 %v2677
        %v3275 = vpop.f32.mrb[0].mxu0
        %v3276 = vadd.f32 %v3211, %v3275
        %v3277 = vpop.f32.mrb[0].mxu0
        %v3278 = vpop.f32.mrb[0].mxu0
        %v3279 = vadd.f32 %v3214, %v3278
        %v3280 = vpop.f32.mrb[0].mxu0
        %3281 = vdwg.mxu0
        %3282 = vmatprep.subr.bf16.mxu0 0
        %3283 = vmatpush1.bf16.msra.mxu0 %v3040
        %3284 = vmatprep.subr.bf16.mxu0 0
        %3285 = vmatpush1.bf16.msra.mxu0 %v3041
        %3286 = vmatprep.subr.bf16.mxu0 0
        %3287 = vmatpush1.bf16.msra.mxu0 %v3042
        %3288 = vmatprep.subr.bf16.mxu0 0
        %3289 = vmatpush1.bf16.msra.mxu0 %v3043
        %3290 = vmatprep.subr.bf16.mxu0 0
        %3291 = vmatpush1.bf16.msra.mxu0 %v3044
        %3292 = vmatprep.subr.bf16.mxu0 0
        %3293 = vmatpush1.bf16.msra.mxu0 %v3045
        %3294 = vmatprep.subr.bf16.mxu0 0
        %3295 = vmatpush1.bf16.msra.mxu0 %v3046
        %3296 = vmatprep.subr.bf16.mxu0 0
        %3297 = vmatpush1.bf16.msra.mxu0 %v3047
        %3298 = vmatprep.subr.bf16.mxu0 0
        %3299 = vmatpush1.bf16.msra.mxu0 %v3048
        %3300 = vmatprep.subr.bf16.mxu0 0
        %3301 = vmatpush1.bf16.msra.mxu0 %v3049
        %3302 = vmatprep.subr.bf16.mxu0 0
        %3303 = vmatpush1.bf16.msra.mxu0 %v3050
        %3304 = vmatprep.subr.bf16.mxu0 0
        %3305 = vmatpush1.bf16.msra.mxu0 %v3051
        %3306 = vmatprep.subr.bf16.mxu0 0
        %3307 = vmatpush1.bf16.msra.mxu0 %v3052
        %3308 = vmatprep.subr.bf16.mxu0 0
        %3309 = vmatpush1.bf16.msra.mxu0 %v3053
        %3310 = vmatprep.subr.bf16.mxu0 0
        %3311 = vmatpush1.bf16.msra.mxu0 %v3054
        %3312 = vmatprep.subr.bf16.mxu0 0
        %3313 = vmatpush1.bf16.msra.mxu0 %v3055
        %3314 = vmatprep.mubr.bf16.mxu0 %v2653
        %3315 = vmatmul.mubr.bf16.gmra.mrb[0].mxu0 %v2652
        %v3316 = vpop.f32.mrb[0].mxu0
        %v3317 = vadd.f32 %v3252, %v3316
        %v3318 = vpop.f32.mrb[0].mxu0
        %v3319 = vpop.f32.mrb[0].mxu0
        %v3320 = vadd.f32 %v3255, %v3319
        %v3321 = vpop.f32.mrb[0].mxu0
        %3322 = vmatprep.mubr.bf16.mxu0 %v2662
        %3323 = vmatmul.mubr.bf16.gmra.mrb[0].mxu0 %v2661
        %v3324 = vpop.f32.mrb[0].mxu0
        %v3325 = vadd.f32 %v3260, %v3324
        %v3326 = vpop.f32.mrb[0].mxu0
        %v3327 = vpop.f32.mrb[0].mxu0
        %v3328 = vadd.f32 %v3263, %v3327
        %v3329 = vpop.f32.mrb[0].mxu0
        %3330 = vmatprep.mubr.bf16.mxu0 %v2671
        %3331 = vmatmul.mubr.bf16.gmra.mrb[0].mxu0 %v2670
        %v3332 = vpop.f32.mrb[0].mxu0
        %v3333 = vadd.f32 %v3268, %v3332
        %v3334 = vpop.f32.mrb[0].mxu0
        %v3335 = vpop.f32.mrb[0].mxu0
        %v3336 = vadd.f32 %v3271, %v3335
        %v3337 = vpop.f32.mrb[0].mxu0
        %3338 = vmatprep.mubr.bf16.mxu0 %v2680
        %3339 = vmatmul.mubr.bf16.gmra.mrb[0].mxu0 %v2679
        %v3340 = vpop.f32.mrb[0].mxu0
        %v3341 = vadd.f32 %v3276, %v3340
        %v3342 = vpop.f32.mrb[0].mxu0
        %v3343 = vpop.f32.mrb[0].mxu0
        %v3344 = vadd.f32 %v3279, %v3343
        %v3345 = vpop.f32.mrb[0].mxu0
        %3346 = vdwg.mxu0
        %3347 = vmatprep.subr.bf16.mxu0 0
        %3348 = vmatpush1.bf16.msra.mxu0 %v3056
        %3349 = vmatprep.subr.bf16.mxu0 0
        %3350 = vmatpush1.bf16.msra.mxu0 %v3057
        %3351 = vmatprep.subr.bf16.mxu0 0
        %3352 = vmatpush1.bf16.msra.mxu0 %v3058
        %3353 = vmatprep.subr.bf16.mxu0 0
        %3354 = vmatpush1.bf16.msra.mxu0 %v3059
        %3355 = vmatprep.subr.bf16.mxu0 0
        %3356 = vmatpush1.bf16.msra.mxu0 %v3060
        %3357 = vmatprep.subr.bf16.mxu0 0
        %3358 = vmatpush1.bf16.msra.mxu0 %v3061
        %3359 = vmatprep.subr.bf16.mxu0 0
        %3360 = vmatpush1.bf16.msra.mxu0 %v3062
        %3361 = vmatprep.subr.bf16.mxu0 0
        %3362 = vmatpush1.bf16.msra.mxu0 %v3063
        %3363 = vmatprep.subr.bf16.mxu0 0
        %3364 = vmatpush1.bf16.msra.mxu0 %v3064
        %3365 = vmatprep.subr.bf16.mxu0 0
        %3366 = vmatpush1.bf16.msra.mxu0 %v3065
        %3367 = vmatprep.subr.bf16.mxu0 0
        %3368 = vmatpush1.bf16.msra.mxu0 %v3066
        %3369 = vmatprep.subr.bf16.mxu0 0
        %3370 = vmatpush1.bf16.msra.mxu0 %v3067
        %3371 = vmatprep.subr.bf16.mxu0 0
        %3372 = vmatpush1.bf16.msra.mxu0 %v3068
        %3373 = vmatprep.subr.bf16.mxu0 0
        %3374 = vmatpush1.bf16.msra.mxu0 %v3069
        %3375 = vmatprep.subr.bf16.mxu0 0
        %3376 = vmatpush1.bf16.msra.mxu0 %v3070
        %3377 = vmatprep.subr.bf16.mxu0 0
        %3378 = vmatpush1.bf16.msra.mxu0 %v3071
        %3379 = vmatprep.mubr.bf16.mxu0 %v2655
        %3380 = vmatmul.mubr.bf16.gmra.mrb[0].mxu0 %v2654
        %v3381 = vpop.f32.mrb[0].mxu0
        %v3382 = vadd.f32 %v3317, %v3381
        %v3383 = vpop.f32.mrb[0].mxu0
        %v3384 = vpop.f32.mrb[0].mxu0
        %v3385 = vadd.f32 %v3320, %v3384
        %v3386 = vpop.f32.mrb[0].mxu0
        %3387 = vmatprep.mubr.bf16.mxu0 %v2664
        %3388 = vmatmul.mubr.bf16.gmra.mrb[0].mxu0 %v2663
        %v3389 = vpop.f32.mrb[0].mxu0
        %v3390 = vadd.f32 %v3325, %v3389
        %v3391 = vpop.f32.mrb[0].mxu0
        %v3392 = vpop.f32.mrb[0].mxu0
        %v3393 = vadd.f32 %v3328, %v3392
        %v3394 = vpop.f32.mrb[0].mxu0
        %3395 = vmatprep.mubr.bf16.mxu0 %v2673
        %3396 = vmatmul.mubr.bf16.gmra.mrb[0].mxu0 %v2672
        %v3397 = vpop.f32.mrb[0].mxu0
        %v3398 = vadd.f32 %v3333, %v3397
        %v3399 = vpop.f32.mrb[0].mxu0
        %v3400 = vpop.f32.mrb[0].mxu0
        %v3401 = vadd.f32 %v3336, %v3400
        %v3402 = vpop.f32.mrb[0].mxu0
        %3403 = vmatprep.mubr.bf16.mxu0 %v2682
        %3404 = vmatmul.mubr.bf16.gmra.mrb[0].mxu0 %v2681
        %v3405 = vpop.f32.mrb[0].mxu0
        %v3406 = vadd.f32 %v3341, %v3405
        %v3407 = vpop.f32.mrb[0].mxu0
        %v3408 = vpop.f32.mrb[0].mxu0
        %v3409 = vadd.f32 %v3344, %v3408
        %v3410 = vpop.f32.mrb[0].mxu0
        %3411 = vdwg.mxu0
        %3412 = vmatprep.subr.bf16.mxu0 0
        %3413 = vmatpush1.bf16.msra.mxu0 %v3072
        %3414 = vmatprep.subr.bf16.mxu0 0
        %3415 = vmatpush1.bf16.msra.mxu0 %v3073
        %3416 = vmatprep.subr.bf16.mxu0 0
        %3417 = vmatpush1.bf16.msra.mxu0 %v3074
        %3418 = vmatprep.subr.bf16.mxu0 0
        %3419 = vmatpush1.bf16.msra.mxu0 %v3075
        %3420 = vmatprep.subr.bf16.mxu0 0
        %3421 = vmatpush1.bf16.msra.mxu0 %v3076
        %3422 = vmatprep.subr.bf16.mxu0 0
        %3423 = vmatpush1.bf16.msra.mxu0 %v3077
        %3424 = vmatprep.subr.bf16.mxu0 0
        %3425 = vmatpush1.bf16.msra.mxu0 %v3078
        %3426 = vmatprep.subr.bf16.mxu0 0
        %3427 = vmatpush1.bf16.msra.mxu0 %v3079
        %3428 = vmatprep.subr.bf16.mxu0 0
        %3429 = vmatpush1.bf16.msra.mxu0 0
        %3430 = vmatprep.subr.bf16.mxu0 0
        %3431 = vmatpush1.bf16.msra.mxu0 0
        %3432 = vmatprep.subr.bf16.mxu0 0
        %3433 = vmatpush1.bf16.msra.mxu0 0
        %3434 = vmatprep.subr.bf16.mxu0 0
        %3435 = vmatpush1.bf16.msra.mxu0 0
        %3436 = vmatprep.subr.bf16.mxu0 0
        %3437 = vmatpush1.bf16.msra.mxu0 0
        %3438 = vmatprep.subr.bf16.mxu0 0
        %3439 = vmatpush1.bf16.msra.mxu0 0
        %3440 = vmatprep.subr.bf16.mxu0 0
        %3441 = vmatpush1.bf16.msra.mxu0 0
        %3442 = vmatprep.subr.bf16.mxu0 0
        %3443 = vmatpush1.bf16.msra.mxu0 0
        %3444 = vmatprep.mubr.bf16.mxu0 0
        %3445 = vmatmul.mubr.bf16.gmra.mrb[0].mxu0 %v2656
        %v3446 = vpop.f32.mrb[0].mxu0
        %v3447 = vadd.f32 %v3382, %v3446
        %v3448 = vpop.f32.mrb[0].mxu0
        %v3449 = vpop.f32.mrb[0].mxu0
        %v3450 = vadd.f32 %v3385, %v3449
        %v3451 = vpop.f32.mrb[0].mxu0
        %3452 = vmatprep.mubr.bf16.mxu0 0
        %3453 = vmatmul.mubr.bf16.gmra.mrb[0].mxu0 %v2665
        %v3454 = vpop.f32.mrb[0].mxu0
        %v3455 = vadd.f32 %v3390, %v3454
        %v3456 = vpop.f32.mrb[0].mxu0
        %v3457 = vpop.f32.mrb[0].mxu0
        %v3458 = vadd.f32 %v3393, %v3457
        %v3459 = vpop.f32.mrb[0].mxu0
        %3460 = vmatprep.mubr.bf16.mxu0 0
        %3461 = vmatmul.mubr.bf16.gmra.mrb[0].mxu0 %v2674
        %v3462 = vpop.f32.mrb[0].mxu0
        %v3463 = vadd.f32 %v3398, %v3462
        %v3464 = vpop.f32.mrb[0].mxu0
        %v3465 = vpop.f32.mrb[0].mxu0
        %v3466 = vadd.f32 %v3401, %v3465
        %v3467 = vpop.f32.mrb[0].mxu0
        %3468 = vmatprep.mubr.bf16.mxu0 0
        %3469 = vmatmul.mubr.bf16.gmra.mrb[0].mxu0 %v2683
        %v3470 = vpop.f32.mrb[0].mxu0
        %v3471 = vadd.f32 %v3406, %v3470
        %v3472 = vpop.f32.mrb[0].mxu0
        %v3473 = vpop.f32.mrb[0].mxu0
        %v3474 = vadd.f32 %v3409, %v3473
        %v3475 = vpop.f32.mrb[0].mxu0
        %3476 = vdwg.mxu0
        %v3477 = vmax.f32 %v3447, 0.0
        %v3478 = vmax.f32 %v3450, 0.0
        %v3479 = vmax.f32 %v3455, 0.0
        %v3480 = vmax.f32 %v3458, 0.0
        %v3481 = vmax.f32 %v3463, 0.0
        %v3482 = vmax.f32 %v3466, 0.0
        %v3483 = vmax.f32 %v3471, 0.0
        %v3484 = vmax.f32 %v3474, 0.0
        %v3485 = vunpack.c.l.bf16 %v336
        %v3486 = vunpack.c.l.bf16 %v337
        %v3487 = vunpack.c.l.bf16 %v338
        %v3488 = vunpack.c.l.bf16 %v339
        %v3489 = vunpack.c.l.bf16 %v340
        %v3490 = vunpack.c.l.bf16 %v341
        %v3491 = vunpack.c.l.bf16 %v342
        %v3492 = vunpack.c.l.bf16 %v343
        %v3493 = vadd.f32 %v3477, %v3485
        %v3494 = vadd.f32 %v3478, %v3486
        %v3495 = vadd.f32 %v3479, %v3487
        %v3496 = vadd.f32 %v3480, %v3488
        %v3497 = vadd.f32 %v3481, %v3489
        %v3498 = vadd.f32 %v3482, %v3490
        %v3499 = vadd.f32 %v3483, %v3491
        %v3500 = vadd.f32 %v3484, %v3492
        %v3501 = vpack.c.bf16 %v3493, %v3493
        %v3502 = vpack.c.bf16 %v3494, %v3494
        %v3503 = vpack.c.bf16 %v3495, %v3495
        %v3504 = vpack.c.bf16 %v3496, %v3496
        %v3505 = vpack.c.bf16 %v3497, %v3497
        %v3506 = vpack.c.bf16 %v3498, %v3498
        %v3507 = vpack.c.bf16 %v3499, %v3499
        %v3508 = vpack.c.bf16 %v3500, %v3500
        %3509 = vst [vmem:[%s328] sm:$0xf] %v3501
        %3510 = vst [vmem:[%s328 + $0x4] sm:$0xf] %v3502
        %3511 = vst [vmem:[%s328 + $0x8] sm:$0xf] %v3503
        %3512 = vst [vmem:[%s328 + $0xc] sm:$0xf] %v3504
        %3513 = vst [vmem:[%s328 + $0x10] sm:$0xf] %v3505
        %3514 = vst [vmem:[%s328 + $0x14] sm:$0xf] %v3506
        %3515 = vst [vmem:[%s328 + $0x18] sm:$0xf] %v3507
        %3516 = vst [vmem:[%s328 + $0x1c] sm:$0xf] %v3508
        %v3517 = vadd.f32 %v3493, %v3494
        %v3518 = vadd.f32 %v3517, %v3495
        %v3519 = vadd.f32 %v3518, %v3496
        %v3520 = vadd.f32 %v3519, %v3497
        %v3521 = vadd.f32 %v3520, %v3498
        %v3522 = vadd.f32 %v3521, %v3499
        %v3523 = vadd.f32 %v3522, %v3500
        %v3524 = vrot.slane %v3523, 4
        %v3525 = vadd.f32 %v3523, %v3524
        %v3526 = vrot.slane %v3525, 2
        %v3527 = vadd.f32 %v3525, %v3526
        %v3528 = vrot.slane %v3527, 1
        %v3529 = vadd.f32 %v3527, %v3528
        %3530 = vst [vmem:[%s334] sm:$0x1] %v3529
        %s3531 = sand.u32 %s147, 1
        %s3532 = scalar_lea.sflag [#allocation5], %s3531
        %s3533 = sand.u32 %s147, 1
        %s3534 = smul.addr %s3533, 32
        %s3535 = scalar_lea.vmem [#allocation12], %s3534
        %s3536 = sand.u32 %s173, 1
        %s3537 = scalar_lea.sflag [#allocation14], %s3536
        %s3538 = sand.u32 %s173, 1
        %s3539 = scalar_lea.vmem [#allocation13], %s3538
        // Predicated region
        $region61: #{csp_res_stage_forward.6} parent=39 // pred_check
          %p3540 = pneg %p157
        $region62: #{csp_res_stage_forward.6} parent=39 // pred_check_branch
          %3542 = sbr.rel (%p3540) target = $region64
        $region63: #{csp_res_stage_forward.6} parent=39 // pred_region
          %s3544 = ssub.s32 512, 512
          %3545 = vsyncadd %s3532, %s3544
          %s3546 = smul.addr %s29, 8
          %s3547 = smul.addr %s3546, 64
          %s3548 = scalar_lea.hbm %s5, %s3547
          %s3549 = sshll.u32 %s3535, 4
          %s3550 = int_to_ptr.vmem [resolvable:$true] %s3549
          %3555 = dma.vmem_to_hbm [thread:$0]  %s3550, 512, %s3548, %s3532, 64, 64, 4
        $region64: #{csp_res_stage_forward.6} parent=39 // pred_fallthru
          _
        // Predicated region
        $region65: #{csp_res_stage_forward.6} parent=39 // pred_check
          %p3556 = pneg %p183
        $region66: #{csp_res_stage_forward.6} parent=39 // pred_check_branch
          %3558 = sbr.rel (%p3556) target = $region68
        $region67: #{csp_res_stage_forward.6} parent=39 // pred_region
          %s3560 = ssub.s32 16, 16
          %3561 = vsyncadd %s3537, %s3560
          %s3562 = smul.addr %s29, 16
          %s3563 = scalar_lea.hbm %s6, %s3562
          %s3565 = sshll.u32 %s3539, 4
          %s3566 = int_to_ptr.vmem [resolvable:$true] %s3565
          %3568 = dma.vmem_to_hbm [thread:$0]  %s3566, 16, %s3563, %s3537
        $region68: #{csp_res_stage_forward.6} parent=39 // pred_fallthru
          _
      $region40: #{csp_res_stage_forward.6} parent=5 // pred_fallthru
        _
      %p3569 = scmp.le.s32.totalorder 2, %s24
      // Predicated region
      $region69: #{csp_res_stage_forward.6} parent=5 // pred_check
        %p3570 = pneg %p3569
      $region70: #{csp_res_stage_forward.6} parent=5 // pred_check_branch
        %3572 = sbr.rel (%p3570) target = $region72
      $region71: #{csp_res_stage_forward.6} parent=5 // pred_region
        %s3573 = ssub.s32 %s24, 2
        // Predicated region
        $region73: #{csp_res_stage_forward.6} parent=71 // pred_check
          %p3574 = pneg %p163
        $region74: #{csp_res_stage_forward.6} parent=71 // pred_check_branch
          %3576 = sbr.rel (%p3574) target = $region76
        $region75: #{csp_res_stage_forward.6} parent=71 // pred_region
          %s3577 = sand.u32 %s148, 1
          %s3578 = scalar_lea.sflag [#allocation5], %s3577
          %s3579 = sand.u32 %s148, 1
          %s3580 = smul.addr %s3579, 32
          %s3581 = scalar_lea.vmem [#allocation12], %s3580
          %3582 = dma.done %s3578, 512
        $region76: #{csp_res_stage_forward.6} parent=71 // pred_fallthru
          _
        // Predicated region
        $region77: #{csp_res_stage_forward.6} parent=71 // pred_check
          %p3583 = pneg %p189
        $region78: #{csp_res_stage_forward.6} parent=71 // pred_check_branch
          %3585 = sbr.rel (%p3583) target = $region80
        $region79: #{csp_res_stage_forward.6} parent=71 // pred_region
          %s3586 = sand.u32 %s174, 1
          %s3587 = scalar_lea.sflag [#allocation14], %s3586
          %s3588 = sand.u32 %s174, 1
          %s3589 = scalar_lea.vmem [#allocation13], %s3588
          %3590 = dma.done %s3587, 16
        $region80: #{csp_res_stage_forward.6} parent=71 // pred_fallthru
          _
      $region72: #{csp_res_stage_forward.6} parent=5 // pred_fallthru
        _
    $region6: #{csp_res_stage_forward.6} parent=1 // loop_footer
      %s28 = sadd.s32 1, %s24
    $region7: #{csp_res_stage_forward.6} parent=1 // loop_footer_branch
      %23 = sbr.rel target = $region3
    $region8: #{csp_res_stage_forward.6} parent=1 // loop_exit
      _
    %3591 = vsyncpa [#allocation4], 1
    %s3592 = scalar_lea.sflag [#allocation4], 1
    %3593 = vsyncpa %s3592, 1
    %3594 = vsyncpa [#allocation7], 1
    %3595 = vsyncpa [#allocation10], 1
    %3596 = vsyncpa [#allocation5], 1
    %s3597 = scalar_lea.sflag [#allocation5], 1
    %3598 = vsyncpa %s3597, 1
    %3599 = vsyncpa [#allocation14], 1
    %s3600 = scalar_lea.sflag [#allocation14], 1
    %3601 = vsyncpa %s3600, 1

</llo_original>
